<compile_context>
chip_gen: v5e
topology: v5e:2x2
jax: 0.10.0
libtpu: 0.0.40
codegen_flags: <defaults>
</compile_context>

<pallas_src>
import math

import jax
import jax.numpy as jnp
from jax.experimental import pallas as pl
from jax.experimental.pallas import tpu as pltpu


# ---------------------------------------------------------------------------
# Kernel
# ---------------------------------------------------------------------------
def _feature_agg_kernel(x_ref,
                        w1_ref, b1_ref,
                        w2_ref, b2_ref,
                        w3_ref, b3_ref,
                        out_ref):
    # Block shapes (leading batch dim of size 1 indexed away):
    #   x   : (1, C0, TM) bf16, TM = tile_n * K, lanes (point-major, k-minor)
    #   out : (1, H3, tile_n) f32
    x = x_ref[0]                                       # (C0, TM) bf16

    tile_n = out_ref.shape[2]
    k_nbrs = x.shape[-1] // tile_n

    # ---- layer 1: single bf16 MXU dot over [feature | diff | dist] ----------
    h = jnp.dot(w1_ref[...], x, preferred_element_type=jnp.float32)   # (H1, TM)
    h = jnp.maximum(h + b1_ref[...], 0.0)                             # BN bias + ReLU

    # ---- layer 2 -------------------------------------------------------------
    h = jnp.dot(w2_ref[...], h.astype(jnp.bfloat16),
                preferred_element_type=jnp.float32)                   # (H2, TM)
    h = jnp.maximum(h + b2_ref[...], 0.0)

    # ---- layer 3: emitted in (TM, H3) orientation so the K-sum is a cheap ----
    # sublane-group reduce (k is minor in the row index; K == 8 == sublane group)
    h = jax.lax.dot_general(h.astype(jnp.bfloat16), w3_ref[...],
                            (((0,), (0,)), ((), ())),
                            preferred_element_type=jnp.float32)       # (TM, H3)
    h = jnp.maximum(h + b3_ref[...], 0.0)

    # ---- reduction='sum' over the k neighbours -------------------------------
    h = h.reshape(tile_n, k_nbrs, h.shape[-1])
    hs = jnp.sum(h, axis=1)                                           # (tile_n, H3)

    out_ref[0] = hs.T                                                 # (H3, tile_n)


# ---------------------------------------------------------------------------
# Host-side parameter preparation (BN fold, transpose, bf16 cast)
# ---------------------------------------------------------------------------
def _fold_bn(w, bn, eps=1e-5):
    """y = BN(W x) == (scale*W) x + bias  (inference mode)."""
    scale = bn["gamma"] / jnp.sqrt(bn["var"] + eps)
    w_f = w * scale[:, None]
    b_f = bn["beta"] - bn["mean"] * scale
    return w_f, b_f


def _prepare_kernel_params(params):
    w1, b1 = _fold_bn(params["w1"], params["bn1"])
    w2, b2 = _fold_bn(params["w2"], params["bn2"])
    w3, b3 = _fold_bn(params["w3"], params["bn3"])
    return (w1.astype(jnp.bfloat16), b1[:, None],           # (H1, C0), (H1, 1)
            w2.astype(jnp.bfloat16), b2[:, None],           # (H2, H1), (H2, 1)
            jnp.transpose(w3).astype(jnp.bfloat16),          # (H2, H3) for layer-3 flip
            b3[None, :])                                      # (1, H3)


# ---------------------------------------------------------------------------
# Public wrapper — PyTorch layouts in and out
# ---------------------------------------------------------------------------
def feature_aggregation(src_xyz, tgt_xyz, feature, params, *, tile_n=1024):
    """Pallas FeatureAggregation forward.

    Args (PyTorch layout):
        src_xyz : (B, 3, N, K)
        tgt_xyz : (B, 3, N)
        feature : (B, C_in, N, K)
    Returns:
        (B, out_channels, N)  float32
    """
    B, three, N, K = src_xyz.shape
    assert three == 3
    C_in = feature.shape[1]
    C0 = C_in + 4
    H3 = params["w3"].shape[0]

    tile_n = min(tile_n, N)
    assert N % tile_n == 0, "N must be a multiple of tile_n"
    assert tile_n == N or tile_n % 128 == 0, "tile_n must be 128-aligned (or == N)"
    TM = tile_n * K

    # Build [feature | diff | dist] once on the host side — XLA fuses the
    # subtract / square / reduce / concat / bf16-cast into a single HBM pass,
    # and the kernel then reads half the bytes (bf16) with no in-kernel concat.
    diff = src_xyz - tgt_xyz[:, :, :, None]                       # (B, 3, N, K)
    dist = jnp.sum(diff * diff, axis=1, keepdims=True)            # (B, 1, N, K)
    x = jnp.concatenate([feature, diff, dist], axis=1)            # (B, C0, N, K)
    x = x.astype(jnp.bfloat16).reshape(B, C0, N * K)              # lane-dense

    w1, b1, w2, b2, w3io, b3 = _prepare_kernel_params(params)

    def full(a):
        return pl.BlockSpec(a.shape, lambda bi, ni, _nd=a.ndim: (0,) * _nd)

    out = pl.pallas_call(
        _feature_agg_kernel,
        out_shape=jax.ShapeDtypeStruct((B, H3, N), jnp.float32),
        grid_spec=pltpu.PrefetchScalarGridSpec(
            num_scalar_prefetch=0,
            grid=(B, N // tile_n),
            in_specs=[
                pl.BlockSpec((1, C0, TM), lambda bi, ni: (bi, 0, ni)),
                full(w1), full(b1),
                full(w2), full(b2),
                full(w3io), full(b3),
            ],
            out_specs=pl.BlockSpec((1, H3, tile_n), lambda bi, ni: (bi, 0, ni)),
        ),
        compiler_params=pltpu.CompilerParams(
            dimension_semantics=("parallel", "parallel"),
            vmem_limit_bytes=32 * 1024 * 1024,
        ),
    )(x, w1, b1, w2, b2, w3io, b3)

    return out                                                    # (B, H3, N)


# ---------------------------------------------------------------------------
# Parameter construction + pure-JAX reference (mirrors the PyTorch module)
# ---------------------------------------------------------------------------
def make_params(key, in_channels, mlp_channels=(64, 64, 64)):
    """Xavier-uniform 1x1-conv weights + default (eval-mode) BatchNorm stats."""
    def xavier(k, fan_out, fan_in):
        bound = math.sqrt(6.0 / (fan_in + fan_out))
        return jax.random.uniform(k, (fan_out, fan_in), jnp.float32,
                                  minval=-bound, maxval=bound)

    def bn(h):
        return dict(gamma=jnp.ones((h,), jnp.float32),
                    beta=jnp.zeros((h,), jnp.float32),
                    mean=jnp.zeros((h,), jnp.float32),
                    var=jnp.ones((h,), jnp.float32))

    c0 = in_channels + 4                       # feature + relation (diff3 + dist1)
    h1, h2, h3 = mlp_channels
    k1, k2, k3 = jax.random.split(key, 3)
    return dict(w1=xavier(k1, h1, c0), bn1=bn(h1),
                w2=xavier(k2, h2, h1), bn2=bn(h2),
                w3=xavier(k3, h3, h2), bn3=bn(h3))


def reference_forward(src_xyz, tgt_xyz, feature, params, eps=1e-5):
    """Pure-JAX f32 reference (mirrors the PyTorch forward, eval-mode BN)."""
    diff = src_xyz - tgt_xyz[..., None]                       # (B,3,N,K)
    dist = jnp.sum(diff ** 2, axis=1, keepdims=True)          # (B,1,N,K)
    x = jnp.concatenate([feature, diff, dist], axis=1)        # (B,C+4,N,K)
    for w_name, bn_name in (("w1", "bn1"), ("w2", "bn2"), ("w3", "bn3")):
        w, bn = params[w_name], params[bn_name]
        x = jnp.einsum("oc,bcnk->bonk", w, x)
        scale = bn["gamma"] / jnp.sqrt(bn["var"] + eps)
        bias = bn["beta"] - bn["mean"] * scale
        x = x * scale[None, :, None, None] + bias[None, :, None, None]
        x = jnp.maximum(x, 0.0)
    return jnp.sum(x, axis=3)                                 # (B,H3,N)


# ---------------------------------------------------------------------------
if __name__ == "__main__":
    B, C_in, N, K = 2, 12, 512, 8
    key = jax.random.PRNGKey(0)
    k_src, k_tgt, k_feat, k_par = jax.random.split(key, 4)

    src_xyz = jax.random.normal(k_src, (B, 3, N, K), jnp.float32)
    tgt_xyz = jax.random.normal(k_tgt, (B, 3, N), jnp.float32)
    feature = jax.random.normal(k_feat, (B, C_in, N, K), jnp.float32)
    params = make_params(k_par, C_in, mlp_channels=(64, 64, 64))

    fwd = jax.jit(feature_aggregation, static_argnames=("tile_n",))
    out = fwd(src_xyz, tgt_xyz, feature, params, tile_n=1024)
    out = jax.block_until_ready(out)

    ref = reference_forward(src_xyz, tgt_xyz, feature, params)
    assert out.shape == (B, 64, N), out.shape
    max_err = float(jnp.max(jnp.abs(out - ref)))
    # bf16 matmul operands (incl. the folded relation channels) vs. an all-f32
    # reference, plus a sum over K=8 neighbours -> allow a few percent error.
    assert jnp.allclose(out, ref, rtol=5e-2, atol=3e-1), max_err

    print("KERNEL_OK")
</pallas_src>

<mosaic_0001>
module attributes {stable_mosaic.version = 11 : i64} {
  func.func @_feature_agg_kernel(%arg0: i32, %arg1: i32, %arg2: memref<1x16x4096xbf16, #tpu.memory_space<vmem>>, %arg3: memref<64x16xbf16, #tpu.memory_space<vmem>>, %arg4: memref<64x1xf32, #tpu.memory_space<vmem>>, %arg5: memref<64x64xbf16, #tpu.memory_space<vmem>>, %arg6: memref<64x1xf32, #tpu.memory_space<vmem>>, %arg7: memref<64x64xbf16, #tpu.memory_space<vmem>>, %arg8: memref<1x64xf32, #tpu.memory_space<vmem>>, %arg9: memref<1x64x512xf32, #tpu.memory_space<vmem>>) attributes {dimension_semantics = [#tpu.dimension_semantics<parallel>, #tpu.dimension_semantics<parallel>], iteration_bounds = array<i64: 2, 1>, scalar_prefetch = 0 : i64, scratch_operands = 0 : i64, tpu.core_type = #tpu.core_type<tc>, window_params = [{transform_indices = @transform_0, window_bounds = array<i64: 1, 16, 4096>}, {pipeline_mode = #tpu.pipeline_mode<synchronous>, transform_indices = @transform_1, window_bounds = array<i64: 64, 16>}, {pipeline_mode = #tpu.pipeline_mode<synchronous>, transform_indices = @transform_2, window_bounds = array<i64: 64, 1>}, {pipeline_mode = #tpu.pipeline_mode<synchronous>, transform_indices = @transform_3, window_bounds = array<i64: 64, 64>}, {pipeline_mode = #tpu.pipeline_mode<synchronous>, transform_indices = @transform_4, window_bounds = array<i64: 64, 1>}, {pipeline_mode = #tpu.pipeline_mode<synchronous>, transform_indices = @transform_5, window_bounds = array<i64: 64, 64>}, {pipeline_mode = #tpu.pipeline_mode<synchronous>, transform_indices = @transform_6, window_bounds = array<i64: 1, 64>}, {transform_indices = @transform_7, window_bounds = array<i64: 1, 64, 512>}]} {
    %c0 = arith.constant 0 : index
    %c0_0 = arith.constant 0 : index
    %c0_1 = arith.constant 0 : index
    %0 = vector.load %arg2[%c0, %c0_0, %c0_1] : memref<1x16x4096xbf16, #tpu.memory_space<vmem>>, vector<1x16x4096xbf16>
    %1 = vector.shape_cast %0 : vector<1x16x4096xbf16> to vector<16x4096xbf16>
    %c0_2 = arith.constant 0 : index
    %c0_3 = arith.constant 0 : index
    %2 = vector.load %arg3[%c0_2, %c0_3] : memref<64x16xbf16, #tpu.memory_space<vmem>>, vector<64x16xbf16>
    %cst = arith.constant dense<0.000000e+00> : vector<64x4096xf32>
    %3 = tpu.matmul %2, %1, %cst {dimension_numbers = #tpu.dot_dimension_numbers<[1], [0], [0], [1], [0, 0, 1, 1], [], []>} : vector<64x16xbf16>, vector<16x4096xbf16>, vector<64x4096xf32> -> vector<64x4096xf32>
    %c0_4 = arith.constant 0 : index
    %c0_5 = arith.constant 0 : index
    %4 = vector.load %arg4[%c0_4, %c0_5] : memref<64x1xf32, #tpu.memory_space<vmem>>, vector<64x1xf32>
    %5 = vector.broadcast %4 : vector<64x1xf32> to vector<64x4096xf32>
    %6 = arith.addf %3, %5 : vector<64x4096xf32>
    %cst_6 = arith.constant 0.000000e+00 : f32
    %7 = vector.broadcast %cst_6 : f32 to vector<64x4096xf32>
    %8 = arith.maximumf %6, %7 : vector<64x4096xf32>
    %c0_7 = arith.constant 0 : index
    %c0_8 = arith.constant 0 : index
    %9 = vector.load %arg5[%c0_7, %c0_8] : memref<64x64xbf16, #tpu.memory_space<vmem>>, vector<64x64xbf16>
    %10 = arith.truncf %8 : vector<64x4096xf32> to vector<64x4096xbf16>
    %cst_9 = arith.constant dense<0.000000e+00> : vector<64x4096xf32>
    %11 = tpu.matmul %9, %10, %cst_9 {dimension_numbers = #tpu.dot_dimension_numbers<[1], [0], [0], [1], [0, 0, 1, 1], [], []>} : vector<64x64xbf16>, vector<64x4096xbf16>, vector<64x4096xf32> -> vector<64x4096xf32>
    %c0_10 = arith.constant 0 : index
    %c0_11 = arith.constant 0 : index
    %12 = vector.load %arg6[%c0_10, %c0_11] : memref<64x1xf32, #tpu.memory_space<vmem>>, vector<64x1xf32>
    %13 = vector.broadcast %12 : vector<64x1xf32> to vector<64x4096xf32>
    %14 = arith.addf %11, %13 : vector<64x4096xf32>
    %cst_12 = arith.constant 0.000000e+00 : f32
    %15 = vector.broadcast %cst_12 : f32 to vector<64x4096xf32>
    %16 = arith.maximumf %14, %15 : vector<64x4096xf32>
    %17 = arith.truncf %16 : vector<64x4096xf32> to vector<64x4096xbf16>
    %c0_13 = arith.constant 0 : index
    %c0_14 = arith.constant 0 : index
    %18 = vector.load %arg7[%c0_13, %c0_14] : memref<64x64xbf16, #tpu.memory_space<vmem>>, vector<64x64xbf16>
    %cst_15 = arith.constant dense<0.000000e+00> : vector<4096x64xf32>
    %19 = tpu.matmul %17, %18, %cst_15 {dimension_numbers = #tpu.dot_dimension_numbers<[0], [0], [1], [1], [0, 1, 1, 1], [], []>} : vector<64x4096xbf16>, vector<64x64xbf16>, vector<4096x64xf32> -> vector<4096x64xf32>
    %c0_16 = arith.constant 0 : index
    %c0_17 = arith.constant 0 : index
    %20 = vector.load %arg8[%c0_16, %c0_17] : memref<1x64xf32, #tpu.memory_space<vmem>>, vector<1x64xf32>
    %21 = vector.broadcast %20 : vector<1x64xf32> to vector<4096x64xf32>
    %22 = arith.addf %19, %21 : vector<4096x64xf32>
    %cst_18 = arith.constant 0.000000e+00 : f32
    %23 = vector.broadcast %cst_18 : f32 to vector<4096x64xf32>
    %24 = arith.maximumf %22, %23 : vector<4096x64xf32>
    %25 = vector.shape_cast %24 : vector<4096x64xf32> to vector<512x8x64xf32>
    %cst_19 = arith.constant dense<0.000000e+00> : vector<512x64xf32>
    %26 = vector.multi_reduction <add>, %25, %cst_19 [1] : vector<512x8x64xf32> to vector<512x64xf32>
    %27 = tpu.transpose %26, [1, 0] : vector<512x64xf32> -> vector<64x512xf32>
    %c0_20 = arith.constant 0 : index
    %c0_21 = arith.constant 0 : index
    %c0_22 = arith.constant 0 : index
    %28 = vector.load %arg9[%c0_20, %c0_21, %c0_22] : memref<1x64x512xf32, #tpu.memory_space<vmem>>, vector<1x64x512xf32>
    %29 = vector.shape_cast %28 : vector<1x64x512xf32> to vector<64x512xf32>
    %30 = vector.shape_cast %27 : vector<64x512xf32> to vector<1x64x512xf32>
    tpu.vector_store %arg9[%c0_20, %c0_21, %c0_22], %30 {strides = array<i32>} : memref<1x64x512xf32, #tpu.memory_space<vmem>>, vector<1x64x512xf32>,
    return
  }
  func.func @transform_0(%arg0: i32, %arg1: i32) -> (i32, i32, i32) {
    %c0_i32 = arith.constant 0 : i32
    %c0_i32_0 = arith.constant 0 : i32
    return %arg0, %c0_i32, %arg1 : i32, i32, i32
  }
  func.func @transform_1(%arg0: i32, %arg1: i32) -> (i32, i32) {
    %c0_i32 = arith.constant 0 : i32
    %c0_i32_0 = arith.constant 0 : i32
    %c0_i32_1 = arith.constant 0 : i32
    return %c0_i32, %c0_i32_0 : i32, i32
  }
  func.func @transform_2(%arg0: i32, %arg1: i32) -> (i32, i32) {
    %c0_i32 = arith.constant 0 : i32
    %c0_i32_0 = arith.constant 0 : i32
    %c0_i32_1 = arith.constant 0 : i32
    return %c0_i32, %c0_i32_0 : i32, i32
  }
  func.func @transform_3(%arg0: i32, %arg1: i32) -> (i32, i32) {
    %c0_i32 = arith.constant 0 : i32
    %c0_i32_0 = arith.constant 0 : i32
    %c0_i32_1 = arith.constant 0 : i32
    return %c0_i32, %c0_i32_0 : i32, i32
  }
  func.func @transform_4(%arg0: i32, %arg1: i32) -> (i32, i32) {
    %c0_i32 = arith.constant 0 : i32
    %c0_i32_0 = arith.constant 0 : i32
    %c0_i32_1 = arith.constant 0 : i32
    return %c0_i32, %c0_i32_0 : i32, i32
  }
  func.func @transform_5(%arg0: i32, %arg1: i32) -> (i32, i32) {
    %c0_i32 = arith.constant 0 : i32
    %c0_i32_0 = arith.constant 0 : i32
    %c0_i32_1 = arith.constant 0 : i32
    return %c0_i32, %c0_i32_0 : i32, i32
  }
  func.func @transform_6(%arg0: i32, %arg1: i32) -> (i32, i32) {
    %c0_i32 = arith.constant 0 : i32
    %c0_i32_0 = arith.constant 0 : i32
    %c0_i32_1 = arith.constant 0 : i32
    return %c0_i32, %c0_i32_0 : i32, i32
  }
  func.func @transform_7(%arg0: i32, %arg1: i32) -> (i32, i32, i32) {
    %c0_i32 = arith.constant 0 : i32
    %c0_i32_0 = arith.constant 0 : i32
    return %arg0, %c0_i32, %arg1 : i32, i32, i32
  }
}

</mosaic_0001>

<llo_original>
// kernel: feature_aggregation.1
$region0: #{feature_aggregation.1}
  #allocation0 [shape = 'u32[]', space=smem, size = 0x4, offset = 0x4, fixed_abs, tag = 'smem constant byte address 0x4 - core index']
  #allocation1 [shape = 'u32[72,128]{1,0:T(1,128)}', space=vmem, size = 0x9000, scoped, tag = 'internal scratch']
  %s0 = inlined_call_operand.vmem [shape: bf16[2,16,4096], index: 0, kind: input, shape index: {}]
  %s1 = inlined_call_operand.vmem [shape: bf16[64,16], index: 1, kind: input, shape index: {}]
  %s2 = inlined_call_operand.vmem [shape: f32[64,1], index: 2, kind: input, shape index: {}]
  %s3 = inlined_call_operand.vmem [shape: bf16[64,64], index: 3, kind: input, shape index: {}]
  %s4 = inlined_call_operand.vmem [shape: f32[64,1], index: 4, kind: input, shape index: {}]
  %s5 = inlined_call_operand.vmem [shape: bf16[64,64], index: 5, kind: input, shape index: {}]
  %s6 = inlined_call_operand.vmem [shape: f32[1,64], index: 6, kind: input, shape index: {}]
  %s7 = inlined_call_operand.hbm [shape: f32[2,64,512], index: 7, kind: output, shape index: {}]
  %s8 = sld [smem:[#allocation0]]
  $region61: #{feature_aggregation.1} parent=0
    _
  %s10 = ssub.s32 1, %s8
  %s11 = scalar_select 0, %s10, %s8
  $region1: #{feature_aggregation.1} parent=0
    #allocation2 [shape = 'u8[262144]{0}', space=vmem, size = 0x40000, scoped, tag = 'output window, operand 0']
    #allocation3 [shape = 's32[2]{0}', space=sflag, size = 0x8, scoped, tag = 'scoped memory for feature_aggregation.1']
    %12 = vsyncpa [#allocation3], 0
    %s13 = scalar_lea.sflag [#allocation3], 1
    %14 = vsyncpa %s13, 0
    loop: start=0, step=1, limit=4
    $region2: #{feature_aggregation.1} parent=1 // loop_pre_header
      _
    $region3: #{feature_aggregation.1} parent=1 // loop_header
      %s16 = sphi 0, %s20
      %p17 = scmp.ge.s32.totalorder %s16, 4
      %s23 = sphi 0, %s35
      %s24 = sphi 0, %s31
      %s25 = sphi 0, %s23
      %s26 = sphi 0, %s24
      %s27 = sphi 0, %s25
      %s28 = sphi 0, %s26
      %s40 = sphi 0, %s42
      %s43 = sphi 0, %s40
      %s44 = sphi 0, %s43
      %s60 = sphi 0, %s44
      %s64 = sphi 0, %s64
      %s66 = sphi 0, %s64
      %s67 = sphi 0, %s66
      %s81 = sphi 0, %s67
      %s85 = sphi 0, %s85
      %s87 = sphi 0, %s85
      %s88 = sphi 0, %s87
      %s102 = sphi 0, %s88
      %s106 = sphi 0, %s106
      %s108 = sphi 0, %s106
      %s109 = sphi 0, %s108
      %s123 = sphi 0, %s109
      %s127 = sphi 0, %s127
      %s129 = sphi 0, %s127
      %s130 = sphi 0, %s129
      %s144 = sphi 0, %s130
      %s148 = sphi 0, %s148
      %s150 = sphi 0, %s148
      %s151 = sphi 0, %s150
      %s165 = sphi 0, %s151
      %s169 = sphi 0, %s169
      %s171 = sphi 0, %s169
      %s172 = sphi 0, %s171
      %s186 = sphi 0, %s172
      %s194 = sphi 0, %s196
      %s197 = sphi 0, %s194
      %s198 = sphi 0, %s197
      %s214 = sphi 0, %s198
    $region4: #{feature_aggregation.1} parent=1 // loop_header_branch
      %19 = sbr.rel (%p17) target = $region8
    $region5: #{feature_aggregation.1} parent=1 // loop_body
      %s21 = ssub.s32 %s16, 1
      %s22 = ssub.s32 %s16, 2
      %s29 = sadd.s32 1, %s24
      %p30 = scmp.ge.s32.totalorder %s29, 1
      %s31 = scalar_select %p30, 0, %s29
      %s32 = sadd.s32 1, %s23
      %s33 = scalar_select %p30, %s32, %s23
      %p34 = scmp.ge.s32.totalorder %s33, 2
      %s35 = scalar_select %p34, 0, %s33
      %s36 = ssub.s32 %s23, %s35
      %s37 = ssub.s32 %s24, %s31
      %s38 = sor.u32 %s36, %s37
      %p39 = scmp.eq.s32.totalorder %s38, 0
      %s41 = sadd.s32 %s40, 1
      %s42 = scalar_select %p39, %s40, %s41
      %p45 = pneg %p39
      %p46 = scmp.eq.s32.totalorder %s16, 1
      %p47 = por %p45, %p46
      %p48 = scmp.ne.s32.totalorder %s40, %s43
      %p49 = scmp.eq.s32.totalorder %s16, 0
      %p50 = por %p48, %p49
      %p51 = scmp.ne.s32.totalorder %s40, %s43
      %p52 = scmp.eq.s32.totalorder %s21, 1
      %p53 = por %p51, %p52
      %p54 = scmp.ne.s32.totalorder %s43, %s44
      %p55 = scmp.eq.s32.totalorder %s21, 0
      %p56 = por %p54, %p55
      %p57 = scmp.ne.s32.totalorder %s43, %s44
      %p58 = scmp.eq.s32.totalorder %s22, 1
      %p59 = por %p57, %p58
      %p61 = scmp.ne.s32.totalorder %s44, %s60
      %p62 = scmp.eq.s32.totalorder %s22, 0
      %p63 = por %p61, %p62
      %s65 = sadd.s32 %s64, 1
      %p68 = scmp.eq.s32.totalorder %s16, 1
      %p69 = scmp.ne.s32.totalorder %s64, %s66
      %p70 = scmp.eq.s32.totalorder %s16, 0
      %p71 = por %p69, %p70
      %p72 = scmp.ne.s32.totalorder %s64, %s66
      %p73 = scmp.eq.s32.totalorder %s21, 1
      %p74 = por %p72, %p73
      %p75 = scmp.ne.s32.totalorder %s66, %s67
      %p76 = scmp.eq.s32.totalorder %s21, 0
      %p77 = por %p75, %p76
      %p78 = scmp.ne.s32.totalorder %s66, %s67
      %p79 = scmp.eq.s32.totalorder %s22, 1
      %p80 = por %p78, %p79
      %p82 = scmp.ne.s32.totalorder %s67, %s81
      %p83 = scmp.eq.s32.totalorder %s22, 0
      %p84 = por %p82, %p83
      %s86 = sadd.s32 %s85, 1
      %p89 = scmp.eq.s32.totalorder %s16, 1
      %p90 = scmp.ne.s32.totalorder %s85, %s87
      %p91 = scmp.eq.s32.totalorder %s16, 0
      %p92 = por %p90, %p91
      %p93 = scmp.ne.s32.totalorder %s85, %s87
      %p94 = scmp.eq.s32.totalorder %s21, 1
      %p95 = por %p93, %p94
      %p96 = scmp.ne.s32.totalorder %s87, %s88
      %p97 = scmp.eq.s32.totalorder %s21, 0
      %p98 = por %p96, %p97
      %p99 = scmp.ne.s32.totalorder %s87, %s88
      %p100 = scmp.eq.s32.totalorder %s22, 1
      %p101 = por %p99, %p100
      %p103 = scmp.ne.s32.totalorder %s88, %s102
      %p104 = scmp.eq.s32.totalorder %s22, 0
      %p105 = por %p103, %p104
      %s107 = sadd.s32 %s106, 1
      %p110 = scmp.eq.s32.totalorder %s16, 1
      %p111 = scmp.ne.s32.totalorder %s106, %s108
      %p112 = scmp.eq.s32.totalorder %s16, 0
      %p113 = por %p111, %p112
      %p114 = scmp.ne.s32.totalorder %s106, %s108
      %p115 = scmp.eq.s32.totalorder %s21, 1
      %p116 = por %p114, %p115
      %p117 = scmp.ne.s32.totalorder %s108, %s109
      %p118 = scmp.eq.s32.totalorder %s21, 0
      %p119 = por %p117, %p118
      %p120 = scmp.ne.s32.totalorder %s108, %s109
      %p121 = scmp.eq.s32.totalorder %s22, 1
      %p122 = por %p120, %p121
      %p124 = scmp.ne.s32.totalorder %s109, %s123
      %p125 = scmp.eq.s32.totalorder %s22, 0
      %p126 = por %p124, %p125
      %s128 = sadd.s32 %s127, 1
      %p131 = scmp.eq.s32.totalorder %s16, 1
      %p132 = scmp.ne.s32.totalorder %s127, %s129
      %p133 = scmp.eq.s32.totalorder %s16, 0
      %p134 = por %p132, %p133
      %p135 = scmp.ne.s32.totalorder %s127, %s129
      %p136 = scmp.eq.s32.totalorder %s21, 1
      %p137 = por %p135, %p136
      %p138 = scmp.ne.s32.totalorder %s129, %s130
      %p139 = scmp.eq.s32.totalorder %s21, 0
      %p140 = por %p138, %p139
      %p141 = scmp.ne.s32.totalorder %s129, %s130
      %p142 = scmp.eq.s32.totalorder %s22, 1
      %p143 = por %p141, %p142
      %p145 = scmp.ne.s32.totalorder %s130, %s144
      %p146 = scmp.eq.s32.totalorder %s22, 0
      %p147 = por %p145, %p146
      %s149 = sadd.s32 %s148, 1
      %p152 = scmp.eq.s32.totalorder %s16, 1
      %p153 = scmp.ne.s32.totalorder %s148, %s150
      %p154 = scmp.eq.s32.totalorder %s16, 0
      %p155 = por %p153, %p154
      %p156 = scmp.ne.s32.totalorder %s148, %s150
      %p157 = scmp.eq.s32.totalorder %s21, 1
      %p158 = por %p156, %p157
      %p159 = scmp.ne.s32.totalorder %s150, %s151
      %p160 = scmp.eq.s32.totalorder %s21, 0
      %p161 = por %p159, %p160
      %p162 = scmp.ne.s32.totalorder %s150, %s151
      %p163 = scmp.eq.s32.totalorder %s22, 1
      %p164 = por %p162, %p163
      %p166 = scmp.ne.s32.totalorder %s151, %s165
      %p167 = scmp.eq.s32.totalorder %s22, 0
      %p168 = por %p166, %p167
      %s170 = sadd.s32 %s169, 1
      %p173 = scmp.eq.s32.totalorder %s16, 1
      %p174 = scmp.ne.s32.totalorder %s169, %s171
      %p175 = scmp.eq.s32.totalorder %s16, 0
      %p176 = por %p174, %p175
      %p177 = scmp.ne.s32.totalorder %s169, %s171
      %p178 = scmp.eq.s32.totalorder %s21, 1
      %p179 = por %p177, %p178
      %p180 = scmp.ne.s32.totalorder %s171, %s172
      %p181 = scmp.eq.s32.totalorder %s21, 0
      %p182 = por %p180, %p181
      %p183 = scmp.ne.s32.totalorder %s171, %s172
      %p184 = scmp.eq.s32.totalorder %s22, 1
      %p185 = por %p183, %p184
      %p187 = scmp.ne.s32.totalorder %s172, %s186
      %p188 = scmp.eq.s32.totalorder %s22, 0
      %p189 = por %p187, %p188
      %s190 = ssub.s32 %s23, %s35
      %s191 = ssub.s32 %s24, %s31
      %s192 = sor.u32 %s190, %s191
      %p193 = scmp.eq.s32.totalorder %s192, 0
      %s195 = sadd.s32 %s194, 1
      %s196 = scalar_select %p193, %s194, %s195
      %p199 = pneg %p193
      %p200 = scmp.eq.s32.totalorder %s16, 1
      %p201 = por %p199, %p200
      %p202 = scmp.ne.s32.totalorder %s194, %s197
      %p203 = scmp.eq.s32.totalorder %s16, 0
      %p204 = por %p202, %p203
      %p205 = scmp.ne.s32.totalorder %s194, %s197
      %p206 = scmp.eq.s32.totalorder %s21, 1
      %p207 = por %p205, %p206
      %p208 = scmp.ne.s32.totalorder %s197, %s198
      %p209 = scmp.eq.s32.totalorder %s21, 0
      %p210 = por %p208, %p209
      %p211 = scmp.ne.s32.totalorder %s197, %s198
      %p212 = scmp.eq.s32.totalorder %s22, 1
      %p213 = por %p211, %p212
      %p215 = scmp.ne.s32.totalorder %s198, %s214
      %p216 = scmp.eq.s32.totalorder %s22, 0
      %p217 = por %p215, %p216
      %p218 = scmp.le.s32.totalorder 1, %s16
      %p219 = scmp.lt.s32.totalorder %s16, 3
      %p220 = pnand %p218, %p219
      %p221 = pneg %p220
      // Predicated region
      $region9: #{feature_aggregation.1} parent=5 // pred_check
        _
      $region10: #{feature_aggregation.1} parent=5 // pred_check_branch
        %223 = sbr.rel (%p220) target = $region12
      $region11: #{feature_aggregation.1} parent=5 // pred_region
        %s224 = ssub.s32 %s16, 1
        // Predicated region
        $region13: #{feature_aggregation.1} parent=11 // pred_check
          %p225 = pneg %p77
        $region14: #{feature_aggregation.1} parent=11 // pred_check_branch
          %227 = sbr.rel (%p225) target = $region16
        $region15: #{feature_aggregation.1} parent=11 // pred_region
          _
        $region16: #{feature_aggregation.1} parent=11 // pred_fallthru
          _
        // Predicated region
        $region17: #{feature_aggregation.1} parent=11 // pred_check
          %p228 = pneg %p98
        $region18: #{feature_aggregation.1} parent=11 // pred_check_branch
          %230 = sbr.rel (%p228) target = $region20
        $region19: #{feature_aggregation.1} parent=11 // pred_region
          _
        $region20: #{feature_aggregation.1} parent=11 // pred_fallthru
          _
        // Predicated region
        $region21: #{feature_aggregation.1} parent=11 // pred_check
          %p231 = pneg %p119
        $region22: #{feature_aggregation.1} parent=11 // pred_check_branch
          %233 = sbr.rel (%p231) target = $region24
        $region23: #{feature_aggregation.1} parent=11 // pred_region
          _
        $region24: #{feature_aggregation.1} parent=11 // pred_fallthru
          _
        // Predicated region
        $region25: #{feature_aggregation.1} parent=11 // pred_check
          %p234 = pneg %p140
        $region26: #{feature_aggregation.1} parent=11 // pred_check_branch
          %236 = sbr.rel (%p234) target = $region28
        $region27: #{feature_aggregation.1} parent=11 // pred_region
          _
        $region28: #{feature_aggregation.1} parent=11 // pred_fallthru
          _
        // Predicated region
        $region29: #{feature_aggregation.1} parent=11 // pred_check
          %p237 = pneg %p161
        $region30: #{feature_aggregation.1} parent=11 // pred_check_branch
          %239 = sbr.rel (%p237) target = $region32
        $region31: #{feature_aggregation.1} parent=11 // pred_region
          _
        $region32: #{feature_aggregation.1} parent=11 // pred_fallthru
          _
        // Predicated region
        $region33: #{feature_aggregation.1} parent=11 // pred_check
          %p240 = pneg %p182
        $region34: #{feature_aggregation.1} parent=11 // pred_check_branch
          %242 = sbr.rel (%p240) target = $region36
        $region35: #{feature_aggregation.1} parent=11 // pred_region
          _
        $region36: #{feature_aggregation.1} parent=11 // pred_fallthru
          _
      $region12: #{feature_aggregation.1} parent=5 // pred_fallthru
        _
      %p243 = scmp.lt.s32.totalorder %s16, 2
      // Predicated region
      $region37: #{feature_aggregation.1} parent=5 // pred_check
        %p244 = pneg %p243
      $region38: #{feature_aggregation.1} parent=5 // pred_check_branch
        %246 = sbr.rel (%p244) target = $region40
      $region39: #{feature_aggregation.1} parent=5 // pred_region
        // Predicated region
        $region41: #{feature_aggregation.1} parent=39 // pred_check
          %p247 = pneg %p50
        $region42: #{feature_aggregation.1} parent=39 // pred_check_branch
          %249 = sbr.rel (%p247) target = $region44
        $region43: #{feature_aggregation.1} parent=39 // pred_region
          %s250 = smul.u32 32, %s24
          %p251 = scmp.lt.s32.totalorder %s23, 1
          %s252 = scalar_select %p251, %s23, 1
          %p253 = scmp.lt.s32.totalorder %s250, 31
          %s254 = scalar_select %p253, %s250, 31
          %s255 = smul.addr %s252, 64
          %s256 = sadd.s32 %s254, %s255
          %s257 = smul.addr %s256, 4
          %s258 = scalar_lea.vmem %s0, %s257
          %s259 = smul.u32 32, %s24
        $region44: #{feature_aggregation.1} parent=39 // pred_fallthru
          _
      $region40: #{feature_aggregation.1} parent=5 // pred_fallthru
        _
      %p260 = scmp.le.s32.totalorder 1, %s16
      %p261 = scmp.lt.s32.totalorder %s16, 3
      %p262 = pnand %p260, %p261
      %p263 = pneg %p262
      // Predicated region
      $region45: #{feature_aggregation.1} parent=5 // pred_check
        _
      $region46: #{feature_aggregation.1} parent=5 // pred_check_branch
        %265 = sbr.rel (%p262) target = $region48
      $region47: #{feature_aggregation.1} parent=5 // pred_region
        %s266 = ssub.s32 %s16, 1
        %s267 = smul.u32 32, %s26
        %p268 = scmp.lt.s32.totalorder %s25, 1
        %s269 = scalar_select %p268, %s25, 1
        %p270 = scmp.lt.s32.totalorder %s267, 31
        %s271 = scalar_select %p270, %s267, 31
        %s272 = smul.addr %s269, 64
        %s273 = sadd.s32 %s271, %s272
        %s274 = smul.addr %s273, 4
        %s275 = scalar_lea.vmem %s0, %s274
        %p276 = pneg %p56
        %p277 = pneg %p53
        %p278 = pneg %p77
        %p279 = pneg %p74
        %p280 = pneg %p98
        %p281 = pneg %p95
        %p282 = pneg %p119
        %p283 = pneg %p116
        %p284 = pneg %p140
        %p285 = pneg %p137
        %p286 = pneg %p161
        %p287 = pneg %p158
        %p288 = pneg %p182
        %p289 = pneg %p179
        %p290 = pneg %p210
        %p291 = pneg %p207
        %s292 = sand.u32 %s197, 1
        %s293 = scalar_lea.sflag [#allocation3], %s292
        %s294 = sand.u32 %s197, 1
        %s295 = smul.addr %s294, 256
        %s296 = scalar_lea.vmem [#allocation2], %s295
        %s297 = smul.u32 32, %s26
        %p298 = scmp.lt.s32.totalorder %s25, 1
        %s299 = scalar_select %p298, %s25, 1
        %p300 = scmp.lt.s32.totalorder %s297, 31
        %s301 = scalar_select %p300, %s297, 31
        %s302 = smul.addr %s299, 64
        %s303 = sadd.s32 %s301, %s302
        %s304 = smul.addr %s303, 4
        %s305 = scalar_lea.vmem %s0, %s304
        %s306 = smul.u32 32, %s26
        %s307 = smul.u32 4, %s26
        %v309 = vld [vmem:[%s305] sm:$0xff]
        %v310 = vld [vmem:[%s305 + $0x8] sm:$0xff]
        %v311 = vld [vmem:[%s305 + $0x10] sm:$0xff]
        %v312 = vld [vmem:[%s305 + $0x18] sm:$0xff]
        %v313 = vld [vmem:[%s305 + $0x20] sm:$0xff]
        %v314 = vld [vmem:[%s305 + $0x28] sm:$0xff]
        %v315 = vld [vmem:[%s305 + $0x30] sm:$0xff]
        %v316 = vld [vmem:[%s305 + $0x38] sm:$0xff]
        %v317 = vld [vmem:[%s305 + $0x40] sm:$0xff]
        %v318 = vld [vmem:[%s305 + $0x48] sm:$0xff]
        %v319 = vld [vmem:[%s305 + $0x50] sm:$0xff]
        %v320 = vld [vmem:[%s305 + $0x58] sm:$0xff]
        %v321 = vld [vmem:[%s305 + $0x60] sm:$0xff]
        %v322 = vld [vmem:[%s305 + $0x68] sm:$0xff]
        %v323 = vld [vmem:[%s305 + $0x70] sm:$0xff]
        %v324 = vld [vmem:[%s305 + $0x78] sm:$0xff]
        %v325 = vld [vmem:[%s305 + $0x80] sm:$0xff]
        %v326 = vld [vmem:[%s305 + $0x88] sm:$0xff]
        %v327 = vld [vmem:[%s305 + $0x90] sm:$0xff]
        %v328 = vld [vmem:[%s305 + $0x98] sm:$0xff]
        %v329 = vld [vmem:[%s305 + $0xa0] sm:$0xff]
        %v330 = vld [vmem:[%s305 + $0xa8] sm:$0xff]
        %v331 = vld [vmem:[%s305 + $0xb0] sm:$0xff]
        %v332 = vld [vmem:[%s305 + $0xb8] sm:$0xff]
        %v333 = vld [vmem:[%s305 + $0xc0] sm:$0xff]
        %v334 = vld [vmem:[%s305 + $0xc8] sm:$0xff]
        %v335 = vld [vmem:[%s305 + $0xd0] sm:$0xff]
        %v336 = vld [vmem:[%s305 + $0xd8] sm:$0xff]
        %v337 = vld [vmem:[%s305 + $0xe0] sm:$0xff]
        %v338 = vld [vmem:[%s305 + $0xe8] sm:$0xff]
        %v339 = vld [vmem:[%s305 + $0xf0] sm:$0xff]
        %v340 = vld [vmem:[%s305 + $0xf8] sm:$0xff]
        %v341 = vld [vmem:[%s1] sm:$0xf]
        %v342 = vld [vmem:[%s1 + $0x4] sm:$0xf]
        %v343 = vld [vmem:[%s1 + $0x8] sm:$0xf]
        %v344 = vld [vmem:[%s1 + $0xc] sm:$0xf]
        %v345 = vld [vmem:[%s1 + $0x10] sm:$0xf]
        %v346 = vld [vmem:[%s1 + $0x14] sm:$0xf]
        %v347 = vld [vmem:[%s1 + $0x18] sm:$0xf]
        %v348 = vld [vmem:[%s1 + $0x1c] sm:$0xf]
        %v349 = vld [vmem:[%s2] sm:$0xff]
        %v350 = vld [vmem:[%s2 + $0x8] sm:$0xff]
        %v351 = vld [vmem:[%s2 + $0x10] sm:$0xff]
        %v352 = vld [vmem:[%s2 + $0x18] sm:$0xff]
        %v353 = vld [vmem:[%s2 + $0x20] sm:$0xff]
        %v354 = vld [vmem:[%s2 + $0x28] sm:$0xff]
        %v355 = vld [vmem:[%s2 + $0x30] sm:$0xff]
        %v356 = vld [vmem:[%s2 + $0x38] sm:$0xff]
        %358 = vset.pattern.permute.xlu0 0
        %359 = vperm.xlu0 %358, %v349
        %v360 = vpop.permute.xlu0 %359
        %363 = vset.pattern.permute.xlu0 0
        %364 = vperm.xlu0 %363, %v350
        %v365 = vpop.permute.xlu0 %364
        %368 = vset.pattern.permute.xlu0 0
        %369 = vperm.xlu0 %368, %v351
        %v370 = vpop.permute.xlu0 %369
        %373 = vset.pattern.permute.xlu0 0
        %374 = vperm.xlu0 %373, %v352
        %v375 = vpop.permute.xlu0 %374
        %378 = vset.pattern.permute.xlu0 0
        %379 = vperm.xlu0 %378, %v353
        %v380 = vpop.permute.xlu0 %379
        %383 = vset.pattern.permute.xlu0 0
        %384 = vperm.xlu0 %383, %v354
        %v385 = vpop.permute.xlu0 %384
        %388 = vset.pattern.permute.xlu0 0
        %389 = vperm.xlu0 %388, %v355
        %v390 = vpop.permute.xlu0 %389
        %393 = vset.pattern.permute.xlu0 0
        %394 = vperm.xlu0 %393, %v356
        %v395 = vpop.permute.xlu0 %394
        %v405 = vunpack.c.l.b16 %v341
        %v406 = vunpack.c.l.b16 %v342
        %v407 = vunpack.c.l.b16 %v343
        %v408 = vunpack.c.l.b16 %v344
        %v409 = vunpack.c.l.b16 %v345
        %v410 = vunpack.c.l.b16 %v346
        %v411 = vunpack.c.l.b16 %v347
        %v412 = vunpack.c.l.b16 %v348
        %v413 = vpack.c.b16 %v406, %v405
        %v414 = vpack.c.b16 %v408, %v407
        %v415 = vpack.c.b16 %v410, %v409
        %v416 = vpack.c.b16 %v412, %v411
        %v449 = vunpack.c.l.b16 %v309
        %v450 = vunpack.c.h.b16 %v309
        %v451 = vunpack.c.l.b16 %v310
        %v452 = vunpack.c.h.b16 %v310
        %v453 = vunpack.c.l.b16 %v311
        %v454 = vunpack.c.h.b16 %v311
        %v455 = vunpack.c.l.b16 %v312
        %v456 = vunpack.c.h.b16 %v312
        %v457 = vunpack.c.l.b16 %v313
        %v458 = vunpack.c.h.b16 %v313
        %v459 = vunpack.c.l.b16 %v314
        %v460 = vunpack.c.h.b16 %v314
        %v461 = vunpack.c.l.b16 %v315
        %v462 = vunpack.c.h.b16 %v315
        %v463 = vunpack.c.l.b16 %v316
        %v464 = vunpack.c.h.b16 %v316
        %v465 = vunpack.c.l.b16 %v317
        %v466 = vunpack.c.h.b16 %v317
        %v467 = vunpack.c.l.b16 %v318
        %v468 = vunpack.c.h.b16 %v318
        %v469 = vunpack.c.l.b16 %v319
        %v470 = vunpack.c.h.b16 %v319
        %v471 = vunpack.c.l.b16 %v320
        %v472 = vunpack.c.h.b16 %v320
        %v473 = vunpack.c.l.b16 %v321
        %v474 = vunpack.c.h.b16 %v321
        %v475 = vunpack.c.l.b16 %v322
        %v476 = vunpack.c.h.b16 %v322
        %v477 = vunpack.c.l.b16 %v323
        %v478 = vunpack.c.h.b16 %v323
        %v479 = vunpack.c.l.b16 %v324
        %v480 = vunpack.c.h.b16 %v324
        %v481 = vunpack.c.l.b16 %v325
        %v482 = vunpack.c.h.b16 %v325
        %v483 = vunpack.c.l.b16 %v326
        %v484 = vunpack.c.h.b16 %v326
        %v485 = vunpack.c.l.b16 %v327
        %v486 = vunpack.c.h.b16 %v327
        %v487 = vunpack.c.l.b16 %v328
        %v488 = vunpack.c.h.b16 %v328
        %v489 = vunpack.c.l.b16 %v329
        %v490 = vunpack.c.h.b16 %v329
        %v491 = vunpack.c.l.b16 %v330
        %v492 = vunpack.c.h.b16 %v330
        %v493 = vunpack.c.l.b16 %v331
        %v494 = vunpack.c.h.b16 %v331
        %v495 = vunpack.c.l.b16 %v332
        %v496 = vunpack.c.h.b16 %v332
        %v497 = vunpack.c.l.b16 %v333
        %v498 = vunpack.c.h.b16 %v333
        %v499 = vunpack.c.l.b16 %v334
        %v500 = vunpack.c.h.b16 %v334
        %v501 = vunpack.c.l.b16 %v335
        %v502 = vunpack.c.h.b16 %v335
        %v503 = vunpack.c.l.b16 %v336
        %v504 = vunpack.c.h.b16 %v336
        %v505 = vunpack.c.l.b16 %v337
        %v506 = vunpack.c.h.b16 %v337
        %v507 = vunpack.c.l.b16 %v338
        %v508 = vunpack.c.h.b16 %v338
        %v509 = vunpack.c.l.b16 %v339
        %v510 = vunpack.c.h.b16 %v339
        %v511 = vunpack.c.l.b16 %v340
        %v512 = vunpack.c.h.b16 %v340
        %v513 = vpack.c.b16 %v481, %v449
        %v514 = vpack.c.b16 %v482, %v450
        %v515 = vpack.c.b16 %v483, %v451
        %v516 = vpack.c.b16 %v484, %v452
        %v517 = vpack.c.b16 %v485, %v453
        %v518 = vpack.c.b16 %v486, %v454
        %v519 = vpack.c.b16 %v487, %v455
        %v520 = vpack.c.b16 %v488, %v456
        %v521 = vpack.c.b16 %v489, %v457
        %v522 = vpack.c.b16 %v490, %v458
        %v523 = vpack.c.b16 %v491, %v459
        %v524 = vpack.c.b16 %v492, %v460
        %v525 = vpack.c.b16 %v493, %v461
        %v526 = vpack.c.b16 %v494, %v462
        %v527 = vpack.c.b16 %v495, %v463
        %v528 = vpack.c.b16 %v496, %v464
        %v529 = vpack.c.b16 %v497, %v465
        %v530 = vpack.c.b16 %v498, %v466
        %v531 = vpack.c.b16 %v499, %v467
        %v532 = vpack.c.b16 %v500, %v468
        %v533 = vpack.c.b16 %v501, %v469
        %v534 = vpack.c.b16 %v502, %v470
        %v535 = vpack.c.b16 %v503, %v471
        %v536 = vpack.c.b16 %v504, %v472
        %v537 = vpack.c.b16 %v505, %v473
        %v538 = vpack.c.b16 %v506, %v474
        %v539 = vpack.c.b16 %v507, %v475
        %v540 = vpack.c.b16 %v508, %v476
        %v541 = vpack.c.b16 %v509, %v477
        %v542 = vpack.c.b16 %v510, %v478
        %v543 = vpack.c.b16 %v511, %v479
        %v544 = vpack.c.b16 %v512, %v480
        %vm577 = vcmask 130048
        %v579 = vsel %vm577, %v413, 0
        %v582 = vsel %vm577, %v414, 0
        %v585 = vsel %vm577, %v415, 0
        %v588 = vsel %vm577, %v416, 0
        %590 = vmatpush.bf16.msra.mxu0 0
        %591 = vmatpush.bf16.msra.mxu0 0
        %592 = vmatpush.bf16.msra.mxu0 0
        %593 = vmatpush.bf16.msra.mxu0 0
        %594 = vmatpush.bf16.msra.mxu0 0
        %595 = vmatpush.bf16.msra.mxu0 0
        %596 = vmatpush.bf16.msra.mxu0 0
        %597 = vmatpush.bf16.msra.mxu0 %v513
        %598 = vmatmul.bf16.gmra.mxu0 %v579
        %v599 = vpop.f32.mrf.mxu0
        %v600 = vadd.f32 %v360, %v599
        %v601 = vpop.f32.mrf.mxu0
        %v602 = vadd.f32 %v365, %v601
        %603 = vmatmul.bf16.gmra.mxu0 %v582
        %v604 = vpop.f32.mrf.mxu0
        %v605 = vadd.f32 %v370, %v604
        %v606 = vpop.f32.mrf.mxu0
        %v607 = vadd.f32 %v375, %v606
        %608 = vmatmul.bf16.gmra.mxu0 %v585
        %v609 = vpop.f32.mrf.mxu0
        %v610 = vadd.f32 %v380, %v609
        %v611 = vpop.f32.mrf.mxu0
        %v612 = vadd.f32 %v385, %v611
        %613 = vmatmul.bf16.gmra.mxu0 %v588
        %v614 = vpop.f32.mrf.mxu0
        %v615 = vadd.f32 %v390, %v614
        %v616 = vpop.f32.mrf.mxu0
        %v617 = vadd.f32 %v395, %v616
        %618 = vdwg.mxu0
        %619 = vmatpush.bf16.msra.mxu0 0
        %620 = vmatpush.bf16.msra.mxu0 0
        %621 = vmatpush.bf16.msra.mxu0 0
        %622 = vmatpush.bf16.msra.mxu0 0
        %623 = vmatpush.bf16.msra.mxu0 0
        %624 = vmatpush.bf16.msra.mxu0 0
        %625 = vmatpush.bf16.msra.mxu0 0
        %626 = vmatpush.bf16.msra.mxu0 %v514
        %627 = vmatmul.bf16.gmra.mxu0 %v579
        %v628 = vpop.f32.mrf.mxu0
        %v629 = vadd.f32 %v360, %v628
        %v630 = vpop.f32.mrf.mxu0
        %v631 = vadd.f32 %v365, %v630
        %632 = vmatmul.bf16.gmra.mxu0 %v582
        %v633 = vpop.f32.mrf.mxu0
        %v634 = vadd.f32 %v370, %v633
        %v635 = vpop.f32.mrf.mxu0
        %v636 = vadd.f32 %v375, %v635
        %637 = vmatmul.bf16.gmra.mxu0 %v585
        %v638 = vpop.f32.mrf.mxu0
        %v639 = vadd.f32 %v380, %v638
        %v640 = vpop.f32.mrf.mxu0
        %v641 = vadd.f32 %v385, %v640
        %642 = vmatmul.bf16.gmra.mxu0 %v588
        %v643 = vpop.f32.mrf.mxu0
        %v644 = vadd.f32 %v390, %v643
        %v645 = vpop.f32.mrf.mxu0
        %v646 = vadd.f32 %v395, %v645
        %647 = vdwg.mxu0
        %648 = vmatpush.bf16.msra.mxu0 0
        %649 = vmatpush.bf16.msra.mxu0 0
        %650 = vmatpush.bf16.msra.mxu0 0
        %651 = vmatpush.bf16.msra.mxu0 0
        %652 = vmatpush.bf16.msra.mxu0 0
        %653 = vmatpush.bf16.msra.mxu0 0
        %654 = vmatpush.bf16.msra.mxu0 0
        %655 = vmatpush.bf16.msra.mxu0 %v515
        %656 = vmatmul.bf16.gmra.mxu0 %v579
        %v657 = vpop.f32.mrf.mxu0
        %v658 = vadd.f32 %v360, %v657
        %v659 = vpop.f32.mrf.mxu0
        %v660 = vadd.f32 %v365, %v659
        %661 = vmatmul.bf16.gmra.mxu0 %v582
        %v662 = vpop.f32.mrf.mxu0
        %v663 = vadd.f32 %v370, %v662
        %v664 = vpop.f32.mrf.mxu0
        %v665 = vadd.f32 %v375, %v664
        %666 = vmatmul.bf16.gmra.mxu0 %v585
        %v667 = vpop.f32.mrf.mxu0
        %v668 = vadd.f32 %v380, %v667
        %v669 = vpop.f32.mrf.mxu0
        %v670 = vadd.f32 %v385, %v669
        %671 = vmatmul.bf16.gmra.mxu0 %v588
        %v672 = vpop.f32.mrf.mxu0
        %v673 = vadd.f32 %v390, %v672
        %v674 = vpop.f32.mrf.mxu0
        %v675 = vadd.f32 %v395, %v674
        %676 = vdwg.mxu0
        %677 = vmatpush.bf16.msra.mxu0 0
        %678 = vmatpush.bf16.msra.mxu0 0
        %679 = vmatpush.bf16.msra.mxu0 0
        %680 = vmatpush.bf16.msra.mxu0 0
        %681 = vmatpush.bf16.msra.mxu0 0
        %682 = vmatpush.bf16.msra.mxu0 0
        %683 = vmatpush.bf16.msra.mxu0 0
        %684 = vmatpush.bf16.msra.mxu0 %v516
        %685 = vmatmul.bf16.gmra.mxu0 %v579
        %v686 = vpop.f32.mrf.mxu0
        %v687 = vadd.f32 %v360, %v686
        %v688 = vpop.f32.mrf.mxu0
        %v689 = vadd.f32 %v365, %v688
        %690 = vmatmul.bf16.gmra.mxu0 %v582
        %v691 = vpop.f32.mrf.mxu0
        %v692 = vadd.f32 %v370, %v691
        %v693 = vpop.f32.mrf.mxu0
        %v694 = vadd.f32 %v375, %v693
        %695 = vmatmul.bf16.gmra.mxu0 %v585
        %v696 = vpop.f32.mrf.mxu0
        %v697 = vadd.f32 %v380, %v696
        %v698 = vpop.f32.mrf.mxu0
        %v699 = vadd.f32 %v385, %v698
        %700 = vmatmul.bf16.gmra.mxu0 %v588
        %v701 = vpop.f32.mrf.mxu0
        %v702 = vadd.f32 %v390, %v701
        %v703 = vpop.f32.mrf.mxu0
        %v704 = vadd.f32 %v395, %v703
        %705 = vdwg.mxu0
        %706 = vmatpush.bf16.msra.mxu0 0
        %707 = vmatpush.bf16.msra.mxu0 0
        %708 = vmatpush.bf16.msra.mxu0 0
        %709 = vmatpush.bf16.msra.mxu0 0
        %710 = vmatpush.bf16.msra.mxu0 0
        %711 = vmatpush.bf16.msra.mxu0 0
        %712 = vmatpush.bf16.msra.mxu0 0
        %713 = vmatpush.bf16.msra.mxu0 %v517
        %714 = vmatmul.bf16.gmra.mxu0 %v579
        %v715 = vpop.f32.mrf.mxu0
        %v716 = vadd.f32 %v360, %v715
        %v717 = vpop.f32.mrf.mxu0
        %v718 = vadd.f32 %v365, %v717
        %719 = vmatmul.bf16.gmra.mxu0 %v582
        %v720 = vpop.f32.mrf.mxu0
        %v721 = vadd.f32 %v370, %v720
        %v722 = vpop.f32.mrf.mxu0
        %v723 = vadd.f32 %v375, %v722
        %724 = vmatmul.bf16.gmra.mxu0 %v585
        %v725 = vpop.f32.mrf.mxu0
        %v726 = vadd.f32 %v380, %v725
        %v727 = vpop.f32.mrf.mxu0
        %v728 = vadd.f32 %v385, %v727
        %729 = vmatmul.bf16.gmra.mxu0 %v588
        %v730 = vpop.f32.mrf.mxu0
        %v731 = vadd.f32 %v390, %v730
        %v732 = vpop.f32.mrf.mxu0
        %v733 = vadd.f32 %v395, %v732
        %734 = vdwg.mxu0
        %735 = vmatpush.bf16.msra.mxu0 0
        %736 = vmatpush.bf16.msra.mxu0 0
        %737 = vmatpush.bf16.msra.mxu0 0
        %738 = vmatpush.bf16.msra.mxu0 0
        %739 = vmatpush.bf16.msra.mxu0 0
        %740 = vmatpush.bf16.msra.mxu0 0
        %741 = vmatpush.bf16.msra.mxu0 0
        %742 = vmatpush.bf16.msra.mxu0 %v518
        %743 = vmatmul.bf16.gmra.mxu0 %v579
        %v744 = vpop.f32.mrf.mxu0
        %v745 = vadd.f32 %v360, %v744
        %v746 = vpop.f32.mrf.mxu0
        %v747 = vadd.f32 %v365, %v746
        %748 = vmatmul.bf16.gmra.mxu0 %v582
        %v749 = vpop.f32.mrf.mxu0
        %v750 = vadd.f32 %v370, %v749
        %v751 = vpop.f32.mrf.mxu0
        %v752 = vadd.f32 %v375, %v751
        %753 = vmatmul.bf16.gmra.mxu0 %v585
        %v754 = vpop.f32.mrf.mxu0
        %v755 = vadd.f32 %v380, %v754
        %v756 = vpop.f32.mrf.mxu0
        %v757 = vadd.f32 %v385, %v756
        %758 = vmatmul.bf16.gmra.mxu0 %v588
        %v759 = vpop.f32.mrf.mxu0
        %v760 = vadd.f32 %v390, %v759
        %v761 = vpop.f32.mrf.mxu0
        %v762 = vadd.f32 %v395, %v761
        %763 = vdwg.mxu0
        %764 = vmatpush.bf16.msra.mxu0 0
        %765 = vmatpush.bf16.msra.mxu0 0
        %766 = vmatpush.bf16.msra.mxu0 0
        %767 = vmatpush.bf16.msra.mxu0 0
        %768 = vmatpush.bf16.msra.mxu0 0
        %769 = vmatpush.bf16.msra.mxu0 0
        %770 = vmatpush.bf16.msra.mxu0 0
        %771 = vmatpush.bf16.msra.mxu0 %v519
        %772 = vmatmul.bf16.gmra.mxu0 %v579
        %v773 = vpop.f32.mrf.mxu0
        %v774 = vadd.f32 %v360, %v773
        %v775 = vpop.f32.mrf.mxu0
        %v776 = vadd.f32 %v365, %v775
        %777 = vmatmul.bf16.gmra.mxu0 %v582
        %v778 = vpop.f32.mrf.mxu0
        %v779 = vadd.f32 %v370, %v778
        %v780 = vpop.f32.mrf.mxu0
        %v781 = vadd.f32 %v375, %v780
        %782 = vmatmul.bf16.gmra.mxu0 %v585
        %v783 = vpop.f32.mrf.mxu0
        %v784 = vadd.f32 %v380, %v783
        %v785 = vpop.f32.mrf.mxu0
        %v786 = vadd.f32 %v385, %v785
        %787 = vmatmul.bf16.gmra.mxu0 %v588
        %v788 = vpop.f32.mrf.mxu0
        %v789 = vadd.f32 %v390, %v788
        %v790 = vpop.f32.mrf.mxu0
        %v791 = vadd.f32 %v395, %v790
        %792 = vdwg.mxu0
        %793 = vmatpush.bf16.msra.mxu0 0
        %794 = vmatpush.bf16.msra.mxu0 0
        %795 = vmatpush.bf16.msra.mxu0 0
        %796 = vmatpush.bf16.msra.mxu0 0
        %797 = vmatpush.bf16.msra.mxu0 0
        %798 = vmatpush.bf16.msra.mxu0 0
        %799 = vmatpush.bf16.msra.mxu0 0
        %800 = vmatpush.bf16.msra.mxu0 %v520
        %801 = vmatmul.bf16.gmra.mxu0 %v579
        %v802 = vpop.f32.mrf.mxu0
        %v803 = vadd.f32 %v360, %v802
        %v804 = vpop.f32.mrf.mxu0
        %v805 = vadd.f32 %v365, %v804
        %806 = vmatmul.bf16.gmra.mxu0 %v582
        %v807 = vpop.f32.mrf.mxu0
        %v808 = vadd.f32 %v370, %v807
        %v809 = vpop.f32.mrf.mxu0
        %v810 = vadd.f32 %v375, %v809
        %811 = vmatmul.bf16.gmra.mxu0 %v585
        %v812 = vpop.f32.mrf.mxu0
        %v813 = vadd.f32 %v380, %v812
        %v814 = vpop.f32.mrf.mxu0
        %v815 = vadd.f32 %v385, %v814
        %816 = vmatmul.bf16.gmra.mxu0 %v588
        %v817 = vpop.f32.mrf.mxu0
        %v818 = vadd.f32 %v390, %v817
        %v819 = vpop.f32.mrf.mxu0
        %v820 = vadd.f32 %v395, %v819
        %821 = vdwg.mxu0
        %822 = vmatpush.bf16.msra.mxu0 0
        %823 = vmatpush.bf16.msra.mxu0 0
        %824 = vmatpush.bf16.msra.mxu0 0
        %825 = vmatpush.bf16.msra.mxu0 0
        %826 = vmatpush.bf16.msra.mxu0 0
        %827 = vmatpush.bf16.msra.mxu0 0
        %828 = vmatpush.bf16.msra.mxu0 0
        %829 = vmatpush.bf16.msra.mxu0 %v521
        %830 = vmatmul.bf16.gmra.mxu0 %v579
        %v831 = vpop.f32.mrf.mxu0
        %v832 = vadd.f32 %v360, %v831
        %v833 = vpop.f32.mrf.mxu0
        %v834 = vadd.f32 %v365, %v833
        %835 = vmatmul.bf16.gmra.mxu0 %v582
        %v836 = vpop.f32.mrf.mxu0
        %v837 = vadd.f32 %v370, %v836
        %v838 = vpop.f32.mrf.mxu0
        %v839 = vadd.f32 %v375, %v838
        %840 = vmatmul.bf16.gmra.mxu0 %v585
        %v841 = vpop.f32.mrf.mxu0
        %v842 = vadd.f32 %v380, %v841
        %v843 = vpop.f32.mrf.mxu0
        %v844 = vadd.f32 %v385, %v843
        %845 = vmatmul.bf16.gmra.mxu0 %v588
        %v846 = vpop.f32.mrf.mxu0
        %v847 = vadd.f32 %v390, %v846
        %v848 = vpop.f32.mrf.mxu0
        %v849 = vadd.f32 %v395, %v848
        %850 = vdwg.mxu0
        %851 = vmatpush.bf16.msra.mxu0 0
        %852 = vmatpush.bf16.msra.mxu0 0
        %853 = vmatpush.bf16.msra.mxu0 0
        %854 = vmatpush.bf16.msra.mxu0 0
        %855 = vmatpush.bf16.msra.mxu0 0
        %856 = vmatpush.bf16.msra.mxu0 0
        %857 = vmatpush.bf16.msra.mxu0 0
        %858 = vmatpush.bf16.msra.mxu0 %v522
        %859 = vmatmul.bf16.gmra.mxu0 %v579
        %v860 = vpop.f32.mrf.mxu0
        %v861 = vadd.f32 %v360, %v860
        %v862 = vpop.f32.mrf.mxu0
        %v863 = vadd.f32 %v365, %v862
        %864 = vmatmul.bf16.gmra.mxu0 %v582
        %v865 = vpop.f32.mrf.mxu0
        %v866 = vadd.f32 %v370, %v865
        %v867 = vpop.f32.mrf.mxu0
        %v868 = vadd.f32 %v375, %v867
        %869 = vmatmul.bf16.gmra.mxu0 %v585
        %v870 = vpop.f32.mrf.mxu0
        %v871 = vadd.f32 %v380, %v870
        %v872 = vpop.f32.mrf.mxu0
        %v873 = vadd.f32 %v385, %v872
        %874 = vmatmul.bf16.gmra.mxu0 %v588
        %v875 = vpop.f32.mrf.mxu0
        %v876 = vadd.f32 %v390, %v875
        %v877 = vpop.f32.mrf.mxu0
        %v878 = vadd.f32 %v395, %v877
        %879 = vdwg.mxu0
        %880 = vmatpush.bf16.msra.mxu0 0
        %881 = vmatpush.bf16.msra.mxu0 0
        %882 = vmatpush.bf16.msra.mxu0 0
        %883 = vmatpush.bf16.msra.mxu0 0
        %884 = vmatpush.bf16.msra.mxu0 0
        %885 = vmatpush.bf16.msra.mxu0 0
        %886 = vmatpush.bf16.msra.mxu0 0
        %887 = vmatpush.bf16.msra.mxu0 %v523
        %888 = vmatmul.bf16.gmra.mxu0 %v579
        %v889 = vpop.f32.mrf.mxu0
        %v890 = vadd.f32 %v360, %v889
        %v891 = vpop.f32.mrf.mxu0
        %v892 = vadd.f32 %v365, %v891
        %893 = vmatmul.bf16.gmra.mxu0 %v582
        %v894 = vpop.f32.mrf.mxu0
        %v895 = vadd.f32 %v370, %v894
        %v896 = vpop.f32.mrf.mxu0
        %v897 = vadd.f32 %v375, %v896
        %898 = vmatmul.bf16.gmra.mxu0 %v585
        %v899 = vpop.f32.mrf.mxu0
        %v900 = vadd.f32 %v380, %v899
        %v901 = vpop.f32.mrf.mxu0
        %v902 = vadd.f32 %v385, %v901
        %903 = vmatmul.bf16.gmra.mxu0 %v588
        %v904 = vpop.f32.mrf.mxu0
        %v905 = vadd.f32 %v390, %v904
        %v906 = vpop.f32.mrf.mxu0
        %v907 = vadd.f32 %v395, %v906
        %908 = vdwg.mxu0
        %909 = vmatpush.bf16.msra.mxu0 0
        %910 = vmatpush.bf16.msra.mxu0 0
        %911 = vmatpush.bf16.msra.mxu0 0
        %912 = vmatpush.bf16.msra.mxu0 0
        %913 = vmatpush.bf16.msra.mxu0 0
        %914 = vmatpush.bf16.msra.mxu0 0
        %915 = vmatpush.bf16.msra.mxu0 0
        %916 = vmatpush.bf16.msra.mxu0 %v524
        %917 = vmatmul.bf16.gmra.mxu0 %v579
        %v918 = vpop.f32.mrf.mxu0
        %v919 = vadd.f32 %v360, %v918
        %v920 = vpop.f32.mrf.mxu0
        %v921 = vadd.f32 %v365, %v920
        %922 = vmatmul.bf16.gmra.mxu0 %v582
        %v923 = vpop.f32.mrf.mxu0
        %v924 = vadd.f32 %v370, %v923
        %v925 = vpop.f32.mrf.mxu0
        %v926 = vadd.f32 %v375, %v925
        %927 = vmatmul.bf16.gmra.mxu0 %v585
        %v928 = vpop.f32.mrf.mxu0
        %v929 = vadd.f32 %v380, %v928
        %v930 = vpop.f32.mrf.mxu0
        %v931 = vadd.f32 %v385, %v930
        %932 = vmatmul.bf16.gmra.mxu0 %v588
        %v933 = vpop.f32.mrf.mxu0
        %v934 = vadd.f32 %v390, %v933
        %v935 = vpop.f32.mrf.mxu0
        %v936 = vadd.f32 %v395, %v935
        %937 = vdwg.mxu0
        %938 = vmatpush.bf16.msra.mxu0 0
        %939 = vmatpush.bf16.msra.mxu0 0
        %940 = vmatpush.bf16.msra.mxu0 0
        %941 = vmatpush.bf16.msra.mxu0 0
        %942 = vmatpush.bf16.msra.mxu0 0
        %943 = vmatpush.bf16.msra.mxu0 0
        %944 = vmatpush.bf16.msra.mxu0 0
        %945 = vmatpush.bf16.msra.mxu0 %v525
        %946 = vmatmul.bf16.gmra.mxu0 %v579
        %v947 = vpop.f32.mrf.mxu0
        %v948 = vadd.f32 %v360, %v947
        %v949 = vpop.f32.mrf.mxu0
        %v950 = vadd.f32 %v365, %v949
        %951 = vmatmul.bf16.gmra.mxu0 %v582
        %v952 = vpop.f32.mrf.mxu0
        %v953 = vadd.f32 %v370, %v952
        %v954 = vpop.f32.mrf.mxu0
        %v955 = vadd.f32 %v375, %v954
        %956 = vmatmul.bf16.gmra.mxu0 %v585
        %v957 = vpop.f32.mrf.mxu0
        %v958 = vadd.f32 %v380, %v957
        %v959 = vpop.f32.mrf.mxu0
        %v960 = vadd.f32 %v385, %v959
        %961 = vmatmul.bf16.gmra.mxu0 %v588
        %v962 = vpop.f32.mrf.mxu0
        %v963 = vadd.f32 %v390, %v962
        %v964 = vpop.f32.mrf.mxu0
        %v965 = vadd.f32 %v395, %v964
        %966 = vdwg.mxu0
        %967 = vmatpush.bf16.msra.mxu0 0
        %968 = vmatpush.bf16.msra.mxu0 0
        %969 = vmatpush.bf16.msra.mxu0 0
        %970 = vmatpush.bf16.msra.mxu0 0
        %971 = vmatpush.bf16.msra.mxu0 0
        %972 = vmatpush.bf16.msra.mxu0 0
        %973 = vmatpush.bf16.msra.mxu0 0
        %974 = vmatpush.bf16.msra.mxu0 %v526
        %975 = vmatmul.bf16.gmra.mxu0 %v579
        %v976 = vpop.f32.mrf.mxu0
        %v977 = vadd.f32 %v360, %v976
        %v978 = vpop.f32.mrf.mxu0
        %v979 = vadd.f32 %v365, %v978
        %980 = vmatmul.bf16.gmra.mxu0 %v582
        %v981 = vpop.f32.mrf.mxu0
        %v982 = vadd.f32 %v370, %v981
        %v983 = vpop.f32.mrf.mxu0
        %v984 = vadd.f32 %v375, %v983
        %985 = vmatmul.bf16.gmra.mxu0 %v585
        %v986 = vpop.f32.mrf.mxu0
        %v987 = vadd.f32 %v380, %v986
        %v988 = vpop.f32.mrf.mxu0
        %v989 = vadd.f32 %v385, %v988
        %990 = vmatmul.bf16.gmra.mxu0 %v588
        %v991 = vpop.f32.mrf.mxu0
        %v992 = vadd.f32 %v390, %v991
        %v993 = vpop.f32.mrf.mxu0
        %v994 = vadd.f32 %v395, %v993
        %995 = vdwg.mxu0
        %996 = vmatpush.bf16.msra.mxu0 0
        %997 = vmatpush.bf16.msra.mxu0 0
        %998 = vmatpush.bf16.msra.mxu0 0
        %999 = vmatpush.bf16.msra.mxu0 0
        %1000 = vmatpush.bf16.msra.mxu0 0
        %1001 = vmatpush.bf16.msra.mxu0 0
        %1002 = vmatpush.bf16.msra.mxu0 0
        %1003 = vmatpush.bf16.msra.mxu0 %v527
        %1004 = vmatmul.bf16.gmra.mxu0 %v579
        %v1005 = vpop.f32.mrf.mxu0
        %v1006 = vadd.f32 %v360, %v1005
        %v1007 = vpop.f32.mrf.mxu0
        %v1008 = vadd.f32 %v365, %v1007
        %1009 = vmatmul.bf16.gmra.mxu0 %v582
        %v1010 = vpop.f32.mrf.mxu0
        %v1011 = vadd.f32 %v370, %v1010
        %v1012 = vpop.f32.mrf.mxu0
        %v1013 = vadd.f32 %v375, %v1012
        %1014 = vmatmul.bf16.gmra.mxu0 %v585
        %v1015 = vpop.f32.mrf.mxu0
        %v1016 = vadd.f32 %v380, %v1015
        %v1017 = vpop.f32.mrf.mxu0
        %v1018 = vadd.f32 %v385, %v1017
        %1019 = vmatmul.bf16.gmra.mxu0 %v588
        %v1020 = vpop.f32.mrf.mxu0
        %v1021 = vadd.f32 %v390, %v1020
        %v1022 = vpop.f32.mrf.mxu0
        %v1023 = vadd.f32 %v395, %v1022
        %1024 = vdwg.mxu0
        %1025 = vmatpush.bf16.msra.mxu0 0
        %1026 = vmatpush.bf16.msra.mxu0 0
        %1027 = vmatpush.bf16.msra.mxu0 0
        %1028 = vmatpush.bf16.msra.mxu0 0
        %1029 = vmatpush.bf16.msra.mxu0 0
        %1030 = vmatpush.bf16.msra.mxu0 0
        %1031 = vmatpush.bf16.msra.mxu0 0
        %1032 = vmatpush.bf16.msra.mxu0 %v528
        %1033 = vmatmul.bf16.gmra.mxu0 %v579
        %v1034 = vpop.f32.mrf.mxu0
        %v1035 = vadd.f32 %v360, %v1034
        %v1036 = vpop.f32.mrf.mxu0
        %v1037 = vadd.f32 %v365, %v1036
        %1038 = vmatmul.bf16.gmra.mxu0 %v582
        %v1039 = vpop.f32.mrf.mxu0
        %v1040 = vadd.f32 %v370, %v1039
        %v1041 = vpop.f32.mrf.mxu0
        %v1042 = vadd.f32 %v375, %v1041
        %1043 = vmatmul.bf16.gmra.mxu0 %v585
        %v1044 = vpop.f32.mrf.mxu0
        %v1045 = vadd.f32 %v380, %v1044
        %v1046 = vpop.f32.mrf.mxu0
        %v1047 = vadd.f32 %v385, %v1046
        %1048 = vmatmul.bf16.gmra.mxu0 %v588
        %v1049 = vpop.f32.mrf.mxu0
        %v1050 = vadd.f32 %v390, %v1049
        %v1051 = vpop.f32.mrf.mxu0
        %v1052 = vadd.f32 %v395, %v1051
        %1053 = vdwg.mxu0
        %1054 = vmatpush.bf16.msra.mxu0 0
        %1055 = vmatpush.bf16.msra.mxu0 0
        %1056 = vmatpush.bf16.msra.mxu0 0
        %1057 = vmatpush.bf16.msra.mxu0 0
        %1058 = vmatpush.bf16.msra.mxu0 0
        %1059 = vmatpush.bf16.msra.mxu0 0
        %1060 = vmatpush.bf16.msra.mxu0 0
        %1061 = vmatpush.bf16.msra.mxu0 %v529
        %1062 = vmatmul.bf16.gmra.mxu0 %v579
        %v1063 = vpop.f32.mrf.mxu0
        %v1064 = vadd.f32 %v360, %v1063
        %v1065 = vpop.f32.mrf.mxu0
        %v1066 = vadd.f32 %v365, %v1065
        %1067 = vmatmul.bf16.gmra.mxu0 %v582
        %v1068 = vpop.f32.mrf.mxu0
        %v1069 = vadd.f32 %v370, %v1068
        %v1070 = vpop.f32.mrf.mxu0
        %v1071 = vadd.f32 %v375, %v1070
        %1072 = vmatmul.bf16.gmra.mxu0 %v585
        %v1073 = vpop.f32.mrf.mxu0
        %v1074 = vadd.f32 %v380, %v1073
        %v1075 = vpop.f32.mrf.mxu0
        %v1076 = vadd.f32 %v385, %v1075
        %1077 = vmatmul.bf16.gmra.mxu0 %v588
        %v1078 = vpop.f32.mrf.mxu0
        %v1079 = vadd.f32 %v390, %v1078
        %v1080 = vpop.f32.mrf.mxu0
        %v1081 = vadd.f32 %v395, %v1080
        %1082 = vdwg.mxu0
        %1083 = vmatpush.bf16.msra.mxu0 0
        %1084 = vmatpush.bf16.msra.mxu0 0
        %1085 = vmatpush.bf16.msra.mxu0 0
        %1086 = vmatpush.bf16.msra.mxu0 0
        %1087 = vmatpush.bf16.msra.mxu0 0
        %1088 = vmatpush.bf16.msra.mxu0 0
        %1089 = vmatpush.bf16.msra.mxu0 0
        %1090 = vmatpush.bf16.msra.mxu0 %v530
        %1091 = vmatmul.bf16.gmra.mxu0 %v579
        %v1092 = vpop.f32.mrf.mxu0
        %v1093 = vadd.f32 %v360, %v1092
        %v1094 = vpop.f32.mrf.mxu0
        %v1095 = vadd.f32 %v365, %v1094
        %1096 = vmatmul.bf16.gmra.mxu0 %v582
        %v1097 = vpop.f32.mrf.mxu0
        %v1098 = vadd.f32 %v370, %v1097
        %v1099 = vpop.f32.mrf.mxu0
        %v1100 = vadd.f32 %v375, %v1099
        %1101 = vmatmul.bf16.gmra.mxu0 %v585
        %v1102 = vpop.f32.mrf.mxu0
        %v1103 = vadd.f32 %v380, %v1102
        %v1104 = vpop.f32.mrf.mxu0
        %v1105 = vadd.f32 %v385, %v1104
        %1106 = vmatmul.bf16.gmra.mxu0 %v588
        %v1107 = vpop.f32.mrf.mxu0
        %v1108 = vadd.f32 %v390, %v1107
        %v1109 = vpop.f32.mrf.mxu0
        %v1110 = vadd.f32 %v395, %v1109
        %1111 = vdwg.mxu0
        %1112 = vmatpush.bf16.msra.mxu0 0
        %1113 = vmatpush.bf16.msra.mxu0 0
        %1114 = vmatpush.bf16.msra.mxu0 0
        %1115 = vmatpush.bf16.msra.mxu0 0
        %1116 = vmatpush.bf16.msra.mxu0 0
        %1117 = vmatpush.bf16.msra.mxu0 0
        %1118 = vmatpush.bf16.msra.mxu0 0
        %1119 = vmatpush.bf16.msra.mxu0 %v531
        %1120 = vmatmul.bf16.gmra.mxu0 %v579
        %v1121 = vpop.f32.mrf.mxu0
        %v1122 = vadd.f32 %v360, %v1121
        %v1123 = vpop.f32.mrf.mxu0
        %v1124 = vadd.f32 %v365, %v1123
        %1125 = vmatmul.bf16.gmra.mxu0 %v582
        %v1126 = vpop.f32.mrf.mxu0
        %v1127 = vadd.f32 %v370, %v1126
        %v1128 = vpop.f32.mrf.mxu0
        %v1129 = vadd.f32 %v375, %v1128
        %1130 = vmatmul.bf16.gmra.mxu0 %v585
        %v1131 = vpop.f32.mrf.mxu0
        %v1132 = vadd.f32 %v380, %v1131
        %v1133 = vpop.f32.mrf.mxu0
        %v1134 = vadd.f32 %v385, %v1133
        %1135 = vmatmul.bf16.gmra.mxu0 %v588
        %v1136 = vpop.f32.mrf.mxu0
        %v1137 = vadd.f32 %v390, %v1136
        %v1138 = vpop.f32.mrf.mxu0
        %v1139 = vadd.f32 %v395, %v1138
        %1140 = vdwg.mxu0
        %1141 = vmatpush.bf16.msra.mxu0 0
        %1142 = vmatpush.bf16.msra.mxu0 0
        %1143 = vmatpush.bf16.msra.mxu0 0
        %1144 = vmatpush.bf16.msra.mxu0 0
        %1145 = vmatpush.bf16.msra.mxu0 0
        %1146 = vmatpush.bf16.msra.mxu0 0
        %1147 = vmatpush.bf16.msra.mxu0 0
        %1148 = vmatpush.bf16.msra.mxu0 %v532
        %1149 = vmatmul.bf16.gmra.mxu0 %v579
        %v1150 = vpop.f32.mrf.mxu0
        %v1151 = vadd.f32 %v360, %v1150
        %v1152 = vpop.f32.mrf.mxu0
        %v1153 = vadd.f32 %v365, %v1152
        %1154 = vmatmul.bf16.gmra.mxu0 %v582
        %v1155 = vpop.f32.mrf.mxu0
        %v1156 = vadd.f32 %v370, %v1155
        %v1157 = vpop.f32.mrf.mxu0
        %v1158 = vadd.f32 %v375, %v1157
        %1159 = vmatmul.bf16.gmra.mxu0 %v585
        %v1160 = vpop.f32.mrf.mxu0
        %v1161 = vadd.f32 %v380, %v1160
        %v1162 = vpop.f32.mrf.mxu0
        %v1163 = vadd.f32 %v385, %v1162
        %1164 = vmatmul.bf16.gmra.mxu0 %v588
        %v1165 = vpop.f32.mrf.mxu0
        %v1166 = vadd.f32 %v390, %v1165
        %v1167 = vpop.f32.mrf.mxu0
        %v1168 = vadd.f32 %v395, %v1167
        %1169 = vdwg.mxu0
        %1170 = vmatpush.bf16.msra.mxu0 0
        %1171 = vmatpush.bf16.msra.mxu0 0
        %1172 = vmatpush.bf16.msra.mxu0 0
        %1173 = vmatpush.bf16.msra.mxu0 0
        %1174 = vmatpush.bf16.msra.mxu0 0
        %1175 = vmatpush.bf16.msra.mxu0 0
        %1176 = vmatpush.bf16.msra.mxu0 0
        %1177 = vmatpush.bf16.msra.mxu0 %v533
        %1178 = vmatmul.bf16.gmra.mxu0 %v579
        %v1179 = vpop.f32.mrf.mxu0
        %v1180 = vadd.f32 %v360, %v1179
        %v1181 = vpop.f32.mrf.mxu0
        %v1182 = vadd.f32 %v365, %v1181
        %1183 = vmatmul.bf16.gmra.mxu0 %v582
        %v1184 = vpop.f32.mrf.mxu0
        %v1185 = vadd.f32 %v370, %v1184
        %v1186 = vpop.f32.mrf.mxu0
        %v1187 = vadd.f32 %v375, %v1186
        %1188 = vmatmul.bf16.gmra.mxu0 %v585
        %v1189 = vpop.f32.mrf.mxu0
        %v1190 = vadd.f32 %v380, %v1189
        %v1191 = vpop.f32.mrf.mxu0
        %v1192 = vadd.f32 %v385, %v1191
        %1193 = vmatmul.bf16.gmra.mxu0 %v588
        %v1194 = vpop.f32.mrf.mxu0
        %v1195 = vadd.f32 %v390, %v1194
        %v1196 = vpop.f32.mrf.mxu0
        %v1197 = vadd.f32 %v395, %v1196
        %1198 = vdwg.mxu0
        %1199 = vmatpush.bf16.msra.mxu0 0
        %1200 = vmatpush.bf16.msra.mxu0 0
        %1201 = vmatpush.bf16.msra.mxu0 0
        %1202 = vmatpush.bf16.msra.mxu0 0
        %1203 = vmatpush.bf16.msra.mxu0 0
        %1204 = vmatpush.bf16.msra.mxu0 0
        %1205 = vmatpush.bf16.msra.mxu0 0
        %1206 = vmatpush.bf16.msra.mxu0 %v534
        %1207 = vmatmul.bf16.gmra.mxu0 %v579
        %v1208 = vpop.f32.mrf.mxu0
        %v1209 = vadd.f32 %v360, %v1208
        %v1210 = vpop.f32.mrf.mxu0
        %v1211 = vadd.f32 %v365, %v1210
        %1212 = vmatmul.bf16.gmra.mxu0 %v582
        %v1213 = vpop.f32.mrf.mxu0
        %v1214 = vadd.f32 %v370, %v1213
        %v1215 = vpop.f32.mrf.mxu0
        %v1216 = vadd.f32 %v375, %v1215
        %1217 = vmatmul.bf16.gmra.mxu0 %v585
        %v1218 = vpop.f32.mrf.mxu0
        %v1219 = vadd.f32 %v380, %v1218
        %v1220 = vpop.f32.mrf.mxu0
        %v1221 = vadd.f32 %v385, %v1220
        %1222 = vmatmul.bf16.gmra.mxu0 %v588
        %v1223 = vpop.f32.mrf.mxu0
        %v1224 = vadd.f32 %v390, %v1223
        %v1225 = vpop.f32.mrf.mxu0
        %v1226 = vadd.f32 %v395, %v1225
        %1227 = vdwg.mxu0
        %1228 = vmatpush.bf16.msra.mxu0 0
        %1229 = vmatpush.bf16.msra.mxu0 0
        %1230 = vmatpush.bf16.msra.mxu0 0
        %1231 = vmatpush.bf16.msra.mxu0 0
        %1232 = vmatpush.bf16.msra.mxu0 0
        %1233 = vmatpush.bf16.msra.mxu0 0
        %1234 = vmatpush.bf16.msra.mxu0 0
        %1235 = vmatpush.bf16.msra.mxu0 %v535
        %1236 = vmatmul.bf16.gmra.mxu0 %v579
        %v1237 = vpop.f32.mrf.mxu0
        %v1238 = vadd.f32 %v360, %v1237
        %v1239 = vpop.f32.mrf.mxu0
        %v1240 = vadd.f32 %v365, %v1239
        %1241 = vmatmul.bf16.gmra.mxu0 %v582
        %v1242 = vpop.f32.mrf.mxu0
        %v1243 = vadd.f32 %v370, %v1242
        %v1244 = vpop.f32.mrf.mxu0
        %v1245 = vadd.f32 %v375, %v1244
        %1246 = vmatmul.bf16.gmra.mxu0 %v585
        %v1247 = vpop.f32.mrf.mxu0
        %v1248 = vadd.f32 %v380, %v1247
        %v1249 = vpop.f32.mrf.mxu0
        %v1250 = vadd.f32 %v385, %v1249
        %1251 = vmatmul.bf16.gmra.mxu0 %v588
        %v1252 = vpop.f32.mrf.mxu0
        %v1253 = vadd.f32 %v390, %v1252
        %v1254 = vpop.f32.mrf.mxu0
        %v1255 = vadd.f32 %v395, %v1254
        %1256 = vdwg.mxu0
        %1257 = vmatpush.bf16.msra.mxu0 0
        %1258 = vmatpush.bf16.msra.mxu0 0
        %1259 = vmatpush.bf16.msra.mxu0 0
        %1260 = vmatpush.bf16.msra.mxu0 0
        %1261 = vmatpush.bf16.msra.mxu0 0
        %1262 = vmatpush.bf16.msra.mxu0 0
        %1263 = vmatpush.bf16.msra.mxu0 0
        %1264 = vmatpush.bf16.msra.mxu0 %v536
        %1265 = vmatmul.bf16.gmra.mxu0 %v579
        %v1266 = vpop.f32.mrf.mxu0
        %v1267 = vadd.f32 %v360, %v1266
        %v1268 = vpop.f32.mrf.mxu0
        %v1269 = vadd.f32 %v365, %v1268
        %1270 = vmatmul.bf16.gmra.mxu0 %v582
        %v1271 = vpop.f32.mrf.mxu0
        %v1272 = vadd.f32 %v370, %v1271
        %v1273 = vpop.f32.mrf.mxu0
        %v1274 = vadd.f32 %v375, %v1273
        %1275 = vmatmul.bf16.gmra.mxu0 %v585
        %v1276 = vpop.f32.mrf.mxu0
        %v1277 = vadd.f32 %v380, %v1276
        %v1278 = vpop.f32.mrf.mxu0
        %v1279 = vadd.f32 %v385, %v1278
        %1280 = vmatmul.bf16.gmra.mxu0 %v588
        %v1281 = vpop.f32.mrf.mxu0
        %v1282 = vadd.f32 %v390, %v1281
        %v1283 = vpop.f32.mrf.mxu0
        %v1284 = vadd.f32 %v395, %v1283
        %1285 = vdwg.mxu0
        %1286 = vmatpush.bf16.msra.mxu0 0
        %1287 = vmatpush.bf16.msra.mxu0 0
        %1288 = vmatpush.bf16.msra.mxu0 0
        %1289 = vmatpush.bf16.msra.mxu0 0
        %1290 = vmatpush.bf16.msra.mxu0 0
        %1291 = vmatpush.bf16.msra.mxu0 0
        %1292 = vmatpush.bf16.msra.mxu0 0
        %1293 = vmatpush.bf16.msra.mxu0 %v537
        %1294 = vmatmul.bf16.gmra.mxu0 %v579
        %v1295 = vpop.f32.mrf.mxu0
        %v1296 = vadd.f32 %v360, %v1295
        %v1297 = vpop.f32.mrf.mxu0
        %v1298 = vadd.f32 %v365, %v1297
        %1299 = vmatmul.bf16.gmra.mxu0 %v582
        %v1300 = vpop.f32.mrf.mxu0
        %v1301 = vadd.f32 %v370, %v1300
        %v1302 = vpop.f32.mrf.mxu0
        %v1303 = vadd.f32 %v375, %v1302
        %1304 = vmatmul.bf16.gmra.mxu0 %v585
        %v1305 = vpop.f32.mrf.mxu0
        %v1306 = vadd.f32 %v380, %v1305
        %v1307 = vpop.f32.mrf.mxu0
        %v1308 = vadd.f32 %v385, %v1307
        %1309 = vmatmul.bf16.gmra.mxu0 %v588
        %v1310 = vpop.f32.mrf.mxu0
        %v1311 = vadd.f32 %v390, %v1310
        %v1312 = vpop.f32.mrf.mxu0
        %v1313 = vadd.f32 %v395, %v1312
        %1314 = vdwg.mxu0
        %1315 = vmatpush.bf16.msra.mxu0 0
        %1316 = vmatpush.bf16.msra.mxu0 0
        %1317 = vmatpush.bf16.msra.mxu0 0
        %1318 = vmatpush.bf16.msra.mxu0 0
        %1319 = vmatpush.bf16.msra.mxu0 0
        %1320 = vmatpush.bf16.msra.mxu0 0
        %1321 = vmatpush.bf16.msra.mxu0 0
        %1322 = vmatpush.bf16.msra.mxu0 %v538
        %1323 = vmatmul.bf16.gmra.mxu0 %v579
        %v1324 = vpop.f32.mrf.mxu0
        %v1325 = vadd.f32 %v360, %v1324
        %v1326 = vpop.f32.mrf.mxu0
        %v1327 = vadd.f32 %v365, %v1326
        %1328 = vmatmul.bf16.gmra.mxu0 %v582
        %v1329 = vpop.f32.mrf.mxu0
        %v1330 = vadd.f32 %v370, %v1329
        %v1331 = vpop.f32.mrf.mxu0
        %v1332 = vadd.f32 %v375, %v1331
        %1333 = vmatmul.bf16.gmra.mxu0 %v585
        %v1334 = vpop.f32.mrf.mxu0
        %v1335 = vadd.f32 %v380, %v1334
        %v1336 = vpop.f32.mrf.mxu0
        %v1337 = vadd.f32 %v385, %v1336
        %1338 = vmatmul.bf16.gmra.mxu0 %v588
        %v1339 = vpop.f32.mrf.mxu0
        %v1340 = vadd.f32 %v390, %v1339
        %v1341 = vpop.f32.mrf.mxu0
        %v1342 = vadd.f32 %v395, %v1341
        %1343 = vdwg.mxu0
        %1344 = vmatpush.bf16.msra.mxu0 0
        %1345 = vmatpush.bf16.msra.mxu0 0
        %1346 = vmatpush.bf16.msra.mxu0 0
        %1347 = vmatpush.bf16.msra.mxu0 0
        %1348 = vmatpush.bf16.msra.mxu0 0
        %1349 = vmatpush.bf16.msra.mxu0 0
        %1350 = vmatpush.bf16.msra.mxu0 0
        %1351 = vmatpush.bf16.msra.mxu0 %v539
        %1352 = vmatmul.bf16.gmra.mxu0 %v579
        %v1353 = vpop.f32.mrf.mxu0
        %v1354 = vadd.f32 %v360, %v1353
        %v1355 = vpop.f32.mrf.mxu0
        %v1356 = vadd.f32 %v365, %v1355
        %1357 = vmatmul.bf16.gmra.mxu0 %v582
        %v1358 = vpop.f32.mrf.mxu0
        %v1359 = vadd.f32 %v370, %v1358
        %v1360 = vpop.f32.mrf.mxu0
        %v1361 = vadd.f32 %v375, %v1360
        %1362 = vmatmul.bf16.gmra.mxu0 %v585
        %v1363 = vpop.f32.mrf.mxu0
        %v1364 = vadd.f32 %v380, %v1363
        %v1365 = vpop.f32.mrf.mxu0
        %v1366 = vadd.f32 %v385, %v1365
        %1367 = vmatmul.bf16.gmra.mxu0 %v588
        %v1368 = vpop.f32.mrf.mxu0
        %v1369 = vadd.f32 %v390, %v1368
        %v1370 = vpop.f32.mrf.mxu0
        %v1371 = vadd.f32 %v395, %v1370
        %1372 = vdwg.mxu0
        %1373 = vmatpush.bf16.msra.mxu0 0
        %1374 = vmatpush.bf16.msra.mxu0 0
        %1375 = vmatpush.bf16.msra.mxu0 0
        %1376 = vmatpush.bf16.msra.mxu0 0
        %1377 = vmatpush.bf16.msra.mxu0 0
        %1378 = vmatpush.bf16.msra.mxu0 0
        %1379 = vmatpush.bf16.msra.mxu0 0
        %1380 = vmatpush.bf16.msra.mxu0 %v540
        %1381 = vmatmul.bf16.gmra.mxu0 %v579
        %v1382 = vpop.f32.mrf.mxu0
        %v1383 = vadd.f32 %v360, %v1382
        %v1384 = vpop.f32.mrf.mxu0
        %v1385 = vadd.f32 %v365, %v1384
        %1386 = vmatmul.bf16.gmra.mxu0 %v582
        %v1387 = vpop.f32.mrf.mxu0
        %v1388 = vadd.f32 %v370, %v1387
        %v1389 = vpop.f32.mrf.mxu0
        %v1390 = vadd.f32 %v375, %v1389
        %1391 = vmatmul.bf16.gmra.mxu0 %v585
        %v1392 = vpop.f32.mrf.mxu0
        %v1393 = vadd.f32 %v380, %v1392
        %v1394 = vpop.f32.mrf.mxu0
        %v1395 = vadd.f32 %v385, %v1394
        %1396 = vmatmul.bf16.gmra.mxu0 %v588
        %v1397 = vpop.f32.mrf.mxu0
        %v1398 = vadd.f32 %v390, %v1397
        %v1399 = vpop.f32.mrf.mxu0
        %v1400 = vadd.f32 %v395, %v1399
        %1401 = vdwg.mxu0
        %1402 = vmatpush.bf16.msra.mxu0 0
        %1403 = vmatpush.bf16.msra.mxu0 0
        %1404 = vmatpush.bf16.msra.mxu0 0
        %1405 = vmatpush.bf16.msra.mxu0 0
        %1406 = vmatpush.bf16.msra.mxu0 0
        %1407 = vmatpush.bf16.msra.mxu0 0
        %1408 = vmatpush.bf16.msra.mxu0 0
        %1409 = vmatpush.bf16.msra.mxu0 %v541
        %1410 = vmatmul.bf16.gmra.mxu0 %v579
        %v1411 = vpop.f32.mrf.mxu0
        %v1412 = vadd.f32 %v360, %v1411
        %v1413 = vpop.f32.mrf.mxu0
        %v1414 = vadd.f32 %v365, %v1413
        %1415 = vmatmul.bf16.gmra.mxu0 %v582
        %v1416 = vpop.f32.mrf.mxu0
        %v1417 = vadd.f32 %v370, %v1416
        %v1418 = vpop.f32.mrf.mxu0
        %v1419 = vadd.f32 %v375, %v1418
        %1420 = vmatmul.bf16.gmra.mxu0 %v585
        %v1421 = vpop.f32.mrf.mxu0
        %v1422 = vadd.f32 %v380, %v1421
        %v1423 = vpop.f32.mrf.mxu0
        %v1424 = vadd.f32 %v385, %v1423
        %1425 = vmatmul.bf16.gmra.mxu0 %v588
        %v1426 = vpop.f32.mrf.mxu0
        %v1427 = vadd.f32 %v390, %v1426
        %v1428 = vpop.f32.mrf.mxu0
        %v1429 = vadd.f32 %v395, %v1428
        %1430 = vdwg.mxu0
        %1431 = vmatpush.bf16.msra.mxu0 0
        %1432 = vmatpush.bf16.msra.mxu0 0
        %1433 = vmatpush.bf16.msra.mxu0 0
        %1434 = vmatpush.bf16.msra.mxu0 0
        %1435 = vmatpush.bf16.msra.mxu0 0
        %1436 = vmatpush.bf16.msra.mxu0 0
        %1437 = vmatpush.bf16.msra.mxu0 0
        %1438 = vmatpush.bf16.msra.mxu0 %v542
        %1439 = vmatmul.bf16.gmra.mxu0 %v579
        %v1440 = vpop.f32.mrf.mxu0
        %v1441 = vadd.f32 %v360, %v1440
        %v1442 = vpop.f32.mrf.mxu0
        %v1443 = vadd.f32 %v365, %v1442
        %1444 = vmatmul.bf16.gmra.mxu0 %v582
        %v1445 = vpop.f32.mrf.mxu0
        %v1446 = vadd.f32 %v370, %v1445
        %v1447 = vpop.f32.mrf.mxu0
        %v1448 = vadd.f32 %v375, %v1447
        %1449 = vmatmul.bf16.gmra.mxu0 %v585
        %v1450 = vpop.f32.mrf.mxu0
        %v1451 = vadd.f32 %v380, %v1450
        %v1452 = vpop.f32.mrf.mxu0
        %v1453 = vadd.f32 %v385, %v1452
        %1454 = vmatmul.bf16.gmra.mxu0 %v588
        %v1455 = vpop.f32.mrf.mxu0
        %v1456 = vadd.f32 %v390, %v1455
        %v1457 = vpop.f32.mrf.mxu0
        %v1458 = vadd.f32 %v395, %v1457
        %1459 = vdwg.mxu0
        %1460 = vmatpush.bf16.msra.mxu0 0
        %1461 = vmatpush.bf16.msra.mxu0 0
        %1462 = vmatpush.bf16.msra.mxu0 0
        %1463 = vmatpush.bf16.msra.mxu0 0
        %1464 = vmatpush.bf16.msra.mxu0 0
        %1465 = vmatpush.bf16.msra.mxu0 0
        %1466 = vmatpush.bf16.msra.mxu0 0
        %1467 = vmatpush.bf16.msra.mxu0 %v543
        %1468 = vmatmul.bf16.gmra.mxu0 %v579
        %v1469 = vpop.f32.mrf.mxu0
        %v1470 = vadd.f32 %v360, %v1469
        %v1471 = vpop.f32.mrf.mxu0
        %v1472 = vadd.f32 %v365, %v1471
        %1473 = vmatmul.bf16.gmra.mxu0 %v582
        %v1474 = vpop.f32.mrf.mxu0
        %v1475 = vadd.f32 %v370, %v1474
        %v1476 = vpop.f32.mrf.mxu0
        %v1477 = vadd.f32 %v375, %v1476
        %1478 = vmatmul.bf16.gmra.mxu0 %v585
        %v1479 = vpop.f32.mrf.mxu0
        %v1480 = vadd.f32 %v380, %v1479
        %v1481 = vpop.f32.mrf.mxu0
        %v1482 = vadd.f32 %v385, %v1481
        %1483 = vmatmul.bf16.gmra.mxu0 %v588
        %v1484 = vpop.f32.mrf.mxu0
        %v1485 = vadd.f32 %v390, %v1484
        %v1486 = vpop.f32.mrf.mxu0
        %v1487 = vadd.f32 %v395, %v1486
        %1488 = vdwg.mxu0
        %1489 = vmatpush.bf16.msra.mxu0 0
        %1490 = vmatpush.bf16.msra.mxu0 0
        %1491 = vmatpush.bf16.msra.mxu0 0
        %1492 = vmatpush.bf16.msra.mxu0 0
        %1493 = vmatpush.bf16.msra.mxu0 0
        %1494 = vmatpush.bf16.msra.mxu0 0
        %1495 = vmatpush.bf16.msra.mxu0 0
        %1496 = vmatpush.bf16.msra.mxu0 %v544
        %1497 = vmatmul.bf16.gmra.mxu0 %v579
        %v1498 = vpop.f32.mrf.mxu0
        %v1499 = vadd.f32 %v360, %v1498
        %v1500 = vpop.f32.mrf.mxu0
        %v1501 = vadd.f32 %v365, %v1500
        %1502 = vmatmul.bf16.gmra.mxu0 %v582
        %v1503 = vpop.f32.mrf.mxu0
        %v1504 = vadd.f32 %v370, %v1503
        %v1505 = vpop.f32.mrf.mxu0
        %v1506 = vadd.f32 %v375, %v1505
        %1507 = vmatmul.bf16.gmra.mxu0 %v585
        %v1508 = vpop.f32.mrf.mxu0
        %v1509 = vadd.f32 %v380, %v1508
        %v1510 = vpop.f32.mrf.mxu0
        %v1511 = vadd.f32 %v385, %v1510
        %1512 = vmatmul.bf16.gmra.mxu0 %v588
        %v1513 = vpop.f32.mrf.mxu0
        %v1514 = vadd.f32 %v390, %v1513
        %v1515 = vpop.f32.mrf.mxu0
        %v1516 = vadd.f32 %v395, %v1515
        %1517 = vdwg.mxu0
        %v1518 = vmax.f32 %v600, 0.0
        %v1519 = vmax.f32 %v629, 0.0
        %v1520 = vmax.f32 %v658, 0.0
        %v1521 = vmax.f32 %v687, 0.0
        %v1522 = vmax.f32 %v716, 0.0
        %v1523 = vmax.f32 %v745, 0.0
        %v1524 = vmax.f32 %v774, 0.0
        %v1525 = vmax.f32 %v803, 0.0
        %v1526 = vmax.f32 %v832, 0.0
        %v1527 = vmax.f32 %v861, 0.0
        %v1528 = vmax.f32 %v890, 0.0
        %v1529 = vmax.f32 %v919, 0.0
        %v1530 = vmax.f32 %v948, 0.0
        %v1531 = vmax.f32 %v977, 0.0
        %v1532 = vmax.f32 %v1006, 0.0
        %v1533 = vmax.f32 %v1035, 0.0
        %v1534 = vmax.f32 %v1064, 0.0
        %v1535 = vmax.f32 %v1093, 0.0
        %v1536 = vmax.f32 %v1122, 0.0
        %v1537 = vmax.f32 %v1151, 0.0
        %v1538 = vmax.f32 %v1180, 0.0
        %v1539 = vmax.f32 %v1209, 0.0
        %v1540 = vmax.f32 %v1238, 0.0
        %v1541 = vmax.f32 %v1267, 0.0
        %v1542 = vmax.f32 %v1296, 0.0
        %v1543 = vmax.f32 %v1325, 0.0
        %v1544 = vmax.f32 %v1354, 0.0
        %v1545 = vmax.f32 %v1383, 0.0
        %v1546 = vmax.f32 %v1412, 0.0
        %v1547 = vmax.f32 %v1441, 0.0
        %v1548 = vmax.f32 %v1470, 0.0
        %v1549 = vmax.f32 %v1499, 0.0
        %v1550 = vmax.f32 %v602, 0.0
        %v1551 = vmax.f32 %v631, 0.0
        %v1552 = vmax.f32 %v660, 0.0
        %v1553 = vmax.f32 %v689, 0.0
        %v1554 = vmax.f32 %v718, 0.0
        %v1555 = vmax.f32 %v747, 0.0
        %v1556 = vmax.f32 %v776, 0.0
        %v1557 = vmax.f32 %v805, 0.0
        %v1558 = vmax.f32 %v834, 0.0
        %v1559 = vmax.f32 %v863, 0.0
        %v1560 = vmax.f32 %v892, 0.0
        %v1561 = vmax.f32 %v921, 0.0
        %v1562 = vmax.f32 %v950, 0.0
        %v1563 = vmax.f32 %v979, 0.0
        %v1564 = vmax.f32 %v1008, 0.0
        %v1565 = vmax.f32 %v1037, 0.0
        %v1566 = vmax.f32 %v1066, 0.0
        %v1567 = vmax.f32 %v1095, 0.0
        %v1568 = vmax.f32 %v1124, 0.0
        %v1569 = vmax.f32 %v1153, 0.0
        %v1570 = vmax.f32 %v1182, 0.0
        %v1571 = vmax.f32 %v1211, 0.0
        %v1572 = vmax.f32 %v1240, 0.0
        %v1573 = vmax.f32 %v1269, 0.0
        %v1574 = vmax.f32 %v1298, 0.0
        %v1575 = vmax.f32 %v1327, 0.0
        %v1576 = vmax.f32 %v1356, 0.0
        %v1577 = vmax.f32 %v1385, 0.0
        %v1578 = vmax.f32 %v1414, 0.0
        %v1579 = vmax.f32 %v1443, 0.0
        %v1580 = vmax.f32 %v1472, 0.0
        %v1581 = vmax.f32 %v1501, 0.0
        %v1582 = vmax.f32 %v605, 0.0
        %v1583 = vmax.f32 %v634, 0.0
        %v1584 = vmax.f32 %v663, 0.0
        %v1585 = vmax.f32 %v692, 0.0
        %v1586 = vmax.f32 %v721, 0.0
        %v1587 = vmax.f32 %v750, 0.0
        %v1588 = vmax.f32 %v779, 0.0
        %v1589 = vmax.f32 %v808, 0.0
        %v1590 = vmax.f32 %v837, 0.0
        %v1591 = vmax.f32 %v866, 0.0
        %v1592 = vmax.f32 %v895, 0.0
        %v1593 = vmax.f32 %v924, 0.0
        %v1594 = vmax.f32 %v953, 0.0
        %v1595 = vmax.f32 %v982, 0.0
        %v1596 = vmax.f32 %v1011, 0.0
        %v1597 = vmax.f32 %v1040, 0.0
        %v1598 = vmax.f32 %v1069, 0.0
        %v1599 = vmax.f32 %v1098, 0.0
        %v1600 = vmax.f32 %v1127, 0.0
        %v1601 = vmax.f32 %v1156, 0.0
        %v1602 = vmax.f32 %v1185, 0.0
        %v1603 = vmax.f32 %v1214, 0.0
        %v1604 = vmax.f32 %v1243, 0.0
        %v1605 = vmax.f32 %v1272, 0.0
        %v1606 = vmax.f32 %v1301, 0.0
        %v1607 = vmax.f32 %v1330, 0.0
        %v1608 = vmax.f32 %v1359, 0.0
        %v1609 = vmax.f32 %v1388, 0.0
        %v1610 = vmax.f32 %v1417, 0.0
        %v1611 = vmax.f32 %v1446, 0.0
        %v1612 = vmax.f32 %v1475, 0.0
        %v1613 = vmax.f32 %v1504, 0.0
        %v1614 = vmax.f32 %v607, 0.0
        %v1615 = vmax.f32 %v636, 0.0
        %v1616 = vmax.f32 %v665, 0.0
        %v1617 = vmax.f32 %v694, 0.0
        %v1618 = vmax.f32 %v723, 0.0
        %v1619 = vmax.f32 %v752, 0.0
        %v1620 = vmax.f32 %v781, 0.0
        %v1621 = vmax.f32 %v810, 0.0
        %v1622 = vmax.f32 %v839, 0.0
        %v1623 = vmax.f32 %v868, 0.0
        %v1624 = vmax.f32 %v897, 0.0
        %v1625 = vmax.f32 %v926, 0.0
        %v1626 = vmax.f32 %v955, 0.0
        %v1627 = vmax.f32 %v984, 0.0
        %v1628 = vmax.f32 %v1013, 0.0
        %v1629 = vmax.f32 %v1042, 0.0
        %v1630 = vmax.f32 %v1071, 0.0
        %v1631 = vmax.f32 %v1100, 0.0
        %v1632 = vmax.f32 %v1129, 0.0
        %v1633 = vmax.f32 %v1158, 0.0
        %v1634 = vmax.f32 %v1187, 0.0
        %v1635 = vmax.f32 %v1216, 0.0
        %v1636 = vmax.f32 %v1245, 0.0
        %v1637 = vmax.f32 %v1274, 0.0
        %v1638 = vmax.f32 %v1303, 0.0
        %v1639 = vmax.f32 %v1332, 0.0
        %v1640 = vmax.f32 %v1361, 0.0
        %v1641 = vmax.f32 %v1390, 0.0
        %v1642 = vmax.f32 %v1419, 0.0
        %v1643 = vmax.f32 %v1448, 0.0
        %v1644 = vmax.f32 %v1477, 0.0
        %v1645 = vmax.f32 %v1506, 0.0
        %v1646 = vmax.f32 %v610, 0.0
        %v1647 = vmax.f32 %v639, 0.0
        %v1648 = vmax.f32 %v668, 0.0
        %v1649 = vmax.f32 %v697, 0.0
        %v1650 = vmax.f32 %v726, 0.0
        %v1651 = vmax.f32 %v755, 0.0
        %v1652 = vmax.f32 %v784, 0.0
        %v1653 = vmax.f32 %v813, 0.0
        %v1654 = vmax.f32 %v842, 0.0
        %v1655 = vmax.f32 %v871, 0.0
        %v1656 = vmax.f32 %v900, 0.0
        %v1657 = vmax.f32 %v929, 0.0
        %v1658 = vmax.f32 %v958, 0.0
        %v1659 = vmax.f32 %v987, 0.0
        %v1660 = vmax.f32 %v1016, 0.0
        %v1661 = vmax.f32 %v1045, 0.0
        %v1662 = vmax.f32 %v1074, 0.0
        %v1663 = vmax.f32 %v1103, 0.0
        %v1664 = vmax.f32 %v1132, 0.0
        %v1665 = vmax.f32 %v1161, 0.0
        %v1666 = vmax.f32 %v1190, 0.0
        %v1667 = vmax.f32 %v1219, 0.0
        %v1668 = vmax.f32 %v1248, 0.0
        %v1669 = vmax.f32 %v1277, 0.0
        %v1670 = vmax.f32 %v1306, 0.0
        %v1671 = vmax.f32 %v1335, 0.0
        %v1672 = vmax.f32 %v1364, 0.0
        %v1673 = vmax.f32 %v1393, 0.0
        %v1674 = vmax.f32 %v1422, 0.0
        %v1675 = vmax.f32 %v1451, 0.0
        %v1676 = vmax.f32 %v1480, 0.0
        %v1677 = vmax.f32 %v1509, 0.0
        %v1678 = vmax.f32 %v612, 0.0
        %v1679 = vmax.f32 %v641, 0.0
        %v1680 = vmax.f32 %v670, 0.0
        %v1681 = vmax.f32 %v699, 0.0
        %v1682 = vmax.f32 %v728, 0.0
        %v1683 = vmax.f32 %v757, 0.0
        %v1684 = vmax.f32 %v786, 0.0
        %v1685 = vmax.f32 %v815, 0.0
        %v1686 = vmax.f32 %v844, 0.0
        %v1687 = vmax.f32 %v873, 0.0
        %v1688 = vmax.f32 %v902, 0.0
        %v1689 = vmax.f32 %v931, 0.0
        %v1690 = vmax.f32 %v960, 0.0
        %v1691 = vmax.f32 %v989, 0.0
        %v1692 = vmax.f32 %v1018, 0.0
        %v1693 = vmax.f32 %v1047, 0.0
        %v1694 = vmax.f32 %v1076, 0.0
        %v1695 = vmax.f32 %v1105, 0.0
        %v1696 = vmax.f32 %v1134, 0.0
        %v1697 = vmax.f32 %v1163, 0.0
        %v1698 = vmax.f32 %v1192, 0.0
        %v1699 = vmax.f32 %v1221, 0.0
        %v1700 = vmax.f32 %v1250, 0.0
        %v1701 = vmax.f32 %v1279, 0.0
        %v1702 = vmax.f32 %v1308, 0.0
        %v1703 = vmax.f32 %v1337, 0.0
        %v1704 = vmax.f32 %v1366, 0.0
        %v1705 = vmax.f32 %v1395, 0.0
        %v1706 = vmax.f32 %v1424, 0.0
        %v1707 = vmax.f32 %v1453, 0.0
        %v1708 = vmax.f32 %v1482, 0.0
        %v1709 = vmax.f32 %v1511, 0.0
        %v1710 = vmax.f32 %v615, 0.0
        %v1711 = vmax.f32 %v644, 0.0
        %v1712 = vmax.f32 %v673, 0.0
        %v1713 = vmax.f32 %v702, 0.0
        %v1714 = vmax.f32 %v731, 0.0
        %v1715 = vmax.f32 %v760, 0.0
        %v1716 = vmax.f32 %v789, 0.0
        %v1717 = vmax.f32 %v818, 0.0
        %v1718 = vmax.f32 %v847, 0.0
        %v1719 = vmax.f32 %v876, 0.0
        %v1720 = vmax.f32 %v905, 0.0
        %v1721 = vmax.f32 %v934, 0.0
        %v1722 = vmax.f32 %v963, 0.0
        %v1723 = vmax.f32 %v992, 0.0
        %v1724 = vmax.f32 %v1021, 0.0
        %v1725 = vmax.f32 %v1050, 0.0
        %v1726 = vmax.f32 %v1079, 0.0
        %v1727 = vmax.f32 %v1108, 0.0
        %v1728 = vmax.f32 %v1137, 0.0
        %v1729 = vmax.f32 %v1166, 0.0
        %v1730 = vmax.f32 %v1195, 0.0
        %v1731 = vmax.f32 %v1224, 0.0
        %v1732 = vmax.f32 %v1253, 0.0
        %v1733 = vmax.f32 %v1282, 0.0
        %v1734 = vmax.f32 %v1311, 0.0
        %v1735 = vmax.f32 %v1340, 0.0
        %v1736 = vmax.f32 %v1369, 0.0
        %v1737 = vmax.f32 %v1398, 0.0
        %v1738 = vmax.f32 %v1427, 0.0
        %v1739 = vmax.f32 %v1456, 0.0
        %v1740 = vmax.f32 %v1485, 0.0
        %v1741 = vmax.f32 %v1514, 0.0
        %v1742 = vmax.f32 %v617, 0.0
        %v1743 = vmax.f32 %v646, 0.0
        %v1744 = vmax.f32 %v675, 0.0
        %v1745 = vmax.f32 %v704, 0.0
        %v1746 = vmax.f32 %v733, 0.0
        %v1747 = vmax.f32 %v762, 0.0
        %v1748 = vmax.f32 %v791, 0.0
        %v1749 = vmax.f32 %v820, 0.0
        %v1750 = vmax.f32 %v849, 0.0
        %v1751 = vmax.f32 %v878, 0.0
        %v1752 = vmax.f32 %v907, 0.0
        %v1753 = vmax.f32 %v936, 0.0
        %v1754 = vmax.f32 %v965, 0.0
        %v1755 = vmax.f32 %v994, 0.0
        %v1756 = vmax.f32 %v1023, 0.0
        %v1757 = vmax.f32 %v1052, 0.0
        %v1758 = vmax.f32 %v1081, 0.0
        %v1759 = vmax.f32 %v1110, 0.0
        %v1760 = vmax.f32 %v1139, 0.0
        %v1761 = vmax.f32 %v1168, 0.0
        %v1762 = vmax.f32 %v1197, 0.0
        %v1763 = vmax.f32 %v1226, 0.0
        %v1764 = vmax.f32 %v1255, 0.0
        %v1765 = vmax.f32 %v1284, 0.0
        %v1766 = vmax.f32 %v1313, 0.0
        %v1767 = vmax.f32 %v1342, 0.0
        %v1768 = vmax.f32 %v1371, 0.0
        %v1769 = vmax.f32 %v1400, 0.0
        %v1770 = vmax.f32 %v1429, 0.0
        %v1771 = vmax.f32 %v1458, 0.0
        %v1772 = vmax.f32 %v1487, 0.0
        %v1773 = vmax.f32 %v1516, 0.0
        %v1774 = vld [vmem:[%s3] sm:$0xf]
        %v1775 = vld [vmem:[%s3 + $0x4] sm:$0xf]
        %v1776 = vld [vmem:[%s3 + $0x8] sm:$0xf]
        %v1777 = vld [vmem:[%s3 + $0xc] sm:$0xf]
        %v1778 = vld [vmem:[%s3 + $0x10] sm:$0xf]
        %v1779 = vld [vmem:[%s3 + $0x14] sm:$0xf]
        %v1780 = vld [vmem:[%s3 + $0x18] sm:$0xf]
        %v1781 = vld [vmem:[%s3 + $0x1c] sm:$0xf]
        %v1782 = vpack.c.bf16 %v1550, %v1518
        %v1783 = vpack.c.bf16 %v1551, %v1519
        %v1784 = vpack.c.bf16 %v1552, %v1520
        %v1785 = vpack.c.bf16 %v1553, %v1521
        %v1786 = vpack.c.bf16 %v1554, %v1522
        %v1787 = vpack.c.bf16 %v1555, %v1523
        %v1788 = vpack.c.bf16 %v1556, %v1524
        %v1789 = vpack.c.bf16 %v1557, %v1525
        %v1790 = vpack.c.bf16 %v1558, %v1526
        %v1791 = vpack.c.bf16 %v1559, %v1527
        %v1792 = vpack.c.bf16 %v1560, %v1528
        %v1793 = vpack.c.bf16 %v1561, %v1529
        %v1794 = vpack.c.bf16 %v1562, %v1530
        %v1795 = vpack.c.bf16 %v1563, %v1531
        %v1796 = vpack.c.bf16 %v1564, %v1532
        %v1797 = vpack.c.bf16 %v1565, %v1533
        %v1798 = vpack.c.bf16 %v1566, %v1534
        %v1799 = vpack.c.bf16 %v1567, %v1535
        %v1800 = vpack.c.bf16 %v1568, %v1536
        %v1801 = vpack.c.bf16 %v1569, %v1537
        %v1802 = vpack.c.bf16 %v1570, %v1538
        %v1803 = vpack.c.bf16 %v1571, %v1539
        %v1804 = vpack.c.bf16 %v1572, %v1540
        %v1805 = vpack.c.bf16 %v1573, %v1541
        %v1806 = vpack.c.bf16 %v1574, %v1542
        %v1807 = vpack.c.bf16 %v1575, %v1543
        %v1808 = vpack.c.bf16 %v1576, %v1544
        %v1809 = vpack.c.bf16 %v1577, %v1545
        %v1810 = vpack.c.bf16 %v1578, %v1546
        %v1811 = vpack.c.bf16 %v1579, %v1547
        %v1812 = vpack.c.bf16 %v1580, %v1548
        %v1813 = vpack.c.bf16 %v1581, %v1549
        %v1814 = vpack.c.bf16 %v1614, %v1582
        %v1815 = vpack.c.bf16 %v1615, %v1583
        %v1816 = vpack.c.bf16 %v1616, %v1584
        %v1817 = vpack.c.bf16 %v1617, %v1585
        %v1818 = vpack.c.bf16 %v1618, %v1586
        %v1819 = vpack.c.bf16 %v1619, %v1587
        %v1820 = vpack.c.bf16 %v1620, %v1588
        %v1821 = vpack.c.bf16 %v1621, %v1589
        %v1822 = vpack.c.bf16 %v1622, %v1590
        %v1823 = vpack.c.bf16 %v1623, %v1591
        %v1824 = vpack.c.bf16 %v1624, %v1592
        %v1825 = vpack.c.bf16 %v1625, %v1593
        %v1826 = vpack.c.bf16 %v1626, %v1594
        %v1827 = vpack.c.bf16 %v1627, %v1595
        %v1828 = vpack.c.bf16 %v1628, %v1596
        %v1829 = vpack.c.bf16 %v1629, %v1597
        %v1830 = vpack.c.bf16 %v1630, %v1598
        %v1831 = vpack.c.bf16 %v1631, %v1599
        %v1832 = vpack.c.bf16 %v1632, %v1600
        %v1833 = vpack.c.bf16 %v1633, %v1601
        %v1834 = vpack.c.bf16 %v1634, %v1602
        %v1835 = vpack.c.bf16 %v1635, %v1603
        %v1836 = vpack.c.bf16 %v1636, %v1604
        %v1837 = vpack.c.bf16 %v1637, %v1605
        %v1838 = vpack.c.bf16 %v1638, %v1606
        %v1839 = vpack.c.bf16 %v1639, %v1607
        %v1840 = vpack.c.bf16 %v1640, %v1608
        %v1841 = vpack.c.bf16 %v1641, %v1609
        %v1842 = vpack.c.bf16 %v1642, %v1610
        %v1843 = vpack.c.bf16 %v1643, %v1611
        %v1844 = vpack.c.bf16 %v1644, %v1612
        %v1845 = vpack.c.bf16 %v1645, %v1613
        %v1846 = vpack.c.bf16 %v1678, %v1646
        %v1847 = vpack.c.bf16 %v1679, %v1647
        %v1848 = vpack.c.bf16 %v1680, %v1648
        %v1849 = vpack.c.bf16 %v1681, %v1649
        %v1850 = vpack.c.bf16 %v1682, %v1650
        %v1851 = vpack.c.bf16 %v1683, %v1651
        %v1852 = vpack.c.bf16 %v1684, %v1652
        %v1853 = vpack.c.bf16 %v1685, %v1653
        %v1854 = vpack.c.bf16 %v1686, %v1654
        %v1855 = vpack.c.bf16 %v1687, %v1655
        %v1856 = vpack.c.bf16 %v1688, %v1656
        %v1857 = vpack.c.bf16 %v1689, %v1657
        %v1858 = vpack.c.bf16 %v1690, %v1658
        %v1859 = vpack.c.bf16 %v1691, %v1659
        %v1860 = vpack.c.bf16 %v1692, %v1660
        %v1861 = vpack.c.bf16 %v1693, %v1661
        %v1862 = vpack.c.bf16 %v1694, %v1662
        %v1863 = vpack.c.bf16 %v1695, %v1663
        %v1864 = vpack.c.bf16 %v1696, %v1664
        %v1865 = vpack.c.bf16 %v1697, %v1665
        %v1866 = vpack.c.bf16 %v1698, %v1666
        %v1867 = vpack.c.bf16 %v1699, %v1667
        %v1868 = vpack.c.bf16 %v1700, %v1668
        %v1869 = vpack.c.bf16 %v1701, %v1669
        %v1870 = vpack.c.bf16 %v1702, %v1670
        %v1871 = vpack.c.bf16 %v1703, %v1671
        %v1872 = vpack.c.bf16 %v1704, %v1672
        %v1873 = vpack.c.bf16 %v1705, %v1673
        %v1874 = vpack.c.bf16 %v1706, %v1674
        %v1875 = vpack.c.bf16 %v1707, %v1675
        %v1876 = vpack.c.bf16 %v1708, %v1676
        %v1877 = vpack.c.bf16 %v1709, %v1677
        %v1878 = vpack.c.bf16 %v1742, %v1710
        %v1879 = vpack.c.bf16 %v1743, %v1711
        %v1880 = vpack.c.bf16 %v1744, %v1712
        %v1881 = vpack.c.bf16 %v1745, %v1713
        %v1882 = vpack.c.bf16 %v1746, %v1714
        %v1883 = vpack.c.bf16 %v1747, %v1715
        %v1884 = vpack.c.bf16 %v1748, %v1716
        %v1885 = vpack.c.bf16 %v1749, %v1717
        %v1886 = vpack.c.bf16 %v1750, %v1718
        %v1887 = vpack.c.bf16 %v1751, %v1719
        %v1888 = vpack.c.bf16 %v1752, %v1720
        %v1889 = vpack.c.bf16 %v1753, %v1721
        %v1890 = vpack.c.bf16 %v1754, %v1722
        %v1891 = vpack.c.bf16 %v1755, %v1723
        %v1892 = vpack.c.bf16 %v1756, %v1724
        %v1893 = vpack.c.bf16 %v1757, %v1725
        %v1894 = vpack.c.bf16 %v1758, %v1726
        %v1895 = vpack.c.bf16 %v1759, %v1727
        %v1896 = vpack.c.bf16 %v1760, %v1728
        %v1897 = vpack.c.bf16 %v1761, %v1729
        %v1898 = vpack.c.bf16 %v1762, %v1730
        %v1899 = vpack.c.bf16 %v1763, %v1731
        %v1900 = vpack.c.bf16 %v1764, %v1732
        %v1901 = vpack.c.bf16 %v1765, %v1733
        %v1902 = vpack.c.bf16 %v1766, %v1734
        %v1903 = vpack.c.bf16 %v1767, %v1735
        %v1904 = vpack.c.bf16 %v1768, %v1736
        %v1905 = vpack.c.bf16 %v1769, %v1737
        %v1906 = vpack.c.bf16 %v1770, %v1738
        %v1907 = vpack.c.bf16 %v1771, %v1739
        %v1908 = vpack.c.bf16 %v1772, %v1740
        %v1909 = vpack.c.bf16 %v1773, %v1741
        %v1910 = vld [vmem:[%s4] sm:$0xff]
        %v1911 = vld [vmem:[%s4 + $0x8] sm:$0xff]
        %v1912 = vld [vmem:[%s4 + $0x10] sm:$0xff]
        %v1913 = vld [vmem:[%s4 + $0x18] sm:$0xff]
        %v1914 = vld [vmem:[%s4 + $0x20] sm:$0xff]
        %v1915 = vld [vmem:[%s4 + $0x28] sm:$0xff]
        %v1916 = vld [vmem:[%s4 + $0x30] sm:$0xff]
        %v1917 = vld [vmem:[%s4 + $0x38] sm:$0xff]
        %1919 = vset.pattern.permute.xlu0 0
        %1920 = vperm.xlu0 %1919, %v1910
        %v1921 = vpop.permute.xlu0 %1920
        %1924 = vset.pattern.permute.xlu0 0
        %1925 = vperm.xlu0 %1924, %v1911
        %v1926 = vpop.permute.xlu0 %1925
        %1929 = vset.pattern.permute.xlu0 0
        %1930 = vperm.xlu0 %1929, %v1912
        %v1931 = vpop.permute.xlu0 %1930
        %1934 = vset.pattern.permute.xlu0 0
        %1935 = vperm.xlu0 %1934, %v1913
        %v1936 = vpop.permute.xlu0 %1935
        %1939 = vset.pattern.permute.xlu0 0
        %1940 = vperm.xlu0 %1939, %v1914
        %v1941 = vpop.permute.xlu0 %1940
        %1944 = vset.pattern.permute.xlu0 0
        %1945 = vperm.xlu0 %1944, %v1915
        %v1946 = vpop.permute.xlu0 %1945
        %1949 = vset.pattern.permute.xlu0 0
        %1950 = vperm.xlu0 %1949, %v1916
        %v1951 = vpop.permute.xlu0 %1950
        %1954 = vset.pattern.permute.xlu0 0
        %1955 = vperm.xlu0 %1954, %v1917
        %v1956 = vpop.permute.xlu0 %1955
        %v1966 = vunpack.c.l.b16 %v1774
        %v1967 = vunpack.c.l.b16 %v1775
        %v1968 = vunpack.c.l.b16 %v1776
        %v1969 = vunpack.c.l.b16 %v1777
        %v1970 = vunpack.c.l.b16 %v1778
        %v1971 = vunpack.c.l.b16 %v1779
        %v1972 = vunpack.c.l.b16 %v1780
        %v1973 = vunpack.c.l.b16 %v1781
        %v1974 = vpack.c.b16 %v1967, %v1966
        %v1975 = vpack.c.b16 %v1969, %v1968
        %v1976 = vpack.c.b16 %v1971, %v1970
        %v1977 = vpack.c.b16 %v1973, %v1972
        %vm1978 = vcmask 523264
        %v1980 = vsel %vm1978, %v1974, 0
        %v1983 = vsel %vm1978, %v1975, 0
        %v1986 = vsel %vm1978, %v1976, 0
        %v1989 = vsel %vm1978, %v1977, 0
        %1991 = vmatpush.bf16.msra.mxu0 0
        %1992 = vmatpush.bf16.msra.mxu0 0
        %1993 = vmatpush.bf16.msra.mxu0 0
        %1994 = vmatpush.bf16.msra.mxu0 0
        %1995 = vmatpush.bf16.msra.mxu0 %v1878
        %1996 = vmatpush.bf16.msra.mxu0 %v1846
        %1997 = vmatpush.bf16.msra.mxu0 %v1814
        %1998 = vmatpush.bf16.msra.mxu0 %v1782
        %1999 = vmatmul.bf16.gmra.mxu0 %v1980
        %v2000 = vpop.f32.mrf.mxu0
        %v2001 = vadd.f32 %v1921, %v2000
        %v2002 = vpop.f32.mrf.mxu0
        %v2003 = vadd.f32 %v1926, %v2002
        %2004 = vmatmul.bf16.gmra.mxu0 %v1983
        %v2005 = vpop.f32.mrf.mxu0
        %v2006 = vadd.f32 %v1931, %v2005
        %v2007 = vpop.f32.mrf.mxu0
        %v2008 = vadd.f32 %v1936, %v2007
        %2009 = vmatmul.bf16.gmra.mxu0 %v1986
        %v2010 = vpop.f32.mrf.mxu0
        %v2011 = vadd.f32 %v1941, %v2010
        %v2012 = vpop.f32.mrf.mxu0
        %v2013 = vadd.f32 %v1946, %v2012
        %2014 = vmatmul.bf16.gmra.mxu0 %v1989
        %v2015 = vpop.f32.mrf.mxu0
        %v2016 = vadd.f32 %v1951, %v2015
        %v2017 = vpop.f32.mrf.mxu0
        %v2018 = vadd.f32 %v1956, %v2017
        %2019 = vdwg.mxu0
        %2020 = vmatpush.bf16.msra.mxu0 0
        %2021 = vmatpush.bf16.msra.mxu0 0
        %2022 = vmatpush.bf16.msra.mxu0 0
        %2023 = vmatpush.bf16.msra.mxu0 0
        %2024 = vmatpush.bf16.msra.mxu0 %v1879
        %2025 = vmatpush.bf16.msra.mxu0 %v1847
        %2026 = vmatpush.bf16.msra.mxu0 %v1815
        %2027 = vmatpush.bf16.msra.mxu0 %v1783
        %2028 = vmatmul.bf16.gmra.mxu0 %v1980
        %v2029 = vpop.f32.mrf.mxu0
        %v2030 = vadd.f32 %v1921, %v2029
        %v2031 = vpop.f32.mrf.mxu0
        %v2032 = vadd.f32 %v1926, %v2031
        %2033 = vmatmul.bf16.gmra.mxu0 %v1983
        %v2034 = vpop.f32.mrf.mxu0
        %v2035 = vadd.f32 %v1931, %v2034
        %v2036 = vpop.f32.mrf.mxu0
        %v2037 = vadd.f32 %v1936, %v2036
        %2038 = vmatmul.bf16.gmra.mxu0 %v1986
        %v2039 = vpop.f32.mrf.mxu0
        %v2040 = vadd.f32 %v1941, %v2039
        %v2041 = vpop.f32.mrf.mxu0
        %v2042 = vadd.f32 %v1946, %v2041
        %2043 = vmatmul.bf16.gmra.mxu0 %v1989
        %v2044 = vpop.f32.mrf.mxu0
        %v2045 = vadd.f32 %v1951, %v2044
        %v2046 = vpop.f32.mrf.mxu0
        %v2047 = vadd.f32 %v1956, %v2046
        %2048 = vdwg.mxu0
        %2049 = vmatpush.bf16.msra.mxu0 0
        %2050 = vmatpush.bf16.msra.mxu0 0
        %2051 = vmatpush.bf16.msra.mxu0 0
        %2052 = vmatpush.bf16.msra.mxu0 0
        %2053 = vmatpush.bf16.msra.mxu0 %v1880
        %2054 = vmatpush.bf16.msra.mxu0 %v1848
        %2055 = vmatpush.bf16.msra.mxu0 %v1816
        %2056 = vmatpush.bf16.msra.mxu0 %v1784
        %2057 = vmatmul.bf16.gmra.mxu0 %v1980
        %v2058 = vpop.f32.mrf.mxu0
        %v2059 = vadd.f32 %v1921, %v2058
        %v2060 = vpop.f32.mrf.mxu0
        %v2061 = vadd.f32 %v1926, %v2060
        %2062 = vmatmul.bf16.gmra.mxu0 %v1983
        %v2063 = vpop.f32.mrf.mxu0
        %v2064 = vadd.f32 %v1931, %v2063
        %v2065 = vpop.f32.mrf.mxu0
        %v2066 = vadd.f32 %v1936, %v2065
        %2067 = vmatmul.bf16.gmra.mxu0 %v1986
        %v2068 = vpop.f32.mrf.mxu0
        %v2069 = vadd.f32 %v1941, %v2068
        %v2070 = vpop.f32.mrf.mxu0
        %v2071 = vadd.f32 %v1946, %v2070
        %2072 = vmatmul.bf16.gmra.mxu0 %v1989
        %v2073 = vpop.f32.mrf.mxu0
        %v2074 = vadd.f32 %v1951, %v2073
        %v2075 = vpop.f32.mrf.mxu0
        %v2076 = vadd.f32 %v1956, %v2075
        %2077 = vdwg.mxu0
        %2078 = vmatpush.bf16.msra.mxu0 0
        %2079 = vmatpush.bf16.msra.mxu0 0
        %2080 = vmatpush.bf16.msra.mxu0 0
        %2081 = vmatpush.bf16.msra.mxu0 0
        %2082 = vmatpush.bf16.msra.mxu0 %v1881
        %2083 = vmatpush.bf16.msra.mxu0 %v1849
        %2084 = vmatpush.bf16.msra.mxu0 %v1817
        %2085 = vmatpush.bf16.msra.mxu0 %v1785
        %2086 = vmatmul.bf16.gmra.mxu0 %v1980
        %v2087 = vpop.f32.mrf.mxu0
        %v2088 = vadd.f32 %v1921, %v2087
        %v2089 = vpop.f32.mrf.mxu0
        %v2090 = vadd.f32 %v1926, %v2089
        %2091 = vmatmul.bf16.gmra.mxu0 %v1983
        %v2092 = vpop.f32.mrf.mxu0
        %v2093 = vadd.f32 %v1931, %v2092
        %v2094 = vpop.f32.mrf.mxu0
        %v2095 = vadd.f32 %v1936, %v2094
        %2096 = vmatmul.bf16.gmra.mxu0 %v1986
        %v2097 = vpop.f32.mrf.mxu0
        %v2098 = vadd.f32 %v1941, %v2097
        %v2099 = vpop.f32.mrf.mxu0
        %v2100 = vadd.f32 %v1946, %v2099
        %2101 = vmatmul.bf16.gmra.mxu0 %v1989
        %v2102 = vpop.f32.mrf.mxu0
        %v2103 = vadd.f32 %v1951, %v2102
        %v2104 = vpop.f32.mrf.mxu0
        %v2105 = vadd.f32 %v1956, %v2104
        %2106 = vdwg.mxu0
        %2107 = vmatpush.bf16.msra.mxu0 0
        %2108 = vmatpush.bf16.msra.mxu0 0
        %2109 = vmatpush.bf16.msra.mxu0 0
        %2110 = vmatpush.bf16.msra.mxu0 0
        %2111 = vmatpush.bf16.msra.mxu0 %v1882
        %2112 = vmatpush.bf16.msra.mxu0 %v1850
        %2113 = vmatpush.bf16.msra.mxu0 %v1818
        %2114 = vmatpush.bf16.msra.mxu0 %v1786
        %2115 = vmatmul.bf16.gmra.mxu0 %v1980
        %v2116 = vpop.f32.mrf.mxu0
        %v2117 = vadd.f32 %v1921, %v2116
        %v2118 = vpop.f32.mrf.mxu0
        %v2119 = vadd.f32 %v1926, %v2118
        %2120 = vmatmul.bf16.gmra.mxu0 %v1983
        %v2121 = vpop.f32.mrf.mxu0
        %v2122 = vadd.f32 %v1931, %v2121
        %v2123 = vpop.f32.mrf.mxu0
        %v2124 = vadd.f32 %v1936, %v2123
        %2125 = vmatmul.bf16.gmra.mxu0 %v1986
        %v2126 = vpop.f32.mrf.mxu0
        %v2127 = vadd.f32 %v1941, %v2126
        %v2128 = vpop.f32.mrf.mxu0
        %v2129 = vadd.f32 %v1946, %v2128
        %2130 = vmatmul.bf16.gmra.mxu0 %v1989
        %v2131 = vpop.f32.mrf.mxu0
        %v2132 = vadd.f32 %v1951, %v2131
        %v2133 = vpop.f32.mrf.mxu0
        %v2134 = vadd.f32 %v1956, %v2133
        %2135 = vdwg.mxu0
        %2136 = vmatpush.bf16.msra.mxu0 0
        %2137 = vmatpush.bf16.msra.mxu0 0
        %2138 = vmatpush.bf16.msra.mxu0 0
        %2139 = vmatpush.bf16.msra.mxu0 0
        %2140 = vmatpush.bf16.msra.mxu0 %v1883
        %2141 = vmatpush.bf16.msra.mxu0 %v1851
        %2142 = vmatpush.bf16.msra.mxu0 %v1819
        %2143 = vmatpush.bf16.msra.mxu0 %v1787
        %2144 = vmatmul.bf16.gmra.mxu0 %v1980
        %v2145 = vpop.f32.mrf.mxu0
        %v2146 = vadd.f32 %v1921, %v2145
        %v2147 = vpop.f32.mrf.mxu0
        %v2148 = vadd.f32 %v1926, %v2147
        %2149 = vmatmul.bf16.gmra.mxu0 %v1983
        %v2150 = vpop.f32.mrf.mxu0
        %v2151 = vadd.f32 %v1931, %v2150
        %v2152 = vpop.f32.mrf.mxu0
        %v2153 = vadd.f32 %v1936, %v2152
        %2154 = vmatmul.bf16.gmra.mxu0 %v1986
        %v2155 = vpop.f32.mrf.mxu0
        %v2156 = vadd.f32 %v1941, %v2155
        %v2157 = vpop.f32.mrf.mxu0
        %v2158 = vadd.f32 %v1946, %v2157
        %2159 = vmatmul.bf16.gmra.mxu0 %v1989
        %v2160 = vpop.f32.mrf.mxu0
        %v2161 = vadd.f32 %v1951, %v2160
        %v2162 = vpop.f32.mrf.mxu0
        %v2163 = vadd.f32 %v1956, %v2162
        %2164 = vdwg.mxu0
        %2165 = vmatpush.bf16.msra.mxu0 0
        %2166 = vmatpush.bf16.msra.mxu0 0
        %2167 = vmatpush.bf16.msra.mxu0 0
        %2168 = vmatpush.bf16.msra.mxu0 0
        %2169 = vmatpush.bf16.msra.mxu0 %v1884
        %2170 = vmatpush.bf16.msra.mxu0 %v1852
        %2171 = vmatpush.bf16.msra.mxu0 %v1820
        %2172 = vmatpush.bf16.msra.mxu0 %v1788
        %2173 = vmatmul.bf16.gmra.mxu0 %v1980
        %v2174 = vpop.f32.mrf.mxu0
        %v2175 = vadd.f32 %v1921, %v2174
        %v2176 = vpop.f32.mrf.mxu0
        %v2177 = vadd.f32 %v1926, %v2176
        %2178 = vmatmul.bf16.gmra.mxu0 %v1983
        %v2179 = vpop.f32.mrf.mxu0
        %v2180 = vadd.f32 %v1931, %v2179
        %v2181 = vpop.f32.mrf.mxu0
        %v2182 = vadd.f32 %v1936, %v2181
        %2183 = vmatmul.bf16.gmra.mxu0 %v1986
        %v2184 = vpop.f32.mrf.mxu0
        %v2185 = vadd.f32 %v1941, %v2184
        %v2186 = vpop.f32.mrf.mxu0
        %v2187 = vadd.f32 %v1946, %v2186
        %2188 = vmatmul.bf16.gmra.mxu0 %v1989
        %v2189 = vpop.f32.mrf.mxu0
        %v2190 = vadd.f32 %v1951, %v2189
        %v2191 = vpop.f32.mrf.mxu0
        %v2192 = vadd.f32 %v1956, %v2191
        %2193 = vdwg.mxu0
        %2194 = vmatpush.bf16.msra.mxu0 0
        %2195 = vmatpush.bf16.msra.mxu0 0
        %2196 = vmatpush.bf16.msra.mxu0 0
        %2197 = vmatpush.bf16.msra.mxu0 0
        %2198 = vmatpush.bf16.msra.mxu0 %v1885
        %2199 = vmatpush.bf16.msra.mxu0 %v1853
        %2200 = vmatpush.bf16.msra.mxu0 %v1821
        %2201 = vmatpush.bf16.msra.mxu0 %v1789
        %2202 = vmatmul.bf16.gmra.mxu0 %v1980
        %v2203 = vpop.f32.mrf.mxu0
        %v2204 = vadd.f32 %v1921, %v2203
        %v2205 = vpop.f32.mrf.mxu0
        %v2206 = vadd.f32 %v1926, %v2205
        %2207 = vmatmul.bf16.gmra.mxu0 %v1983
        %v2208 = vpop.f32.mrf.mxu0
        %v2209 = vadd.f32 %v1931, %v2208
        %v2210 = vpop.f32.mrf.mxu0
        %v2211 = vadd.f32 %v1936, %v2210
        %2212 = vmatmul.bf16.gmra.mxu0 %v1986
        %v2213 = vpop.f32.mrf.mxu0
        %v2214 = vadd.f32 %v1941, %v2213
        %v2215 = vpop.f32.mrf.mxu0
        %v2216 = vadd.f32 %v1946, %v2215
        %2217 = vmatmul.bf16.gmra.mxu0 %v1989
        %v2218 = vpop.f32.mrf.mxu0
        %v2219 = vadd.f32 %v1951, %v2218
        %v2220 = vpop.f32.mrf.mxu0
        %v2221 = vadd.f32 %v1956, %v2220
        %2222 = vdwg.mxu0
        %2223 = vmatpush.bf16.msra.mxu0 0
        %2224 = vmatpush.bf16.msra.mxu0 0
        %2225 = vmatpush.bf16.msra.mxu0 0
        %2226 = vmatpush.bf16.msra.mxu0 0
        %2227 = vmatpush.bf16.msra.mxu0 %v1886
        %2228 = vmatpush.bf16.msra.mxu0 %v1854
        %2229 = vmatpush.bf16.msra.mxu0 %v1822
        %2230 = vmatpush.bf16.msra.mxu0 %v1790
        %2231 = vmatmul.bf16.gmra.mxu0 %v1980
        %v2232 = vpop.f32.mrf.mxu0
        %v2233 = vadd.f32 %v1921, %v2232
        %v2234 = vpop.f32.mrf.mxu0
        %v2235 = vadd.f32 %v1926, %v2234
        %2236 = vmatmul.bf16.gmra.mxu0 %v1983
        %v2237 = vpop.f32.mrf.mxu0
        %v2238 = vadd.f32 %v1931, %v2237
        %v2239 = vpop.f32.mrf.mxu0
        %v2240 = vadd.f32 %v1936, %v2239
        %2241 = vmatmul.bf16.gmra.mxu0 %v1986
        %v2242 = vpop.f32.mrf.mxu0
        %v2243 = vadd.f32 %v1941, %v2242
        %v2244 = vpop.f32.mrf.mxu0
        %v2245 = vadd.f32 %v1946, %v2244
        %2246 = vmatmul.bf16.gmra.mxu0 %v1989
        %v2247 = vpop.f32.mrf.mxu0
        %v2248 = vadd.f32 %v1951, %v2247
        %v2249 = vpop.f32.mrf.mxu0
        %v2250 = vadd.f32 %v1956, %v2249
        %2251 = vdwg.mxu0
        %2252 = vmatpush.bf16.msra.mxu0 0
        %2253 = vmatpush.bf16.msra.mxu0 0
        %2254 = vmatpush.bf16.msra.mxu0 0
        %2255 = vmatpush.bf16.msra.mxu0 0
        %2256 = vmatpush.bf16.msra.mxu0 %v1887
        %2257 = vmatpush.bf16.msra.mxu0 %v1855
        %2258 = vmatpush.bf16.msra.mxu0 %v1823
        %2259 = vmatpush.bf16.msra.mxu0 %v1791
        %2260 = vmatmul.bf16.gmra.mxu0 %v1980
        %v2261 = vpop.f32.mrf.mxu0
        %v2262 = vadd.f32 %v1921, %v2261
        %v2263 = vpop.f32.mrf.mxu0
        %v2264 = vadd.f32 %v1926, %v2263
        %2265 = vmatmul.bf16.gmra.mxu0 %v1983
        %v2266 = vpop.f32.mrf.mxu0
        %v2267 = vadd.f32 %v1931, %v2266
        %v2268 = vpop.f32.mrf.mxu0
        %v2269 = vadd.f32 %v1936, %v2268
        %2270 = vmatmul.bf16.gmra.mxu0 %v1986
        %v2271 = vpop.f32.mrf.mxu0
        %v2272 = vadd.f32 %v1941, %v2271
        %v2273 = vpop.f32.mrf.mxu0
        %v2274 = vadd.f32 %v1946, %v2273
        %2275 = vmatmul.bf16.gmra.mxu0 %v1989
        %v2276 = vpop.f32.mrf.mxu0
        %v2277 = vadd.f32 %v1951, %v2276
        %v2278 = vpop.f32.mrf.mxu0
        %v2279 = vadd.f32 %v1956, %v2278
        %2280 = vdwg.mxu0
        %2281 = vmatpush.bf16.msra.mxu0 0
        %2282 = vmatpush.bf16.msra.mxu0 0
        %2283 = vmatpush.bf16.msra.mxu0 0
        %2284 = vmatpush.bf16.msra.mxu0 0
        %2285 = vmatpush.bf16.msra.mxu0 %v1888
        %2286 = vmatpush.bf16.msra.mxu0 %v1856
        %2287 = vmatpush.bf16.msra.mxu0 %v1824
        %2288 = vmatpush.bf16.msra.mxu0 %v1792
        %2289 = vmatmul.bf16.gmra.mxu0 %v1980
        %v2290 = vpop.f32.mrf.mxu0
        %v2291 = vadd.f32 %v1921, %v2290
        %v2292 = vpop.f32.mrf.mxu0
        %v2293 = vadd.f32 %v1926, %v2292
        %2294 = vmatmul.bf16.gmra.mxu0 %v1983
        %v2295 = vpop.f32.mrf.mxu0
        %v2296 = vadd.f32 %v1931, %v2295
        %v2297 = vpop.f32.mrf.mxu0
        %v2298 = vadd.f32 %v1936, %v2297
        %2299 = vmatmul.bf16.gmra.mxu0 %v1986
        %v2300 = vpop.f32.mrf.mxu0
        %v2301 = vadd.f32 %v1941, %v2300
        %v2302 = vpop.f32.mrf.mxu0
        %v2303 = vadd.f32 %v1946, %v2302
        %2304 = vmatmul.bf16.gmra.mxu0 %v1989
        %v2305 = vpop.f32.mrf.mxu0
        %v2306 = vadd.f32 %v1951, %v2305
        %v2307 = vpop.f32.mrf.mxu0
        %v2308 = vadd.f32 %v1956, %v2307
        %2309 = vdwg.mxu0
        %2310 = vmatpush.bf16.msra.mxu0 0
        %2311 = vmatpush.bf16.msra.mxu0 0
        %2312 = vmatpush.bf16.msra.mxu0 0
        %2313 = vmatpush.bf16.msra.mxu0 0
        %2314 = vmatpush.bf16.msra.mxu0 %v1889
        %2315 = vmatpush.bf16.msra.mxu0 %v1857
        %2316 = vmatpush.bf16.msra.mxu0 %v1825
        %2317 = vmatpush.bf16.msra.mxu0 %v1793
        %2318 = vmatmul.bf16.gmra.mxu0 %v1980
        %v2319 = vpop.f32.mrf.mxu0
        %v2320 = vadd.f32 %v1921, %v2319
        %v2321 = vpop.f32.mrf.mxu0
        %v2322 = vadd.f32 %v1926, %v2321
        %2323 = vmatmul.bf16.gmra.mxu0 %v1983
        %v2324 = vpop.f32.mrf.mxu0
        %v2325 = vadd.f32 %v1931, %v2324
        %v2326 = vpop.f32.mrf.mxu0
        %v2327 = vadd.f32 %v1936, %v2326
        %2328 = vmatmul.bf16.gmra.mxu0 %v1986
        %v2329 = vpop.f32.mrf.mxu0
        %v2330 = vadd.f32 %v1941, %v2329
        %v2331 = vpop.f32.mrf.mxu0
        %v2332 = vadd.f32 %v1946, %v2331
        %2333 = vmatmul.bf16.gmra.mxu0 %v1989
        %v2334 = vpop.f32.mrf.mxu0
        %v2335 = vadd.f32 %v1951, %v2334
        %v2336 = vpop.f32.mrf.mxu0
        %v2337 = vadd.f32 %v1956, %v2336
        %2338 = vdwg.mxu0
        %2339 = vmatpush.bf16.msra.mxu0 0
        %2340 = vmatpush.bf16.msra.mxu0 0
        %2341 = vmatpush.bf16.msra.mxu0 0
        %2342 = vmatpush.bf16.msra.mxu0 0
        %2343 = vmatpush.bf16.msra.mxu0 %v1890
        %2344 = vmatpush.bf16.msra.mxu0 %v1858
        %2345 = vmatpush.bf16.msra.mxu0 %v1826
        %2346 = vmatpush.bf16.msra.mxu0 %v1794
        %2347 = vmatmul.bf16.gmra.mxu0 %v1980
        %v2348 = vpop.f32.mrf.mxu0
        %v2349 = vadd.f32 %v1921, %v2348
        %v2350 = vpop.f32.mrf.mxu0
        %v2351 = vadd.f32 %v1926, %v2350
        %2352 = vmatmul.bf16.gmra.mxu0 %v1983
        %v2353 = vpop.f32.mrf.mxu0
        %v2354 = vadd.f32 %v1931, %v2353
        %v2355 = vpop.f32.mrf.mxu0
        %v2356 = vadd.f32 %v1936, %v2355
        %2357 = vmatmul.bf16.gmra.mxu0 %v1986
        %v2358 = vpop.f32.mrf.mxu0
        %v2359 = vadd.f32 %v1941, %v2358
        %v2360 = vpop.f32.mrf.mxu0
        %v2361 = vadd.f32 %v1946, %v2360
        %2362 = vmatmul.bf16.gmra.mxu0 %v1989
        %v2363 = vpop.f32.mrf.mxu0
        %v2364 = vadd.f32 %v1951, %v2363
        %v2365 = vpop.f32.mrf.mxu0
        %v2366 = vadd.f32 %v1956, %v2365
        %2367 = vdwg.mxu0
        %2368 = vmatpush.bf16.msra.mxu0 0
        %2369 = vmatpush.bf16.msra.mxu0 0
        %2370 = vmatpush.bf16.msra.mxu0 0
        %2371 = vmatpush.bf16.msra.mxu0 0
        %2372 = vmatpush.bf16.msra.mxu0 %v1891
        %2373 = vmatpush.bf16.msra.mxu0 %v1859
        %2374 = vmatpush.bf16.msra.mxu0 %v1827
        %2375 = vmatpush.bf16.msra.mxu0 %v1795
        %2376 = vmatmul.bf16.gmra.mxu0 %v1980
        %v2377 = vpop.f32.mrf.mxu0
        %v2378 = vadd.f32 %v1921, %v2377
        %v2379 = vpop.f32.mrf.mxu0
        %v2380 = vadd.f32 %v1926, %v2379
        %2381 = vmatmul.bf16.gmra.mxu0 %v1983
        %v2382 = vpop.f32.mrf.mxu0
        %v2383 = vadd.f32 %v1931, %v2382
        %v2384 = vpop.f32.mrf.mxu0
        %v2385 = vadd.f32 %v1936, %v2384
        %2386 = vmatmul.bf16.gmra.mxu0 %v1986
        %v2387 = vpop.f32.mrf.mxu0
        %v2388 = vadd.f32 %v1941, %v2387
        %v2389 = vpop.f32.mrf.mxu0
        %v2390 = vadd.f32 %v1946, %v2389
        %2391 = vmatmul.bf16.gmra.mxu0 %v1989
        %v2392 = vpop.f32.mrf.mxu0
        %v2393 = vadd.f32 %v1951, %v2392
        %v2394 = vpop.f32.mrf.mxu0
        %v2395 = vadd.f32 %v1956, %v2394
        %2396 = vdwg.mxu0
        %2397 = vmatpush.bf16.msra.mxu0 0
        %2398 = vmatpush.bf16.msra.mxu0 0
        %2399 = vmatpush.bf16.msra.mxu0 0
        %2400 = vmatpush.bf16.msra.mxu0 0
        %2401 = vmatpush.bf16.msra.mxu0 %v1892
        %2402 = vmatpush.bf16.msra.mxu0 %v1860
        %2403 = vmatpush.bf16.msra.mxu0 %v1828
        %2404 = vmatpush.bf16.msra.mxu0 %v1796
        %2405 = vmatmul.bf16.gmra.mxu0 %v1980
        %v2406 = vpop.f32.mrf.mxu0
        %v2407 = vadd.f32 %v1921, %v2406
        %v2408 = vpop.f32.mrf.mxu0
        %v2409 = vadd.f32 %v1926, %v2408
        %2410 = vmatmul.bf16.gmra.mxu0 %v1983
        %v2411 = vpop.f32.mrf.mxu0
        %v2412 = vadd.f32 %v1931, %v2411
        %v2413 = vpop.f32.mrf.mxu0
        %v2414 = vadd.f32 %v1936, %v2413
        %2415 = vmatmul.bf16.gmra.mxu0 %v1986
        %v2416 = vpop.f32.mrf.mxu0
        %v2417 = vadd.f32 %v1941, %v2416
        %v2418 = vpop.f32.mrf.mxu0
        %v2419 = vadd.f32 %v1946, %v2418
        %2420 = vmatmul.bf16.gmra.mxu0 %v1989
        %v2421 = vpop.f32.mrf.mxu0
        %v2422 = vadd.f32 %v1951, %v2421
        %v2423 = vpop.f32.mrf.mxu0
        %v2424 = vadd.f32 %v1956, %v2423
        %2425 = vdwg.mxu0
        %2426 = vmatpush.bf16.msra.mxu0 0
        %2427 = vmatpush.bf16.msra.mxu0 0
        %2428 = vmatpush.bf16.msra.mxu0 0
        %2429 = vmatpush.bf16.msra.mxu0 0
        %2430 = vmatpush.bf16.msra.mxu0 %v1893
        %2431 = vmatpush.bf16.msra.mxu0 %v1861
        %2432 = vmatpush.bf16.msra.mxu0 %v1829
        %2433 = vmatpush.bf16.msra.mxu0 %v1797
        %2434 = vmatmul.bf16.gmra.mxu0 %v1980
        %v2435 = vpop.f32.mrf.mxu0
        %v2436 = vadd.f32 %v1921, %v2435
        %v2437 = vpop.f32.mrf.mxu0
        %v2438 = vadd.f32 %v1926, %v2437
        %2439 = vmatmul.bf16.gmra.mxu0 %v1983
        %v2440 = vpop.f32.mrf.mxu0
        %v2441 = vadd.f32 %v1931, %v2440
        %v2442 = vpop.f32.mrf.mxu0
        %v2443 = vadd.f32 %v1936, %v2442
        %2444 = vmatmul.bf16.gmra.mxu0 %v1986
        %v2445 = vpop.f32.mrf.mxu0
        %v2446 = vadd.f32 %v1941, %v2445
        %v2447 = vpop.f32.mrf.mxu0
        %v2448 = vadd.f32 %v1946, %v2447
        %2449 = vmatmul.bf16.gmra.mxu0 %v1989
        %v2450 = vpop.f32.mrf.mxu0
        %v2451 = vadd.f32 %v1951, %v2450
        %v2452 = vpop.f32.mrf.mxu0
        %v2453 = vadd.f32 %v1956, %v2452
        %2454 = vdwg.mxu0
        %2455 = vmatpush.bf16.msra.mxu0 0
        %2456 = vmatpush.bf16.msra.mxu0 0
        %2457 = vmatpush.bf16.msra.mxu0 0
        %2458 = vmatpush.bf16.msra.mxu0 0
        %2459 = vmatpush.bf16.msra.mxu0 %v1894
        %2460 = vmatpush.bf16.msra.mxu0 %v1862
        %2461 = vmatpush.bf16.msra.mxu0 %v1830
        %2462 = vmatpush.bf16.msra.mxu0 %v1798
        %2463 = vmatmul.bf16.gmra.mxu0 %v1980
        %v2464 = vpop.f32.mrf.mxu0
        %v2465 = vadd.f32 %v1921, %v2464
        %v2466 = vpop.f32.mrf.mxu0
        %v2467 = vadd.f32 %v1926, %v2466
        %2468 = vmatmul.bf16.gmra.mxu0 %v1983
        %v2469 = vpop.f32.mrf.mxu0
        %v2470 = vadd.f32 %v1931, %v2469
        %v2471 = vpop.f32.mrf.mxu0
        %v2472 = vadd.f32 %v1936, %v2471
        %2473 = vmatmul.bf16.gmra.mxu0 %v1986
        %v2474 = vpop.f32.mrf.mxu0
        %v2475 = vadd.f32 %v1941, %v2474
        %v2476 = vpop.f32.mrf.mxu0
        %v2477 = vadd.f32 %v1946, %v2476
        %2478 = vmatmul.bf16.gmra.mxu0 %v1989
        %v2479 = vpop.f32.mrf.mxu0
        %v2480 = vadd.f32 %v1951, %v2479
        %v2481 = vpop.f32.mrf.mxu0
        %v2482 = vadd.f32 %v1956, %v2481
        %2483 = vdwg.mxu0
        %2484 = vmatpush.bf16.msra.mxu0 0
        %2485 = vmatpush.bf16.msra.mxu0 0
        %2486 = vmatpush.bf16.msra.mxu0 0
        %2487 = vmatpush.bf16.msra.mxu0 0
        %2488 = vmatpush.bf16.msra.mxu0 %v1895
        %2489 = vmatpush.bf16.msra.mxu0 %v1863
        %2490 = vmatpush.bf16.msra.mxu0 %v1831
        %2491 = vmatpush.bf16.msra.mxu0 %v1799
        %2492 = vmatmul.bf16.gmra.mxu0 %v1980
        %v2493 = vpop.f32.mrf.mxu0
        %v2494 = vadd.f32 %v1921, %v2493
        %v2495 = vpop.f32.mrf.mxu0
        %v2496 = vadd.f32 %v1926, %v2495
        %2497 = vmatmul.bf16.gmra.mxu0 %v1983
        %v2498 = vpop.f32.mrf.mxu0
        %v2499 = vadd.f32 %v1931, %v2498
        %v2500 = vpop.f32.mrf.mxu0
        %v2501 = vadd.f32 %v1936, %v2500
        %2502 = vmatmul.bf16.gmra.mxu0 %v1986
        %v2503 = vpop.f32.mrf.mxu0
        %v2504 = vadd.f32 %v1941, %v2503
        %v2505 = vpop.f32.mrf.mxu0
        %v2506 = vadd.f32 %v1946, %v2505
        %2507 = vmatmul.bf16.gmra.mxu0 %v1989
        %v2508 = vpop.f32.mrf.mxu0
        %v2509 = vadd.f32 %v1951, %v2508
        %v2510 = vpop.f32.mrf.mxu0
        %v2511 = vadd.f32 %v1956, %v2510
        %2512 = vdwg.mxu0
        %2513 = vmatpush.bf16.msra.mxu0 0
        %2514 = vmatpush.bf16.msra.mxu0 0
        %2515 = vmatpush.bf16.msra.mxu0 0
        %2516 = vmatpush.bf16.msra.mxu0 0
        %2517 = vmatpush.bf16.msra.mxu0 %v1896
        %2518 = vmatpush.bf16.msra.mxu0 %v1864
        %2519 = vmatpush.bf16.msra.mxu0 %v1832
        %2520 = vmatpush.bf16.msra.mxu0 %v1800
        %2521 = vmatmul.bf16.gmra.mxu0 %v1980
        %v2522 = vpop.f32.mrf.mxu0
        %v2523 = vadd.f32 %v1921, %v2522
        %v2524 = vpop.f32.mrf.mxu0
        %v2525 = vadd.f32 %v1926, %v2524
        %2526 = vmatmul.bf16.gmra.mxu0 %v1983
        %v2527 = vpop.f32.mrf.mxu0
        %v2528 = vadd.f32 %v1931, %v2527
        %v2529 = vpop.f32.mrf.mxu0
        %v2530 = vadd.f32 %v1936, %v2529
        %2531 = vmatmul.bf16.gmra.mxu0 %v1986
        %v2532 = vpop.f32.mrf.mxu0
        %v2533 = vadd.f32 %v1941, %v2532
        %v2534 = vpop.f32.mrf.mxu0
        %v2535 = vadd.f32 %v1946, %v2534
        %2536 = vmatmul.bf16.gmra.mxu0 %v1989
        %v2537 = vpop.f32.mrf.mxu0
        %v2538 = vadd.f32 %v1951, %v2537
        %v2539 = vpop.f32.mrf.mxu0
        %v2540 = vadd.f32 %v1956, %v2539
        %2541 = vdwg.mxu0
        %2542 = vmatpush.bf16.msra.mxu0 0
        %2543 = vmatpush.bf16.msra.mxu0 0
        %2544 = vmatpush.bf16.msra.mxu0 0
        %2545 = vmatpush.bf16.msra.mxu0 0
        %2546 = vmatpush.bf16.msra.mxu0 %v1897
        %2547 = vmatpush.bf16.msra.mxu0 %v1865
        %2548 = vmatpush.bf16.msra.mxu0 %v1833
        %2549 = vmatpush.bf16.msra.mxu0 %v1801
        %2550 = vmatmul.bf16.gmra.mxu0 %v1980
        %v2551 = vpop.f32.mrf.mxu0
        %v2552 = vadd.f32 %v1921, %v2551
        %v2553 = vpop.f32.mrf.mxu0
        %v2554 = vadd.f32 %v1926, %v2553
        %2555 = vmatmul.bf16.gmra.mxu0 %v1983
        %v2556 = vpop.f32.mrf.mxu0
        %v2557 = vadd.f32 %v1931, %v2556
        %v2558 = vpop.f32.mrf.mxu0
        %v2559 = vadd.f32 %v1936, %v2558
        %2560 = vmatmul.bf16.gmra.mxu0 %v1986
        %v2561 = vpop.f32.mrf.mxu0
        %v2562 = vadd.f32 %v1941, %v2561
        %v2563 = vpop.f32.mrf.mxu0
        %v2564 = vadd.f32 %v1946, %v2563
        %2565 = vmatmul.bf16.gmra.mxu0 %v1989
        %v2566 = vpop.f32.mrf.mxu0
        %v2567 = vadd.f32 %v1951, %v2566
        %v2568 = vpop.f32.mrf.mxu0
        %v2569 = vadd.f32 %v1956, %v2568
        %2570 = vdwg.mxu0
        %2571 = vmatpush.bf16.msra.mxu0 0
        %2572 = vmatpush.bf16.msra.mxu0 0
        %2573 = vmatpush.bf16.msra.mxu0 0
        %2574 = vmatpush.bf16.msra.mxu0 0
        %2575 = vmatpush.bf16.msra.mxu0 %v1898
        %2576 = vmatpush.bf16.msra.mxu0 %v1866
        %2577 = vmatpush.bf16.msra.mxu0 %v1834
        %2578 = vmatpush.bf16.msra.mxu0 %v1802
        %2579 = vmatmul.bf16.gmra.mxu0 %v1980
        %v2580 = vpop.f32.mrf.mxu0
        %v2581 = vadd.f32 %v1921, %v2580
        %v2582 = vpop.f32.mrf.mxu0
        %v2583 = vadd.f32 %v1926, %v2582
        %2584 = vmatmul.bf16.gmra.mxu0 %v1983
        %v2585 = vpop.f32.mrf.mxu0
        %v2586 = vadd.f32 %v1931, %v2585
        %v2587 = vpop.f32.mrf.mxu0
        %v2588 = vadd.f32 %v1936, %v2587
        %2589 = vmatmul.bf16.gmra.mxu0 %v1986
        %v2590 = vpop.f32.mrf.mxu0
        %v2591 = vadd.f32 %v1941, %v2590
        %v2592 = vpop.f32.mrf.mxu0
        %v2593 = vadd.f32 %v1946, %v2592
        %2594 = vmatmul.bf16.gmra.mxu0 %v1989
        %v2595 = vpop.f32.mrf.mxu0
        %v2596 = vadd.f32 %v1951, %v2595
        %v2597 = vpop.f32.mrf.mxu0
        %v2598 = vadd.f32 %v1956, %v2597
        %2599 = vdwg.mxu0
        %2600 = vmatpush.bf16.msra.mxu0 0
        %2601 = vmatpush.bf16.msra.mxu0 0
        %2602 = vmatpush.bf16.msra.mxu0 0
        %2603 = vmatpush.bf16.msra.mxu0 0
        %2604 = vmatpush.bf16.msra.mxu0 %v1899
        %2605 = vmatpush.bf16.msra.mxu0 %v1867
        %2606 = vmatpush.bf16.msra.mxu0 %v1835
        %2607 = vmatpush.bf16.msra.mxu0 %v1803
        %2608 = vmatmul.bf16.gmra.mxu0 %v1980
        %v2609 = vpop.f32.mrf.mxu0
        %v2610 = vadd.f32 %v1921, %v2609
        %v2611 = vpop.f32.mrf.mxu0
        %v2612 = vadd.f32 %v1926, %v2611
        %2613 = vmatmul.bf16.gmra.mxu0 %v1983
        %v2614 = vpop.f32.mrf.mxu0
        %v2615 = vadd.f32 %v1931, %v2614
        %v2616 = vpop.f32.mrf.mxu0
        %v2617 = vadd.f32 %v1936, %v2616
        %2618 = vmatmul.bf16.gmra.mxu0 %v1986
        %v2619 = vpop.f32.mrf.mxu0
        %v2620 = vadd.f32 %v1941, %v2619
        %v2621 = vpop.f32.mrf.mxu0
        %v2622 = vadd.f32 %v1946, %v2621
        %2623 = vmatmul.bf16.gmra.mxu0 %v1989
        %v2624 = vpop.f32.mrf.mxu0
        %v2625 = vadd.f32 %v1951, %v2624
        %v2626 = vpop.f32.mrf.mxu0
        %v2627 = vadd.f32 %v1956, %v2626
        %2628 = vdwg.mxu0
        %2629 = vmatpush.bf16.msra.mxu0 0
        %2630 = vmatpush.bf16.msra.mxu0 0
        %2631 = vmatpush.bf16.msra.mxu0 0
        %2632 = vmatpush.bf16.msra.mxu0 0
        %2633 = vmatpush.bf16.msra.mxu0 %v1900
        %2634 = vmatpush.bf16.msra.mxu0 %v1868
        %2635 = vmatpush.bf16.msra.mxu0 %v1836
        %2636 = vmatpush.bf16.msra.mxu0 %v1804
        %2637 = vmatmul.bf16.gmra.mxu0 %v1980
        %v2638 = vpop.f32.mrf.mxu0
        %v2639 = vadd.f32 %v1921, %v2638
        %v2640 = vpop.f32.mrf.mxu0
        %v2641 = vadd.f32 %v1926, %v2640
        %2642 = vmatmul.bf16.gmra.mxu0 %v1983
        %v2643 = vpop.f32.mrf.mxu0
        %v2644 = vadd.f32 %v1931, %v2643
        %v2645 = vpop.f32.mrf.mxu0
        %v2646 = vadd.f32 %v1936, %v2645
        %2647 = vmatmul.bf16.gmra.mxu0 %v1986
        %v2648 = vpop.f32.mrf.mxu0
        %v2649 = vadd.f32 %v1941, %v2648
        %v2650 = vpop.f32.mrf.mxu0
        %v2651 = vadd.f32 %v1946, %v2650
        %2652 = vmatmul.bf16.gmra.mxu0 %v1989
        %v2653 = vpop.f32.mrf.mxu0
        %v2654 = vadd.f32 %v1951, %v2653
        %v2655 = vpop.f32.mrf.mxu0
        %v2656 = vadd.f32 %v1956, %v2655
        %2657 = vdwg.mxu0
        %2658 = vmatpush.bf16.msra.mxu0 0
        %2659 = vmatpush.bf16.msra.mxu0 0
        %2660 = vmatpush.bf16.msra.mxu0 0
        %2661 = vmatpush.bf16.msra.mxu0 0
        %2662 = vmatpush.bf16.msra.mxu0 %v1901
        %2663 = vmatpush.bf16.msra.mxu0 %v1869
        %2664 = vmatpush.bf16.msra.mxu0 %v1837
        %2665 = vmatpush.bf16.msra.mxu0 %v1805
        %2666 = vmatmul.bf16.gmra.mxu0 %v1980
        %v2667 = vpop.f32.mrf.mxu0
        %v2668 = vadd.f32 %v1921, %v2667
        %v2669 = vpop.f32.mrf.mxu0
        %v2670 = vadd.f32 %v1926, %v2669
        %2671 = vmatmul.bf16.gmra.mxu0 %v1983
        %v2672 = vpop.f32.mrf.mxu0
        %v2673 = vadd.f32 %v1931, %v2672
        %v2674 = vpop.f32.mrf.mxu0
        %v2675 = vadd.f32 %v1936, %v2674
        %2676 = vmatmul.bf16.gmra.mxu0 %v1986
        %v2677 = vpop.f32.mrf.mxu0
        %v2678 = vadd.f32 %v1941, %v2677
        %v2679 = vpop.f32.mrf.mxu0
        %v2680 = vadd.f32 %v1946, %v2679
        %2681 = vmatmul.bf16.gmra.mxu0 %v1989
        %v2682 = vpop.f32.mrf.mxu0
        %v2683 = vadd.f32 %v1951, %v2682
        %v2684 = vpop.f32.mrf.mxu0
        %v2685 = vadd.f32 %v1956, %v2684
        %2686 = vdwg.mxu0
        %2687 = vmatpush.bf16.msra.mxu0 0
        %2688 = vmatpush.bf16.msra.mxu0 0
        %2689 = vmatpush.bf16.msra.mxu0 0
        %2690 = vmatpush.bf16.msra.mxu0 0
        %2691 = vmatpush.bf16.msra.mxu0 %v1902
        %2692 = vmatpush.bf16.msra.mxu0 %v1870
        %2693 = vmatpush.bf16.msra.mxu0 %v1838
        %2694 = vmatpush.bf16.msra.mxu0 %v1806
        %2695 = vmatmul.bf16.gmra.mxu0 %v1980
        %v2696 = vpop.f32.mrf.mxu0
        %v2697 = vadd.f32 %v1921, %v2696
        %v2698 = vpop.f32.mrf.mxu0
        %v2699 = vadd.f32 %v1926, %v2698
        %2700 = vmatmul.bf16.gmra.mxu0 %v1983
        %v2701 = vpop.f32.mrf.mxu0
        %v2702 = vadd.f32 %v1931, %v2701
        %v2703 = vpop.f32.mrf.mxu0
        %v2704 = vadd.f32 %v1936, %v2703
        %2705 = vmatmul.bf16.gmra.mxu0 %v1986
        %v2706 = vpop.f32.mrf.mxu0
        %v2707 = vadd.f32 %v1941, %v2706
        %v2708 = vpop.f32.mrf.mxu0
        %v2709 = vadd.f32 %v1946, %v2708
        %2710 = vmatmul.bf16.gmra.mxu0 %v1989
        %v2711 = vpop.f32.mrf.mxu0
        %v2712 = vadd.f32 %v1951, %v2711
        %v2713 = vpop.f32.mrf.mxu0
        %v2714 = vadd.f32 %v1956, %v2713
        %2715 = vdwg.mxu0
        %2716 = vmatpush.bf16.msra.mxu0 0
        %2717 = vmatpush.bf16.msra.mxu0 0
        %2718 = vmatpush.bf16.msra.mxu0 0
        %2719 = vmatpush.bf16.msra.mxu0 0
        %2720 = vmatpush.bf16.msra.mxu0 %v1903
        %2721 = vmatpush.bf16.msra.mxu0 %v1871
        %2722 = vmatpush.bf16.msra.mxu0 %v1839
        %2723 = vmatpush.bf16.msra.mxu0 %v1807
        %2724 = vmatmul.bf16.gmra.mxu0 %v1980
        %v2725 = vpop.f32.mrf.mxu0
        %v2726 = vadd.f32 %v1921, %v2725
        %v2727 = vpop.f32.mrf.mxu0
        %v2728 = vadd.f32 %v1926, %v2727
        %2729 = vmatmul.bf16.gmra.mxu0 %v1983
        %v2730 = vpop.f32.mrf.mxu0
        %v2731 = vadd.f32 %v1931, %v2730
        %v2732 = vpop.f32.mrf.mxu0
        %v2733 = vadd.f32 %v1936, %v2732
        %2734 = vmatmul.bf16.gmra.mxu0 %v1986
        %v2735 = vpop.f32.mrf.mxu0
        %v2736 = vadd.f32 %v1941, %v2735
        %v2737 = vpop.f32.mrf.mxu0
        %v2738 = vadd.f32 %v1946, %v2737
        %2739 = vmatmul.bf16.gmra.mxu0 %v1989
        %v2740 = vpop.f32.mrf.mxu0
        %v2741 = vadd.f32 %v1951, %v2740
        %v2742 = vpop.f32.mrf.mxu0
        %v2743 = vadd.f32 %v1956, %v2742
        %2744 = vdwg.mxu0
        %2745 = vmatpush.bf16.msra.mxu0 0
        %2746 = vmatpush.bf16.msra.mxu0 0
        %2747 = vmatpush.bf16.msra.mxu0 0
        %2748 = vmatpush.bf16.msra.mxu0 0
        %2749 = vmatpush.bf16.msra.mxu0 %v1904
        %2750 = vmatpush.bf16.msra.mxu0 %v1872
        %2751 = vmatpush.bf16.msra.mxu0 %v1840
        %2752 = vmatpush.bf16.msra.mxu0 %v1808
        %2753 = vmatmul.bf16.gmra.mxu0 %v1980
        %v2754 = vpop.f32.mrf.mxu0
        %v2755 = vadd.f32 %v1921, %v2754
        %v2756 = vpop.f32.mrf.mxu0
        %v2757 = vadd.f32 %v1926, %v2756
        %2758 = vmatmul.bf16.gmra.mxu0 %v1983
        %v2759 = vpop.f32.mrf.mxu0
        %v2760 = vadd.f32 %v1931, %v2759
        %v2761 = vpop.f32.mrf.mxu0
        %v2762 = vadd.f32 %v1936, %v2761
        %2763 = vmatmul.bf16.gmra.mxu0 %v1986
        %v2764 = vpop.f32.mrf.mxu0
        %v2765 = vadd.f32 %v1941, %v2764
        %v2766 = vpop.f32.mrf.mxu0
        %v2767 = vadd.f32 %v1946, %v2766
        %2768 = vmatmul.bf16.gmra.mxu0 %v1989
        %v2769 = vpop.f32.mrf.mxu0
        %v2770 = vadd.f32 %v1951, %v2769
        %v2771 = vpop.f32.mrf.mxu0
        %v2772 = vadd.f32 %v1956, %v2771
        %2773 = vdwg.mxu0
        %2774 = vmatpush.bf16.msra.mxu0 0
        %2775 = vmatpush.bf16.msra.mxu0 0
        %2776 = vmatpush.bf16.msra.mxu0 0
        %2777 = vmatpush.bf16.msra.mxu0 0
        %2778 = vmatpush.bf16.msra.mxu0 %v1905
        %2779 = vmatpush.bf16.msra.mxu0 %v1873
        %2780 = vmatpush.bf16.msra.mxu0 %v1841
        %2781 = vmatpush.bf16.msra.mxu0 %v1809
        %2782 = vmatmul.bf16.gmra.mxu0 %v1980
        %v2783 = vpop.f32.mrf.mxu0
        %v2784 = vadd.f32 %v1921, %v2783
        %v2785 = vpop.f32.mrf.mxu0
        %v2786 = vadd.f32 %v1926, %v2785
        %2787 = vmatmul.bf16.gmra.mxu0 %v1983
        %v2788 = vpop.f32.mrf.mxu0
        %v2789 = vadd.f32 %v1931, %v2788
        %v2790 = vpop.f32.mrf.mxu0
        %v2791 = vadd.f32 %v1936, %v2790
        %2792 = vmatmul.bf16.gmra.mxu0 %v1986
        %v2793 = vpop.f32.mrf.mxu0
        %v2794 = vadd.f32 %v1941, %v2793
        %v2795 = vpop.f32.mrf.mxu0
        %v2796 = vadd.f32 %v1946, %v2795
        %2797 = vmatmul.bf16.gmra.mxu0 %v1989
        %v2798 = vpop.f32.mrf.mxu0
        %v2799 = vadd.f32 %v1951, %v2798
        %v2800 = vpop.f32.mrf.mxu0
        %v2801 = vadd.f32 %v1956, %v2800
        %2802 = vdwg.mxu0
        %2803 = vmatpush.bf16.msra.mxu0 0
        %2804 = vmatpush.bf16.msra.mxu0 0
        %2805 = vmatpush.bf16.msra.mxu0 0
        %2806 = vmatpush.bf16.msra.mxu0 0
        %2807 = vmatpush.bf16.msra.mxu0 %v1906
        %2808 = vmatpush.bf16.msra.mxu0 %v1874
        %2809 = vmatpush.bf16.msra.mxu0 %v1842
        %2810 = vmatpush.bf16.msra.mxu0 %v1810
        %2811 = vmatmul.bf16.gmra.mxu0 %v1980
        %v2812 = vpop.f32.mrf.mxu0
        %v2813 = vadd.f32 %v1921, %v2812
        %v2814 = vpop.f32.mrf.mxu0
        %v2815 = vadd.f32 %v1926, %v2814
        %2816 = vmatmul.bf16.gmra.mxu0 %v1983
        %v2817 = vpop.f32.mrf.mxu0
        %v2818 = vadd.f32 %v1931, %v2817
        %v2819 = vpop.f32.mrf.mxu0
        %v2820 = vadd.f32 %v1936, %v2819
        %2821 = vmatmul.bf16.gmra.mxu0 %v1986
        %v2822 = vpop.f32.mrf.mxu0
        %v2823 = vadd.f32 %v1941, %v2822
        %v2824 = vpop.f32.mrf.mxu0
        %v2825 = vadd.f32 %v1946, %v2824
        %2826 = vmatmul.bf16.gmra.mxu0 %v1989
        %v2827 = vpop.f32.mrf.mxu0
        %v2828 = vadd.f32 %v1951, %v2827
        %v2829 = vpop.f32.mrf.mxu0
        %v2830 = vadd.f32 %v1956, %v2829
        %2831 = vdwg.mxu0
        %2832 = vmatpush.bf16.msra.mxu0 0
        %2833 = vmatpush.bf16.msra.mxu0 0
        %2834 = vmatpush.bf16.msra.mxu0 0
        %2835 = vmatpush.bf16.msra.mxu0 0
        %2836 = vmatpush.bf16.msra.mxu0 %v1907
        %2837 = vmatpush.bf16.msra.mxu0 %v1875
        %2838 = vmatpush.bf16.msra.mxu0 %v1843
        %2839 = vmatpush.bf16.msra.mxu0 %v1811
        %2840 = vmatmul.bf16.gmra.mxu0 %v1980
        %v2841 = vpop.f32.mrf.mxu0
        %v2842 = vadd.f32 %v1921, %v2841
        %v2843 = vpop.f32.mrf.mxu0
        %v2844 = vadd.f32 %v1926, %v2843
        %2845 = vmatmul.bf16.gmra.mxu0 %v1983
        %v2846 = vpop.f32.mrf.mxu0
        %v2847 = vadd.f32 %v1931, %v2846
        %v2848 = vpop.f32.mrf.mxu0
        %v2849 = vadd.f32 %v1936, %v2848
        %2850 = vmatmul.bf16.gmra.mxu0 %v1986
        %v2851 = vpop.f32.mrf.mxu0
        %v2852 = vadd.f32 %v1941, %v2851
        %v2853 = vpop.f32.mrf.mxu0
        %v2854 = vadd.f32 %v1946, %v2853
        %2855 = vmatmul.bf16.gmra.mxu0 %v1989
        %v2856 = vpop.f32.mrf.mxu0
        %v2857 = vadd.f32 %v1951, %v2856
        %v2858 = vpop.f32.mrf.mxu0
        %v2859 = vadd.f32 %v1956, %v2858
        %2860 = vdwg.mxu0
        %2861 = vmatpush.bf16.msra.mxu0 0
        %2862 = vmatpush.bf16.msra.mxu0 0
        %2863 = vmatpush.bf16.msra.mxu0 0
        %2864 = vmatpush.bf16.msra.mxu0 0
        %2865 = vmatpush.bf16.msra.mxu0 %v1908
        %2866 = vmatpush.bf16.msra.mxu0 %v1876
        %2867 = vmatpush.bf16.msra.mxu0 %v1844
        %2868 = vmatpush.bf16.msra.mxu0 %v1812
        %2869 = vmatmul.bf16.gmra.mxu0 %v1980
        %v2870 = vpop.f32.mrf.mxu0
        %v2871 = vadd.f32 %v1921, %v2870
        %v2872 = vpop.f32.mrf.mxu0
        %v2873 = vadd.f32 %v1926, %v2872
        %2874 = vmatmul.bf16.gmra.mxu0 %v1983
        %v2875 = vpop.f32.mrf.mxu0
        %v2876 = vadd.f32 %v1931, %v2875
        %v2877 = vpop.f32.mrf.mxu0
        %v2878 = vadd.f32 %v1936, %v2877
        %2879 = vmatmul.bf16.gmra.mxu0 %v1986
        %v2880 = vpop.f32.mrf.mxu0
        %v2881 = vadd.f32 %v1941, %v2880
        %v2882 = vpop.f32.mrf.mxu0
        %v2883 = vadd.f32 %v1946, %v2882
        %2884 = vmatmul.bf16.gmra.mxu0 %v1989
        %v2885 = vpop.f32.mrf.mxu0
        %v2886 = vadd.f32 %v1951, %v2885
        %v2887 = vpop.f32.mrf.mxu0
        %v2888 = vadd.f32 %v1956, %v2887
        %2889 = vdwg.mxu0
        %2890 = vmatpush.bf16.msra.mxu0 0
        %2891 = vmatpush.bf16.msra.mxu0 0
        %2892 = vmatpush.bf16.msra.mxu0 0
        %2893 = vmatpush.bf16.msra.mxu0 0
        %2894 = vmatpush.bf16.msra.mxu0 %v1909
        %2895 = vmatpush.bf16.msra.mxu0 %v1877
        %2896 = vmatpush.bf16.msra.mxu0 %v1845
        %2897 = vmatpush.bf16.msra.mxu0 %v1813
        %2898 = vmatmul.bf16.gmra.mxu0 %v1980
        %v2899 = vpop.f32.mrf.mxu0
        %v2900 = vadd.f32 %v1921, %v2899
        %v2901 = vpop.f32.mrf.mxu0
        %v2902 = vadd.f32 %v1926, %v2901
        %2903 = vmatmul.bf16.gmra.mxu0 %v1983
        %v2904 = vpop.f32.mrf.mxu0
        %v2905 = vadd.f32 %v1931, %v2904
        %v2906 = vpop.f32.mrf.mxu0
        %v2907 = vadd.f32 %v1936, %v2906
        %2908 = vmatmul.bf16.gmra.mxu0 %v1986
        %v2909 = vpop.f32.mrf.mxu0
        %v2910 = vadd.f32 %v1941, %v2909
        %v2911 = vpop.f32.mrf.mxu0
        %v2912 = vadd.f32 %v1946, %v2911
        %2913 = vmatmul.bf16.gmra.mxu0 %v1989
        %v2914 = vpop.f32.mrf.mxu0
        %v2915 = vadd.f32 %v1951, %v2914
        %v2916 = vpop.f32.mrf.mxu0
        %v2917 = vadd.f32 %v1956, %v2916
        %2918 = vdwg.mxu0
        %v2919 = vmax.f32 %v2001, 0.0
        %v2920 = vmax.f32 %v2030, 0.0
        %v2921 = vmax.f32 %v2059, 0.0
        %v2922 = vmax.f32 %v2088, 0.0
        %v2923 = vmax.f32 %v2117, 0.0
        %v2924 = vmax.f32 %v2146, 0.0
        %v2925 = vmax.f32 %v2175, 0.0
        %v2926 = vmax.f32 %v2204, 0.0
        %v2927 = vmax.f32 %v2233, 0.0
        %v2928 = vmax.f32 %v2262, 0.0
        %v2929 = vmax.f32 %v2291, 0.0
        %v2930 = vmax.f32 %v2320, 0.0
        %v2931 = vmax.f32 %v2349, 0.0
        %v2932 = vmax.f32 %v2378, 0.0
        %v2933 = vmax.f32 %v2407, 0.0
        %v2934 = vmax.f32 %v2436, 0.0
        %v2935 = vmax.f32 %v2465, 0.0
        %v2936 = vmax.f32 %v2494, 0.0
        %v2937 = vmax.f32 %v2523, 0.0
        %v2938 = vmax.f32 %v2552, 0.0
        %v2939 = vmax.f32 %v2581, 0.0
        %v2940 = vmax.f32 %v2610, 0.0
        %v2941 = vmax.f32 %v2639, 0.0
        %v2942 = vmax.f32 %v2668, 0.0
        %v2943 = vmax.f32 %v2697, 0.0
        %v2944 = vmax.f32 %v2726, 0.0
        %v2945 = vmax.f32 %v2755, 0.0
        %v2946 = vmax.f32 %v2784, 0.0
        %v2947 = vmax.f32 %v2813, 0.0
        %v2948 = vmax.f32 %v2842, 0.0
        %v2949 = vmax.f32 %v2871, 0.0
        %v2950 = vmax.f32 %v2900, 0.0
        %v2951 = vmax.f32 %v2003, 0.0
        %v2952 = vmax.f32 %v2032, 0.0
        %v2953 = vmax.f32 %v2061, 0.0
        %v2954 = vmax.f32 %v2090, 0.0
        %v2955 = vmax.f32 %v2119, 0.0
        %v2956 = vmax.f32 %v2148, 0.0
        %v2957 = vmax.f32 %v2177, 0.0
        %v2958 = vmax.f32 %v2206, 0.0
        %v2959 = vmax.f32 %v2235, 0.0
        %v2960 = vmax.f32 %v2264, 0.0
        %v2961 = vmax.f32 %v2293, 0.0
        %v2962 = vmax.f32 %v2322, 0.0
        %v2963 = vmax.f32 %v2351, 0.0
        %v2964 = vmax.f32 %v2380, 0.0
        %v2965 = vmax.f32 %v2409, 0.0
        %v2966 = vmax.f32 %v2438, 0.0
        %v2967 = vmax.f32 %v2467, 0.0
        %v2968 = vmax.f32 %v2496, 0.0
        %v2969 = vmax.f32 %v2525, 0.0
        %v2970 = vmax.f32 %v2554, 0.0
        %v2971 = vmax.f32 %v2583, 0.0
        %v2972 = vmax.f32 %v2612, 0.0
        %v2973 = vmax.f32 %v2641, 0.0
        %v2974 = vmax.f32 %v2670, 0.0
        %v2975 = vmax.f32 %v2699, 0.0
        %v2976 = vmax.f32 %v2728, 0.0
        %v2977 = vmax.f32 %v2757, 0.0
        %v2978 = vmax.f32 %v2786, 0.0
        %v2979 = vmax.f32 %v2815, 0.0
        %v2980 = vmax.f32 %v2844, 0.0
        %v2981 = vmax.f32 %v2873, 0.0
        %v2982 = vmax.f32 %v2902, 0.0
        %v2983 = vmax.f32 %v2006, 0.0
        %v2984 = vmax.f32 %v2035, 0.0
        %v2985 = vmax.f32 %v2064, 0.0
        %v2986 = vmax.f32 %v2093, 0.0
        %v2987 = vmax.f32 %v2122, 0.0
        %v2988 = vmax.f32 %v2151, 0.0
        %v2989 = vmax.f32 %v2180, 0.0
        %v2990 = vmax.f32 %v2209, 0.0
        %v2991 = vmax.f32 %v2238, 0.0
        %v2992 = vmax.f32 %v2267, 0.0
        %v2993 = vmax.f32 %v2296, 0.0
        %v2994 = vmax.f32 %v2325, 0.0
        %v2995 = vmax.f32 %v2354, 0.0
        %v2996 = vmax.f32 %v2383, 0.0
        %v2997 = vmax.f32 %v2412, 0.0
        %v2998 = vmax.f32 %v2441, 0.0
        %v2999 = vmax.f32 %v2470, 0.0
        %v3000 = vmax.f32 %v2499, 0.0
        %v3001 = vmax.f32 %v2528, 0.0
        %v3002 = vmax.f32 %v2557, 0.0
        %v3003 = vmax.f32 %v2586, 0.0
        %v3004 = vmax.f32 %v2615, 0.0
        %v3005 = vmax.f32 %v2644, 0.0
        %v3006 = vmax.f32 %v2673, 0.0
        %v3007 = vmax.f32 %v2702, 0.0
        %v3008 = vmax.f32 %v2731, 0.0
        %v3009 = vmax.f32 %v2760, 0.0
        %v3010 = vmax.f32 %v2789, 0.0
        %v3011 = vmax.f32 %v2818, 0.0
        %v3012 = vmax.f32 %v2847, 0.0
        %v3013 = vmax.f32 %v2876, 0.0
        %v3014 = vmax.f32 %v2905, 0.0
        %v3015 = vmax.f32 %v2008, 0.0
        %v3016 = vmax.f32 %v2037, 0.0
        %v3017 = vmax.f32 %v2066, 0.0
        %v3018 = vmax.f32 %v2095, 0.0
        %v3019 = vmax.f32 %v2124, 0.0
        %v3020 = vmax.f32 %v2153, 0.0
        %v3021 = vmax.f32 %v2182, 0.0
        %v3022 = vmax.f32 %v2211, 0.0
        %v3023 = vmax.f32 %v2240, 0.0
        %v3024 = vmax.f32 %v2269, 0.0
        %v3025 = vmax.f32 %v2298, 0.0
        %v3026 = vmax.f32 %v2327, 0.0
        %v3027 = vmax.f32 %v2356, 0.0
        %v3028 = vmax.f32 %v2385, 0.0
        %v3029 = vmax.f32 %v2414, 0.0
        %v3030 = vmax.f32 %v2443, 0.0
        %v3031 = vmax.f32 %v2472, 0.0
        %v3032 = vmax.f32 %v2501, 0.0
        %v3033 = vmax.f32 %v2530, 0.0
        %v3034 = vmax.f32 %v2559, 0.0
        %v3035 = vmax.f32 %v2588, 0.0
        %v3036 = vmax.f32 %v2617, 0.0
        %v3037 = vmax.f32 %v2646, 0.0
        %v3038 = vmax.f32 %v2675, 0.0
        %v3039 = vmax.f32 %v2704, 0.0
        %v3040 = vmax.f32 %v2733, 0.0
        %v3041 = vmax.f32 %v2762, 0.0
        %v3042 = vmax.f32 %v2791, 0.0
        %v3043 = vmax.f32 %v2820, 0.0
        %v3044 = vmax.f32 %v2849, 0.0
        %v3045 = vmax.f32 %v2878, 0.0
        %v3046 = vmax.f32 %v2907, 0.0
        %v3047 = vmax.f32 %v2011, 0.0
        %v3048 = vmax.f32 %v2040, 0.0
        %v3049 = vmax.f32 %v2069, 0.0
        %v3050 = vmax.f32 %v2098, 0.0
        %v3051 = vmax.f32 %v2127, 0.0
        %v3052 = vmax.f32 %v2156, 0.0
        %v3053 = vmax.f32 %v2185, 0.0
        %v3054 = vmax.f32 %v2214, 0.0
        %v3055 = vmax.f32 %v2243, 0.0
        %v3056 = vmax.f32 %v2272, 0.0
        %v3057 = vmax.f32 %v2301, 0.0
        %v3058 = vmax.f32 %v2330, 0.0
        %v3059 = vmax.f32 %v2359, 0.0
        %v3060 = vmax.f32 %v2388, 0.0
        %v3061 = vmax.f32 %v2417, 0.0
        %v3062 = vmax.f32 %v2446, 0.0
        %v3063 = vmax.f32 %v2475, 0.0
        %v3064 = vmax.f32 %v2504, 0.0
        %v3065 = vmax.f32 %v2533, 0.0
        %v3066 = vmax.f32 %v2562, 0.0
        %v3067 = vmax.f32 %v2591, 0.0
        %v3068 = vmax.f32 %v2620, 0.0
        %v3069 = vmax.f32 %v2649, 0.0
        %v3070 = vmax.f32 %v2678, 0.0
        %v3071 = vmax.f32 %v2707, 0.0
        %v3072 = vmax.f32 %v2736, 0.0
        %v3073 = vmax.f32 %v2765, 0.0
        %v3074 = vmax.f32 %v2794, 0.0
        %v3075 = vmax.f32 %v2823, 0.0
        %v3076 = vmax.f32 %v2852, 0.0
        %v3077 = vmax.f32 %v2881, 0.0
        %v3078 = vmax.f32 %v2910, 0.0
        %v3079 = vmax.f32 %v2013, 0.0
        %v3080 = vmax.f32 %v2042, 0.0
        %v3081 = vmax.f32 %v2071, 0.0
        %v3082 = vmax.f32 %v2100, 0.0
        %v3083 = vmax.f32 %v2129, 0.0
        %v3084 = vmax.f32 %v2158, 0.0
        %v3085 = vmax.f32 %v2187, 0.0
        %v3086 = vmax.f32 %v2216, 0.0
        %v3087 = vmax.f32 %v2245, 0.0
        %v3088 = vmax.f32 %v2274, 0.0
        %v3089 = vmax.f32 %v2303, 0.0
        %v3090 = vmax.f32 %v2332, 0.0
        %v3091 = vmax.f32 %v2361, 0.0
        %v3092 = vmax.f32 %v2390, 0.0
        %v3093 = vmax.f32 %v2419, 0.0
        %v3094 = vmax.f32 %v2448, 0.0
        %v3095 = vmax.f32 %v2477, 0.0
        %v3096 = vmax.f32 %v2506, 0.0
        %v3097 = vmax.f32 %v2535, 0.0
        %v3098 = vmax.f32 %v2564, 0.0
        %v3099 = vmax.f32 %v2593, 0.0
        %v3100 = vmax.f32 %v2622, 0.0
        %v3101 = vmax.f32 %v2651, 0.0
        %v3102 = vmax.f32 %v2680, 0.0
        %v3103 = vmax.f32 %v2709, 0.0
        %v3104 = vmax.f32 %v2738, 0.0
        %v3105 = vmax.f32 %v2767, 0.0
        %v3106 = vmax.f32 %v2796, 0.0
        %v3107 = vmax.f32 %v2825, 0.0
        %v3108 = vmax.f32 %v2854, 0.0
        %v3109 = vmax.f32 %v2883, 0.0
        %v3110 = vmax.f32 %v2912, 0.0
        %v3111 = vmax.f32 %v2016, 0.0
        %v3112 = vmax.f32 %v2045, 0.0
        %v3113 = vmax.f32 %v2074, 0.0
        %v3114 = vmax.f32 %v2103, 0.0
        %v3115 = vmax.f32 %v2132, 0.0
        %v3116 = vmax.f32 %v2161, 0.0
        %v3117 = vmax.f32 %v2190, 0.0
        %v3118 = vmax.f32 %v2219, 0.0
        %v3119 = vmax.f32 %v2248, 0.0
        %v3120 = vmax.f32 %v2277, 0.0
        %v3121 = vmax.f32 %v2306, 0.0
        %v3122 = vmax.f32 %v2335, 0.0
        %v3123 = vmax.f32 %v2364, 0.0
        %v3124 = vmax.f32 %v2393, 0.0
        %v3125 = vmax.f32 %v2422, 0.0
        %v3126 = vmax.f32 %v2451, 0.0
        %v3127 = vmax.f32 %v2480, 0.0
        %v3128 = vmax.f32 %v2509, 0.0
        %v3129 = vmax.f32 %v2538, 0.0
        %v3130 = vmax.f32 %v2567, 0.0
        %v3131 = vmax.f32 %v2596, 0.0
        %v3132 = vmax.f32 %v2625, 0.0
        %v3133 = vmax.f32 %v2654, 0.0
        %v3134 = vmax.f32 %v2683, 0.0
        %v3135 = vmax.f32 %v2712, 0.0
        %v3136 = vmax.f32 %v2741, 0.0
        %v3137 = vmax.f32 %v2770, 0.0
        %v3138 = vmax.f32 %v2799, 0.0
        %v3139 = vmax.f32 %v2828, 0.0
        %v3140 = vmax.f32 %v2857, 0.0
        %v3141 = vmax.f32 %v2886, 0.0
        %v3142 = vmax.f32 %v2915, 0.0
        %v3143 = vmax.f32 %v2018, 0.0
        %v3144 = vmax.f32 %v2047, 0.0
        %v3145 = vmax.f32 %v2076, 0.0
        %v3146 = vmax.f32 %v2105, 0.0
        %v3147 = vmax.f32 %v2134, 0.0
        %v3148 = vmax.f32 %v2163, 0.0
        %v3149 = vmax.f32 %v2192, 0.0
        %v3150 = vmax.f32 %v2221, 0.0
        %v3151 = vmax.f32 %v2250, 0.0
        %v3152 = vmax.f32 %v2279, 0.0
        %v3153 = vmax.f32 %v2308, 0.0
        %v3154 = vmax.f32 %v2337, 0.0
        %v3155 = vmax.f32 %v2366, 0.0
        %v3156 = vmax.f32 %v2395, 0.0
        %v3157 = vmax.f32 %v2424, 0.0
        %v3158 = vmax.f32 %v2453, 0.0
        %v3159 = vmax.f32 %v2482, 0.0
        %v3160 = vmax.f32 %v2511, 0.0
        %v3161 = vmax.f32 %v2540, 0.0
        %v3162 = vmax.f32 %v2569, 0.0
        %v3163 = vmax.f32 %v2598, 0.0
        %v3164 = vmax.f32 %v2627, 0.0
        %v3165 = vmax.f32 %v2656, 0.0
        %v3166 = vmax.f32 %v2685, 0.0
        %v3167 = vmax.f32 %v2714, 0.0
        %v3168 = vmax.f32 %v2743, 0.0
        %v3169 = vmax.f32 %v2772, 0.0
        %v3170 = vmax.f32 %v2801, 0.0
        %v3171 = vmax.f32 %v2830, 0.0
        %v3172 = vmax.f32 %v2859, 0.0
        %v3173 = vmax.f32 %v2888, 0.0
        %v3174 = vmax.f32 %v2917, 0.0
        %v3175 = vpack.c.bf16 %v2951, %v2919
        %v3176 = vpack.c.bf16 %v2952, %v2920
        %v3177 = vpack.c.bf16 %v2953, %v2921
        %v3178 = vpack.c.bf16 %v2954, %v2922
        %v3179 = vpack.c.bf16 %v2955, %v2923
        %v3180 = vpack.c.bf16 %v2956, %v2924
        %v3181 = vpack.c.bf16 %v2957, %v2925
        %v3182 = vpack.c.bf16 %v2958, %v2926
        %v3183 = vpack.c.bf16 %v2959, %v2927
        %v3184 = vpack.c.bf16 %v2960, %v2928
        %v3185 = vpack.c.bf16 %v2961, %v2929
        %v3186 = vpack.c.bf16 %v2962, %v2930
        %v3187 = vpack.c.bf16 %v2963, %v2931
        %v3188 = vpack.c.bf16 %v2964, %v2932
        %v3189 = vpack.c.bf16 %v2965, %v2933
        %v3190 = vpack.c.bf16 %v2966, %v2934
        %v3191 = vpack.c.bf16 %v2967, %v2935
        %v3192 = vpack.c.bf16 %v2968, %v2936
        %v3193 = vpack.c.bf16 %v2969, %v2937
        %v3194 = vpack.c.bf16 %v2970, %v2938
        %v3195 = vpack.c.bf16 %v2971, %v2939
        %v3196 = vpack.c.bf16 %v2972, %v2940
        %v3197 = vpack.c.bf16 %v2973, %v2941
        %v3198 = vpack.c.bf16 %v2974, %v2942
        %v3199 = vpack.c.bf16 %v2975, %v2943
        %v3200 = vpack.c.bf16 %v2976, %v2944
        %v3201 = vpack.c.bf16 %v2977, %v2945
        %v3202 = vpack.c.bf16 %v2978, %v2946
        %v3203 = vpack.c.bf16 %v2979, %v2947
        %v3204 = vpack.c.bf16 %v2980, %v2948
        %v3205 = vpack.c.bf16 %v2981, %v2949
        %v3206 = vpack.c.bf16 %v2982, %v2950
        %v3207 = vpack.c.bf16 %v3015, %v2983
        %v3208 = vpack.c.bf16 %v3016, %v2984
        %v3209 = vpack.c.bf16 %v3017, %v2985
        %v3210 = vpack.c.bf16 %v3018, %v2986
        %v3211 = vpack.c.bf16 %v3019, %v2987
        %v3212 = vpack.c.bf16 %v3020, %v2988
        %v3213 = vpack.c.bf16 %v3021, %v2989
        %v3214 = vpack.c.bf16 %v3022, %v2990
        %v3215 = vpack.c.bf16 %v3023, %v2991
        %v3216 = vpack.c.bf16 %v3024, %v2992
        %v3217 = vpack.c.bf16 %v3025, %v2993
        %v3218 = vpack.c.bf16 %v3026, %v2994
        %v3219 = vpack.c.bf16 %v3027, %v2995
        %v3220 = vpack.c.bf16 %v3028, %v2996
        %v3221 = vpack.c.bf16 %v3029, %v2997
        %v3222 = vpack.c.bf16 %v3030, %v2998
        %v3223 = vpack.c.bf16 %v3031, %v2999
        %v3224 = vpack.c.bf16 %v3032, %v3000
        %v3225 = vpack.c.bf16 %v3033, %v3001
        %v3226 = vpack.c.bf16 %v3034, %v3002
        %v3227 = vpack.c.bf16 %v3035, %v3003
        %v3228 = vpack.c.bf16 %v3036, %v3004
        %v3229 = vpack.c.bf16 %v3037, %v3005
        %v3230 = vpack.c.bf16 %v3038, %v3006
        %v3231 = vpack.c.bf16 %v3039, %v3007
        %v3232 = vpack.c.bf16 %v3040, %v3008
        %v3233 = vpack.c.bf16 %v3041, %v3009
        %v3234 = vpack.c.bf16 %v3042, %v3010
        %v3235 = vpack.c.bf16 %v3043, %v3011
        %v3236 = vpack.c.bf16 %v3044, %v3012
        %v3237 = vpack.c.bf16 %v3045, %v3013
        %v3238 = vpack.c.bf16 %v3046, %v3014
        %v3239 = vpack.c.bf16 %v3079, %v3047
        %v3240 = vpack.c.bf16 %v3080, %v3048
        %v3241 = vpack.c.bf16 %v3081, %v3049
        %v3242 = vpack.c.bf16 %v3082, %v3050
        %v3243 = vpack.c.bf16 %v3083, %v3051
        %v3244 = vpack.c.bf16 %v3084, %v3052
        %v3245 = vpack.c.bf16 %v3085, %v3053
        %v3246 = vpack.c.bf16 %v3086, %v3054
        %v3247 = vpack.c.bf16 %v3087, %v3055
        %v3248 = vpack.c.bf16 %v3088, %v3056
        %v3249 = vpack.c.bf16 %v3089, %v3057
        %v3250 = vpack.c.bf16 %v3090, %v3058
        %v3251 = vpack.c.bf16 %v3091, %v3059
        %v3252 = vpack.c.bf16 %v3092, %v3060
        %v3253 = vpack.c.bf16 %v3093, %v3061
        %v3254 = vpack.c.bf16 %v3094, %v3062
        %v3255 = vpack.c.bf16 %v3095, %v3063
        %v3256 = vpack.c.bf16 %v3096, %v3064
        %v3257 = vpack.c.bf16 %v3097, %v3065
        %v3258 = vpack.c.bf16 %v3098, %v3066
        %v3259 = vpack.c.bf16 %v3099, %v3067
        %v3260 = vpack.c.bf16 %v3100, %v3068
        %v3261 = vpack.c.bf16 %v3101, %v3069
        %v3262 = vpack.c.bf16 %v3102, %v3070
        %v3263 = vpack.c.bf16 %v3103, %v3071
        %v3264 = vpack.c.bf16 %v3104, %v3072
        %v3265 = vpack.c.bf16 %v3105, %v3073
        %v3266 = vpack.c.bf16 %v3106, %v3074
        %v3267 = vpack.c.bf16 %v3107, %v3075
        %v3268 = vpack.c.bf16 %v3108, %v3076
        %v3269 = vpack.c.bf16 %v3109, %v3077
        %v3270 = vpack.c.bf16 %v3110, %v3078
        %v3271 = vpack.c.bf16 %v3143, %v3111
        %v3272 = vpack.c.bf16 %v3144, %v3112
        %v3273 = vpack.c.bf16 %v3145, %v3113
        %v3274 = vpack.c.bf16 %v3146, %v3114
        %v3275 = vpack.c.bf16 %v3147, %v3115
        %v3276 = vpack.c.bf16 %v3148, %v3116
        %v3277 = vpack.c.bf16 %v3149, %v3117
        %v3278 = vpack.c.bf16 %v3150, %v3118
        %v3279 = vpack.c.bf16 %v3151, %v3119
        %v3280 = vpack.c.bf16 %v3152, %v3120
        %v3281 = vpack.c.bf16 %v3153, %v3121
        %v3282 = vpack.c.bf16 %v3154, %v3122
        %v3283 = vpack.c.bf16 %v3155, %v3123
        %v3284 = vpack.c.bf16 %v3156, %v3124
        %v3285 = vpack.c.bf16 %v3157, %v3125
        %v3286 = vpack.c.bf16 %v3158, %v3126
        %v3287 = vpack.c.bf16 %v3159, %v3127
        %v3288 = vpack.c.bf16 %v3160, %v3128
        %v3289 = vpack.c.bf16 %v3161, %v3129
        %v3290 = vpack.c.bf16 %v3162, %v3130
        %v3291 = vpack.c.bf16 %v3163, %v3131
        %v3292 = vpack.c.bf16 %v3164, %v3132
        %v3293 = vpack.c.bf16 %v3165, %v3133
        %v3294 = vpack.c.bf16 %v3166, %v3134
        %v3295 = vpack.c.bf16 %v3167, %v3135
        %v3296 = vpack.c.bf16 %v3168, %v3136
        %v3297 = vpack.c.bf16 %v3169, %v3137
        %v3298 = vpack.c.bf16 %v3170, %v3138
        %v3299 = vpack.c.bf16 %v3171, %v3139
        %v3300 = vpack.c.bf16 %v3172, %v3140
        %v3301 = vpack.c.bf16 %v3173, %v3141
        %v3302 = vpack.c.bf16 %v3174, %v3142
        %v3303 = vld [vmem:[%s5] sm:$0xf]
        %v3304 = vld [vmem:[%s5 + $0x4] sm:$0xf]
        %v3305 = vld [vmem:[%s5 + $0x8] sm:$0xf]
        %v3306 = vld [vmem:[%s5 + $0xc] sm:$0xf]
        %v3307 = vld [vmem:[%s5 + $0x10] sm:$0xf]
        %v3308 = vld [vmem:[%s5 + $0x14] sm:$0xf]
        %v3309 = vld [vmem:[%s5 + $0x18] sm:$0xf]
        %v3310 = vld [vmem:[%s5 + $0x1c] sm:$0xf]
        %v3311 = vld [vmem:[%s6] sm:$0x1]
        %v3313 = vperm.slane %v3311, 0
        %3315 = vxpose.binary.xlu0.c.b16.start [1/16] %v3176, %v3175, 128
        %3316 = vxpose.binary.xlu0.c.b16.cont [2/16] %v3208, %v3207, 128
        %3317 = vxpose.binary.xlu0.c.b16.cont [3/16] %v3240, %v3239, 128
        %3318 = vxpose.binary.xlu0.c.b16.cont [4/16] %v3272, %v3271, 128
        %3319 = vxpose.binary.xlu0.c.b16.cont [5/16] 0, 0, 128
        %3320 = vxpose.binary.xlu0.c.b16.cont [6/16] 0, 0, 128
        %3321 = vxpose.binary.xlu0.c.b16.cont [7/16] 0, 0, 128
        %3322 = vxpose.binary.xlu0.c.b16.end [8/16] 0, 0, 128
        %v3323 = vpop.trf.xlu0
        %v3324 = vpop.trf.xlu0
        %v3325 = vpop.trf.xlu0
        %v3326 = vpop.trf.xlu0
        %v3327 = vpop.trf.xlu0
        %v3328 = vpop.trf.xlu0
        %v3329 = vpop.trf.xlu0
        %v3330 = vpop.trf.xlu0
        %v3331 = vpop.trf.xlu0
        %v3332 = vpop.trf.xlu0
        %v3333 = vpop.trf.xlu0
        %v3334 = vpop.trf.xlu0
        %v3335 = vpop.trf.xlu0
        %v3336 = vpop.trf.xlu0
        %v3337 = vpop.trf.xlu0
        %v3338 = vpop.trf.xlu0
        %3339 = vxpose.binary.xlu0.c.b16.start [1/16] %v3178, %v3177, 128
        %3340 = vxpose.binary.xlu0.c.b16.cont [2/16] %v3210, %v3209, 128
        %3341 = vxpose.binary.xlu0.c.b16.cont [3/16] %v3242, %v3241, 128
        %3342 = vxpose.binary.xlu0.c.b16.cont [4/16] %v3274, %v3273, 128
        %3343 = vxpose.binary.xlu0.c.b16.cont [5/16] 0, 0, 128
        %3344 = vxpose.binary.xlu0.c.b16.cont [6/16] 0, 0, 128
        %3345 = vxpose.binary.xlu0.c.b16.cont [7/16] 0, 0, 128
        %3346 = vxpose.binary.xlu0.c.b16.end [8/16] 0, 0, 128
        %v3347 = vpop.trf.xlu0
        %v3348 = vpop.trf.xlu0
        %v3349 = vpop.trf.xlu0
        %v3350 = vpop.trf.xlu0
        %v3351 = vpop.trf.xlu0
        %v3352 = vpop.trf.xlu0
        %v3353 = vpop.trf.xlu0
        %v3354 = vpop.trf.xlu0
        %v3355 = vpop.trf.xlu0
        %v3356 = vpop.trf.xlu0
        %v3357 = vpop.trf.xlu0
        %v3358 = vpop.trf.xlu0
        %v3359 = vpop.trf.xlu0
        %v3360 = vpop.trf.xlu0
        %v3361 = vpop.trf.xlu0
        %v3362 = vpop.trf.xlu0
        %3363 = vxpose.binary.xlu0.c.b16.start [1/16] %v3180, %v3179, 128
        %3364 = vxpose.binary.xlu0.c.b16.cont [2/16] %v3212, %v3211, 128
        %3365 = vxpose.binary.xlu0.c.b16.cont [3/16] %v3244, %v3243, 128
        %3366 = vxpose.binary.xlu0.c.b16.cont [4/16] %v3276, %v3275, 128
        %3367 = vxpose.binary.xlu0.c.b16.cont [5/16] 0, 0, 128
        %3368 = vxpose.binary.xlu0.c.b16.cont [6/16] 0, 0, 128
        %3369 = vxpose.binary.xlu0.c.b16.cont [7/16] 0, 0, 128
        %3370 = vxpose.binary.xlu0.c.b16.end [8/16] 0, 0, 128
        %v3371 = vpop.trf.xlu0
        %v3372 = vpop.trf.xlu0
        %v3373 = vpop.trf.xlu0
        %v3374 = vpop.trf.xlu0
        %v3375 = vpop.trf.xlu0
        %v3376 = vpop.trf.xlu0
        %v3377 = vpop.trf.xlu0
        %v3378 = vpop.trf.xlu0
        %v3379 = vpop.trf.xlu0
        %v3380 = vpop.trf.xlu0
        %v3381 = vpop.trf.xlu0
        %v3382 = vpop.trf.xlu0
        %v3383 = vpop.trf.xlu0
        %v3384 = vpop.trf.xlu0
        %v3385 = vpop.trf.xlu0
        %v3386 = vpop.trf.xlu0
        %3387 = vxpose.binary.xlu0.c.b16.start [1/16] %v3182, %v3181, 128
        %3388 = vxpose.binary.xlu0.c.b16.cont [2/16] %v3214, %v3213, 128
        %3389 = vxpose.binary.xlu0.c.b16.cont [3/16] %v3246, %v3245, 128
        %3390 = vxpose.binary.xlu0.c.b16.cont [4/16] %v3278, %v3277, 128
        %3391 = vxpose.binary.xlu0.c.b16.cont [5/16] 0, 0, 128
        %3392 = vxpose.binary.xlu0.c.b16.cont [6/16] 0, 0, 128
        %3393 = vxpose.binary.xlu0.c.b16.cont [7/16] 0, 0, 128
        %3394 = vxpose.binary.xlu0.c.b16.end [8/16] 0, 0, 128
        %v3395 = vpop.trf.xlu0
        %v3396 = vpop.trf.xlu0
        %v3397 = vpop.trf.xlu0
        %v3398 = vpop.trf.xlu0
        %v3399 = vpop.trf.xlu0
        %v3400 = vpop.trf.xlu0
        %v3401 = vpop.trf.xlu0
        %v3402 = vpop.trf.xlu0
        %v3403 = vpop.trf.xlu0
        %v3404 = vpop.trf.xlu0
        %v3405 = vpop.trf.xlu0
        %v3406 = vpop.trf.xlu0
        %v3407 = vpop.trf.xlu0
        %v3408 = vpop.trf.xlu0
        %v3409 = vpop.trf.xlu0
        %v3410 = vpop.trf.xlu0
        %3411 = vxpose.binary.xlu0.c.b16.start [1/16] %v3184, %v3183, 128
        %3412 = vxpose.binary.xlu0.c.b16.cont [2/16] %v3216, %v3215, 128
        %3413 = vxpose.binary.xlu0.c.b16.cont [3/16] %v3248, %v3247, 128
        %3414 = vxpose.binary.xlu0.c.b16.cont [4/16] %v3280, %v3279, 128
        %3415 = vxpose.binary.xlu0.c.b16.cont [5/16] 0, 0, 128
        %3416 = vxpose.binary.xlu0.c.b16.cont [6/16] 0, 0, 128
        %3417 = vxpose.binary.xlu0.c.b16.cont [7/16] 0, 0, 128
        %3418 = vxpose.binary.xlu0.c.b16.end [8/16] 0, 0, 128
        %v3419 = vpop.trf.xlu0
        %v3420 = vpop.trf.xlu0
        %v3421 = vpop.trf.xlu0
        %v3422 = vpop.trf.xlu0
        %v3423 = vpop.trf.xlu0
        %v3424 = vpop.trf.xlu0
        %v3425 = vpop.trf.xlu0
        %v3426 = vpop.trf.xlu0
        %v3427 = vpop.trf.xlu0
        %v3428 = vpop.trf.xlu0
        %v3429 = vpop.trf.xlu0
        %v3430 = vpop.trf.xlu0
        %v3431 = vpop.trf.xlu0
        %v3432 = vpop.trf.xlu0
        %v3433 = vpop.trf.xlu0
        %v3434 = vpop.trf.xlu0
        %3435 = vxpose.binary.xlu0.c.b16.start [1/16] %v3186, %v3185, 128
        %3436 = vxpose.binary.xlu0.c.b16.cont [2/16] %v3218, %v3217, 128
        %3437 = vxpose.binary.xlu0.c.b16.cont [3/16] %v3250, %v3249, 128
        %3438 = vxpose.binary.xlu0.c.b16.cont [4/16] %v3282, %v3281, 128
        %3439 = vxpose.binary.xlu0.c.b16.cont [5/16] 0, 0, 128
        %3440 = vxpose.binary.xlu0.c.b16.cont [6/16] 0, 0, 128
        %3441 = vxpose.binary.xlu0.c.b16.cont [7/16] 0, 0, 128
        %3442 = vxpose.binary.xlu0.c.b16.end [8/16] 0, 0, 128
        %v3443 = vpop.trf.xlu0
        %v3444 = vpop.trf.xlu0
        %v3445 = vpop.trf.xlu0
        %v3446 = vpop.trf.xlu0
        %v3447 = vpop.trf.xlu0
        %v3448 = vpop.trf.xlu0
        %v3449 = vpop.trf.xlu0
        %v3450 = vpop.trf.xlu0
        %v3451 = vpop.trf.xlu0
        %v3452 = vpop.trf.xlu0
        %v3453 = vpop.trf.xlu0
        %v3454 = vpop.trf.xlu0
        %v3455 = vpop.trf.xlu0
        %v3456 = vpop.trf.xlu0
        %v3457 = vpop.trf.xlu0
        %v3458 = vpop.trf.xlu0
        %3459 = vxpose.binary.xlu0.c.b16.start [1/16] %v3188, %v3187, 128
        %3460 = vxpose.binary.xlu0.c.b16.cont [2/16] %v3220, %v3219, 128
        %3461 = vxpose.binary.xlu0.c.b16.cont [3/16] %v3252, %v3251, 128
        %3462 = vxpose.binary.xlu0.c.b16.cont [4/16] %v3284, %v3283, 128
        %3463 = vxpose.binary.xlu0.c.b16.cont [5/16] 0, 0, 128
        %3464 = vxpose.binary.xlu0.c.b16.cont [6/16] 0, 0, 128
        %3465 = vxpose.binary.xlu0.c.b16.cont [7/16] 0, 0, 128
        %3466 = vxpose.binary.xlu0.c.b16.end [8/16] 0, 0, 128
        %v3467 = vpop.trf.xlu0
        %v3468 = vpop.trf.xlu0
        %v3469 = vpop.trf.xlu0
        %v3470 = vpop.trf.xlu0
        %v3471 = vpop.trf.xlu0
        %v3472 = vpop.trf.xlu0
        %v3473 = vpop.trf.xlu0
        %v3474 = vpop.trf.xlu0
        %v3475 = vpop.trf.xlu0
        %v3476 = vpop.trf.xlu0
        %v3477 = vpop.trf.xlu0
        %v3478 = vpop.trf.xlu0
        %v3479 = vpop.trf.xlu0
        %v3480 = vpop.trf.xlu0
        %v3481 = vpop.trf.xlu0
        %v3482 = vpop.trf.xlu0
        %3483 = vxpose.binary.xlu0.c.b16.start [1/16] %v3190, %v3189, 128
        %3484 = vxpose.binary.xlu0.c.b16.cont [2/16] %v3222, %v3221, 128
        %3485 = vxpose.binary.xlu0.c.b16.cont [3/16] %v3254, %v3253, 128
        %3486 = vxpose.binary.xlu0.c.b16.cont [4/16] %v3286, %v3285, 128
        %3487 = vxpose.binary.xlu0.c.b16.cont [5/16] 0, 0, 128
        %3488 = vxpose.binary.xlu0.c.b16.cont [6/16] 0, 0, 128
        %3489 = vxpose.binary.xlu0.c.b16.cont [7/16] 0, 0, 128
        %3490 = vxpose.binary.xlu0.c.b16.end [8/16] 0, 0, 128
        %v3491 = vpop.trf.xlu0
        %v3492 = vpop.trf.xlu0
        %v3493 = vpop.trf.xlu0
        %v3494 = vpop.trf.xlu0
        %v3495 = vpop.trf.xlu0
        %v3496 = vpop.trf.xlu0
        %v3497 = vpop.trf.xlu0
        %v3498 = vpop.trf.xlu0
        %v3499 = vpop.trf.xlu0
        %v3500 = vpop.trf.xlu0
        %v3501 = vpop.trf.xlu0
        %v3502 = vpop.trf.xlu0
        %v3503 = vpop.trf.xlu0
        %v3504 = vpop.trf.xlu0
        %v3505 = vpop.trf.xlu0
        %v3506 = vpop.trf.xlu0
        %3507 = vxpose.binary.xlu0.c.b16.start [1/16] %v3192, %v3191, 128
        %3508 = vxpose.binary.xlu0.c.b16.cont [2/16] %v3224, %v3223, 128
        %3509 = vxpose.binary.xlu0.c.b16.cont [3/16] %v3256, %v3255, 128
        %3510 = vxpose.binary.xlu0.c.b16.cont [4/16] %v3288, %v3287, 128
        %3511 = vxpose.binary.xlu0.c.b16.cont [5/16] 0, 0, 128
        %3512 = vxpose.binary.xlu0.c.b16.cont [6/16] 0, 0, 128
        %3513 = vxpose.binary.xlu0.c.b16.cont [7/16] 0, 0, 128
        %3514 = vxpose.binary.xlu0.c.b16.end [8/16] 0, 0, 128
        %v3515 = vpop.trf.xlu0
        %v3516 = vpop.trf.xlu0
        %v3517 = vpop.trf.xlu0
        %v3518 = vpop.trf.xlu0
        %v3519 = vpop.trf.xlu0
        %v3520 = vpop.trf.xlu0
        %v3521 = vpop.trf.xlu0
        %v3522 = vpop.trf.xlu0
        %v3523 = vpop.trf.xlu0
        %v3524 = vpop.trf.xlu0
        %v3525 = vpop.trf.xlu0
        %v3526 = vpop.trf.xlu0
        %v3527 = vpop.trf.xlu0
        %v3528 = vpop.trf.xlu0
        %v3529 = vpop.trf.xlu0
        %v3530 = vpop.trf.xlu0
        %3531 = vxpose.binary.xlu0.c.b16.start [1/16] %v3194, %v3193, 128
        %3532 = vxpose.binary.xlu0.c.b16.cont [2/16] %v3226, %v3225, 128
        %3533 = vxpose.binary.xlu0.c.b16.cont [3/16] %v3258, %v3257, 128
        %3534 = vxpose.binary.xlu0.c.b16.cont [4/16] %v3290, %v3289, 128
        %3535 = vxpose.binary.xlu0.c.b16.cont [5/16] 0, 0, 128
        %3536 = vxpose.binary.xlu0.c.b16.cont [6/16] 0, 0, 128
        %3537 = vxpose.binary.xlu0.c.b16.cont [7/16] 0, 0, 128
        %3538 = vxpose.binary.xlu0.c.b16.end [8/16] 0, 0, 128
        %v3539 = vpop.trf.xlu0
        %v3540 = vpop.trf.xlu0
        %v3541 = vpop.trf.xlu0
        %v3542 = vpop.trf.xlu0
        %v3543 = vpop.trf.xlu0
        %v3544 = vpop.trf.xlu0
        %v3545 = vpop.trf.xlu0
        %v3546 = vpop.trf.xlu0
        %v3547 = vpop.trf.xlu0
        %v3548 = vpop.trf.xlu0
        %v3549 = vpop.trf.xlu0
        %v3550 = vpop.trf.xlu0
        %v3551 = vpop.trf.xlu0
        %v3552 = vpop.trf.xlu0
        %v3553 = vpop.trf.xlu0
        %v3554 = vpop.trf.xlu0
        %3555 = vxpose.binary.xlu0.c.b16.start [1/16] %v3196, %v3195, 128
        %3556 = vxpose.binary.xlu0.c.b16.cont [2/16] %v3228, %v3227, 128
        %3557 = vxpose.binary.xlu0.c.b16.cont [3/16] %v3260, %v3259, 128
        %3558 = vxpose.binary.xlu0.c.b16.cont [4/16] %v3292, %v3291, 128
        %3559 = vxpose.binary.xlu0.c.b16.cont [5/16] 0, 0, 128
        %3560 = vxpose.binary.xlu0.c.b16.cont [6/16] 0, 0, 128
        %3561 = vxpose.binary.xlu0.c.b16.cont [7/16] 0, 0, 128
        %3562 = vxpose.binary.xlu0.c.b16.end [8/16] 0, 0, 128
        %v3563 = vpop.trf.xlu0
        %v3564 = vpop.trf.xlu0
        %v3565 = vpop.trf.xlu0
        %v3566 = vpop.trf.xlu0
        %v3567 = vpop.trf.xlu0
        %v3568 = vpop.trf.xlu0
        %v3569 = vpop.trf.xlu0
        %v3570 = vpop.trf.xlu0
        %v3571 = vpop.trf.xlu0
        %v3572 = vpop.trf.xlu0
        %v3573 = vpop.trf.xlu0
        %v3574 = vpop.trf.xlu0
        %v3575 = vpop.trf.xlu0
        %v3576 = vpop.trf.xlu0
        %v3577 = vpop.trf.xlu0
        %v3578 = vpop.trf.xlu0
        %3579 = vxpose.binary.xlu0.c.b16.start [1/16] %v3198, %v3197, 128
        %3580 = vxpose.binary.xlu0.c.b16.cont [2/16] %v3230, %v3229, 128
        %3581 = vxpose.binary.xlu0.c.b16.cont [3/16] %v3262, %v3261, 128
        %3582 = vxpose.binary.xlu0.c.b16.cont [4/16] %v3294, %v3293, 128
        %3583 = vxpose.binary.xlu0.c.b16.cont [5/16] 0, 0, 128
        %3584 = vxpose.binary.xlu0.c.b16.cont [6/16] 0, 0, 128
        %3585 = vxpose.binary.xlu0.c.b16.cont [7/16] 0, 0, 128
        %3586 = vxpose.binary.xlu0.c.b16.end [8/16] 0, 0, 128
        %v3587 = vpop.trf.xlu0
        %v3588 = vpop.trf.xlu0
        %v3589 = vpop.trf.xlu0
        %v3590 = vpop.trf.xlu0
        %v3591 = vpop.trf.xlu0
        %v3592 = vpop.trf.xlu0
        %v3593 = vpop.trf.xlu0
        %v3594 = vpop.trf.xlu0
        %v3595 = vpop.trf.xlu0
        %v3596 = vpop.trf.xlu0
        %v3597 = vpop.trf.xlu0
        %v3598 = vpop.trf.xlu0
        %v3599 = vpop.trf.xlu0
        %v3600 = vpop.trf.xlu0
        %v3601 = vpop.trf.xlu0
        %v3602 = vpop.trf.xlu0
        %3603 = vxpose.binary.xlu0.c.b16.start [1/16] %v3200, %v3199, 128
        %3604 = vxpose.binary.xlu0.c.b16.cont [2/16] %v3232, %v3231, 128
        %3605 = vxpose.binary.xlu0.c.b16.cont [3/16] %v3264, %v3263, 128
        %3606 = vxpose.binary.xlu0.c.b16.cont [4/16] %v3296, %v3295, 128
        %3607 = vxpose.binary.xlu0.c.b16.cont [5/16] 0, 0, 128
        %3608 = vxpose.binary.xlu0.c.b16.cont [6/16] 0, 0, 128
        %3609 = vxpose.binary.xlu0.c.b16.cont [7/16] 0, 0, 128
        %3610 = vxpose.binary.xlu0.c.b16.end [8/16] 0, 0, 128
        %v3611 = vpop.trf.xlu0
        %v3612 = vpop.trf.xlu0
        %v3613 = vpop.trf.xlu0
        %v3614 = vpop.trf.xlu0
        %v3615 = vpop.trf.xlu0
        %v3616 = vpop.trf.xlu0
        %v3617 = vpop.trf.xlu0
        %v3618 = vpop.trf.xlu0
        %v3619 = vpop.trf.xlu0
        %v3620 = vpop.trf.xlu0
        %v3621 = vpop.trf.xlu0
        %v3622 = vpop.trf.xlu0
        %v3623 = vpop.trf.xlu0
        %v3624 = vpop.trf.xlu0
        %v3625 = vpop.trf.xlu0
        %v3626 = vpop.trf.xlu0
        %3627 = vxpose.binary.xlu0.c.b16.start [1/16] %v3202, %v3201, 128
        %3628 = vxpose.binary.xlu0.c.b16.cont [2/16] %v3234, %v3233, 128
        %3629 = vxpose.binary.xlu0.c.b16.cont [3/16] %v3266, %v3265, 128
        %3630 = vxpose.binary.xlu0.c.b16.cont [4/16] %v3298, %v3297, 128
        %3631 = vxpose.binary.xlu0.c.b16.cont [5/16] 0, 0, 128
        %3632 = vxpose.binary.xlu0.c.b16.cont [6/16] 0, 0, 128
        %3633 = vxpose.binary.xlu0.c.b16.cont [7/16] 0, 0, 128
        %3634 = vxpose.binary.xlu0.c.b16.end [8/16] 0, 0, 128
        %v3635 = vpop.trf.xlu0
        %v3636 = vpop.trf.xlu0
        %v3637 = vpop.trf.xlu0
        %v3638 = vpop.trf.xlu0
        %v3639 = vpop.trf.xlu0
        %v3640 = vpop.trf.xlu0
        %v3641 = vpop.trf.xlu0
        %v3642 = vpop.trf.xlu0
        %v3643 = vpop.trf.xlu0
        %v3644 = vpop.trf.xlu0
        %v3645 = vpop.trf.xlu0
        %v3646 = vpop.trf.xlu0
        %v3647 = vpop.trf.xlu0
        %v3648 = vpop.trf.xlu0
        %v3649 = vpop.trf.xlu0
        %v3650 = vpop.trf.xlu0
        %3651 = vxpose.binary.xlu0.c.b16.start [1/16] %v3204, %v3203, 128
        %3652 = vxpose.binary.xlu0.c.b16.cont [2/16] %v3236, %v3235, 128
        %3653 = vxpose.binary.xlu0.c.b16.cont [3/16] %v3268, %v3267, 128
        %3654 = vxpose.binary.xlu0.c.b16.cont [4/16] %v3300, %v3299, 128
        %3655 = vxpose.binary.xlu0.c.b16.cont [5/16] 0, 0, 128
        %3656 = vxpose.binary.xlu0.c.b16.cont [6/16] 0, 0, 128
        %3657 = vxpose.binary.xlu0.c.b16.cont [7/16] 0, 0, 128
        %3658 = vxpose.binary.xlu0.c.b16.end [8/16] 0, 0, 128
        %v3659 = vpop.trf.xlu0
        %v3660 = vpop.trf.xlu0
        %v3661 = vpop.trf.xlu0
        %v3662 = vpop.trf.xlu0
        %v3663 = vpop.trf.xlu0
        %v3664 = vpop.trf.xlu0
        %v3665 = vpop.trf.xlu0
        %v3666 = vpop.trf.xlu0
        %v3667 = vpop.trf.xlu0
        %v3668 = vpop.trf.xlu0
        %v3669 = vpop.trf.xlu0
        %v3670 = vpop.trf.xlu0
        %v3671 = vpop.trf.xlu0
        %v3672 = vpop.trf.xlu0
        %v3673 = vpop.trf.xlu0
        %v3674 = vpop.trf.xlu0
        %3675 = vxpose.binary.xlu0.c.b16.start [1/16] %v3206, %v3205, 128
        %3676 = vxpose.binary.xlu0.c.b16.cont [2/16] %v3238, %v3237, 128
        %3677 = vxpose.binary.xlu0.c.b16.cont [3/16] %v3270, %v3269, 128
        %3678 = vxpose.binary.xlu0.c.b16.cont [4/16] %v3302, %v3301, 128
        %3679 = vxpose.binary.xlu0.c.b16.cont [5/16] 0, 0, 128
        %3680 = vxpose.binary.xlu0.c.b16.cont [6/16] 0, 0, 128
        %3681 = vxpose.binary.xlu0.c.b16.cont [7/16] 0, 0, 128
        %3682 = vxpose.binary.xlu0.c.b16.end [8/16] 0, 0, 128
        %v3683 = vpop.trf.xlu0
        %v3684 = vpop.trf.xlu0
        %v3685 = vpop.trf.xlu0
        %v3686 = vpop.trf.xlu0
        %v3687 = vpop.trf.xlu0
        %v3688 = vpop.trf.xlu0
        %v3689 = vpop.trf.xlu0
        %v3690 = vpop.trf.xlu0
        %v3691 = vpop.trf.xlu0
        %v3692 = vpop.trf.xlu0
        %v3693 = vpop.trf.xlu0
        %v3694 = vpop.trf.xlu0
        %v3695 = vpop.trf.xlu0
        %v3696 = vpop.trf.xlu0
        %v3697 = vpop.trf.xlu0
        %v3698 = vpop.trf.xlu0
        %v3707 = vunpack.c.l.b16 %v3303
        %v3708 = vunpack.c.l.b16 %v3304
        %v3709 = vunpack.c.l.b16 %v3305
        %v3710 = vunpack.c.l.b16 %v3306
        %v3711 = vunpack.c.l.b16 %v3307
        %v3712 = vunpack.c.l.b16 %v3308
        %v3713 = vunpack.c.l.b16 %v3309
        %v3714 = vunpack.c.l.b16 %v3310
        %v3715 = vpack.c.b16 %v3708, %v3707
        %v3716 = vpack.c.b16 %v3710, %v3709
        %v3717 = vpack.c.b16 %v3712, %v3711
        %v3718 = vpack.c.b16 %v3714, %v3713
        %v3724 = vsel %vm1978, %v3323, 0
        %v3727 = vsel %vm1978, %v3325, 0
        %v3730 = vsel %vm1978, %v3327, 0
        %v3733 = vsel %vm1978, %v3329, 0
        %v3736 = vsel %vm1978, %v3331, 0
        %v3739 = vsel %vm1978, %v3333, 0
        %v3742 = vsel %vm1978, %v3335, 0
        %v3745 = vsel %vm1978, %v3337, 0
        %v3748 = vsel %vm1978, %v3324, 0
        %v3751 = vsel %vm1978, %v3326, 0
        %v3754 = vsel %vm1978, %v3328, 0
        %v3757 = vsel %vm1978, %v3330, 0
        %v3760 = vsel %vm1978, %v3332, 0
        %v3763 = vsel %vm1978, %v3334, 0
        %v3766 = vsel %vm1978, %v3336, 0
        %v3769 = vsel %vm1978, %v3338, 0
        %v3772 = vsel %vm1978, %v3347, 0
        %v3775 = vsel %vm1978, %v3349, 0
        %v3778 = vsel %vm1978, %v3351, 0
        %v3781 = vsel %vm1978, %v3353, 0
        %v3784 = vsel %vm1978, %v3355, 0
        %v3787 = vsel %vm1978, %v3357, 0
        %v3790 = vsel %vm1978, %v3359, 0
        %v3793 = vsel %vm1978, %v3361, 0
        %v3796 = vsel %vm1978, %v3348, 0
        %v3799 = vsel %vm1978, %v3350, 0
        %v3802 = vsel %vm1978, %v3352, 0
        %v3805 = vsel %vm1978, %v3354, 0
        %v3808 = vsel %vm1978, %v3356, 0
        %v3811 = vsel %vm1978, %v3358, 0
        %v3814 = vsel %vm1978, %v3360, 0
        %v3817 = vsel %vm1978, %v3362, 0
        %v3820 = vsel %vm1978, %v3371, 0
        %v3823 = vsel %vm1978, %v3373, 0
        %v3826 = vsel %vm1978, %v3375, 0
        %v3829 = vsel %vm1978, %v3377, 0
        %v3832 = vsel %vm1978, %v3379, 0
        %v3835 = vsel %vm1978, %v3381, 0
        %v3838 = vsel %vm1978, %v3383, 0
        %v3841 = vsel %vm1978, %v3385, 0
        %v3844 = vsel %vm1978, %v3372, 0
        %v3847 = vsel %vm1978, %v3374, 0
        %v3850 = vsel %vm1978, %v3376, 0
        %v3853 = vsel %vm1978, %v3378, 0
        %v3856 = vsel %vm1978, %v3380, 0
        %v3859 = vsel %vm1978, %v3382, 0
        %v3862 = vsel %vm1978, %v3384, 0
        %v3865 = vsel %vm1978, %v3386, 0
        %v3868 = vsel %vm1978, %v3395, 0
        %v3871 = vsel %vm1978, %v3397, 0
        %v3874 = vsel %vm1978, %v3399, 0
        %v3877 = vsel %vm1978, %v3401, 0
        %v3880 = vsel %vm1978, %v3403, 0
        %v3883 = vsel %vm1978, %v3405, 0
        %v3886 = vsel %vm1978, %v3407, 0
        %v3889 = vsel %vm1978, %v3409, 0
        %v3892 = vsel %vm1978, %v3396, 0
        %v3895 = vsel %vm1978, %v3398, 0
        %v3898 = vsel %vm1978, %v3400, 0
        %v3901 = vsel %vm1978, %v3402, 0
        %v3904 = vsel %vm1978, %v3404, 0
        %v3907 = vsel %vm1978, %v3406, 0
        %v3910 = vsel %vm1978, %v3408, 0
        %v3913 = vsel %vm1978, %v3410, 0
        %v3916 = vsel %vm1978, %v3419, 0
        %v3919 = vsel %vm1978, %v3421, 0
        %v3922 = vsel %vm1978, %v3423, 0
        %v3925 = vsel %vm1978, %v3425, 0
        %v3928 = vsel %vm1978, %v3427, 0
        %v3931 = vsel %vm1978, %v3429, 0
        %v3934 = vsel %vm1978, %v3431, 0
        %v3937 = vsel %vm1978, %v3433, 0
        %v3940 = vsel %vm1978, %v3420, 0
        %v3943 = vsel %vm1978, %v3422, 0
        %v3946 = vsel %vm1978, %v3424, 0
        %v3949 = vsel %vm1978, %v3426, 0
        %v3952 = vsel %vm1978, %v3428, 0
        %v3955 = vsel %vm1978, %v3430, 0
        %v3958 = vsel %vm1978, %v3432, 0
        %v3961 = vsel %vm1978, %v3434, 0
        %v3964 = vsel %vm1978, %v3443, 0
        %v3967 = vsel %vm1978, %v3445, 0
        %v3970 = vsel %vm1978, %v3447, 0
        %v3973 = vsel %vm1978, %v3449, 0
        %v3976 = vsel %vm1978, %v3451, 0
        %v3979 = vsel %vm1978, %v3453, 0
        %v3982 = vsel %vm1978, %v3455, 0
        %v3985 = vsel %vm1978, %v3457, 0
        %v3988 = vsel %vm1978, %v3444, 0
        %v3991 = vsel %vm1978, %v3446, 0
        %v3994 = vsel %vm1978, %v3448, 0
        %v3997 = vsel %vm1978, %v3450, 0
        %v4000 = vsel %vm1978, %v3452, 0
        %v4003 = vsel %vm1978, %v3454, 0
        %v4006 = vsel %vm1978, %v3456, 0
        %v4009 = vsel %vm1978, %v3458, 0
        %v4012 = vsel %vm1978, %v3467, 0
        %v4015 = vsel %vm1978, %v3469, 0
        %v4018 = vsel %vm1978, %v3471, 0
        %v4021 = vsel %vm1978, %v3473, 0
        %v4024 = vsel %vm1978, %v3475, 0
        %v4027 = vsel %vm1978, %v3477, 0
        %v4030 = vsel %vm1978, %v3479, 0
        %v4033 = vsel %vm1978, %v3481, 0
        %v4036 = vsel %vm1978, %v3468, 0
        %v4039 = vsel %vm1978, %v3470, 0
        %v4042 = vsel %vm1978, %v3472, 0
        %v4045 = vsel %vm1978, %v3474, 0
        %v4048 = vsel %vm1978, %v3476, 0
        %v4051 = vsel %vm1978, %v3478, 0
        %v4054 = vsel %vm1978, %v3480, 0
        %v4057 = vsel %vm1978, %v3482, 0
        %v4060 = vsel %vm1978, %v3491, 0
        %v4063 = vsel %vm1978, %v3493, 0
        %v4066 = vsel %vm1978, %v3495, 0
        %v4069 = vsel %vm1978, %v3497, 0
        %v4072 = vsel %vm1978, %v3499, 0
        %v4075 = vsel %vm1978, %v3501, 0
        %v4078 = vsel %vm1978, %v3503, 0
        %v4081 = vsel %vm1978, %v3505, 0
        %v4084 = vsel %vm1978, %v3492, 0
        %v4087 = vsel %vm1978, %v3494, 0
        %v4090 = vsel %vm1978, %v3496, 0
        %v4093 = vsel %vm1978, %v3498, 0
        %v4096 = vsel %vm1978, %v3500, 0
        %v4099 = vsel %vm1978, %v3502, 0
        %v4102 = vsel %vm1978, %v3504, 0
        %v4105 = vsel %vm1978, %v3506, 0
        %v4108 = vsel %vm1978, %v3515, 0
        %v4111 = vsel %vm1978, %v3517, 0
        %v4114 = vsel %vm1978, %v3519, 0
        %v4117 = vsel %vm1978, %v3521, 0
        %v4120 = vsel %vm1978, %v3523, 0
        %v4123 = vsel %vm1978, %v3525, 0
        %v4126 = vsel %vm1978, %v3527, 0
        %v4129 = vsel %vm1978, %v3529, 0
        %v4132 = vsel %vm1978, %v3516, 0
        %v4135 = vsel %vm1978, %v3518, 0
        %v4138 = vsel %vm1978, %v3520, 0
        %v4141 = vsel %vm1978, %v3522, 0
        %v4144 = vsel %vm1978, %v3524, 0
        %v4147 = vsel %vm1978, %v3526, 0
        %v4150 = vsel %vm1978, %v3528, 0
        %v4153 = vsel %vm1978, %v3530, 0
        %v4156 = vsel %vm1978, %v3539, 0
        %v4159 = vsel %vm1978, %v3541, 0
        %v4162 = vsel %vm1978, %v3543, 0
        %v4165 = vsel %vm1978, %v3545, 0
        %v4168 = vsel %vm1978, %v3547, 0
        %v4171 = vsel %vm1978, %v3549, 0
        %v4174 = vsel %vm1978, %v3551, 0
        %v4177 = vsel %vm1978, %v3553, 0
        %v4180 = vsel %vm1978, %v3540, 0
        %v4183 = vsel %vm1978, %v3542, 0
        %v4186 = vsel %vm1978, %v3544, 0
        %v4189 = vsel %vm1978, %v3546, 0
        %v4192 = vsel %vm1978, %v3548, 0
        %v4195 = vsel %vm1978, %v3550, 0
        %v4198 = vsel %vm1978, %v3552, 0
        %v4201 = vsel %vm1978, %v3554, 0
        %v4204 = vsel %vm1978, %v3563, 0
        %v4207 = vsel %vm1978, %v3565, 0
        %v4210 = vsel %vm1978, %v3567, 0
        %v4213 = vsel %vm1978, %v3569, 0
        %v4216 = vsel %vm1978, %v3571, 0
        %v4219 = vsel %vm1978, %v3573, 0
        %v4222 = vsel %vm1978, %v3575, 0
        %v4225 = vsel %vm1978, %v3577, 0
        %v4228 = vsel %vm1978, %v3564, 0
        %v4231 = vsel %vm1978, %v3566, 0
        %v4234 = vsel %vm1978, %v3568, 0
        %v4237 = vsel %vm1978, %v3570, 0
        %v4240 = vsel %vm1978, %v3572, 0
        %v4243 = vsel %vm1978, %v3574, 0
        %v4246 = vsel %vm1978, %v3576, 0
        %v4249 = vsel %vm1978, %v3578, 0
        %v4252 = vsel %vm1978, %v3587, 0
        %v4255 = vsel %vm1978, %v3589, 0
        %v4258 = vsel %vm1978, %v3591, 0
        %v4261 = vsel %vm1978, %v3593, 0
        %v4264 = vsel %vm1978, %v3595, 0
        %v4267 = vsel %vm1978, %v3597, 0
        %v4270 = vsel %vm1978, %v3599, 0
        %v4273 = vsel %vm1978, %v3601, 0
        %v4276 = vsel %vm1978, %v3588, 0
        %v4279 = vsel %vm1978, %v3590, 0
        %v4282 = vsel %vm1978, %v3592, 0
        %v4285 = vsel %vm1978, %v3594, 0
        %v4288 = vsel %vm1978, %v3596, 0
        %v4291 = vsel %vm1978, %v3598, 0
        %v4294 = vsel %vm1978, %v3600, 0
        %v4297 = vsel %vm1978, %v3602, 0
        %v4300 = vsel %vm1978, %v3611, 0
        %v4303 = vsel %vm1978, %v3613, 0
        %v4306 = vsel %vm1978, %v3615, 0
        %v4309 = vsel %vm1978, %v3617, 0
        %v4312 = vsel %vm1978, %v3619, 0
        %v4315 = vsel %vm1978, %v3621, 0
        %v4318 = vsel %vm1978, %v3623, 0
        %v4321 = vsel %vm1978, %v3625, 0
        %v4324 = vsel %vm1978, %v3612, 0
        %v4327 = vsel %vm1978, %v3614, 0
        %v4330 = vsel %vm1978, %v3616, 0
        %v4333 = vsel %vm1978, %v3618, 0
        %v4336 = vsel %vm1978, %v3620, 0
        %v4339 = vsel %vm1978, %v3622, 0
        %v4342 = vsel %vm1978, %v3624, 0
        %v4345 = vsel %vm1978, %v3626, 0
        %v4348 = vsel %vm1978, %v3635, 0
        %v4351 = vsel %vm1978, %v3637, 0
        %v4354 = vsel %vm1978, %v3639, 0
        %v4357 = vsel %vm1978, %v3641, 0
        %v4360 = vsel %vm1978, %v3643, 0
        %v4363 = vsel %vm1978, %v3645, 0
        %v4366 = vsel %vm1978, %v3647, 0
        %v4369 = vsel %vm1978, %v3649, 0
        %v4372 = vsel %vm1978, %v3636, 0
        %v4375 = vsel %vm1978, %v3638, 0
        %v4378 = vsel %vm1978, %v3640, 0
        %v4381 = vsel %vm1978, %v3642, 0
        %v4384 = vsel %vm1978, %v3644, 0
        %v4387 = vsel %vm1978, %v3646, 0
        %v4390 = vsel %vm1978, %v3648, 0
        %v4393 = vsel %vm1978, %v3650, 0
        %v4396 = vsel %vm1978, %v3659, 0
        %v4399 = vsel %vm1978, %v3661, 0
        %v4402 = vsel %vm1978, %v3663, 0
        %v4405 = vsel %vm1978, %v3665, 0
        %v4408 = vsel %vm1978, %v3667, 0
        %v4411 = vsel %vm1978, %v3669, 0
        %v4414 = vsel %vm1978, %v3671, 0
        %v4417 = vsel %vm1978, %v3673, 0
        %v4420 = vsel %vm1978, %v3660, 0
        %v4423 = vsel %vm1978, %v3662, 0
        %v4426 = vsel %vm1978, %v3664, 0
        %v4429 = vsel %vm1978, %v3666, 0
        %v4432 = vsel %vm1978, %v3668, 0
        %v4435 = vsel %vm1978, %v3670, 0
        %v4438 = vsel %vm1978, %v3672, 0
        %v4441 = vsel %vm1978, %v3674, 0
        %v4444 = vsel %vm1978, %v3683, 0
        %v4447 = vsel %vm1978, %v3685, 0
        %v4450 = vsel %vm1978, %v3687, 0
        %v4453 = vsel %vm1978, %v3689, 0
        %v4456 = vsel %vm1978, %v3691, 0
        %v4459 = vsel %vm1978, %v3693, 0
        %v4462 = vsel %vm1978, %v3695, 0
        %v4465 = vsel %vm1978, %v3697, 0
        %v4468 = vsel %vm1978, %v3684, 0
        %v4471 = vsel %vm1978, %v3686, 0
        %v4474 = vsel %vm1978, %v3688, 0
        %v4477 = vsel %vm1978, %v3690, 0
        %v4480 = vsel %vm1978, %v3692, 0
        %v4483 = vsel %vm1978, %v3694, 0
        %v4486 = vsel %vm1978, %v3696, 0
        %v4489 = vsel %vm1978, %v3698, 0
        %4491 = vmatpush.bf16.msra.mxu0 0
        %4492 = vmatpush.bf16.msra.mxu0 0
        %4493 = vmatpush.bf16.msra.mxu0 0
        %4494 = vmatpush.bf16.msra.mxu0 0
        %4495 = vmatpush.bf16.msra.mxu0 %v3718
        %4496 = vmatpush.bf16.msra.mxu0 %v3717
        %4497 = vmatpush.bf16.msra.mxu0 %v3716
        %4498 = vmatpush.bf16.msra.mxu0 %v3715
        %4499 = vmatmul.bf16.gmra.mxu0 %v3724
        %v4500 = vpop.f32.mrf.mxu0
        %v4501 = vadd.f32 %v3313, %v4500
        %v4502 = vpop.f32.mrf.mxu0
        %v4503 = vadd.f32 %v3313, %v4502
        %4504 = vmatmul.bf16.gmra.mxu0 %v3727
        %v4505 = vpop.f32.mrf.mxu0
        %v4506 = vadd.f32 %v3313, %v4505
        %v4507 = vpop.f32.mrf.mxu0
        %v4508 = vadd.f32 %v3313, %v4507
        %4509 = vmatmul.bf16.gmra.mxu0 %v3730
        %v4510 = vpop.f32.mrf.mxu0
        %v4511 = vadd.f32 %v3313, %v4510
        %v4512 = vpop.f32.mrf.mxu0
        %v4513 = vadd.f32 %v3313, %v4512
        %4514 = vmatmul.bf16.gmra.mxu0 %v3733
        %v4515 = vpop.f32.mrf.mxu0
        %v4516 = vadd.f32 %v3313, %v4515
        %v4517 = vpop.f32.mrf.mxu0
        %v4518 = vadd.f32 %v3313, %v4517
        %4519 = vmatmul.bf16.gmra.mxu0 %v3736
        %v4520 = vpop.f32.mrf.mxu0
        %v4521 = vadd.f32 %v3313, %v4520
        %v4522 = vpop.f32.mrf.mxu0
        %v4523 = vadd.f32 %v3313, %v4522
        %4524 = vmatmul.bf16.gmra.mxu0 %v3739
        %v4525 = vpop.f32.mrf.mxu0
        %v4526 = vadd.f32 %v3313, %v4525
        %v4527 = vpop.f32.mrf.mxu0
        %v4528 = vadd.f32 %v3313, %v4527
        %4529 = vmatmul.bf16.gmra.mxu0 %v3742
        %v4530 = vpop.f32.mrf.mxu0
        %v4531 = vadd.f32 %v3313, %v4530
        %v4532 = vpop.f32.mrf.mxu0
        %v4533 = vadd.f32 %v3313, %v4532
        %4534 = vmatmul.bf16.gmra.mxu0 %v3745
        %v4535 = vpop.f32.mrf.mxu0
        %v4536 = vadd.f32 %v3313, %v4535
        %v4537 = vpop.f32.mrf.mxu0
        %v4538 = vadd.f32 %v3313, %v4537
        %4539 = vmatmul.bf16.gmra.mxu0 %v3748
        %v4540 = vpop.f32.mrf.mxu0
        %v4541 = vadd.f32 %v3313, %v4540
        %v4542 = vpop.f32.mrf.mxu0
        %v4543 = vadd.f32 %v3313, %v4542
        %4544 = vmatmul.bf16.gmra.mxu0 %v3751
        %v4545 = vpop.f32.mrf.mxu0
        %v4546 = vadd.f32 %v3313, %v4545
        %v4547 = vpop.f32.mrf.mxu0
        %v4548 = vadd.f32 %v3313, %v4547
        %4549 = vmatmul.bf16.gmra.mxu0 %v3754
        %v4550 = vpop.f32.mrf.mxu0
        %v4551 = vadd.f32 %v3313, %v4550
        %v4552 = vpop.f32.mrf.mxu0
        %v4553 = vadd.f32 %v3313, %v4552
        %4554 = vmatmul.bf16.gmra.mxu0 %v3757
        %v4555 = vpop.f32.mrf.mxu0
        %v4556 = vadd.f32 %v3313, %v4555
        %v4557 = vpop.f32.mrf.mxu0
        %v4558 = vadd.f32 %v3313, %v4557
        %4559 = vmatmul.bf16.gmra.mxu0 %v3760
        %v4560 = vpop.f32.mrf.mxu0
        %v4561 = vadd.f32 %v3313, %v4560
        %v4562 = vpop.f32.mrf.mxu0
        %v4563 = vadd.f32 %v3313, %v4562
        %4564 = vmatmul.bf16.gmra.mxu0 %v3763
        %v4565 = vpop.f32.mrf.mxu0
        %v4566 = vadd.f32 %v3313, %v4565
        %v4567 = vpop.f32.mrf.mxu0
        %v4568 = vadd.f32 %v3313, %v4567
        %4569 = vmatmul.bf16.gmra.mxu0 %v3766
        %v4570 = vpop.f32.mrf.mxu0
        %v4571 = vadd.f32 %v3313, %v4570
        %v4572 = vpop.f32.mrf.mxu0
        %v4573 = vadd.f32 %v3313, %v4572
        %4574 = vmatmul.bf16.gmra.mxu0 %v3769
        %v4575 = vpop.f32.mrf.mxu0
        %v4576 = vadd.f32 %v3313, %v4575
        %v4577 = vpop.f32.mrf.mxu0
        %v4578 = vadd.f32 %v3313, %v4577
        %4579 = vmatmul.bf16.gmra.mxu0 %v3772
        %v4580 = vpop.f32.mrf.mxu0
        %v4581 = vadd.f32 %v3313, %v4580
        %v4582 = vpop.f32.mrf.mxu0
        %v4583 = vadd.f32 %v3313, %v4582
        %4584 = vmatmul.bf16.gmra.mxu0 %v3775
        %v4585 = vpop.f32.mrf.mxu0
        %v4586 = vadd.f32 %v3313, %v4585
        %v4587 = vpop.f32.mrf.mxu0
        %v4588 = vadd.f32 %v3313, %v4587
        %4589 = vmatmul.bf16.gmra.mxu0 %v3778
        %v4590 = vpop.f32.mrf.mxu0
        %v4591 = vadd.f32 %v3313, %v4590
        %v4592 = vpop.f32.mrf.mxu0
        %v4593 = vadd.f32 %v3313, %v4592
        %4594 = vmatmul.bf16.gmra.mxu0 %v3781
        %v4595 = vpop.f32.mrf.mxu0
        %v4596 = vadd.f32 %v3313, %v4595
        %v4597 = vpop.f32.mrf.mxu0
        %v4598 = vadd.f32 %v3313, %v4597
        %4599 = vmatmul.bf16.gmra.mxu0 %v3784
        %v4600 = vpop.f32.mrf.mxu0
        %v4601 = vadd.f32 %v3313, %v4600
        %v4602 = vpop.f32.mrf.mxu0
        %v4603 = vadd.f32 %v3313, %v4602
        %4604 = vmatmul.bf16.gmra.mxu0 %v3787
        %v4605 = vpop.f32.mrf.mxu0
        %v4606 = vadd.f32 %v3313, %v4605
        %v4607 = vpop.f32.mrf.mxu0
        %v4608 = vadd.f32 %v3313, %v4607
        %4609 = vmatmul.bf16.gmra.mxu0 %v3790
        %v4610 = vpop.f32.mrf.mxu0
        %v4611 = vadd.f32 %v3313, %v4610
        %v4612 = vpop.f32.mrf.mxu0
        %v4613 = vadd.f32 %v3313, %v4612
        %4614 = vmatmul.bf16.gmra.mxu0 %v3793
        %v4615 = vpop.f32.mrf.mxu0
        %v4616 = vadd.f32 %v3313, %v4615
        %v4617 = vpop.f32.mrf.mxu0
        %v4618 = vadd.f32 %v3313, %v4617
        %4619 = vmatmul.bf16.gmra.mxu0 %v3796
        %v4620 = vpop.f32.mrf.mxu0
        %v4621 = vadd.f32 %v3313, %v4620
        %v4622 = vpop.f32.mrf.mxu0
        %v4623 = vadd.f32 %v3313, %v4622
        %4624 = vmatmul.bf16.gmra.mxu0 %v3799
        %v4625 = vpop.f32.mrf.mxu0
        %v4626 = vadd.f32 %v3313, %v4625
        %v4627 = vpop.f32.mrf.mxu0
        %v4628 = vadd.f32 %v3313, %v4627
        %4629 = vmatmul.bf16.gmra.mxu0 %v3802
        %v4630 = vpop.f32.mrf.mxu0
        %v4631 = vadd.f32 %v3313, %v4630
        %v4632 = vpop.f32.mrf.mxu0
        %v4633 = vadd.f32 %v3313, %v4632
        %4634 = vmatmul.bf16.gmra.mxu0 %v3805
        %v4635 = vpop.f32.mrf.mxu0
        %v4636 = vadd.f32 %v3313, %v4635
        %v4637 = vpop.f32.mrf.mxu0
        %v4638 = vadd.f32 %v3313, %v4637
        %4639 = vmatmul.bf16.gmra.mxu0 %v3808
        %v4640 = vpop.f32.mrf.mxu0
        %v4641 = vadd.f32 %v3313, %v4640
        %v4642 = vpop.f32.mrf.mxu0
        %v4643 = vadd.f32 %v3313, %v4642
        %4644 = vmatmul.bf16.gmra.mxu0 %v3811
        %v4645 = vpop.f32.mrf.mxu0
        %v4646 = vadd.f32 %v3313, %v4645
        %v4647 = vpop.f32.mrf.mxu0
        %v4648 = vadd.f32 %v3313, %v4647
        %4649 = vmatmul.bf16.gmra.mxu0 %v3814
        %v4650 = vpop.f32.mrf.mxu0
        %v4651 = vadd.f32 %v3313, %v4650
        %v4652 = vpop.f32.mrf.mxu0
        %v4653 = vadd.f32 %v3313, %v4652
        %4654 = vmatmul.bf16.gmra.mxu0 %v3817
        %v4655 = vpop.f32.mrf.mxu0
        %v4656 = vadd.f32 %v3313, %v4655
        %v4657 = vpop.f32.mrf.mxu0
        %v4658 = vadd.f32 %v3313, %v4657
        %4659 = vmatmul.bf16.gmra.mxu0 %v3820
        %v4660 = vpop.f32.mrf.mxu0
        %v4661 = vadd.f32 %v3313, %v4660
        %v4662 = vpop.f32.mrf.mxu0
        %v4663 = vadd.f32 %v3313, %v4662
        %4664 = vmatmul.bf16.gmra.mxu0 %v3823
        %v4665 = vpop.f32.mrf.mxu0
        %v4666 = vadd.f32 %v3313, %v4665
        %v4667 = vpop.f32.mrf.mxu0
        %v4668 = vadd.f32 %v3313, %v4667
        %4669 = vmatmul.bf16.gmra.mxu0 %v3826
        %v4670 = vpop.f32.mrf.mxu0
        %v4671 = vadd.f32 %v3313, %v4670
        %v4672 = vpop.f32.mrf.mxu0
        %v4673 = vadd.f32 %v3313, %v4672
        %4674 = vmatmul.bf16.gmra.mxu0 %v3829
        %v4675 = vpop.f32.mrf.mxu0
        %v4676 = vadd.f32 %v3313, %v4675
        %v4677 = vpop.f32.mrf.mxu0
        %v4678 = vadd.f32 %v3313, %v4677
        %4679 = vmatmul.bf16.gmra.mxu0 %v3832
        %v4680 = vpop.f32.mrf.mxu0
        %v4681 = vadd.f32 %v3313, %v4680
        %v4682 = vpop.f32.mrf.mxu0
        %v4683 = vadd.f32 %v3313, %v4682
        %4684 = vmatmul.bf16.gmra.mxu0 %v3835
        %v4685 = vpop.f32.mrf.mxu0
        %v4686 = vadd.f32 %v3313, %v4685
        %v4687 = vpop.f32.mrf.mxu0
        %v4688 = vadd.f32 %v3313, %v4687
        %4689 = vmatmul.bf16.gmra.mxu0 %v3838
        %v4690 = vpop.f32.mrf.mxu0
        %v4691 = vadd.f32 %v3313, %v4690
        %v4692 = vpop.f32.mrf.mxu0
        %v4693 = vadd.f32 %v3313, %v4692
        %4694 = vmatmul.bf16.gmra.mxu0 %v3841
        %v4695 = vpop.f32.mrf.mxu0
        %v4696 = vadd.f32 %v3313, %v4695
        %v4697 = vpop.f32.mrf.mxu0
        %v4698 = vadd.f32 %v3313, %v4697
        %4699 = vmatmul.bf16.gmra.mxu0 %v3844
        %v4700 = vpop.f32.mrf.mxu0
        %v4701 = vadd.f32 %v3313, %v4700
        %v4702 = vpop.f32.mrf.mxu0
        %v4703 = vadd.f32 %v3313, %v4702
        %4704 = vmatmul.bf16.gmra.mxu0 %v3847
        %v4705 = vpop.f32.mrf.mxu0
        %v4706 = vadd.f32 %v3313, %v4705
        %v4707 = vpop.f32.mrf.mxu0
        %v4708 = vadd.f32 %v3313, %v4707
        %4709 = vmatmul.bf16.gmra.mxu0 %v3850
        %v4710 = vpop.f32.mrf.mxu0
        %v4711 = vadd.f32 %v3313, %v4710
        %v4712 = vpop.f32.mrf.mxu0
        %v4713 = vadd.f32 %v3313, %v4712
        %4714 = vmatmul.bf16.gmra.mxu0 %v3853
        %v4715 = vpop.f32.mrf.mxu0
        %v4716 = vadd.f32 %v3313, %v4715
        %v4717 = vpop.f32.mrf.mxu0
        %v4718 = vadd.f32 %v3313, %v4717
        %4719 = vmatmul.bf16.gmra.mxu0 %v3856
        %v4720 = vpop.f32.mrf.mxu0
        %v4721 = vadd.f32 %v3313, %v4720
        %v4722 = vpop.f32.mrf.mxu0
        %v4723 = vadd.f32 %v3313, %v4722
        %4724 = vmatmul.bf16.gmra.mxu0 %v3859
        %v4725 = vpop.f32.mrf.mxu0
        %v4726 = vadd.f32 %v3313, %v4725
        %v4727 = vpop.f32.mrf.mxu0
        %v4728 = vadd.f32 %v3313, %v4727
        %4729 = vmatmul.bf16.gmra.mxu0 %v3862
        %v4730 = vpop.f32.mrf.mxu0
        %v4731 = vadd.f32 %v3313, %v4730
        %v4732 = vpop.f32.mrf.mxu0
        %v4733 = vadd.f32 %v3313, %v4732
        %4734 = vmatmul.bf16.gmra.mxu0 %v3865
        %v4735 = vpop.f32.mrf.mxu0
        %v4736 = vadd.f32 %v3313, %v4735
        %v4737 = vpop.f32.mrf.mxu0
        %v4738 = vadd.f32 %v3313, %v4737
        %4739 = vmatmul.bf16.gmra.mxu0 %v3868
        %v4740 = vpop.f32.mrf.mxu0
        %v4741 = vadd.f32 %v3313, %v4740
        %v4742 = vpop.f32.mrf.mxu0
        %v4743 = vadd.f32 %v3313, %v4742
        %4744 = vmatmul.bf16.gmra.mxu0 %v3871
        %v4745 = vpop.f32.mrf.mxu0
        %v4746 = vadd.f32 %v3313, %v4745
        %v4747 = vpop.f32.mrf.mxu0
        %v4748 = vadd.f32 %v3313, %v4747
        %4749 = vmatmul.bf16.gmra.mxu0 %v3874
        %v4750 = vpop.f32.mrf.mxu0
        %v4751 = vadd.f32 %v3313, %v4750
        %v4752 = vpop.f32.mrf.mxu0
        %v4753 = vadd.f32 %v3313, %v4752
        %4754 = vmatmul.bf16.gmra.mxu0 %v3877
        %v4755 = vpop.f32.mrf.mxu0
        %v4756 = vadd.f32 %v3313, %v4755
        %v4757 = vpop.f32.mrf.mxu0
        %v4758 = vadd.f32 %v3313, %v4757
        %4759 = vmatmul.bf16.gmra.mxu0 %v3880
        %v4760 = vpop.f32.mrf.mxu0
        %v4761 = vadd.f32 %v3313, %v4760
        %v4762 = vpop.f32.mrf.mxu0
        %v4763 = vadd.f32 %v3313, %v4762
        %4764 = vmatmul.bf16.gmra.mxu0 %v3883
        %v4765 = vpop.f32.mrf.mxu0
        %v4766 = vadd.f32 %v3313, %v4765
        %v4767 = vpop.f32.mrf.mxu0
        %v4768 = vadd.f32 %v3313, %v4767
        %4769 = vmatmul.bf16.gmra.mxu0 %v3886
        %v4770 = vpop.f32.mrf.mxu0
        %v4771 = vadd.f32 %v3313, %v4770
        %v4772 = vpop.f32.mrf.mxu0
        %v4773 = vadd.f32 %v3313, %v4772
        %4774 = vmatmul.bf16.gmra.mxu0 %v3889
        %v4775 = vpop.f32.mrf.mxu0
        %v4776 = vadd.f32 %v3313, %v4775
        %v4777 = vpop.f32.mrf.mxu0
        %v4778 = vadd.f32 %v3313, %v4777
        %4779 = vmatmul.bf16.gmra.mxu0 %v3892
        %v4780 = vpop.f32.mrf.mxu0
        %v4781 = vadd.f32 %v3313, %v4780
        %v4782 = vpop.f32.mrf.mxu0
        %v4783 = vadd.f32 %v3313, %v4782
        %4784 = vmatmul.bf16.gmra.mxu0 %v3895
        %v4785 = vpop.f32.mrf.mxu0
        %v4786 = vadd.f32 %v3313, %v4785
        %v4787 = vpop.f32.mrf.mxu0
        %v4788 = vadd.f32 %v3313, %v4787
        %4789 = vmatmul.bf16.gmra.mxu0 %v3898
        %v4790 = vpop.f32.mrf.mxu0
        %v4791 = vadd.f32 %v3313, %v4790
        %v4792 = vpop.f32.mrf.mxu0
        %v4793 = vadd.f32 %v3313, %v4792
        %4794 = vmatmul.bf16.gmra.mxu0 %v3901
        %v4795 = vpop.f32.mrf.mxu0
        %v4796 = vadd.f32 %v3313, %v4795
        %v4797 = vpop.f32.mrf.mxu0
        %v4798 = vadd.f32 %v3313, %v4797
        %4799 = vmatmul.bf16.gmra.mxu0 %v3904
        %v4800 = vpop.f32.mrf.mxu0
        %v4801 = vadd.f32 %v3313, %v4800
        %v4802 = vpop.f32.mrf.mxu0
        %v4803 = vadd.f32 %v3313, %v4802
        %4804 = vmatmul.bf16.gmra.mxu0 %v3907
        %v4805 = vpop.f32.mrf.mxu0
        %v4806 = vadd.f32 %v3313, %v4805
        %v4807 = vpop.f32.mrf.mxu0
        %v4808 = vadd.f32 %v3313, %v4807
        %4809 = vmatmul.bf16.gmra.mxu0 %v3910
        %v4810 = vpop.f32.mrf.mxu0
        %v4811 = vadd.f32 %v3313, %v4810
        %v4812 = vpop.f32.mrf.mxu0
        %v4813 = vadd.f32 %v3313, %v4812
        %4814 = vmatmul.bf16.gmra.mxu0 %v3913
        %v4815 = vpop.f32.mrf.mxu0
        %v4816 = vadd.f32 %v3313, %v4815
        %v4817 = vpop.f32.mrf.mxu0
        %v4818 = vadd.f32 %v3313, %v4817
        %4819 = vmatmul.bf16.gmra.mxu0 %v3916
        %v4820 = vpop.f32.mrf.mxu0
        %v4821 = vadd.f32 %v3313, %v4820
        %v4822 = vpop.f32.mrf.mxu0
        %v4823 = vadd.f32 %v3313, %v4822
        %4824 = vmatmul.bf16.gmra.mxu0 %v3919
        %v4825 = vpop.f32.mrf.mxu0
        %v4826 = vadd.f32 %v3313, %v4825
        %v4827 = vpop.f32.mrf.mxu0
        %v4828 = vadd.f32 %v3313, %v4827
        %4829 = vmatmul.bf16.gmra.mxu0 %v3922
        %v4830 = vpop.f32.mrf.mxu0
        %v4831 = vadd.f32 %v3313, %v4830
        %v4832 = vpop.f32.mrf.mxu0
        %v4833 = vadd.f32 %v3313, %v4832
        %4834 = vmatmul.bf16.gmra.mxu0 %v3925
        %v4835 = vpop.f32.mrf.mxu0
        %v4836 = vadd.f32 %v3313, %v4835
        %v4837 = vpop.f32.mrf.mxu0
        %v4838 = vadd.f32 %v3313, %v4837
        %4839 = vmatmul.bf16.gmra.mxu0 %v3928
        %v4840 = vpop.f32.mrf.mxu0
        %v4841 = vadd.f32 %v3313, %v4840
        %v4842 = vpop.f32.mrf.mxu0
        %v4843 = vadd.f32 %v3313, %v4842
        %4844 = vmatmul.bf16.gmra.mxu0 %v3931
        %v4845 = vpop.f32.mrf.mxu0
        %v4846 = vadd.f32 %v3313, %v4845
        %v4847 = vpop.f32.mrf.mxu0
        %v4848 = vadd.f32 %v3313, %v4847
        %4849 = vmatmul.bf16.gmra.mxu0 %v3934
        %v4850 = vpop.f32.mrf.mxu0
        %v4851 = vadd.f32 %v3313, %v4850
        %v4852 = vpop.f32.mrf.mxu0
        %v4853 = vadd.f32 %v3313, %v4852
        %4854 = vmatmul.bf16.gmra.mxu0 %v3937
        %v4855 = vpop.f32.mrf.mxu0
        %v4856 = vadd.f32 %v3313, %v4855
        %v4857 = vpop.f32.mrf.mxu0
        %v4858 = vadd.f32 %v3313, %v4857
        %4859 = vmatmul.bf16.gmra.mxu0 %v3940
        %v4860 = vpop.f32.mrf.mxu0
        %v4861 = vadd.f32 %v3313, %v4860
        %v4862 = vpop.f32.mrf.mxu0
        %v4863 = vadd.f32 %v3313, %v4862
        %4864 = vmatmul.bf16.gmra.mxu0 %v3943
        %v4865 = vpop.f32.mrf.mxu0
        %v4866 = vadd.f32 %v3313, %v4865
        %v4867 = vpop.f32.mrf.mxu0
        %v4868 = vadd.f32 %v3313, %v4867
        %4869 = vmatmul.bf16.gmra.mxu0 %v3946
        %v4870 = vpop.f32.mrf.mxu0
        %v4871 = vadd.f32 %v3313, %v4870
        %v4872 = vpop.f32.mrf.mxu0
        %v4873 = vadd.f32 %v3313, %v4872
        %4874 = vmatmul.bf16.gmra.mxu0 %v3949
        %v4875 = vpop.f32.mrf.mxu0
        %v4876 = vadd.f32 %v3313, %v4875
        %v4877 = vpop.f32.mrf.mxu0
        %v4878 = vadd.f32 %v3313, %v4877
        %4879 = vmatmul.bf16.gmra.mxu0 %v3952
        %v4880 = vpop.f32.mrf.mxu0
        %v4881 = vadd.f32 %v3313, %v4880
        %v4882 = vpop.f32.mrf.mxu0
        %v4883 = vadd.f32 %v3313, %v4882
        %4884 = vmatmul.bf16.gmra.mxu0 %v3955
        %v4885 = vpop.f32.mrf.mxu0
        %v4886 = vadd.f32 %v3313, %v4885
        %v4887 = vpop.f32.mrf.mxu0
        %v4888 = vadd.f32 %v3313, %v4887
        %4889 = vmatmul.bf16.gmra.mxu0 %v3958
        %v4890 = vpop.f32.mrf.mxu0
        %v4891 = vadd.f32 %v3313, %v4890
        %v4892 = vpop.f32.mrf.mxu0
        %v4893 = vadd.f32 %v3313, %v4892
        %4894 = vmatmul.bf16.gmra.mxu0 %v3961
        %v4895 = vpop.f32.mrf.mxu0
        %v4896 = vadd.f32 %v3313, %v4895
        %v4897 = vpop.f32.mrf.mxu0
        %v4898 = vadd.f32 %v3313, %v4897
        %4899 = vmatmul.bf16.gmra.mxu0 %v3964
        %v4900 = vpop.f32.mrf.mxu0
        %v4901 = vadd.f32 %v3313, %v4900
        %v4902 = vpop.f32.mrf.mxu0
        %v4903 = vadd.f32 %v3313, %v4902
        %4904 = vmatmul.bf16.gmra.mxu0 %v3967
        %v4905 = vpop.f32.mrf.mxu0
        %v4906 = vadd.f32 %v3313, %v4905
        %v4907 = vpop.f32.mrf.mxu0
        %v4908 = vadd.f32 %v3313, %v4907
        %4909 = vmatmul.bf16.gmra.mxu0 %v3970
        %v4910 = vpop.f32.mrf.mxu0
        %v4911 = vadd.f32 %v3313, %v4910
        %v4912 = vpop.f32.mrf.mxu0
        %v4913 = vadd.f32 %v3313, %v4912
        %4914 = vmatmul.bf16.gmra.mxu0 %v3973
        %v4915 = vpop.f32.mrf.mxu0
        %v4916 = vadd.f32 %v3313, %v4915
        %v4917 = vpop.f32.mrf.mxu0
        %v4918 = vadd.f32 %v3313, %v4917
        %4919 = vmatmul.bf16.gmra.mxu0 %v3976
        %v4920 = vpop.f32.mrf.mxu0
        %v4921 = vadd.f32 %v3313, %v4920
        %v4922 = vpop.f32.mrf.mxu0
        %v4923 = vadd.f32 %v3313, %v4922
        %4924 = vmatmul.bf16.gmra.mxu0 %v3979
        %v4925 = vpop.f32.mrf.mxu0
        %v4926 = vadd.f32 %v3313, %v4925
        %v4927 = vpop.f32.mrf.mxu0
        %v4928 = vadd.f32 %v3313, %v4927
        %4929 = vmatmul.bf16.gmra.mxu0 %v3982
        %v4930 = vpop.f32.mrf.mxu0
        %v4931 = vadd.f32 %v3313, %v4930
        %v4932 = vpop.f32.mrf.mxu0
        %v4933 = vadd.f32 %v3313, %v4932
        %4934 = vmatmul.bf16.gmra.mxu0 %v3985
        %v4935 = vpop.f32.mrf.mxu0
        %v4936 = vadd.f32 %v3313, %v4935
        %v4937 = vpop.f32.mrf.mxu0
        %v4938 = vadd.f32 %v3313, %v4937
        %4939 = vmatmul.bf16.gmra.mxu0 %v3988
        %v4940 = vpop.f32.mrf.mxu0
        %v4941 = vadd.f32 %v3313, %v4940
        %v4942 = vpop.f32.mrf.mxu0
        %v4943 = vadd.f32 %v3313, %v4942
        %4944 = vmatmul.bf16.gmra.mxu0 %v3991
        %v4945 = vpop.f32.mrf.mxu0
        %v4946 = vadd.f32 %v3313, %v4945
        %v4947 = vpop.f32.mrf.mxu0
        %v4948 = vadd.f32 %v3313, %v4947
        %4949 = vmatmul.bf16.gmra.mxu0 %v3994
        %v4950 = vpop.f32.mrf.mxu0
        %v4951 = vadd.f32 %v3313, %v4950
        %v4952 = vpop.f32.mrf.mxu0
        %v4953 = vadd.f32 %v3313, %v4952
        %4954 = vmatmul.bf16.gmra.mxu0 %v3997
        %v4955 = vpop.f32.mrf.mxu0
        %v4956 = vadd.f32 %v3313, %v4955
        %v4957 = vpop.f32.mrf.mxu0
        %v4958 = vadd.f32 %v3313, %v4957
        %4959 = vmatmul.bf16.gmra.mxu0 %v4000
        %v4960 = vpop.f32.mrf.mxu0
        %v4961 = vadd.f32 %v3313, %v4960
        %v4962 = vpop.f32.mrf.mxu0
        %v4963 = vadd.f32 %v3313, %v4962
        %4964 = vmatmul.bf16.gmra.mxu0 %v4003
        %v4965 = vpop.f32.mrf.mxu0
        %v4966 = vadd.f32 %v3313, %v4965
        %v4967 = vpop.f32.mrf.mxu0
        %v4968 = vadd.f32 %v3313, %v4967
        %4969 = vmatmul.bf16.gmra.mxu0 %v4006
        %v4970 = vpop.f32.mrf.mxu0
        %v4971 = vadd.f32 %v3313, %v4970
        %v4972 = vpop.f32.mrf.mxu0
        %v4973 = vadd.f32 %v3313, %v4972
        %4974 = vmatmul.bf16.gmra.mxu0 %v4009
        %v4975 = vpop.f32.mrf.mxu0
        %v4976 = vadd.f32 %v3313, %v4975
        %v4977 = vpop.f32.mrf.mxu0
        %v4978 = vadd.f32 %v3313, %v4977
        %4979 = vmatmul.bf16.gmra.mxu0 %v4012
        %v4980 = vpop.f32.mrf.mxu0
        %v4981 = vadd.f32 %v3313, %v4980
        %v4982 = vpop.f32.mrf.mxu0
        %v4983 = vadd.f32 %v3313, %v4982
        %4984 = vmatmul.bf16.gmra.mxu0 %v4015
        %v4985 = vpop.f32.mrf.mxu0
        %v4986 = vadd.f32 %v3313, %v4985
        %v4987 = vpop.f32.mrf.mxu0
        %v4988 = vadd.f32 %v3313, %v4987
        %4989 = vmatmul.bf16.gmra.mxu0 %v4018
        %v4990 = vpop.f32.mrf.mxu0
        %v4991 = vadd.f32 %v3313, %v4990
        %v4992 = vpop.f32.mrf.mxu0
        %v4993 = vadd.f32 %v3313, %v4992
        %4994 = vmatmul.bf16.gmra.mxu0 %v4021
        %v4995 = vpop.f32.mrf.mxu0
        %v4996 = vadd.f32 %v3313, %v4995
        %v4997 = vpop.f32.mrf.mxu0
        %v4998 = vadd.f32 %v3313, %v4997
        %4999 = vmatmul.bf16.gmra.mxu0 %v4024
        %v5000 = vpop.f32.mrf.mxu0
        %v5001 = vadd.f32 %v3313, %v5000
        %v5002 = vpop.f32.mrf.mxu0
        %v5003 = vadd.f32 %v3313, %v5002
        %5004 = vmatmul.bf16.gmra.mxu0 %v4027
        %v5005 = vpop.f32.mrf.mxu0
        %v5006 = vadd.f32 %v3313, %v5005
        %v5007 = vpop.f32.mrf.mxu0
        %v5008 = vadd.f32 %v3313, %v5007
        %5009 = vmatmul.bf16.gmra.mxu0 %v4030
        %v5010 = vpop.f32.mrf.mxu0
        %v5011 = vadd.f32 %v3313, %v5010
        %v5012 = vpop.f32.mrf.mxu0
        %v5013 = vadd.f32 %v3313, %v5012
        %5014 = vmatmul.bf16.gmra.mxu0 %v4033
        %v5015 = vpop.f32.mrf.mxu0
        %v5016 = vadd.f32 %v3313, %v5015
        %v5017 = vpop.f32.mrf.mxu0
        %v5018 = vadd.f32 %v3313, %v5017
        %5019 = vmatmul.bf16.gmra.mxu0 %v4036
        %v5020 = vpop.f32.mrf.mxu0
        %v5021 = vadd.f32 %v3313, %v5020
        %v5022 = vpop.f32.mrf.mxu0
        %v5023 = vadd.f32 %v3313, %v5022
        %5024 = vmatmul.bf16.gmra.mxu0 %v4039
        %v5025 = vpop.f32.mrf.mxu0
        %v5026 = vadd.f32 %v3313, %v5025
        %v5027 = vpop.f32.mrf.mxu0
        %v5028 = vadd.f32 %v3313, %v5027
        %5029 = vmatmul.bf16.gmra.mxu0 %v4042
        %v5030 = vpop.f32.mrf.mxu0
        %v5031 = vadd.f32 %v3313, %v5030
        %v5032 = vpop.f32.mrf.mxu0
        %v5033 = vadd.f32 %v3313, %v5032
        %5034 = vmatmul.bf16.gmra.mxu0 %v4045
        %v5035 = vpop.f32.mrf.mxu0
        %v5036 = vadd.f32 %v3313, %v5035
        %v5037 = vpop.f32.mrf.mxu0
        %v5038 = vadd.f32 %v3313, %v5037
        %5039 = vmatmul.bf16.gmra.mxu0 %v4048
        %v5040 = vpop.f32.mrf.mxu0
        %v5041 = vadd.f32 %v3313, %v5040
        %v5042 = vpop.f32.mrf.mxu0
        %v5043 = vadd.f32 %v3313, %v5042
        %5044 = vmatmul.bf16.gmra.mxu0 %v4051
        %v5045 = vpop.f32.mrf.mxu0
        %v5046 = vadd.f32 %v3313, %v5045
        %v5047 = vpop.f32.mrf.mxu0
        %v5048 = vadd.f32 %v3313, %v5047
        %5049 = vmatmul.bf16.gmra.mxu0 %v4054
        %v5050 = vpop.f32.mrf.mxu0
        %v5051 = vadd.f32 %v3313, %v5050
        %v5052 = vpop.f32.mrf.mxu0
        %v5053 = vadd.f32 %v3313, %v5052
        %5054 = vmatmul.bf16.gmra.mxu0 %v4057
        %v5055 = vpop.f32.mrf.mxu0
        %v5056 = vadd.f32 %v3313, %v5055
        %v5057 = vpop.f32.mrf.mxu0
        %v5058 = vadd.f32 %v3313, %v5057
        %5059 = vmatmul.bf16.gmra.mxu0 %v4060
        %v5060 = vpop.f32.mrf.mxu0
        %v5061 = vadd.f32 %v3313, %v5060
        %v5062 = vpop.f32.mrf.mxu0
        %v5063 = vadd.f32 %v3313, %v5062
        %5064 = vmatmul.bf16.gmra.mxu0 %v4063
        %v5065 = vpop.f32.mrf.mxu0
        %v5066 = vadd.f32 %v3313, %v5065
        %v5067 = vpop.f32.mrf.mxu0
        %v5068 = vadd.f32 %v3313, %v5067
        %5069 = vmatmul.bf16.gmra.mxu0 %v4066
        %v5070 = vpop.f32.mrf.mxu0
        %v5071 = vadd.f32 %v3313, %v5070
        %v5072 = vpop.f32.mrf.mxu0
        %v5073 = vadd.f32 %v3313, %v5072
        %5074 = vmatmul.bf16.gmra.mxu0 %v4069
        %v5075 = vpop.f32.mrf.mxu0
        %v5076 = vadd.f32 %v3313, %v5075
        %v5077 = vpop.f32.mrf.mxu0
        %v5078 = vadd.f32 %v3313, %v5077
        %5079 = vmatmul.bf16.gmra.mxu0 %v4072
        %v5080 = vpop.f32.mrf.mxu0
        %v5081 = vadd.f32 %v3313, %v5080
        %v5082 = vpop.f32.mrf.mxu0
        %v5083 = vadd.f32 %v3313, %v5082
        %5084 = vmatmul.bf16.gmra.mxu0 %v4075
        %v5085 = vpop.f32.mrf.mxu0
        %v5086 = vadd.f32 %v3313, %v5085
        %v5087 = vpop.f32.mrf.mxu0
        %v5088 = vadd.f32 %v3313, %v5087
        %5089 = vmatmul.bf16.gmra.mxu0 %v4078
        %v5090 = vpop.f32.mrf.mxu0
        %v5091 = vadd.f32 %v3313, %v5090
        %v5092 = vpop.f32.mrf.mxu0
        %v5093 = vadd.f32 %v3313, %v5092
        %5094 = vmatmul.bf16.gmra.mxu0 %v4081
        %v5095 = vpop.f32.mrf.mxu0
        %v5096 = vadd.f32 %v3313, %v5095
        %v5097 = vpop.f32.mrf.mxu0
        %v5098 = vadd.f32 %v3313, %v5097
        %5099 = vmatmul.bf16.gmra.mxu0 %v4084
        %v5100 = vpop.f32.mrf.mxu0
        %v5101 = vadd.f32 %v3313, %v5100
        %v5102 = vpop.f32.mrf.mxu0
        %v5103 = vadd.f32 %v3313, %v5102
        %5104 = vmatmul.bf16.gmra.mxu0 %v4087
        %v5105 = vpop.f32.mrf.mxu0
        %v5106 = vadd.f32 %v3313, %v5105
        %v5107 = vpop.f32.mrf.mxu0
        %v5108 = vadd.f32 %v3313, %v5107
        %5109 = vmatmul.bf16.gmra.mxu0 %v4090
        %v5110 = vpop.f32.mrf.mxu0
        %v5111 = vadd.f32 %v3313, %v5110
        %v5112 = vpop.f32.mrf.mxu0
        %v5113 = vadd.f32 %v3313, %v5112
        %5114 = vmatmul.bf16.gmra.mxu0 %v4093
        %v5115 = vpop.f32.mrf.mxu0
        %v5116 = vadd.f32 %v3313, %v5115
        %v5117 = vpop.f32.mrf.mxu0
        %v5118 = vadd.f32 %v3313, %v5117
        %5119 = vmatmul.bf16.gmra.mxu0 %v4096
        %v5120 = vpop.f32.mrf.mxu0
        %v5121 = vadd.f32 %v3313, %v5120
        %v5122 = vpop.f32.mrf.mxu0
        %v5123 = vadd.f32 %v3313, %v5122
        %5124 = vmatmul.bf16.gmra.mxu0 %v4099
        %v5125 = vpop.f32.mrf.mxu0
        %v5126 = vadd.f32 %v3313, %v5125
        %v5127 = vpop.f32.mrf.mxu0
        %v5128 = vadd.f32 %v3313, %v5127
        %5129 = vmatmul.bf16.gmra.mxu0 %v4102
        %v5130 = vpop.f32.mrf.mxu0
        %v5131 = vadd.f32 %v3313, %v5130
        %v5132 = vpop.f32.mrf.mxu0
        %v5133 = vadd.f32 %v3313, %v5132
        %5134 = vmatmul.bf16.gmra.mxu0 %v4105
        %v5135 = vpop.f32.mrf.mxu0
        %v5136 = vadd.f32 %v3313, %v5135
        %v5137 = vpop.f32.mrf.mxu0
        %v5138 = vadd.f32 %v3313, %v5137
        %5139 = vmatmul.bf16.gmra.mxu0 %v4108
        %v5140 = vpop.f32.mrf.mxu0
        %v5141 = vadd.f32 %v3313, %v5140
        %v5142 = vpop.f32.mrf.mxu0
        %v5143 = vadd.f32 %v3313, %v5142
        %5144 = vmatmul.bf16.gmra.mxu0 %v4111
        %v5145 = vpop.f32.mrf.mxu0
        %v5146 = vadd.f32 %v3313, %v5145
        %v5147 = vpop.f32.mrf.mxu0
        %v5148 = vadd.f32 %v3313, %v5147
        %5149 = vmatmul.bf16.gmra.mxu0 %v4114
        %v5150 = vpop.f32.mrf.mxu0
        %v5151 = vadd.f32 %v3313, %v5150
        %v5152 = vpop.f32.mrf.mxu0
        %v5153 = vadd.f32 %v3313, %v5152
        %5154 = vmatmul.bf16.gmra.mxu0 %v4117
        %v5155 = vpop.f32.mrf.mxu0
        %v5156 = vadd.f32 %v3313, %v5155
        %v5157 = vpop.f32.mrf.mxu0
        %v5158 = vadd.f32 %v3313, %v5157
        %5159 = vmatmul.bf16.gmra.mxu0 %v4120
        %v5160 = vpop.f32.mrf.mxu0
        %v5161 = vadd.f32 %v3313, %v5160
        %v5162 = vpop.f32.mrf.mxu0
        %v5163 = vadd.f32 %v3313, %v5162
        %5164 = vmatmul.bf16.gmra.mxu0 %v4123
        %v5165 = vpop.f32.mrf.mxu0
        %v5166 = vadd.f32 %v3313, %v5165
        %v5167 = vpop.f32.mrf.mxu0
        %v5168 = vadd.f32 %v3313, %v5167
        %5169 = vmatmul.bf16.gmra.mxu0 %v4126
        %v5170 = vpop.f32.mrf.mxu0
        %v5171 = vadd.f32 %v3313, %v5170
        %v5172 = vpop.f32.mrf.mxu0
        %v5173 = vadd.f32 %v3313, %v5172
        %5174 = vmatmul.bf16.gmra.mxu0 %v4129
        %v5175 = vpop.f32.mrf.mxu0
        %v5176 = vadd.f32 %v3313, %v5175
        %v5177 = vpop.f32.mrf.mxu0
        %v5178 = vadd.f32 %v3313, %v5177
        %5179 = vmatmul.bf16.gmra.mxu0 %v4132
        %v5180 = vpop.f32.mrf.mxu0
        %v5181 = vadd.f32 %v3313, %v5180
        %v5182 = vpop.f32.mrf.mxu0
        %v5183 = vadd.f32 %v3313, %v5182
        %5184 = vmatmul.bf16.gmra.mxu0 %v4135
        %v5185 = vpop.f32.mrf.mxu0
        %v5186 = vadd.f32 %v3313, %v5185
        %v5187 = vpop.f32.mrf.mxu0
        %v5188 = vadd.f32 %v3313, %v5187
        %5189 = vmatmul.bf16.gmra.mxu0 %v4138
        %v5190 = vpop.f32.mrf.mxu0
        %v5191 = vadd.f32 %v3313, %v5190
        %v5192 = vpop.f32.mrf.mxu0
        %v5193 = vadd.f32 %v3313, %v5192
        %5194 = vmatmul.bf16.gmra.mxu0 %v4141
        %v5195 = vpop.f32.mrf.mxu0
        %v5196 = vadd.f32 %v3313, %v5195
        %v5197 = vpop.f32.mrf.mxu0
        %v5198 = vadd.f32 %v3313, %v5197
        %5199 = vmatmul.bf16.gmra.mxu0 %v4144
        %v5200 = vpop.f32.mrf.mxu0
        %v5201 = vadd.f32 %v3313, %v5200
        %v5202 = vpop.f32.mrf.mxu0
        %v5203 = vadd.f32 %v3313, %v5202
        %5204 = vmatmul.bf16.gmra.mxu0 %v4147
        %v5205 = vpop.f32.mrf.mxu0
        %v5206 = vadd.f32 %v3313, %v5205
        %v5207 = vpop.f32.mrf.mxu0
        %v5208 = vadd.f32 %v3313, %v5207
        %5209 = vmatmul.bf16.gmra.mxu0 %v4150
        %v5210 = vpop.f32.mrf.mxu0
        %v5211 = vadd.f32 %v3313, %v5210
        %v5212 = vpop.f32.mrf.mxu0
        %v5213 = vadd.f32 %v3313, %v5212
        %5214 = vmatmul.bf16.gmra.mxu0 %v4153
        %v5215 = vpop.f32.mrf.mxu0
        %v5216 = vadd.f32 %v3313, %v5215
        %v5217 = vpop.f32.mrf.mxu0
        %v5218 = vadd.f32 %v3313, %v5217
        %5219 = vmatmul.bf16.gmra.mxu0 %v4156
        %v5220 = vpop.f32.mrf.mxu0
        %v5221 = vadd.f32 %v3313, %v5220
        %v5222 = vpop.f32.mrf.mxu0
        %v5223 = vadd.f32 %v3313, %v5222
        %5224 = vmatmul.bf16.gmra.mxu0 %v4159
        %v5225 = vpop.f32.mrf.mxu0
        %v5226 = vadd.f32 %v3313, %v5225
        %v5227 = vpop.f32.mrf.mxu0
        %v5228 = vadd.f32 %v3313, %v5227
        %5229 = vmatmul.bf16.gmra.mxu0 %v4162
        %v5230 = vpop.f32.mrf.mxu0
        %v5231 = vadd.f32 %v3313, %v5230
        %v5232 = vpop.f32.mrf.mxu0
        %v5233 = vadd.f32 %v3313, %v5232
        %5234 = vmatmul.bf16.gmra.mxu0 %v4165
        %v5235 = vpop.f32.mrf.mxu0
        %v5236 = vadd.f32 %v3313, %v5235
        %v5237 = vpop.f32.mrf.mxu0
        %v5238 = vadd.f32 %v3313, %v5237
        %5239 = vmatmul.bf16.gmra.mxu0 %v4168
        %v5240 = vpop.f32.mrf.mxu0
        %v5241 = vadd.f32 %v3313, %v5240
        %v5242 = vpop.f32.mrf.mxu0
        %v5243 = vadd.f32 %v3313, %v5242
        %5244 = vmatmul.bf16.gmra.mxu0 %v4171
        %v5245 = vpop.f32.mrf.mxu0
        %v5246 = vadd.f32 %v3313, %v5245
        %v5247 = vpop.f32.mrf.mxu0
        %v5248 = vadd.f32 %v3313, %v5247
        %5249 = vmatmul.bf16.gmra.mxu0 %v4174
        %v5250 = vpop.f32.mrf.mxu0
        %v5251 = vadd.f32 %v3313, %v5250
        %v5252 = vpop.f32.mrf.mxu0
        %v5253 = vadd.f32 %v3313, %v5252
        %5254 = vmatmul.bf16.gmra.mxu0 %v4177
        %v5255 = vpop.f32.mrf.mxu0
        %v5256 = vadd.f32 %v3313, %v5255
        %v5257 = vpop.f32.mrf.mxu0
        %v5258 = vadd.f32 %v3313, %v5257
        %5259 = vmatmul.bf16.gmra.mxu0 %v4180
        %v5260 = vpop.f32.mrf.mxu0
        %v5261 = vadd.f32 %v3313, %v5260
        %v5262 = vpop.f32.mrf.mxu0
        %v5263 = vadd.f32 %v3313, %v5262
        %5264 = vmatmul.bf16.gmra.mxu0 %v4183
        %v5265 = vpop.f32.mrf.mxu0
        %v5266 = vadd.f32 %v3313, %v5265
        %v5267 = vpop.f32.mrf.mxu0
        %v5268 = vadd.f32 %v3313, %v5267
        %5269 = vmatmul.bf16.gmra.mxu0 %v4186
        %v5270 = vpop.f32.mrf.mxu0
        %v5271 = vadd.f32 %v3313, %v5270
        %v5272 = vpop.f32.mrf.mxu0
        %v5273 = vadd.f32 %v3313, %v5272
        %5274 = vmatmul.bf16.gmra.mxu0 %v4189
        %v5275 = vpop.f32.mrf.mxu0
        %v5276 = vadd.f32 %v3313, %v5275
        %v5277 = vpop.f32.mrf.mxu0
        %v5278 = vadd.f32 %v3313, %v5277
        %5279 = vmatmul.bf16.gmra.mxu0 %v4192
        %v5280 = vpop.f32.mrf.mxu0
        %v5281 = vadd.f32 %v3313, %v5280
        %v5282 = vpop.f32.mrf.mxu0
        %v5283 = vadd.f32 %v3313, %v5282
        %5284 = vmatmul.bf16.gmra.mxu0 %v4195
        %v5285 = vpop.f32.mrf.mxu0
        %v5286 = vadd.f32 %v3313, %v5285
        %v5287 = vpop.f32.mrf.mxu0
        %v5288 = vadd.f32 %v3313, %v5287
        %5289 = vmatmul.bf16.gmra.mxu0 %v4198
        %v5290 = vpop.f32.mrf.mxu0
        %v5291 = vadd.f32 %v3313, %v5290
        %v5292 = vpop.f32.mrf.mxu0
        %v5293 = vadd.f32 %v3313, %v5292
        %5294 = vmatmul.bf16.gmra.mxu0 %v4201
        %v5295 = vpop.f32.mrf.mxu0
        %v5296 = vadd.f32 %v3313, %v5295
        %v5297 = vpop.f32.mrf.mxu0
        %v5298 = vadd.f32 %v3313, %v5297
        %5299 = vmatmul.bf16.gmra.mxu0 %v4204
        %v5300 = vpop.f32.mrf.mxu0
        %v5301 = vadd.f32 %v3313, %v5300
        %v5302 = vpop.f32.mrf.mxu0
        %v5303 = vadd.f32 %v3313, %v5302
        %5304 = vmatmul.bf16.gmra.mxu0 %v4207
        %v5305 = vpop.f32.mrf.mxu0
        %v5306 = vadd.f32 %v3313, %v5305
        %v5307 = vpop.f32.mrf.mxu0
        %v5308 = vadd.f32 %v3313, %v5307
        %5309 = vmatmul.bf16.gmra.mxu0 %v4210
        %v5310 = vpop.f32.mrf.mxu0
        %v5311 = vadd.f32 %v3313, %v5310
        %v5312 = vpop.f32.mrf.mxu0
        %v5313 = vadd.f32 %v3313, %v5312
        %5314 = vmatmul.bf16.gmra.mxu0 %v4213
        %v5315 = vpop.f32.mrf.mxu0
        %v5316 = vadd.f32 %v3313, %v5315
        %v5317 = vpop.f32.mrf.mxu0
        %v5318 = vadd.f32 %v3313, %v5317
        %5319 = vmatmul.bf16.gmra.mxu0 %v4216
        %v5320 = vpop.f32.mrf.mxu0
        %v5321 = vadd.f32 %v3313, %v5320
        %v5322 = vpop.f32.mrf.mxu0
        %v5323 = vadd.f32 %v3313, %v5322
        %5324 = vmatmul.bf16.gmra.mxu0 %v4219
        %v5325 = vpop.f32.mrf.mxu0
        %v5326 = vadd.f32 %v3313, %v5325
        %v5327 = vpop.f32.mrf.mxu0
        %v5328 = vadd.f32 %v3313, %v5327
        %5329 = vmatmul.bf16.gmra.mxu0 %v4222
        %v5330 = vpop.f32.mrf.mxu0
        %v5331 = vadd.f32 %v3313, %v5330
        %v5332 = vpop.f32.mrf.mxu0
        %v5333 = vadd.f32 %v3313, %v5332
        %5334 = vmatmul.bf16.gmra.mxu0 %v4225
        %v5335 = vpop.f32.mrf.mxu0
        %v5336 = vadd.f32 %v3313, %v5335
        %v5337 = vpop.f32.mrf.mxu0
        %v5338 = vadd.f32 %v3313, %v5337
        %5339 = vmatmul.bf16.gmra.mxu0 %v4228
        %v5340 = vpop.f32.mrf.mxu0
        %v5341 = vadd.f32 %v3313, %v5340
        %v5342 = vpop.f32.mrf.mxu0
        %v5343 = vadd.f32 %v3313, %v5342
        %5344 = vmatmul.bf16.gmra.mxu0 %v4231
        %v5345 = vpop.f32.mrf.mxu0
        %v5346 = vadd.f32 %v3313, %v5345
        %v5347 = vpop.f32.mrf.mxu0
        %v5348 = vadd.f32 %v3313, %v5347
        %5349 = vmatmul.bf16.gmra.mxu0 %v4234
        %v5350 = vpop.f32.mrf.mxu0
        %v5351 = vadd.f32 %v3313, %v5350
        %v5352 = vpop.f32.mrf.mxu0
        %v5353 = vadd.f32 %v3313, %v5352
        %5354 = vmatmul.bf16.gmra.mxu0 %v4237
        %v5355 = vpop.f32.mrf.mxu0
        %v5356 = vadd.f32 %v3313, %v5355
        %v5357 = vpop.f32.mrf.mxu0
        %v5358 = vadd.f32 %v3313, %v5357
        %5359 = vmatmul.bf16.gmra.mxu0 %v4240
        %v5360 = vpop.f32.mrf.mxu0
        %v5361 = vadd.f32 %v3313, %v5360
        %v5362 = vpop.f32.mrf.mxu0
        %v5363 = vadd.f32 %v3313, %v5362
        %5364 = vmatmul.bf16.gmra.mxu0 %v4243
        %v5365 = vpop.f32.mrf.mxu0
        %v5366 = vadd.f32 %v3313, %v5365
        %v5367 = vpop.f32.mrf.mxu0
        %v5368 = vadd.f32 %v3313, %v5367
        %5369 = vmatmul.bf16.gmra.mxu0 %v4246
        %v5370 = vpop.f32.mrf.mxu0
        %v5371 = vadd.f32 %v3313, %v5370
        %v5372 = vpop.f32.mrf.mxu0
        %v5373 = vadd.f32 %v3313, %v5372
        %5374 = vmatmul.bf16.gmra.mxu0 %v4249
        %v5375 = vpop.f32.mrf.mxu0
        %v5376 = vadd.f32 %v3313, %v5375
        %v5377 = vpop.f32.mrf.mxu0
        %v5378 = vadd.f32 %v3313, %v5377
        %5379 = vmatmul.bf16.gmra.mxu0 %v4252
        %v5380 = vpop.f32.mrf.mxu0
        %v5381 = vadd.f32 %v3313, %v5380
        %v5382 = vpop.f32.mrf.mxu0
        %v5383 = vadd.f32 %v3313, %v5382
        %5384 = vmatmul.bf16.gmra.mxu0 %v4255
        %v5385 = vpop.f32.mrf.mxu0
        %v5386 = vadd.f32 %v3313, %v5385
        %v5387 = vpop.f32.mrf.mxu0
        %v5388 = vadd.f32 %v3313, %v5387
        %5389 = vmatmul.bf16.gmra.mxu0 %v4258
        %v5390 = vpop.f32.mrf.mxu0
        %v5391 = vadd.f32 %v3313, %v5390
        %v5392 = vpop.f32.mrf.mxu0
        %v5393 = vadd.f32 %v3313, %v5392
        %5394 = vmatmul.bf16.gmra.mxu0 %v4261
        %v5395 = vpop.f32.mrf.mxu0
        %v5396 = vadd.f32 %v3313, %v5395
        %v5397 = vpop.f32.mrf.mxu0
        %v5398 = vadd.f32 %v3313, %v5397
        %5399 = vmatmul.bf16.gmra.mxu0 %v4264
        %v5400 = vpop.f32.mrf.mxu0
        %v5401 = vadd.f32 %v3313, %v5400
        %v5402 = vpop.f32.mrf.mxu0
        %v5403 = vadd.f32 %v3313, %v5402
        %5404 = vmatmul.bf16.gmra.mxu0 %v4267
        %v5405 = vpop.f32.mrf.mxu0
        %v5406 = vadd.f32 %v3313, %v5405
        %v5407 = vpop.f32.mrf.mxu0
        %v5408 = vadd.f32 %v3313, %v5407
        %5409 = vmatmul.bf16.gmra.mxu0 %v4270
        %v5410 = vpop.f32.mrf.mxu0
        %v5411 = vadd.f32 %v3313, %v5410
        %v5412 = vpop.f32.mrf.mxu0
        %v5413 = vadd.f32 %v3313, %v5412
        %5414 = vmatmul.bf16.gmra.mxu0 %v4273
        %v5415 = vpop.f32.mrf.mxu0
        %v5416 = vadd.f32 %v3313, %v5415
        %v5417 = vpop.f32.mrf.mxu0
        %v5418 = vadd.f32 %v3313, %v5417
        %5419 = vmatmul.bf16.gmra.mxu0 %v4276
        %v5420 = vpop.f32.mrf.mxu0
        %v5421 = vadd.f32 %v3313, %v5420
        %v5422 = vpop.f32.mrf.mxu0
        %v5423 = vadd.f32 %v3313, %v5422
        %5424 = vmatmul.bf16.gmra.mxu0 %v4279
        %v5425 = vpop.f32.mrf.mxu0
        %v5426 = vadd.f32 %v3313, %v5425
        %v5427 = vpop.f32.mrf.mxu0
        %v5428 = vadd.f32 %v3313, %v5427
        %5429 = vmatmul.bf16.gmra.mxu0 %v4282
        %v5430 = vpop.f32.mrf.mxu0
        %v5431 = vadd.f32 %v3313, %v5430
        %v5432 = vpop.f32.mrf.mxu0
        %v5433 = vadd.f32 %v3313, %v5432
        %5434 = vmatmul.bf16.gmra.mxu0 %v4285
        %v5435 = vpop.f32.mrf.mxu0
        %v5436 = vadd.f32 %v3313, %v5435
        %v5437 = vpop.f32.mrf.mxu0
        %v5438 = vadd.f32 %v3313, %v5437
        %5439 = vmatmul.bf16.gmra.mxu0 %v4288
        %v5440 = vpop.f32.mrf.mxu0
        %v5441 = vadd.f32 %v3313, %v5440
        %v5442 = vpop.f32.mrf.mxu0
        %v5443 = vadd.f32 %v3313, %v5442
        %5444 = vmatmul.bf16.gmra.mxu0 %v4291
        %v5445 = vpop.f32.mrf.mxu0
        %v5446 = vadd.f32 %v3313, %v5445
        %v5447 = vpop.f32.mrf.mxu0
        %v5448 = vadd.f32 %v3313, %v5447
        %5449 = vmatmul.bf16.gmra.mxu0 %v4294
        %v5450 = vpop.f32.mrf.mxu0
        %v5451 = vadd.f32 %v3313, %v5450
        %v5452 = vpop.f32.mrf.mxu0
        %v5453 = vadd.f32 %v3313, %v5452
        %5454 = vmatmul.bf16.gmra.mxu0 %v4297
        %v5455 = vpop.f32.mrf.mxu0
        %v5456 = vadd.f32 %v3313, %v5455
        %v5457 = vpop.f32.mrf.mxu0
        %v5458 = vadd.f32 %v3313, %v5457
        %5459 = vmatmul.bf16.gmra.mxu0 %v4300
        %v5460 = vpop.f32.mrf.mxu0
        %v5461 = vadd.f32 %v3313, %v5460
        %v5462 = vpop.f32.mrf.mxu0
        %v5463 = vadd.f32 %v3313, %v5462
        %5464 = vmatmul.bf16.gmra.mxu0 %v4303
        %v5465 = vpop.f32.mrf.mxu0
        %v5466 = vadd.f32 %v3313, %v5465
        %v5467 = vpop.f32.mrf.mxu0
        %v5468 = vadd.f32 %v3313, %v5467
        %5469 = vmatmul.bf16.gmra.mxu0 %v4306
        %v5470 = vpop.f32.mrf.mxu0
        %v5471 = vadd.f32 %v3313, %v5470
        %v5472 = vpop.f32.mrf.mxu0
        %v5473 = vadd.f32 %v3313, %v5472
        %5474 = vmatmul.bf16.gmra.mxu0 %v4309
        %v5475 = vpop.f32.mrf.mxu0
        %v5476 = vadd.f32 %v3313, %v5475
        %v5477 = vpop.f32.mrf.mxu0
        %v5478 = vadd.f32 %v3313, %v5477
        %5479 = vmatmul.bf16.gmra.mxu0 %v4312
        %v5480 = vpop.f32.mrf.mxu0
        %v5481 = vadd.f32 %v3313, %v5480
        %v5482 = vpop.f32.mrf.mxu0
        %v5483 = vadd.f32 %v3313, %v5482
        %5484 = vmatmul.bf16.gmra.mxu0 %v4315
        %v5485 = vpop.f32.mrf.mxu0
        %v5486 = vadd.f32 %v3313, %v5485
        %v5487 = vpop.f32.mrf.mxu0
        %v5488 = vadd.f32 %v3313, %v5487
        %5489 = vmatmul.bf16.gmra.mxu0 %v4318
        %v5490 = vpop.f32.mrf.mxu0
        %v5491 = vadd.f32 %v3313, %v5490
        %v5492 = vpop.f32.mrf.mxu0
        %v5493 = vadd.f32 %v3313, %v5492
        %5494 = vmatmul.bf16.gmra.mxu0 %v4321
        %v5495 = vpop.f32.mrf.mxu0
        %v5496 = vadd.f32 %v3313, %v5495
        %v5497 = vpop.f32.mrf.mxu0
        %v5498 = vadd.f32 %v3313, %v5497
        %5499 = vmatmul.bf16.gmra.mxu0 %v4324
        %v5500 = vpop.f32.mrf.mxu0
        %v5501 = vadd.f32 %v3313, %v5500
        %v5502 = vpop.f32.mrf.mxu0
        %v5503 = vadd.f32 %v3313, %v5502
        %5504 = vmatmul.bf16.gmra.mxu0 %v4327
        %v5505 = vpop.f32.mrf.mxu0
        %v5506 = vadd.f32 %v3313, %v5505
        %v5507 = vpop.f32.mrf.mxu0
        %v5508 = vadd.f32 %v3313, %v5507
        %5509 = vmatmul.bf16.gmra.mxu0 %v4330
        %v5510 = vpop.f32.mrf.mxu0
        %v5511 = vadd.f32 %v3313, %v5510
        %v5512 = vpop.f32.mrf.mxu0
        %v5513 = vadd.f32 %v3313, %v5512
        %5514 = vmatmul.bf16.gmra.mxu0 %v4333
        %v5515 = vpop.f32.mrf.mxu0
        %v5516 = vadd.f32 %v3313, %v5515
        %v5517 = vpop.f32.mrf.mxu0
        %v5518 = vadd.f32 %v3313, %v5517
        %5519 = vmatmul.bf16.gmra.mxu0 %v4336
        %v5520 = vpop.f32.mrf.mxu0
        %v5521 = vadd.f32 %v3313, %v5520
        %v5522 = vpop.f32.mrf.mxu0
        %v5523 = vadd.f32 %v3313, %v5522
        %5524 = vmatmul.bf16.gmra.mxu0 %v4339
        %v5525 = vpop.f32.mrf.mxu0
        %v5526 = vadd.f32 %v3313, %v5525
        %v5527 = vpop.f32.mrf.mxu0
        %v5528 = vadd.f32 %v3313, %v5527
        %5529 = vmatmul.bf16.gmra.mxu0 %v4342
        %v5530 = vpop.f32.mrf.mxu0
        %v5531 = vadd.f32 %v3313, %v5530
        %v5532 = vpop.f32.mrf.mxu0
        %v5533 = vadd.f32 %v3313, %v5532
        %5534 = vmatmul.bf16.gmra.mxu0 %v4345
        %v5535 = vpop.f32.mrf.mxu0
        %v5536 = vadd.f32 %v3313, %v5535
        %v5537 = vpop.f32.mrf.mxu0
        %v5538 = vadd.f32 %v3313, %v5537
        %5539 = vmatmul.bf16.gmra.mxu0 %v4348
        %v5540 = vpop.f32.mrf.mxu0
        %v5541 = vadd.f32 %v3313, %v5540
        %v5542 = vpop.f32.mrf.mxu0
        %v5543 = vadd.f32 %v3313, %v5542
        %5544 = vmatmul.bf16.gmra.mxu0 %v4351
        %v5545 = vpop.f32.mrf.mxu0
        %v5546 = vadd.f32 %v3313, %v5545
        %v5547 = vpop.f32.mrf.mxu0
        %v5548 = vadd.f32 %v3313, %v5547
        %5549 = vmatmul.bf16.gmra.mxu0 %v4354
        %v5550 = vpop.f32.mrf.mxu0
        %v5551 = vadd.f32 %v3313, %v5550
        %v5552 = vpop.f32.mrf.mxu0
        %v5553 = vadd.f32 %v3313, %v5552
        %5554 = vmatmul.bf16.gmra.mxu0 %v4357
        %v5555 = vpop.f32.mrf.mxu0
        %v5556 = vadd.f32 %v3313, %v5555
        %v5557 = vpop.f32.mrf.mxu0
        %v5558 = vadd.f32 %v3313, %v5557
        %5559 = vmatmul.bf16.gmra.mxu0 %v4360
        %v5560 = vpop.f32.mrf.mxu0
        %v5561 = vadd.f32 %v3313, %v5560
        %v5562 = vpop.f32.mrf.mxu0
        %v5563 = vadd.f32 %v3313, %v5562
        %5564 = vmatmul.bf16.gmra.mxu0 %v4363
        %v5565 = vpop.f32.mrf.mxu0
        %v5566 = vadd.f32 %v3313, %v5565
        %v5567 = vpop.f32.mrf.mxu0
        %v5568 = vadd.f32 %v3313, %v5567
        %5569 = vmatmul.bf16.gmra.mxu0 %v4366
        %v5570 = vpop.f32.mrf.mxu0
        %v5571 = vadd.f32 %v3313, %v5570
        %v5572 = vpop.f32.mrf.mxu0
        %v5573 = vadd.f32 %v3313, %v5572
        %5574 = vmatmul.bf16.gmra.mxu0 %v4369
        %v5575 = vpop.f32.mrf.mxu0
        %v5576 = vadd.f32 %v3313, %v5575
        %v5577 = vpop.f32.mrf.mxu0
        %v5578 = vadd.f32 %v3313, %v5577
        %5579 = vmatmul.bf16.gmra.mxu0 %v4372
        %v5580 = vpop.f32.mrf.mxu0
        %v5581 = vadd.f32 %v3313, %v5580
        %v5582 = vpop.f32.mrf.mxu0
        %v5583 = vadd.f32 %v3313, %v5582
        %5584 = vmatmul.bf16.gmra.mxu0 %v4375
        %v5585 = vpop.f32.mrf.mxu0
        %v5586 = vadd.f32 %v3313, %v5585
        %v5587 = vpop.f32.mrf.mxu0
        %v5588 = vadd.f32 %v3313, %v5587
        %5589 = vmatmul.bf16.gmra.mxu0 %v4378
        %v5590 = vpop.f32.mrf.mxu0
        %v5591 = vadd.f32 %v3313, %v5590
        %v5592 = vpop.f32.mrf.mxu0
        %v5593 = vadd.f32 %v3313, %v5592
        %5594 = vmatmul.bf16.gmra.mxu0 %v4381
        %v5595 = vpop.f32.mrf.mxu0
        %v5596 = vadd.f32 %v3313, %v5595
        %v5597 = vpop.f32.mrf.mxu0
        %v5598 = vadd.f32 %v3313, %v5597
        %5599 = vmatmul.bf16.gmra.mxu0 %v4384
        %v5600 = vpop.f32.mrf.mxu0
        %v5601 = vadd.f32 %v3313, %v5600
        %v5602 = vpop.f32.mrf.mxu0
        %v5603 = vadd.f32 %v3313, %v5602
        %5604 = vmatmul.bf16.gmra.mxu0 %v4387
        %v5605 = vpop.f32.mrf.mxu0
        %v5606 = vadd.f32 %v3313, %v5605
        %v5607 = vpop.f32.mrf.mxu0
        %v5608 = vadd.f32 %v3313, %v5607
        %5609 = vmatmul.bf16.gmra.mxu0 %v4390
        %v5610 = vpop.f32.mrf.mxu0
        %v5611 = vadd.f32 %v3313, %v5610
        %v5612 = vpop.f32.mrf.mxu0
        %v5613 = vadd.f32 %v3313, %v5612
        %5614 = vmatmul.bf16.gmra.mxu0 %v4393
        %v5615 = vpop.f32.mrf.mxu0
        %v5616 = vadd.f32 %v3313, %v5615
        %v5617 = vpop.f32.mrf.mxu0
        %v5618 = vadd.f32 %v3313, %v5617
        %5619 = vmatmul.bf16.gmra.mxu0 %v4396
        %v5620 = vpop.f32.mrf.mxu0
        %v5621 = vadd.f32 %v3313, %v5620
        %v5622 = vpop.f32.mrf.mxu0
        %v5623 = vadd.f32 %v3313, %v5622
        %5624 = vmatmul.bf16.gmra.mxu0 %v4399
        %v5625 = vpop.f32.mrf.mxu0
        %v5626 = vadd.f32 %v3313, %v5625
        %v5627 = vpop.f32.mrf.mxu0
        %v5628 = vadd.f32 %v3313, %v5627
        %5629 = vmatmul.bf16.gmra.mxu0 %v4402
        %v5630 = vpop.f32.mrf.mxu0
        %v5631 = vadd.f32 %v3313, %v5630
        %v5632 = vpop.f32.mrf.mxu0
        %v5633 = vadd.f32 %v3313, %v5632
        %5634 = vmatmul.bf16.gmra.mxu0 %v4405
        %v5635 = vpop.f32.mrf.mxu0
        %v5636 = vadd.f32 %v3313, %v5635
        %v5637 = vpop.f32.mrf.mxu0
        %v5638 = vadd.f32 %v3313, %v5637
        %5639 = vmatmul.bf16.gmra.mxu0 %v4408
        %v5640 = vpop.f32.mrf.mxu0
        %v5641 = vadd.f32 %v3313, %v5640
        %v5642 = vpop.f32.mrf.mxu0
        %v5643 = vadd.f32 %v3313, %v5642
        %5644 = vmatmul.bf16.gmra.mxu0 %v4411
        %v5645 = vpop.f32.mrf.mxu0
        %v5646 = vadd.f32 %v3313, %v5645
        %v5647 = vpop.f32.mrf.mxu0
        %v5648 = vadd.f32 %v3313, %v5647
        %5649 = vmatmul.bf16.gmra.mxu0 %v4414
        %v5650 = vpop.f32.mrf.mxu0
        %v5651 = vadd.f32 %v3313, %v5650
        %v5652 = vpop.f32.mrf.mxu0
        %v5653 = vadd.f32 %v3313, %v5652
        %5654 = vmatmul.bf16.gmra.mxu0 %v4417
        %v5655 = vpop.f32.mrf.mxu0
        %v5656 = vadd.f32 %v3313, %v5655
        %v5657 = vpop.f32.mrf.mxu0
        %v5658 = vadd.f32 %v3313, %v5657
        %5659 = vmatmul.bf16.gmra.mxu0 %v4420
        %v5660 = vpop.f32.mrf.mxu0
        %v5661 = vadd.f32 %v3313, %v5660
        %v5662 = vpop.f32.mrf.mxu0
        %v5663 = vadd.f32 %v3313, %v5662
        %5664 = vmatmul.bf16.gmra.mxu0 %v4423
        %v5665 = vpop.f32.mrf.mxu0
        %v5666 = vadd.f32 %v3313, %v5665
        %v5667 = vpop.f32.mrf.mxu0
        %v5668 = vadd.f32 %v3313, %v5667
        %5669 = vmatmul.bf16.gmra.mxu0 %v4426
        %v5670 = vpop.f32.mrf.mxu0
        %v5671 = vadd.f32 %v3313, %v5670
        %v5672 = vpop.f32.mrf.mxu0
        %v5673 = vadd.f32 %v3313, %v5672
        %5674 = vmatmul.bf16.gmra.mxu0 %v4429
        %v5675 = vpop.f32.mrf.mxu0
        %v5676 = vadd.f32 %v3313, %v5675
        %v5677 = vpop.f32.mrf.mxu0
        %v5678 = vadd.f32 %v3313, %v5677
        %5679 = vmatmul.bf16.gmra.mxu0 %v4432
        %v5680 = vpop.f32.mrf.mxu0
        %v5681 = vadd.f32 %v3313, %v5680
        %v5682 = vpop.f32.mrf.mxu0
        %v5683 = vadd.f32 %v3313, %v5682
        %5684 = vmatmul.bf16.gmra.mxu0 %v4435
        %v5685 = vpop.f32.mrf.mxu0
        %v5686 = vadd.f32 %v3313, %v5685
        %v5687 = vpop.f32.mrf.mxu0
        %v5688 = vadd.f32 %v3313, %v5687
        %5689 = vmatmul.bf16.gmra.mxu0 %v4438
        %v5690 = vpop.f32.mrf.mxu0
        %v5691 = vadd.f32 %v3313, %v5690
        %v5692 = vpop.f32.mrf.mxu0
        %v5693 = vadd.f32 %v3313, %v5692
        %5694 = vmatmul.bf16.gmra.mxu0 %v4441
        %v5695 = vpop.f32.mrf.mxu0
        %v5696 = vadd.f32 %v3313, %v5695
        %v5697 = vpop.f32.mrf.mxu0
        %v5698 = vadd.f32 %v3313, %v5697
        %5699 = vmatmul.bf16.gmra.mxu0 %v4444
        %v5700 = vpop.f32.mrf.mxu0
        %v5701 = vadd.f32 %v3313, %v5700
        %v5702 = vpop.f32.mrf.mxu0
        %v5703 = vadd.f32 %v3313, %v5702
        %5704 = vmatmul.bf16.gmra.mxu0 %v4447
        %v5705 = vpop.f32.mrf.mxu0
        %v5706 = vadd.f32 %v3313, %v5705
        %v5707 = vpop.f32.mrf.mxu0
        %v5708 = vadd.f32 %v3313, %v5707
        %5709 = vmatmul.bf16.gmra.mxu0 %v4450
        %v5710 = vpop.f32.mrf.mxu0
        %v5711 = vadd.f32 %v3313, %v5710
        %v5712 = vpop.f32.mrf.mxu0
        %v5713 = vadd.f32 %v3313, %v5712
        %5714 = vmatmul.bf16.gmra.mxu0 %v4453
        %v5715 = vpop.f32.mrf.mxu0
        %v5716 = vadd.f32 %v3313, %v5715
        %v5717 = vpop.f32.mrf.mxu0
        %v5718 = vadd.f32 %v3313, %v5717
        %5719 = vmatmul.bf16.gmra.mxu0 %v4456
        %v5720 = vpop.f32.mrf.mxu0
        %v5721 = vadd.f32 %v3313, %v5720
        %v5722 = vpop.f32.mrf.mxu0
        %v5723 = vadd.f32 %v3313, %v5722
        %5724 = vmatmul.bf16.gmra.mxu0 %v4459
        %v5725 = vpop.f32.mrf.mxu0
        %v5726 = vadd.f32 %v3313, %v5725
        %v5727 = vpop.f32.mrf.mxu0
        %v5728 = vadd.f32 %v3313, %v5727
        %5729 = vmatmul.bf16.gmra.mxu0 %v4462
        %v5730 = vpop.f32.mrf.mxu0
        %v5731 = vadd.f32 %v3313, %v5730
        %v5732 = vpop.f32.mrf.mxu0
        %v5733 = vadd.f32 %v3313, %v5732
        %5734 = vmatmul.bf16.gmra.mxu0 %v4465
        %v5735 = vpop.f32.mrf.mxu0
        %v5736 = vadd.f32 %v3313, %v5735
        %v5737 = vpop.f32.mrf.mxu0
        %v5738 = vadd.f32 %v3313, %v5737
        %5739 = vmatmul.bf16.gmra.mxu0 %v4468
        %v5740 = vpop.f32.mrf.mxu0
        %v5741 = vadd.f32 %v3313, %v5740
        %v5742 = vpop.f32.mrf.mxu0
        %v5743 = vadd.f32 %v3313, %v5742
        %5744 = vmatmul.bf16.gmra.mxu0 %v4471
        %v5745 = vpop.f32.mrf.mxu0
        %v5746 = vadd.f32 %v3313, %v5745
        %v5747 = vpop.f32.mrf.mxu0
        %v5748 = vadd.f32 %v3313, %v5747
        %5749 = vmatmul.bf16.gmra.mxu0 %v4474
        %v5750 = vpop.f32.mrf.mxu0
        %v5751 = vadd.f32 %v3313, %v5750
        %v5752 = vpop.f32.mrf.mxu0
        %v5753 = vadd.f32 %v3313, %v5752
        %5754 = vmatmul.bf16.gmra.mxu0 %v4477
        %v5755 = vpop.f32.mrf.mxu0
        %v5756 = vadd.f32 %v3313, %v5755
        %v5757 = vpop.f32.mrf.mxu0
        %v5758 = vadd.f32 %v3313, %v5757
        %5759 = vmatmul.bf16.gmra.mxu0 %v4480
        %v5760 = vpop.f32.mrf.mxu0
        %v5761 = vadd.f32 %v3313, %v5760
        %v5762 = vpop.f32.mrf.mxu0
        %v5763 = vadd.f32 %v3313, %v5762
        %5764 = vmatmul.bf16.gmra.mxu0 %v4483
        %v5765 = vpop.f32.mrf.mxu0
        %v5766 = vadd.f32 %v3313, %v5765
        %v5767 = vpop.f32.mrf.mxu0
        %v5768 = vadd.f32 %v3313, %v5767
        %5769 = vmatmul.bf16.gmra.mxu0 %v4486
        %v5770 = vpop.f32.mrf.mxu0
        %v5771 = vadd.f32 %v3313, %v5770
        %v5772 = vpop.f32.mrf.mxu0
        %v5773 = vadd.f32 %v3313, %v5772
        %5774 = vmatmul.bf16.gmra.mxu0 %v4489
        %v5775 = vpop.f32.mrf.mxu0
        %v5776 = vadd.f32 %v3313, %v5775
        %v5777 = vpop.f32.mrf.mxu0
        %v5778 = vadd.f32 %v3313, %v5777
        %5779 = vdwg.mxu0
        %v5780 = vmax.f32 %v4501, 0.0
        %v5781 = vmax.f32 %v4503, 0.0
        %v5782 = vmax.f32 %v4506, 0.0
        %v5783 = vmax.f32 %v4508, 0.0
        %v5784 = vmax.f32 %v4511, 0.0
        %v5785 = vmax.f32 %v4513, 0.0
        %v5786 = vmax.f32 %v4516, 0.0
        %v5787 = vmax.f32 %v4518, 0.0
        %v5788 = vmax.f32 %v4521, 0.0
        %v5789 = vmax.f32 %v4523, 0.0
        %v5790 = vmax.f32 %v4526, 0.0
        %v5791 = vmax.f32 %v4528, 0.0
        %v5792 = vmax.f32 %v4531, 0.0
        %v5793 = vmax.f32 %v4533, 0.0
        %v5794 = vmax.f32 %v4536, 0.0
        %v5795 = vmax.f32 %v4538, 0.0
        %v5796 = vmax.f32 %v4541, 0.0
        %v5797 = vmax.f32 %v4543, 0.0
        %v5798 = vmax.f32 %v4546, 0.0
        %v5799 = vmax.f32 %v4548, 0.0
        %v5800 = vmax.f32 %v4551, 0.0
        %v5801 = vmax.f32 %v4553, 0.0
        %v5802 = vmax.f32 %v4556, 0.0
        %v5803 = vmax.f32 %v4558, 0.0
        %v5804 = vmax.f32 %v4561, 0.0
        %v5805 = vmax.f32 %v4563, 0.0
        %v5806 = vmax.f32 %v4566, 0.0
        %v5807 = vmax.f32 %v4568, 0.0
        %v5808 = vmax.f32 %v4571, 0.0
        %v5809 = vmax.f32 %v4573, 0.0
        %v5810 = vmax.f32 %v4576, 0.0
        %v5811 = vmax.f32 %v4578, 0.0
        %v5812 = vmax.f32 %v4581, 0.0
        %v5813 = vmax.f32 %v4583, 0.0
        %v5814 = vmax.f32 %v4586, 0.0
        %v5815 = vmax.f32 %v4588, 0.0
        %v5816 = vmax.f32 %v4591, 0.0
        %v5817 = vmax.f32 %v4593, 0.0
        %v5818 = vmax.f32 %v4596, 0.0
        %v5819 = vmax.f32 %v4598, 0.0
        %v5820 = vmax.f32 %v4601, 0.0
        %v5821 = vmax.f32 %v4603, 0.0
        %v5822 = vmax.f32 %v4606, 0.0
        %v5823 = vmax.f32 %v4608, 0.0
        %v5824 = vmax.f32 %v4611, 0.0
        %v5825 = vmax.f32 %v4613, 0.0
        %v5826 = vmax.f32 %v4616, 0.0
        %v5827 = vmax.f32 %v4618, 0.0
        %v5828 = vmax.f32 %v4621, 0.0
        %v5829 = vmax.f32 %v4623, 0.0
        %v5830 = vmax.f32 %v4626, 0.0
        %v5831 = vmax.f32 %v4628, 0.0
        %v5832 = vmax.f32 %v4631, 0.0
        %v5833 = vmax.f32 %v4633, 0.0
        %v5834 = vmax.f32 %v4636, 0.0
        %v5835 = vmax.f32 %v4638, 0.0
        %v5836 = vmax.f32 %v4641, 0.0
        %v5837 = vmax.f32 %v4643, 0.0
        %v5838 = vmax.f32 %v4646, 0.0
        %v5839 = vmax.f32 %v4648, 0.0
        %v5840 = vmax.f32 %v4651, 0.0
        %v5841 = vmax.f32 %v4653, 0.0
        %v5842 = vmax.f32 %v4656, 0.0
        %v5843 = vmax.f32 %v4658, 0.0
        %v5844 = vmax.f32 %v4661, 0.0
        %v5845 = vmax.f32 %v4663, 0.0
        %v5846 = vmax.f32 %v4666, 0.0
        %v5847 = vmax.f32 %v4668, 0.0
        %v5848 = vmax.f32 %v4671, 0.0
        %v5849 = vmax.f32 %v4673, 0.0
        %v5850 = vmax.f32 %v4676, 0.0
        %v5851 = vmax.f32 %v4678, 0.0
        %v5852 = vmax.f32 %v4681, 0.0
        %v5853 = vmax.f32 %v4683, 0.0
        %v5854 = vmax.f32 %v4686, 0.0
        %v5855 = vmax.f32 %v4688, 0.0
        %v5856 = vmax.f32 %v4691, 0.0
        %v5857 = vmax.f32 %v4693, 0.0
        %v5858 = vmax.f32 %v4696, 0.0
        %v5859 = vmax.f32 %v4698, 0.0
        %v5860 = vmax.f32 %v4701, 0.0
        %v5861 = vmax.f32 %v4703, 0.0
        %v5862 = vmax.f32 %v4706, 0.0
        %v5863 = vmax.f32 %v4708, 0.0
        %v5864 = vmax.f32 %v4711, 0.0
        %v5865 = vmax.f32 %v4713, 0.0
        %v5866 = vmax.f32 %v4716, 0.0
        %v5867 = vmax.f32 %v4718, 0.0
        %v5868 = vmax.f32 %v4721, 0.0
        %v5869 = vmax.f32 %v4723, 0.0
        %v5870 = vmax.f32 %v4726, 0.0
        %v5871 = vmax.f32 %v4728, 0.0
        %v5872 = vmax.f32 %v4731, 0.0
        %v5873 = vmax.f32 %v4733, 0.0
        %v5874 = vmax.f32 %v4736, 0.0
        %v5875 = vmax.f32 %v4738, 0.0
        %v5876 = vmax.f32 %v4741, 0.0
        %v5877 = vmax.f32 %v4743, 0.0
        %v5878 = vmax.f32 %v4746, 0.0
        %v5879 = vmax.f32 %v4748, 0.0
        %v5880 = vmax.f32 %v4751, 0.0
        %v5881 = vmax.f32 %v4753, 0.0
        %v5882 = vmax.f32 %v4756, 0.0
        %v5883 = vmax.f32 %v4758, 0.0
        %v5884 = vmax.f32 %v4761, 0.0
        %v5885 = vmax.f32 %v4763, 0.0
        %v5886 = vmax.f32 %v4766, 0.0
        %v5887 = vmax.f32 %v4768, 0.0
        %v5888 = vmax.f32 %v4771, 0.0
        %v5889 = vmax.f32 %v4773, 0.0
        %v5890 = vmax.f32 %v4776, 0.0
        %v5891 = vmax.f32 %v4778, 0.0
        %v5892 = vmax.f32 %v4781, 0.0
        %v5893 = vmax.f32 %v4783, 0.0
        %v5894 = vmax.f32 %v4786, 0.0
        %v5895 = vmax.f32 %v4788, 0.0
        %v5896 = vmax.f32 %v4791, 0.0
        %v5897 = vmax.f32 %v4793, 0.0
        %v5898 = vmax.f32 %v4796, 0.0
        %v5899 = vmax.f32 %v4798, 0.0
        %v5900 = vmax.f32 %v4801, 0.0
        %v5901 = vmax.f32 %v4803, 0.0
        %v5902 = vmax.f32 %v4806, 0.0
        %v5903 = vmax.f32 %v4808, 0.0
        %v5904 = vmax.f32 %v4811, 0.0
        %v5905 = vmax.f32 %v4813, 0.0
        %v5906 = vmax.f32 %v4816, 0.0
        %v5907 = vmax.f32 %v4818, 0.0
        %v5908 = vmax.f32 %v4821, 0.0
        %v5909 = vmax.f32 %v4823, 0.0
        %v5910 = vmax.f32 %v4826, 0.0
        %v5911 = vmax.f32 %v4828, 0.0
        %v5912 = vmax.f32 %v4831, 0.0
        %v5913 = vmax.f32 %v4833, 0.0
        %v5914 = vmax.f32 %v4836, 0.0
        %v5915 = vmax.f32 %v4838, 0.0
        %v5916 = vmax.f32 %v4841, 0.0
        %v5917 = vmax.f32 %v4843, 0.0
        %v5918 = vmax.f32 %v4846, 0.0
        %v5919 = vmax.f32 %v4848, 0.0
        %v5920 = vmax.f32 %v4851, 0.0
        %v5921 = vmax.f32 %v4853, 0.0
        %v5922 = vmax.f32 %v4856, 0.0
        %v5923 = vmax.f32 %v4858, 0.0
        %v5924 = vmax.f32 %v4861, 0.0
        %v5925 = vmax.f32 %v4863, 0.0
        %v5926 = vmax.f32 %v4866, 0.0
        %v5927 = vmax.f32 %v4868, 0.0
        %v5928 = vmax.f32 %v4871, 0.0
        %v5929 = vmax.f32 %v4873, 0.0
        %v5930 = vmax.f32 %v4876, 0.0
        %v5931 = vmax.f32 %v4878, 0.0
        %v5932 = vmax.f32 %v4881, 0.0
        %v5933 = vmax.f32 %v4883, 0.0
        %v5934 = vmax.f32 %v4886, 0.0
        %v5935 = vmax.f32 %v4888, 0.0
        %v5936 = vmax.f32 %v4891, 0.0
        %v5937 = vmax.f32 %v4893, 0.0
        %v5938 = vmax.f32 %v4896, 0.0
        %v5939 = vmax.f32 %v4898, 0.0
        %v5940 = vmax.f32 %v4901, 0.0
        %v5941 = vmax.f32 %v4903, 0.0
        %v5942 = vmax.f32 %v4906, 0.0
        %v5943 = vmax.f32 %v4908, 0.0
        %v5944 = vmax.f32 %v4911, 0.0
        %v5945 = vmax.f32 %v4913, 0.0
        %v5946 = vmax.f32 %v4916, 0.0
        %v5947 = vmax.f32 %v4918, 0.0
        %v5948 = vmax.f32 %v4921, 0.0
        %v5949 = vmax.f32 %v4923, 0.0
        %v5950 = vmax.f32 %v4926, 0.0
        %v5951 = vmax.f32 %v4928, 0.0
        %v5952 = vmax.f32 %v4931, 0.0
        %v5953 = vmax.f32 %v4933, 0.0
        %v5954 = vmax.f32 %v4936, 0.0
        %v5955 = vmax.f32 %v4938, 0.0
        %v5956 = vmax.f32 %v4941, 0.0
        %v5957 = vmax.f32 %v4943, 0.0
        %v5958 = vmax.f32 %v4946, 0.0
        %v5959 = vmax.f32 %v4948, 0.0
        %v5960 = vmax.f32 %v4951, 0.0
        %v5961 = vmax.f32 %v4953, 0.0
        %v5962 = vmax.f32 %v4956, 0.0
        %v5963 = vmax.f32 %v4958, 0.0
        %v5964 = vmax.f32 %v4961, 0.0
        %v5965 = vmax.f32 %v4963, 0.0
        %v5966 = vmax.f32 %v4966, 0.0
        %v5967 = vmax.f32 %v4968, 0.0
        %v5968 = vmax.f32 %v4971, 0.0
        %v5969 = vmax.f32 %v4973, 0.0
        %v5970 = vmax.f32 %v4976, 0.0
        %v5971 = vmax.f32 %v4978, 0.0
        %v5972 = vmax.f32 %v4981, 0.0
        %v5973 = vmax.f32 %v4983, 0.0
        %v5974 = vmax.f32 %v4986, 0.0
        %v5975 = vmax.f32 %v4988, 0.0
        %v5976 = vmax.f32 %v4991, 0.0
        %v5977 = vmax.f32 %v4993, 0.0
        %v5978 = vmax.f32 %v4996, 0.0
        %v5979 = vmax.f32 %v4998, 0.0
        %v5980 = vmax.f32 %v5001, 0.0
        %v5981 = vmax.f32 %v5003, 0.0
        %v5982 = vmax.f32 %v5006, 0.0
        %v5983 = vmax.f32 %v5008, 0.0
        %v5984 = vmax.f32 %v5011, 0.0
        %v5985 = vmax.f32 %v5013, 0.0
        %v5986 = vmax.f32 %v5016, 0.0
        %v5987 = vmax.f32 %v5018, 0.0
        %v5988 = vmax.f32 %v5021, 0.0
        %v5989 = vmax.f32 %v5023, 0.0
        %v5990 = vmax.f32 %v5026, 0.0
        %v5991 = vmax.f32 %v5028, 0.0
        %v5992 = vmax.f32 %v5031, 0.0
        %v5993 = vmax.f32 %v5033, 0.0
        %v5994 = vmax.f32 %v5036, 0.0
        %v5995 = vmax.f32 %v5038, 0.0
        %v5996 = vmax.f32 %v5041, 0.0
        %v5997 = vmax.f32 %v5043, 0.0
        %v5998 = vmax.f32 %v5046, 0.0
        %v5999 = vmax.f32 %v5048, 0.0
        %v6000 = vmax.f32 %v5051, 0.0
        %v6001 = vmax.f32 %v5053, 0.0
        %v6002 = vmax.f32 %v5056, 0.0
        %v6003 = vmax.f32 %v5058, 0.0
        %v6004 = vmax.f32 %v5061, 0.0
        %v6005 = vmax.f32 %v5063, 0.0
        %v6006 = vmax.f32 %v5066, 0.0
        %v6007 = vmax.f32 %v5068, 0.0
        %v6008 = vmax.f32 %v5071, 0.0
        %v6009 = vmax.f32 %v5073, 0.0
        %v6010 = vmax.f32 %v5076, 0.0
        %v6011 = vmax.f32 %v5078, 0.0
        %v6012 = vmax.f32 %v5081, 0.0
        %v6013 = vmax.f32 %v5083, 0.0
        %v6014 = vmax.f32 %v5086, 0.0
        %v6015 = vmax.f32 %v5088, 0.0
        %v6016 = vmax.f32 %v5091, 0.0
        %v6017 = vmax.f32 %v5093, 0.0
        %v6018 = vmax.f32 %v5096, 0.0
        %v6019 = vmax.f32 %v5098, 0.0
        %v6020 = vmax.f32 %v5101, 0.0
        %v6021 = vmax.f32 %v5103, 0.0
        %v6022 = vmax.f32 %v5106, 0.0
        %v6023 = vmax.f32 %v5108, 0.0
        %v6024 = vmax.f32 %v5111, 0.0
        %v6025 = vmax.f32 %v5113, 0.0
        %v6026 = vmax.f32 %v5116, 0.0
        %v6027 = vmax.f32 %v5118, 0.0
        %v6028 = vmax.f32 %v5121, 0.0
        %v6029 = vmax.f32 %v5123, 0.0
        %v6030 = vmax.f32 %v5126, 0.0
        %v6031 = vmax.f32 %v5128, 0.0
        %v6032 = vmax.f32 %v5131, 0.0
        %v6033 = vmax.f32 %v5133, 0.0
        %v6034 = vmax.f32 %v5136, 0.0
        %v6035 = vmax.f32 %v5138, 0.0
        %v6036 = vmax.f32 %v5141, 0.0
        %v6037 = vmax.f32 %v5143, 0.0
        %v6038 = vmax.f32 %v5146, 0.0
        %v6039 = vmax.f32 %v5148, 0.0
        %v6040 = vmax.f32 %v5151, 0.0
        %v6041 = vmax.f32 %v5153, 0.0
        %v6042 = vmax.f32 %v5156, 0.0
        %v6043 = vmax.f32 %v5158, 0.0
        %v6044 = vmax.f32 %v5161, 0.0
        %v6045 = vmax.f32 %v5163, 0.0
        %v6046 = vmax.f32 %v5166, 0.0
        %v6047 = vmax.f32 %v5168, 0.0
        %v6048 = vmax.f32 %v5171, 0.0
        %v6049 = vmax.f32 %v5173, 0.0
        %v6050 = vmax.f32 %v5176, 0.0
        %v6051 = vmax.f32 %v5178, 0.0
        %v6052 = vmax.f32 %v5181, 0.0
        %v6053 = vmax.f32 %v5183, 0.0
        %v6054 = vmax.f32 %v5186, 0.0
        %v6055 = vmax.f32 %v5188, 0.0
        %v6056 = vmax.f32 %v5191, 0.0
        %v6057 = vmax.f32 %v5193, 0.0
        %v6058 = vmax.f32 %v5196, 0.0
        %v6059 = vmax.f32 %v5198, 0.0
        %v6060 = vmax.f32 %v5201, 0.0
        %v6061 = vmax.f32 %v5203, 0.0
        %v6062 = vmax.f32 %v5206, 0.0
        %v6063 = vmax.f32 %v5208, 0.0
        %v6064 = vmax.f32 %v5211, 0.0
        %v6065 = vmax.f32 %v5213, 0.0
        %v6066 = vmax.f32 %v5216, 0.0
        %v6067 = vmax.f32 %v5218, 0.0
        %v6068 = vmax.f32 %v5221, 0.0
        %v6069 = vmax.f32 %v5223, 0.0
        %v6070 = vmax.f32 %v5226, 0.0
        %v6071 = vmax.f32 %v5228, 0.0
        %v6072 = vmax.f32 %v5231, 0.0
        %v6073 = vmax.f32 %v5233, 0.0
        %v6074 = vmax.f32 %v5236, 0.0
        %v6075 = vmax.f32 %v5238, 0.0
        %v6076 = vmax.f32 %v5241, 0.0
        %v6077 = vmax.f32 %v5243, 0.0
        %v6078 = vmax.f32 %v5246, 0.0
        %v6079 = vmax.f32 %v5248, 0.0
        %v6080 = vmax.f32 %v5251, 0.0
        %v6081 = vmax.f32 %v5253, 0.0
        %v6082 = vmax.f32 %v5256, 0.0
        %v6083 = vmax.f32 %v5258, 0.0
        %v6084 = vmax.f32 %v5261, 0.0
        %v6085 = vmax.f32 %v5263, 0.0
        %v6086 = vmax.f32 %v5266, 0.0
        %v6087 = vmax.f32 %v5268, 0.0
        %v6088 = vmax.f32 %v5271, 0.0
        %v6089 = vmax.f32 %v5273, 0.0
        %v6090 = vmax.f32 %v5276, 0.0
        %v6091 = vmax.f32 %v5278, 0.0
        %v6092 = vmax.f32 %v5281, 0.0
        %v6093 = vmax.f32 %v5283, 0.0
        %v6094 = vmax.f32 %v5286, 0.0
        %v6095 = vmax.f32 %v5288, 0.0
        %v6096 = vmax.f32 %v5291, 0.0
        %v6097 = vmax.f32 %v5293, 0.0
        %v6098 = vmax.f32 %v5296, 0.0
        %v6099 = vmax.f32 %v5298, 0.0
        %v6100 = vmax.f32 %v5301, 0.0
        %v6101 = vmax.f32 %v5303, 0.0
        %v6102 = vmax.f32 %v5306, 0.0
        %v6103 = vmax.f32 %v5308, 0.0
        %v6104 = vmax.f32 %v5311, 0.0
        %v6105 = vmax.f32 %v5313, 0.0
        %v6106 = vmax.f32 %v5316, 0.0
        %v6107 = vmax.f32 %v5318, 0.0
        %v6108 = vmax.f32 %v5321, 0.0
        %v6109 = vmax.f32 %v5323, 0.0
        %v6110 = vmax.f32 %v5326, 0.0
        %v6111 = vmax.f32 %v5328, 0.0
        %v6112 = vmax.f32 %v5331, 0.0
        %v6113 = vmax.f32 %v5333, 0.0
        %v6114 = vmax.f32 %v5336, 0.0
        %v6115 = vmax.f32 %v5338, 0.0
        %v6116 = vmax.f32 %v5341, 0.0
        %v6117 = vmax.f32 %v5343, 0.0
        %v6118 = vmax.f32 %v5346, 0.0
        %v6119 = vmax.f32 %v5348, 0.0
        %v6120 = vmax.f32 %v5351, 0.0
        %v6121 = vmax.f32 %v5353, 0.0
        %v6122 = vmax.f32 %v5356, 0.0
        %v6123 = vmax.f32 %v5358, 0.0
        %v6124 = vmax.f32 %v5361, 0.0
        %v6125 = vmax.f32 %v5363, 0.0
        %v6126 = vmax.f32 %v5366, 0.0
        %v6127 = vmax.f32 %v5368, 0.0
        %v6128 = vmax.f32 %v5371, 0.0
        %v6129 = vmax.f32 %v5373, 0.0
        %v6130 = vmax.f32 %v5376, 0.0
        %v6131 = vmax.f32 %v5378, 0.0
        %v6132 = vmax.f32 %v5381, 0.0
        %v6133 = vmax.f32 %v5383, 0.0
        %v6134 = vmax.f32 %v5386, 0.0
        %v6135 = vmax.f32 %v5388, 0.0
        %v6136 = vmax.f32 %v5391, 0.0
        %v6137 = vmax.f32 %v5393, 0.0
        %v6138 = vmax.f32 %v5396, 0.0
        %v6139 = vmax.f32 %v5398, 0.0
        %v6140 = vmax.f32 %v5401, 0.0
        %v6141 = vmax.f32 %v5403, 0.0
        %v6142 = vmax.f32 %v5406, 0.0
        %v6143 = vmax.f32 %v5408, 0.0
        %v6144 = vmax.f32 %v5411, 0.0
        %v6145 = vmax.f32 %v5413, 0.0
        %v6146 = vmax.f32 %v5416, 0.0
        %v6147 = vmax.f32 %v5418, 0.0
        %v6148 = vmax.f32 %v5421, 0.0
        %v6149 = vmax.f32 %v5423, 0.0
        %v6150 = vmax.f32 %v5426, 0.0
        %v6151 = vmax.f32 %v5428, 0.0
        %v6152 = vmax.f32 %v5431, 0.0
        %v6153 = vmax.f32 %v5433, 0.0
        %v6154 = vmax.f32 %v5436, 0.0
        %v6155 = vmax.f32 %v5438, 0.0
        %v6156 = vmax.f32 %v5441, 0.0
        %v6157 = vmax.f32 %v5443, 0.0
        %v6158 = vmax.f32 %v5446, 0.0
        %v6159 = vmax.f32 %v5448, 0.0
        %v6160 = vmax.f32 %v5451, 0.0
        %v6161 = vmax.f32 %v5453, 0.0
        %v6162 = vmax.f32 %v5456, 0.0
        %v6163 = vmax.f32 %v5458, 0.0
        %v6164 = vmax.f32 %v5461, 0.0
        %v6165 = vmax.f32 %v5463, 0.0
        %v6166 = vmax.f32 %v5466, 0.0
        %v6167 = vmax.f32 %v5468, 0.0
        %v6168 = vmax.f32 %v5471, 0.0
        %v6169 = vmax.f32 %v5473, 0.0
        %v6170 = vmax.f32 %v5476, 0.0
        %v6171 = vmax.f32 %v5478, 0.0
        %v6172 = vmax.f32 %v5481, 0.0
        %v6173 = vmax.f32 %v5483, 0.0
        %v6174 = vmax.f32 %v5486, 0.0
        %v6175 = vmax.f32 %v5488, 0.0
        %v6176 = vmax.f32 %v5491, 0.0
        %v6177 = vmax.f32 %v5493, 0.0
        %v6178 = vmax.f32 %v5496, 0.0
        %v6179 = vmax.f32 %v5498, 0.0
        %v6180 = vmax.f32 %v5501, 0.0
        %v6181 = vmax.f32 %v5503, 0.0
        %v6182 = vmax.f32 %v5506, 0.0
        %v6183 = vmax.f32 %v5508, 0.0
        %v6184 = vmax.f32 %v5511, 0.0
        %v6185 = vmax.f32 %v5513, 0.0
        %v6186 = vmax.f32 %v5516, 0.0
        %v6187 = vmax.f32 %v5518, 0.0
        %v6188 = vmax.f32 %v5521, 0.0
        %v6189 = vmax.f32 %v5523, 0.0
        %v6190 = vmax.f32 %v5526, 0.0
        %v6191 = vmax.f32 %v5528, 0.0
        %v6192 = vmax.f32 %v5531, 0.0
        %v6193 = vmax.f32 %v5533, 0.0
        %v6194 = vmax.f32 %v5536, 0.0
        %v6195 = vmax.f32 %v5538, 0.0
        %v6196 = vmax.f32 %v5541, 0.0
        %v6197 = vmax.f32 %v5543, 0.0
        %v6198 = vmax.f32 %v5546, 0.0
        %v6199 = vmax.f32 %v5548, 0.0
        %v6200 = vmax.f32 %v5551, 0.0
        %v6201 = vmax.f32 %v5553, 0.0
        %v6202 = vmax.f32 %v5556, 0.0
        %v6203 = vmax.f32 %v5558, 0.0
        %v6204 = vmax.f32 %v5561, 0.0
        %v6205 = vmax.f32 %v5563, 0.0
        %v6206 = vmax.f32 %v5566, 0.0
        %v6207 = vmax.f32 %v5568, 0.0
        %v6208 = vmax.f32 %v5571, 0.0
        %v6209 = vmax.f32 %v5573, 0.0
        %v6210 = vmax.f32 %v5576, 0.0
        %v6211 = vmax.f32 %v5578, 0.0
        %v6212 = vmax.f32 %v5581, 0.0
        %v6213 = vmax.f32 %v5583, 0.0
        %v6214 = vmax.f32 %v5586, 0.0
        %v6215 = vmax.f32 %v5588, 0.0
        %v6216 = vmax.f32 %v5591, 0.0
        %v6217 = vmax.f32 %v5593, 0.0
        %v6218 = vmax.f32 %v5596, 0.0
        %v6219 = vmax.f32 %v5598, 0.0
        %v6220 = vmax.f32 %v5601, 0.0
        %v6221 = vmax.f32 %v5603, 0.0
        %v6222 = vmax.f32 %v5606, 0.0
        %v6223 = vmax.f32 %v5608, 0.0
        %v6224 = vmax.f32 %v5611, 0.0
        %v6225 = vmax.f32 %v5613, 0.0
        %v6226 = vmax.f32 %v5616, 0.0
        %v6227 = vmax.f32 %v5618, 0.0
        %v6228 = vmax.f32 %v5621, 0.0
        %v6229 = vmax.f32 %v5623, 0.0
        %v6230 = vmax.f32 %v5626, 0.0
        %v6231 = vmax.f32 %v5628, 0.0
        %v6232 = vmax.f32 %v5631, 0.0
        %v6233 = vmax.f32 %v5633, 0.0
        %v6234 = vmax.f32 %v5636, 0.0
        %v6235 = vmax.f32 %v5638, 0.0
        %v6236 = vmax.f32 %v5641, 0.0
        %v6237 = vmax.f32 %v5643, 0.0
        %v6238 = vmax.f32 %v5646, 0.0
        %v6239 = vmax.f32 %v5648, 0.0
        %v6240 = vmax.f32 %v5651, 0.0
        %v6241 = vmax.f32 %v5653, 0.0
        %v6242 = vmax.f32 %v5656, 0.0
        %v6243 = vmax.f32 %v5658, 0.0
        %v6244 = vmax.f32 %v5661, 0.0
        %v6245 = vmax.f32 %v5663, 0.0
        %v6246 = vmax.f32 %v5666, 0.0
        %v6247 = vmax.f32 %v5668, 0.0
        %v6248 = vmax.f32 %v5671, 0.0
        %v6249 = vmax.f32 %v5673, 0.0
        %v6250 = vmax.f32 %v5676, 0.0
        %v6251 = vmax.f32 %v5678, 0.0
        %v6252 = vmax.f32 %v5681, 0.0
        %v6253 = vmax.f32 %v5683, 0.0
        %v6254 = vmax.f32 %v5686, 0.0
        %v6255 = vmax.f32 %v5688, 0.0
        %v6256 = vmax.f32 %v5691, 0.0
        %v6257 = vmax.f32 %v5693, 0.0
        %v6258 = vmax.f32 %v5696, 0.0
        %v6259 = vmax.f32 %v5698, 0.0
        %v6260 = vmax.f32 %v5701, 0.0
        %v6261 = vmax.f32 %v5703, 0.0
        %v6262 = vmax.f32 %v5706, 0.0
        %v6263 = vmax.f32 %v5708, 0.0
        %v6264 = vmax.f32 %v5711, 0.0
        %v6265 = vmax.f32 %v5713, 0.0
        %v6266 = vmax.f32 %v5716, 0.0
        %v6267 = vmax.f32 %v5718, 0.0
        %v6268 = vmax.f32 %v5721, 0.0
        %v6269 = vmax.f32 %v5723, 0.0
        %v6270 = vmax.f32 %v5726, 0.0
        %v6271 = vmax.f32 %v5728, 0.0
        %v6272 = vmax.f32 %v5731, 0.0
        %v6273 = vmax.f32 %v5733, 0.0
        %v6274 = vmax.f32 %v5736, 0.0
        %v6275 = vmax.f32 %v5738, 0.0
        %v6276 = vmax.f32 %v5741, 0.0
        %v6277 = vmax.f32 %v5743, 0.0
        %v6278 = vmax.f32 %v5746, 0.0
        %v6279 = vmax.f32 %v5748, 0.0
        %v6280 = vmax.f32 %v5751, 0.0
        %v6281 = vmax.f32 %v5753, 0.0
        %v6282 = vmax.f32 %v5756, 0.0
        %v6283 = vmax.f32 %v5758, 0.0
        %v6284 = vmax.f32 %v5761, 0.0
        %v6285 = vmax.f32 %v5763, 0.0
        %v6286 = vmax.f32 %v5766, 0.0
        %v6287 = vmax.f32 %v5768, 0.0
        %v6288 = vmax.f32 %v5771, 0.0
        %v6289 = vmax.f32 %v5773, 0.0
        %v6290 = vmax.f32 %v5776, 0.0
        %v6291 = vmax.f32 %v5778, 0.0
        %v6292 = vsel %vm1978, %v5780, 0.0
        %v6293 = vrot.slane %v6292, 4
        %v6294 = vadd.f32 %v6292, %v6293
        %v6295 = vrot.slane %v6294, 2
        %v6296 = vadd.f32 %v6294, %v6295
        %v6297 = vrot.slane %v6296, 1
        %v6298 = vadd.f32 %v6296, %v6297
        %v6299 = vsel %vm1978, %v5781, 0.0
        %v6300 = vrot.slane %v6299, 4
        %v6301 = vadd.f32 %v6299, %v6300
        %v6302 = vrot.slane %v6301, 2
        %v6303 = vadd.f32 %v6301, %v6302
        %v6304 = vrot.slane %v6303, 1
        %v6305 = vadd.f32 %v6303, %v6304
        %v6306 = vsel %vm1978, %v5782, 0.0
        %v6307 = vrot.slane %v6306, 4
        %v6308 = vadd.f32 %v6306, %v6307
        %v6309 = vrot.slane %v6308, 2
        %v6310 = vadd.f32 %v6308, %v6309
        %v6311 = vrot.slane %v6310, 1
        %v6312 = vadd.f32 %v6310, %v6311
        %v6313 = vsel %vm1978, %v5783, 0.0
        %v6314 = vrot.slane %v6313, 4
        %v6315 = vadd.f32 %v6313, %v6314
        %v6316 = vrot.slane %v6315, 2
        %v6317 = vadd.f32 %v6315, %v6316
        %v6318 = vrot.slane %v6317, 1
        %v6319 = vadd.f32 %v6317, %v6318
        %v6320 = vsel %vm1978, %v5784, 0.0
        %v6321 = vrot.slane %v6320, 4
        %v6322 = vadd.f32 %v6320, %v6321
        %v6323 = vrot.slane %v6322, 2
        %v6324 = vadd.f32 %v6322, %v6323
        %v6325 = vrot.slane %v6324, 1
        %v6326 = vadd.f32 %v6324, %v6325
        %v6327 = vsel %vm1978, %v5785, 0.0
        %v6328 = vrot.slane %v6327, 4
        %v6329 = vadd.f32 %v6327, %v6328
        %v6330 = vrot.slane %v6329, 2
        %v6331 = vadd.f32 %v6329, %v6330
        %v6332 = vrot.slane %v6331, 1
        %v6333 = vadd.f32 %v6331, %v6332
        %v6334 = vsel %vm1978, %v5786, 0.0
        %v6335 = vrot.slane %v6334, 4
        %v6336 = vadd.f32 %v6334, %v6335
        %v6337 = vrot.slane %v6336, 2
        %v6338 = vadd.f32 %v6336, %v6337
        %v6339 = vrot.slane %v6338, 1
        %v6340 = vadd.f32 %v6338, %v6339
        %v6341 = vsel %vm1978, %v5787, 0.0
        %v6342 = vrot.slane %v6341, 4
        %v6343 = vadd.f32 %v6341, %v6342
        %v6344 = vrot.slane %v6343, 2
        %v6345 = vadd.f32 %v6343, %v6344
        %v6346 = vrot.slane %v6345, 1
        %v6347 = vadd.f32 %v6345, %v6346
        %v6348 = vsel %vm1978, %v5788, 0.0
        %v6349 = vrot.slane %v6348, 4
        %v6350 = vadd.f32 %v6348, %v6349
        %v6351 = vrot.slane %v6350, 2
        %v6352 = vadd.f32 %v6350, %v6351
        %v6353 = vrot.slane %v6352, 1
        %v6354 = vadd.f32 %v6352, %v6353
        %v6355 = vsel %vm1978, %v5789, 0.0
        %v6356 = vrot.slane %v6355, 4
        %v6357 = vadd.f32 %v6355, %v6356
        %v6358 = vrot.slane %v6357, 2
        %v6359 = vadd.f32 %v6357, %v6358
        %v6360 = vrot.slane %v6359, 1
        %v6361 = vadd.f32 %v6359, %v6360
        %v6362 = vsel %vm1978, %v5790, 0.0
        %v6363 = vrot.slane %v6362, 4
        %v6364 = vadd.f32 %v6362, %v6363
        %v6365 = vrot.slane %v6364, 2
        %v6366 = vadd.f32 %v6364, %v6365
        %v6367 = vrot.slane %v6366, 1
        %v6368 = vadd.f32 %v6366, %v6367
        %v6369 = vsel %vm1978, %v5791, 0.0
        %v6370 = vrot.slane %v6369, 4
        %v6371 = vadd.f32 %v6369, %v6370
        %v6372 = vrot.slane %v6371, 2
        %v6373 = vadd.f32 %v6371, %v6372
        %v6374 = vrot.slane %v6373, 1
        %v6375 = vadd.f32 %v6373, %v6374
        %v6376 = vsel %vm1978, %v5792, 0.0
        %v6377 = vrot.slane %v6376, 4
        %v6378 = vadd.f32 %v6376, %v6377
        %v6379 = vrot.slane %v6378, 2
        %v6380 = vadd.f32 %v6378, %v6379
        %v6381 = vrot.slane %v6380, 1
        %v6382 = vadd.f32 %v6380, %v6381
        %v6383 = vsel %vm1978, %v5793, 0.0
        %v6384 = vrot.slane %v6383, 4
        %v6385 = vadd.f32 %v6383, %v6384
        %v6386 = vrot.slane %v6385, 2
        %v6387 = vadd.f32 %v6385, %v6386
        %v6388 = vrot.slane %v6387, 1
        %v6389 = vadd.f32 %v6387, %v6388
        %v6390 = vsel %vm1978, %v5794, 0.0
        %v6391 = vrot.slane %v6390, 4
        %v6392 = vadd.f32 %v6390, %v6391
        %v6393 = vrot.slane %v6392, 2
        %v6394 = vadd.f32 %v6392, %v6393
        %v6395 = vrot.slane %v6394, 1
        %v6396 = vadd.f32 %v6394, %v6395
        %v6397 = vsel %vm1978, %v5795, 0.0
        %v6398 = vrot.slane %v6397, 4
        %v6399 = vadd.f32 %v6397, %v6398
        %v6400 = vrot.slane %v6399, 2
        %v6401 = vadd.f32 %v6399, %v6400
        %v6402 = vrot.slane %v6401, 1
        %v6403 = vadd.f32 %v6401, %v6402
        %v6404 = vsel %vm1978, %v5796, 0.0
        %v6405 = vrot.slane %v6404, 4
        %v6406 = vadd.f32 %v6404, %v6405
        %v6407 = vrot.slane %v6406, 2
        %v6408 = vadd.f32 %v6406, %v6407
        %v6409 = vrot.slane %v6408, 1
        %v6410 = vadd.f32 %v6408, %v6409
        %v6411 = vsel %vm1978, %v5797, 0.0
        %v6412 = vrot.slane %v6411, 4
        %v6413 = vadd.f32 %v6411, %v6412
        %v6414 = vrot.slane %v6413, 2
        %v6415 = vadd.f32 %v6413, %v6414
        %v6416 = vrot.slane %v6415, 1
        %v6417 = vadd.f32 %v6415, %v6416
        %v6418 = vsel %vm1978, %v5798, 0.0
        %v6419 = vrot.slane %v6418, 4
        %v6420 = vadd.f32 %v6418, %v6419
        %v6421 = vrot.slane %v6420, 2
        %v6422 = vadd.f32 %v6420, %v6421
        %v6423 = vrot.slane %v6422, 1
        %v6424 = vadd.f32 %v6422, %v6423
        %v6425 = vsel %vm1978, %v5799, 0.0
        %v6426 = vrot.slane %v6425, 4
        %v6427 = vadd.f32 %v6425, %v6426
        %v6428 = vrot.slane %v6427, 2
        %v6429 = vadd.f32 %v6427, %v6428
        %v6430 = vrot.slane %v6429, 1
        %v6431 = vadd.f32 %v6429, %v6430
        %v6432 = vsel %vm1978, %v5800, 0.0
        %v6433 = vrot.slane %v6432, 4
        %v6434 = vadd.f32 %v6432, %v6433
        %v6435 = vrot.slane %v6434, 2
        %v6436 = vadd.f32 %v6434, %v6435
        %v6437 = vrot.slane %v6436, 1
        %v6438 = vadd.f32 %v6436, %v6437
        %v6439 = vsel %vm1978, %v5801, 0.0
        %v6440 = vrot.slane %v6439, 4
        %v6441 = vadd.f32 %v6439, %v6440
        %v6442 = vrot.slane %v6441, 2
        %v6443 = vadd.f32 %v6441, %v6442
        %v6444 = vrot.slane %v6443, 1
        %v6445 = vadd.f32 %v6443, %v6444
        %v6446 = vsel %vm1978, %v5802, 0.0
        %v6447 = vrot.slane %v6446, 4
        %v6448 = vadd.f32 %v6446, %v6447
        %v6449 = vrot.slane %v6448, 2
        %v6450 = vadd.f32 %v6448, %v6449
        %v6451 = vrot.slane %v6450, 1
        %v6452 = vadd.f32 %v6450, %v6451
        %v6453 = vsel %vm1978, %v5803, 0.0
        %v6454 = vrot.slane %v6453, 4
        %v6455 = vadd.f32 %v6453, %v6454
        %v6456 = vrot.slane %v6455, 2
        %v6457 = vadd.f32 %v6455, %v6456
        %v6458 = vrot.slane %v6457, 1
        %v6459 = vadd.f32 %v6457, %v6458
        %v6460 = vsel %vm1978, %v5804, 0.0
        %v6461 = vrot.slane %v6460, 4
        %v6462 = vadd.f32 %v6460, %v6461
        %v6463 = vrot.slane %v6462, 2
        %v6464 = vadd.f32 %v6462, %v6463
        %v6465 = vrot.slane %v6464, 1
        %v6466 = vadd.f32 %v6464, %v6465
        %v6467 = vsel %vm1978, %v5805, 0.0
        %v6468 = vrot.slane %v6467, 4
        %v6469 = vadd.f32 %v6467, %v6468
        %v6470 = vrot.slane %v6469, 2
        %v6471 = vadd.f32 %v6469, %v6470
        %v6472 = vrot.slane %v6471, 1
        %v6473 = vadd.f32 %v6471, %v6472
        %v6474 = vsel %vm1978, %v5806, 0.0
        %v6475 = vrot.slane %v6474, 4
        %v6476 = vadd.f32 %v6474, %v6475
        %v6477 = vrot.slane %v6476, 2
        %v6478 = vadd.f32 %v6476, %v6477
        %v6479 = vrot.slane %v6478, 1
        %v6480 = vadd.f32 %v6478, %v6479
        %v6481 = vsel %vm1978, %v5807, 0.0
        %v6482 = vrot.slane %v6481, 4
        %v6483 = vadd.f32 %v6481, %v6482
        %v6484 = vrot.slane %v6483, 2
        %v6485 = vadd.f32 %v6483, %v6484
        %v6486 = vrot.slane %v6485, 1
        %v6487 = vadd.f32 %v6485, %v6486
        %v6488 = vsel %vm1978, %v5808, 0.0
        %v6489 = vrot.slane %v6488, 4
        %v6490 = vadd.f32 %v6488, %v6489
        %v6491 = vrot.slane %v6490, 2
        %v6492 = vadd.f32 %v6490, %v6491
        %v6493 = vrot.slane %v6492, 1
        %v6494 = vadd.f32 %v6492, %v6493
        %v6495 = vsel %vm1978, %v5809, 0.0
        %v6496 = vrot.slane %v6495, 4
        %v6497 = vadd.f32 %v6495, %v6496
        %v6498 = vrot.slane %v6497, 2
        %v6499 = vadd.f32 %v6497, %v6498
        %v6500 = vrot.slane %v6499, 1
        %v6501 = vadd.f32 %v6499, %v6500
        %v6502 = vsel %vm1978, %v5810, 0.0
        %v6503 = vrot.slane %v6502, 4
        %v6504 = vadd.f32 %v6502, %v6503
        %v6505 = vrot.slane %v6504, 2
        %v6506 = vadd.f32 %v6504, %v6505
        %v6507 = vrot.slane %v6506, 1
        %v6508 = vadd.f32 %v6506, %v6507
        %v6509 = vsel %vm1978, %v5811, 0.0
        %v6510 = vrot.slane %v6509, 4
        %v6511 = vadd.f32 %v6509, %v6510
        %v6512 = vrot.slane %v6511, 2
        %v6513 = vadd.f32 %v6511, %v6512
        %v6514 = vrot.slane %v6513, 1
        %v6515 = vadd.f32 %v6513, %v6514
        %v6516 = vsel %vm1978, %v5812, 0.0
        %v6517 = vrot.slane %v6516, 4
        %v6518 = vadd.f32 %v6516, %v6517
        %v6519 = vrot.slane %v6518, 2
        %v6520 = vadd.f32 %v6518, %v6519
        %v6521 = vrot.slane %v6520, 1
        %v6522 = vadd.f32 %v6520, %v6521
        %v6523 = vsel %vm1978, %v5813, 0.0
        %v6524 = vrot.slane %v6523, 4
        %v6525 = vadd.f32 %v6523, %v6524
        %v6526 = vrot.slane %v6525, 2
        %v6527 = vadd.f32 %v6525, %v6526
        %v6528 = vrot.slane %v6527, 1
        %v6529 = vadd.f32 %v6527, %v6528
        %v6530 = vsel %vm1978, %v5814, 0.0
        %v6531 = vrot.slane %v6530, 4
        %v6532 = vadd.f32 %v6530, %v6531
        %v6533 = vrot.slane %v6532, 2
        %v6534 = vadd.f32 %v6532, %v6533
        %v6535 = vrot.slane %v6534, 1
        %v6536 = vadd.f32 %v6534, %v6535
        %v6537 = vsel %vm1978, %v5815, 0.0
        %v6538 = vrot.slane %v6537, 4
        %v6539 = vadd.f32 %v6537, %v6538
        %v6540 = vrot.slane %v6539, 2
        %v6541 = vadd.f32 %v6539, %v6540
        %v6542 = vrot.slane %v6541, 1
        %v6543 = vadd.f32 %v6541, %v6542
        %v6544 = vsel %vm1978, %v5816, 0.0
        %v6545 = vrot.slane %v6544, 4
        %v6546 = vadd.f32 %v6544, %v6545
        %v6547 = vrot.slane %v6546, 2
        %v6548 = vadd.f32 %v6546, %v6547
        %v6549 = vrot.slane %v6548, 1
        %v6550 = vadd.f32 %v6548, %v6549
        %v6551 = vsel %vm1978, %v5817, 0.0
        %v6552 = vrot.slane %v6551, 4
        %v6553 = vadd.f32 %v6551, %v6552
        %v6554 = vrot.slane %v6553, 2
        %v6555 = vadd.f32 %v6553, %v6554
        %v6556 = vrot.slane %v6555, 1
        %v6557 = vadd.f32 %v6555, %v6556
        %v6558 = vsel %vm1978, %v5818, 0.0
        %v6559 = vrot.slane %v6558, 4
        %v6560 = vadd.f32 %v6558, %v6559
        %v6561 = vrot.slane %v6560, 2
        %v6562 = vadd.f32 %v6560, %v6561
        %v6563 = vrot.slane %v6562, 1
        %v6564 = vadd.f32 %v6562, %v6563
        %v6565 = vsel %vm1978, %v5819, 0.0
        %v6566 = vrot.slane %v6565, 4
        %v6567 = vadd.f32 %v6565, %v6566
        %v6568 = vrot.slane %v6567, 2
        %v6569 = vadd.f32 %v6567, %v6568
        %v6570 = vrot.slane %v6569, 1
        %v6571 = vadd.f32 %v6569, %v6570
        %v6572 = vsel %vm1978, %v5820, 0.0
        %v6573 = vrot.slane %v6572, 4
        %v6574 = vadd.f32 %v6572, %v6573
        %v6575 = vrot.slane %v6574, 2
        %v6576 = vadd.f32 %v6574, %v6575
        %v6577 = vrot.slane %v6576, 1
        %v6578 = vadd.f32 %v6576, %v6577
        %v6579 = vsel %vm1978, %v5821, 0.0
        %v6580 = vrot.slane %v6579, 4
        %v6581 = vadd.f32 %v6579, %v6580
        %v6582 = vrot.slane %v6581, 2
        %v6583 = vadd.f32 %v6581, %v6582
        %v6584 = vrot.slane %v6583, 1
        %v6585 = vadd.f32 %v6583, %v6584
        %v6586 = vsel %vm1978, %v5822, 0.0
        %v6587 = vrot.slane %v6586, 4
        %v6588 = vadd.f32 %v6586, %v6587
        %v6589 = vrot.slane %v6588, 2
        %v6590 = vadd.f32 %v6588, %v6589
        %v6591 = vrot.slane %v6590, 1
        %v6592 = vadd.f32 %v6590, %v6591
        %v6593 = vsel %vm1978, %v5823, 0.0
        %v6594 = vrot.slane %v6593, 4
        %v6595 = vadd.f32 %v6593, %v6594
        %v6596 = vrot.slane %v6595, 2
        %v6597 = vadd.f32 %v6595, %v6596
        %v6598 = vrot.slane %v6597, 1
        %v6599 = vadd.f32 %v6597, %v6598
        %v6600 = vsel %vm1978, %v5824, 0.0
        %v6601 = vrot.slane %v6600, 4
        %v6602 = vadd.f32 %v6600, %v6601
        %v6603 = vrot.slane %v6602, 2
        %v6604 = vadd.f32 %v6602, %v6603
        %v6605 = vrot.slane %v6604, 1
        %v6606 = vadd.f32 %v6604, %v6605
        %v6607 = vsel %vm1978, %v5825, 0.0
        %v6608 = vrot.slane %v6607, 4
        %v6609 = vadd.f32 %v6607, %v6608
        %v6610 = vrot.slane %v6609, 2
        %v6611 = vadd.f32 %v6609, %v6610
        %v6612 = vrot.slane %v6611, 1
        %v6613 = vadd.f32 %v6611, %v6612
        %v6614 = vsel %vm1978, %v5826, 0.0
        %v6615 = vrot.slane %v6614, 4
        %v6616 = vadd.f32 %v6614, %v6615
        %v6617 = vrot.slane %v6616, 2
        %v6618 = vadd.f32 %v6616, %v6617
        %v6619 = vrot.slane %v6618, 1
        %v6620 = vadd.f32 %v6618, %v6619
        %v6621 = vsel %vm1978, %v5827, 0.0
        %v6622 = vrot.slane %v6621, 4
        %v6623 = vadd.f32 %v6621, %v6622
        %v6624 = vrot.slane %v6623, 2
        %v6625 = vadd.f32 %v6623, %v6624
        %v6626 = vrot.slane %v6625, 1
        %v6627 = vadd.f32 %v6625, %v6626
        %v6628 = vsel %vm1978, %v5828, 0.0
        %v6629 = vrot.slane %v6628, 4
        %v6630 = vadd.f32 %v6628, %v6629
        %v6631 = vrot.slane %v6630, 2
        %v6632 = vadd.f32 %v6630, %v6631
        %v6633 = vrot.slane %v6632, 1
        %v6634 = vadd.f32 %v6632, %v6633
        %v6635 = vsel %vm1978, %v5829, 0.0
        %v6636 = vrot.slane %v6635, 4
        %v6637 = vadd.f32 %v6635, %v6636
        %v6638 = vrot.slane %v6637, 2
        %v6639 = vadd.f32 %v6637, %v6638
        %v6640 = vrot.slane %v6639, 1
        %v6641 = vadd.f32 %v6639, %v6640
        %v6642 = vsel %vm1978, %v5830, 0.0
        %v6643 = vrot.slane %v6642, 4
        %v6644 = vadd.f32 %v6642, %v6643
        %v6645 = vrot.slane %v6644, 2
        %v6646 = vadd.f32 %v6644, %v6645
        %v6647 = vrot.slane %v6646, 1
        %v6648 = vadd.f32 %v6646, %v6647
        %v6649 = vsel %vm1978, %v5831, 0.0
        %v6650 = vrot.slane %v6649, 4
        %v6651 = vadd.f32 %v6649, %v6650
        %v6652 = vrot.slane %v6651, 2
        %v6653 = vadd.f32 %v6651, %v6652
        %v6654 = vrot.slane %v6653, 1
        %v6655 = vadd.f32 %v6653, %v6654
        %v6656 = vsel %vm1978, %v5832, 0.0
        %v6657 = vrot.slane %v6656, 4
        %v6658 = vadd.f32 %v6656, %v6657
        %v6659 = vrot.slane %v6658, 2
        %v6660 = vadd.f32 %v6658, %v6659
        %v6661 = vrot.slane %v6660, 1
        %v6662 = vadd.f32 %v6660, %v6661
        %v6663 = vsel %vm1978, %v5833, 0.0
        %v6664 = vrot.slane %v6663, 4
        %v6665 = vadd.f32 %v6663, %v6664
        %v6666 = vrot.slane %v6665, 2
        %v6667 = vadd.f32 %v6665, %v6666
        %v6668 = vrot.slane %v6667, 1
        %v6669 = vadd.f32 %v6667, %v6668
        %v6670 = vsel %vm1978, %v5834, 0.0
        %v6671 = vrot.slane %v6670, 4
        %v6672 = vadd.f32 %v6670, %v6671
        %v6673 = vrot.slane %v6672, 2
        %v6674 = vadd.f32 %v6672, %v6673
        %v6675 = vrot.slane %v6674, 1
        %v6676 = vadd.f32 %v6674, %v6675
        %v6677 = vsel %vm1978, %v5835, 0.0
        %v6678 = vrot.slane %v6677, 4
        %v6679 = vadd.f32 %v6677, %v6678
        %v6680 = vrot.slane %v6679, 2
        %v6681 = vadd.f32 %v6679, %v6680
        %v6682 = vrot.slane %v6681, 1
        %v6683 = vadd.f32 %v6681, %v6682
        %v6684 = vsel %vm1978, %v5836, 0.0
        %v6685 = vrot.slane %v6684, 4
        %v6686 = vadd.f32 %v6684, %v6685
        %v6687 = vrot.slane %v6686, 2
        %v6688 = vadd.f32 %v6686, %v6687
        %v6689 = vrot.slane %v6688, 1
        %v6690 = vadd.f32 %v6688, %v6689
        %v6691 = vsel %vm1978, %v5837, 0.0
        %v6692 = vrot.slane %v6691, 4
        %v6693 = vadd.f32 %v6691, %v6692
        %v6694 = vrot.slane %v6693, 2
        %v6695 = vadd.f32 %v6693, %v6694
        %v6696 = vrot.slane %v6695, 1
        %v6697 = vadd.f32 %v6695, %v6696
        %v6698 = vsel %vm1978, %v5838, 0.0
        %v6699 = vrot.slane %v6698, 4
        %v6700 = vadd.f32 %v6698, %v6699
        %v6701 = vrot.slane %v6700, 2
        %v6702 = vadd.f32 %v6700, %v6701
        %v6703 = vrot.slane %v6702, 1
        %v6704 = vadd.f32 %v6702, %v6703
        %v6705 = vsel %vm1978, %v5839, 0.0
        %v6706 = vrot.slane %v6705, 4
        %v6707 = vadd.f32 %v6705, %v6706
        %v6708 = vrot.slane %v6707, 2
        %v6709 = vadd.f32 %v6707, %v6708
        %v6710 = vrot.slane %v6709, 1
        %v6711 = vadd.f32 %v6709, %v6710
        %v6712 = vsel %vm1978, %v5840, 0.0
        %v6713 = vrot.slane %v6712, 4
        %v6714 = vadd.f32 %v6712, %v6713
        %v6715 = vrot.slane %v6714, 2
        %v6716 = vadd.f32 %v6714, %v6715
        %v6717 = vrot.slane %v6716, 1
        %v6718 = vadd.f32 %v6716, %v6717
        %v6719 = vsel %vm1978, %v5841, 0.0
        %v6720 = vrot.slane %v6719, 4
        %v6721 = vadd.f32 %v6719, %v6720
        %v6722 = vrot.slane %v6721, 2
        %v6723 = vadd.f32 %v6721, %v6722
        %v6724 = vrot.slane %v6723, 1
        %v6725 = vadd.f32 %v6723, %v6724
        %v6726 = vsel %vm1978, %v5842, 0.0
        %v6727 = vrot.slane %v6726, 4
        %v6728 = vadd.f32 %v6726, %v6727
        %v6729 = vrot.slane %v6728, 2
        %v6730 = vadd.f32 %v6728, %v6729
        %v6731 = vrot.slane %v6730, 1
        %v6732 = vadd.f32 %v6730, %v6731
        %v6733 = vsel %vm1978, %v5843, 0.0
        %v6734 = vrot.slane %v6733, 4
        %v6735 = vadd.f32 %v6733, %v6734
        %v6736 = vrot.slane %v6735, 2
        %v6737 = vadd.f32 %v6735, %v6736
        %v6738 = vrot.slane %v6737, 1
        %v6739 = vadd.f32 %v6737, %v6738
        %v6740 = vsel %vm1978, %v5844, 0.0
        %v6741 = vrot.slane %v6740, 4
        %v6742 = vadd.f32 %v6740, %v6741
        %v6743 = vrot.slane %v6742, 2
        %v6744 = vadd.f32 %v6742, %v6743
        %v6745 = vrot.slane %v6744, 1
        %v6746 = vadd.f32 %v6744, %v6745
        %v6747 = vsel %vm1978, %v5845, 0.0
        %v6748 = vrot.slane %v6747, 4
        %v6749 = vadd.f32 %v6747, %v6748
        %v6750 = vrot.slane %v6749, 2
        %v6751 = vadd.f32 %v6749, %v6750
        %v6752 = vrot.slane %v6751, 1
        %v6753 = vadd.f32 %v6751, %v6752
        %v6754 = vsel %vm1978, %v5846, 0.0
        %v6755 = vrot.slane %v6754, 4
        %v6756 = vadd.f32 %v6754, %v6755
        %v6757 = vrot.slane %v6756, 2
        %v6758 = vadd.f32 %v6756, %v6757
        %v6759 = vrot.slane %v6758, 1
        %v6760 = vadd.f32 %v6758, %v6759
        %v6761 = vsel %vm1978, %v5847, 0.0
        %v6762 = vrot.slane %v6761, 4
        %v6763 = vadd.f32 %v6761, %v6762
        %v6764 = vrot.slane %v6763, 2
        %v6765 = vadd.f32 %v6763, %v6764
        %v6766 = vrot.slane %v6765, 1
        %v6767 = vadd.f32 %v6765, %v6766
        %v6768 = vsel %vm1978, %v5848, 0.0
        %v6769 = vrot.slane %v6768, 4
        %v6770 = vadd.f32 %v6768, %v6769
        %v6771 = vrot.slane %v6770, 2
        %v6772 = vadd.f32 %v6770, %v6771
        %v6773 = vrot.slane %v6772, 1
        %v6774 = vadd.f32 %v6772, %v6773
        %v6775 = vsel %vm1978, %v5849, 0.0
        %v6776 = vrot.slane %v6775, 4
        %v6777 = vadd.f32 %v6775, %v6776
        %v6778 = vrot.slane %v6777, 2
        %v6779 = vadd.f32 %v6777, %v6778
        %v6780 = vrot.slane %v6779, 1
        %v6781 = vadd.f32 %v6779, %v6780
        %v6782 = vsel %vm1978, %v5850, 0.0
        %v6783 = vrot.slane %v6782, 4
        %v6784 = vadd.f32 %v6782, %v6783
        %v6785 = vrot.slane %v6784, 2
        %v6786 = vadd.f32 %v6784, %v6785
        %v6787 = vrot.slane %v6786, 1
        %v6788 = vadd.f32 %v6786, %v6787
        %v6789 = vsel %vm1978, %v5851, 0.0
        %v6790 = vrot.slane %v6789, 4
        %v6791 = vadd.f32 %v6789, %v6790
        %v6792 = vrot.slane %v6791, 2
        %v6793 = vadd.f32 %v6791, %v6792
        %v6794 = vrot.slane %v6793, 1
        %v6795 = vadd.f32 %v6793, %v6794
        %v6796 = vsel %vm1978, %v5852, 0.0
        %v6797 = vrot.slane %v6796, 4
        %v6798 = vadd.f32 %v6796, %v6797
        %v6799 = vrot.slane %v6798, 2
        %v6800 = vadd.f32 %v6798, %v6799
        %v6801 = vrot.slane %v6800, 1
        %v6802 = vadd.f32 %v6800, %v6801
        %v6803 = vsel %vm1978, %v5853, 0.0
        %v6804 = vrot.slane %v6803, 4
        %v6805 = vadd.f32 %v6803, %v6804
        %v6806 = vrot.slane %v6805, 2
        %v6807 = vadd.f32 %v6805, %v6806
        %v6808 = vrot.slane %v6807, 1
        %v6809 = vadd.f32 %v6807, %v6808
        %v6810 = vsel %vm1978, %v5854, 0.0
        %v6811 = vrot.slane %v6810, 4
        %v6812 = vadd.f32 %v6810, %v6811
        %v6813 = vrot.slane %v6812, 2
        %v6814 = vadd.f32 %v6812, %v6813
        %v6815 = vrot.slane %v6814, 1
        %v6816 = vadd.f32 %v6814, %v6815
        %v6817 = vsel %vm1978, %v5855, 0.0
        %v6818 = vrot.slane %v6817, 4
        %v6819 = vadd.f32 %v6817, %v6818
        %v6820 = vrot.slane %v6819, 2
        %v6821 = vadd.f32 %v6819, %v6820
        %v6822 = vrot.slane %v6821, 1
        %v6823 = vadd.f32 %v6821, %v6822
        %v6824 = vsel %vm1978, %v5856, 0.0
        %v6825 = vrot.slane %v6824, 4
        %v6826 = vadd.f32 %v6824, %v6825
        %v6827 = vrot.slane %v6826, 2
        %v6828 = vadd.f32 %v6826, %v6827
        %v6829 = vrot.slane %v6828, 1
        %v6830 = vadd.f32 %v6828, %v6829
        %v6831 = vsel %vm1978, %v5857, 0.0
        %v6832 = vrot.slane %v6831, 4
        %v6833 = vadd.f32 %v6831, %v6832
        %v6834 = vrot.slane %v6833, 2
        %v6835 = vadd.f32 %v6833, %v6834
        %v6836 = vrot.slane %v6835, 1
        %v6837 = vadd.f32 %v6835, %v6836
        %v6838 = vsel %vm1978, %v5858, 0.0
        %v6839 = vrot.slane %v6838, 4
        %v6840 = vadd.f32 %v6838, %v6839
        %v6841 = vrot.slane %v6840, 2
        %v6842 = vadd.f32 %v6840, %v6841
        %v6843 = vrot.slane %v6842, 1
        %v6844 = vadd.f32 %v6842, %v6843
        %v6845 = vsel %vm1978, %v5859, 0.0
        %v6846 = vrot.slane %v6845, 4
        %v6847 = vadd.f32 %v6845, %v6846
        %v6848 = vrot.slane %v6847, 2
        %v6849 = vadd.f32 %v6847, %v6848
        %v6850 = vrot.slane %v6849, 1
        %v6851 = vadd.f32 %v6849, %v6850
        %v6852 = vsel %vm1978, %v5860, 0.0
        %v6853 = vrot.slane %v6852, 4
        %v6854 = vadd.f32 %v6852, %v6853
        %v6855 = vrot.slane %v6854, 2
        %v6856 = vadd.f32 %v6854, %v6855
        %v6857 = vrot.slane %v6856, 1
        %v6858 = vadd.f32 %v6856, %v6857
        %v6859 = vsel %vm1978, %v5861, 0.0
        %v6860 = vrot.slane %v6859, 4
        %v6861 = vadd.f32 %v6859, %v6860
        %v6862 = vrot.slane %v6861, 2
        %v6863 = vadd.f32 %v6861, %v6862
        %v6864 = vrot.slane %v6863, 1
        %v6865 = vadd.f32 %v6863, %v6864
        %v6866 = vsel %vm1978, %v5862, 0.0
        %v6867 = vrot.slane %v6866, 4
        %v6868 = vadd.f32 %v6866, %v6867
        %v6869 = vrot.slane %v6868, 2
        %v6870 = vadd.f32 %v6868, %v6869
        %v6871 = vrot.slane %v6870, 1
        %v6872 = vadd.f32 %v6870, %v6871
        %v6873 = vsel %vm1978, %v5863, 0.0
        %v6874 = vrot.slane %v6873, 4
        %v6875 = vadd.f32 %v6873, %v6874
        %v6876 = vrot.slane %v6875, 2
        %v6877 = vadd.f32 %v6875, %v6876
        %v6878 = vrot.slane %v6877, 1
        %v6879 = vadd.f32 %v6877, %v6878
        %v6880 = vsel %vm1978, %v5864, 0.0
        %v6881 = vrot.slane %v6880, 4
        %v6882 = vadd.f32 %v6880, %v6881
        %v6883 = vrot.slane %v6882, 2
        %v6884 = vadd.f32 %v6882, %v6883
        %v6885 = vrot.slane %v6884, 1
        %v6886 = vadd.f32 %v6884, %v6885
        %v6887 = vsel %vm1978, %v5865, 0.0
        %v6888 = vrot.slane %v6887, 4
        %v6889 = vadd.f32 %v6887, %v6888
        %v6890 = vrot.slane %v6889, 2
        %v6891 = vadd.f32 %v6889, %v6890
        %v6892 = vrot.slane %v6891, 1
        %v6893 = vadd.f32 %v6891, %v6892
        %v6894 = vsel %vm1978, %v5866, 0.0
        %v6895 = vrot.slane %v6894, 4
        %v6896 = vadd.f32 %v6894, %v6895
        %v6897 = vrot.slane %v6896, 2
        %v6898 = vadd.f32 %v6896, %v6897
        %v6899 = vrot.slane %v6898, 1
        %v6900 = vadd.f32 %v6898, %v6899
        %v6901 = vsel %vm1978, %v5867, 0.0
        %v6902 = vrot.slane %v6901, 4
        %v6903 = vadd.f32 %v6901, %v6902
        %v6904 = vrot.slane %v6903, 2
        %v6905 = vadd.f32 %v6903, %v6904
        %v6906 = vrot.slane %v6905, 1
        %v6907 = vadd.f32 %v6905, %v6906
        %v6908 = vsel %vm1978, %v5868, 0.0
        %v6909 = vrot.slane %v6908, 4
        %v6910 = vadd.f32 %v6908, %v6909
        %v6911 = vrot.slane %v6910, 2
        %v6912 = vadd.f32 %v6910, %v6911
        %v6913 = vrot.slane %v6912, 1
        %v6914 = vadd.f32 %v6912, %v6913
        %v6915 = vsel %vm1978, %v5869, 0.0
        %v6916 = vrot.slane %v6915, 4
        %v6917 = vadd.f32 %v6915, %v6916
        %v6918 = vrot.slane %v6917, 2
        %v6919 = vadd.f32 %v6917, %v6918
        %v6920 = vrot.slane %v6919, 1
        %v6921 = vadd.f32 %v6919, %v6920
        %v6922 = vsel %vm1978, %v5870, 0.0
        %v6923 = vrot.slane %v6922, 4
        %v6924 = vadd.f32 %v6922, %v6923
        %v6925 = vrot.slane %v6924, 2
        %v6926 = vadd.f32 %v6924, %v6925
        %v6927 = vrot.slane %v6926, 1
        %v6928 = vadd.f32 %v6926, %v6927
        %v6929 = vsel %vm1978, %v5871, 0.0
        %v6930 = vrot.slane %v6929, 4
        %v6931 = vadd.f32 %v6929, %v6930
        %v6932 = vrot.slane %v6931, 2
        %v6933 = vadd.f32 %v6931, %v6932
        %v6934 = vrot.slane %v6933, 1
        %v6935 = vadd.f32 %v6933, %v6934
        %v6936 = vsel %vm1978, %v5872, 0.0
        %v6937 = vrot.slane %v6936, 4
        %v6938 = vadd.f32 %v6936, %v6937
        %v6939 = vrot.slane %v6938, 2
        %v6940 = vadd.f32 %v6938, %v6939
        %v6941 = vrot.slane %v6940, 1
        %v6942 = vadd.f32 %v6940, %v6941
        %v6943 = vsel %vm1978, %v5873, 0.0
        %v6944 = vrot.slane %v6943, 4
        %v6945 = vadd.f32 %v6943, %v6944
        %v6946 = vrot.slane %v6945, 2
        %v6947 = vadd.f32 %v6945, %v6946
        %v6948 = vrot.slane %v6947, 1
        %v6949 = vadd.f32 %v6947, %v6948
        %v6950 = vsel %vm1978, %v5874, 0.0
        %v6951 = vrot.slane %v6950, 4
        %v6952 = vadd.f32 %v6950, %v6951
        %v6953 = vrot.slane %v6952, 2
        %v6954 = vadd.f32 %v6952, %v6953
        %v6955 = vrot.slane %v6954, 1
        %v6956 = vadd.f32 %v6954, %v6955
        %v6957 = vsel %vm1978, %v5875, 0.0
        %v6958 = vrot.slane %v6957, 4
        %v6959 = vadd.f32 %v6957, %v6958
        %v6960 = vrot.slane %v6959, 2
        %v6961 = vadd.f32 %v6959, %v6960
        %v6962 = vrot.slane %v6961, 1
        %v6963 = vadd.f32 %v6961, %v6962
        %v6964 = vsel %vm1978, %v5876, 0.0
        %v6965 = vrot.slane %v6964, 4
        %v6966 = vadd.f32 %v6964, %v6965
        %v6967 = vrot.slane %v6966, 2
        %v6968 = vadd.f32 %v6966, %v6967
        %v6969 = vrot.slane %v6968, 1
        %v6970 = vadd.f32 %v6968, %v6969
        %v6971 = vsel %vm1978, %v5877, 0.0
        %v6972 = vrot.slane %v6971, 4
        %v6973 = vadd.f32 %v6971, %v6972
        %v6974 = vrot.slane %v6973, 2
        %v6975 = vadd.f32 %v6973, %v6974
        %v6976 = vrot.slane %v6975, 1
        %v6977 = vadd.f32 %v6975, %v6976
        %v6978 = vsel %vm1978, %v5878, 0.0
        %v6979 = vrot.slane %v6978, 4
        %v6980 = vadd.f32 %v6978, %v6979
        %v6981 = vrot.slane %v6980, 2
        %v6982 = vadd.f32 %v6980, %v6981
        %v6983 = vrot.slane %v6982, 1
        %v6984 = vadd.f32 %v6982, %v6983
        %v6985 = vsel %vm1978, %v5879, 0.0
        %v6986 = vrot.slane %v6985, 4
        %v6987 = vadd.f32 %v6985, %v6986
        %v6988 = vrot.slane %v6987, 2
        %v6989 = vadd.f32 %v6987, %v6988
        %v6990 = vrot.slane %v6989, 1
        %v6991 = vadd.f32 %v6989, %v6990
        %v6992 = vsel %vm1978, %v5880, 0.0
        %v6993 = vrot.slane %v6992, 4
        %v6994 = vadd.f32 %v6992, %v6993
        %v6995 = vrot.slane %v6994, 2
        %v6996 = vadd.f32 %v6994, %v6995
        %v6997 = vrot.slane %v6996, 1
        %v6998 = vadd.f32 %v6996, %v6997
        %v6999 = vsel %vm1978, %v5881, 0.0
        %v7000 = vrot.slane %v6999, 4
        %v7001 = vadd.f32 %v6999, %v7000
        %v7002 = vrot.slane %v7001, 2
        %v7003 = vadd.f32 %v7001, %v7002
        %v7004 = vrot.slane %v7003, 1
        %v7005 = vadd.f32 %v7003, %v7004
        %v7006 = vsel %vm1978, %v5882, 0.0
        %v7007 = vrot.slane %v7006, 4
        %v7008 = vadd.f32 %v7006, %v7007
        %v7009 = vrot.slane %v7008, 2
        %v7010 = vadd.f32 %v7008, %v7009
        %v7011 = vrot.slane %v7010, 1
        %v7012 = vadd.f32 %v7010, %v7011
        %v7013 = vsel %vm1978, %v5883, 0.0
        %v7014 = vrot.slane %v7013, 4
        %v7015 = vadd.f32 %v7013, %v7014
        %v7016 = vrot.slane %v7015, 2
        %v7017 = vadd.f32 %v7015, %v7016
        %v7018 = vrot.slane %v7017, 1
        %v7019 = vadd.f32 %v7017, %v7018
        %v7020 = vsel %vm1978, %v5884, 0.0
        %v7021 = vrot.slane %v7020, 4
        %v7022 = vadd.f32 %v7020, %v7021
        %v7023 = vrot.slane %v7022, 2
        %v7024 = vadd.f32 %v7022, %v7023
        %v7025 = vrot.slane %v7024, 1
        %v7026 = vadd.f32 %v7024, %v7025
        %v7027 = vsel %vm1978, %v5885, 0.0
        %v7028 = vrot.slane %v7027, 4
        %v7029 = vadd.f32 %v7027, %v7028
        %v7030 = vrot.slane %v7029, 2
        %v7031 = vadd.f32 %v7029, %v7030
        %v7032 = vrot.slane %v7031, 1
        %v7033 = vadd.f32 %v7031, %v7032
        %v7034 = vsel %vm1978, %v5886, 0.0
        %v7035 = vrot.slane %v7034, 4
        %v7036 = vadd.f32 %v7034, %v7035
        %v7037 = vrot.slane %v7036, 2
        %v7038 = vadd.f32 %v7036, %v7037
        %v7039 = vrot.slane %v7038, 1
        %v7040 = vadd.f32 %v7038, %v7039
        %v7041 = vsel %vm1978, %v5887, 0.0
        %v7042 = vrot.slane %v7041, 4
        %v7043 = vadd.f32 %v7041, %v7042
        %v7044 = vrot.slane %v7043, 2
        %v7045 = vadd.f32 %v7043, %v7044
        %v7046 = vrot.slane %v7045, 1
        %v7047 = vadd.f32 %v7045, %v7046
        %v7048 = vsel %vm1978, %v5888, 0.0
        %v7049 = vrot.slane %v7048, 4
        %v7050 = vadd.f32 %v7048, %v7049
        %v7051 = vrot.slane %v7050, 2
        %v7052 = vadd.f32 %v7050, %v7051
        %v7053 = vrot.slane %v7052, 1
        %v7054 = vadd.f32 %v7052, %v7053
        %v7055 = vsel %vm1978, %v5889, 0.0
        %v7056 = vrot.slane %v7055, 4
        %v7057 = vadd.f32 %v7055, %v7056
        %v7058 = vrot.slane %v7057, 2
        %v7059 = vadd.f32 %v7057, %v7058
        %v7060 = vrot.slane %v7059, 1
        %v7061 = vadd.f32 %v7059, %v7060
        %v7062 = vsel %vm1978, %v5890, 0.0
        %v7063 = vrot.slane %v7062, 4
        %v7064 = vadd.f32 %v7062, %v7063
        %v7065 = vrot.slane %v7064, 2
        %v7066 = vadd.f32 %v7064, %v7065
        %v7067 = vrot.slane %v7066, 1
        %v7068 = vadd.f32 %v7066, %v7067
        %v7069 = vsel %vm1978, %v5891, 0.0
        %v7070 = vrot.slane %v7069, 4
        %v7071 = vadd.f32 %v7069, %v7070
        %v7072 = vrot.slane %v7071, 2
        %v7073 = vadd.f32 %v7071, %v7072
        %v7074 = vrot.slane %v7073, 1
        %v7075 = vadd.f32 %v7073, %v7074
        %v7076 = vsel %vm1978, %v5892, 0.0
        %v7077 = vrot.slane %v7076, 4
        %v7078 = vadd.f32 %v7076, %v7077
        %v7079 = vrot.slane %v7078, 2
        %v7080 = vadd.f32 %v7078, %v7079
        %v7081 = vrot.slane %v7080, 1
        %v7082 = vadd.f32 %v7080, %v7081
        %v7083 = vsel %vm1978, %v5893, 0.0
        %v7084 = vrot.slane %v7083, 4
        %v7085 = vadd.f32 %v7083, %v7084
        %v7086 = vrot.slane %v7085, 2
        %v7087 = vadd.f32 %v7085, %v7086
        %v7088 = vrot.slane %v7087, 1
        %v7089 = vadd.f32 %v7087, %v7088
        %v7090 = vsel %vm1978, %v5894, 0.0
        %v7091 = vrot.slane %v7090, 4
        %v7092 = vadd.f32 %v7090, %v7091
        %v7093 = vrot.slane %v7092, 2
        %v7094 = vadd.f32 %v7092, %v7093
        %v7095 = vrot.slane %v7094, 1
        %v7096 = vadd.f32 %v7094, %v7095
        %v7097 = vsel %vm1978, %v5895, 0.0
        %v7098 = vrot.slane %v7097, 4
        %v7099 = vadd.f32 %v7097, %v7098
        %v7100 = vrot.slane %v7099, 2
        %v7101 = vadd.f32 %v7099, %v7100
        %v7102 = vrot.slane %v7101, 1
        %v7103 = vadd.f32 %v7101, %v7102
        %v7104 = vsel %vm1978, %v5896, 0.0
        %v7105 = vrot.slane %v7104, 4
        %v7106 = vadd.f32 %v7104, %v7105
        %v7107 = vrot.slane %v7106, 2
        %v7108 = vadd.f32 %v7106, %v7107
        %v7109 = vrot.slane %v7108, 1
        %v7110 = vadd.f32 %v7108, %v7109
        %v7111 = vsel %vm1978, %v5897, 0.0
        %v7112 = vrot.slane %v7111, 4
        %v7113 = vadd.f32 %v7111, %v7112
        %v7114 = vrot.slane %v7113, 2
        %v7115 = vadd.f32 %v7113, %v7114
        %v7116 = vrot.slane %v7115, 1
        %v7117 = vadd.f32 %v7115, %v7116
        %v7118 = vsel %vm1978, %v5898, 0.0
        %v7119 = vrot.slane %v7118, 4
        %v7120 = vadd.f32 %v7118, %v7119
        %v7121 = vrot.slane %v7120, 2
        %v7122 = vadd.f32 %v7120, %v7121
        %v7123 = vrot.slane %v7122, 1
        %v7124 = vadd.f32 %v7122, %v7123
        %v7125 = vsel %vm1978, %v5899, 0.0
        %v7126 = vrot.slane %v7125, 4
        %v7127 = vadd.f32 %v7125, %v7126
        %v7128 = vrot.slane %v7127, 2
        %v7129 = vadd.f32 %v7127, %v7128
        %v7130 = vrot.slane %v7129, 1
        %v7131 = vadd.f32 %v7129, %v7130
        %v7132 = vsel %vm1978, %v5900, 0.0
        %v7133 = vrot.slane %v7132, 4
        %v7134 = vadd.f32 %v7132, %v7133
        %v7135 = vrot.slane %v7134, 2
        %v7136 = vadd.f32 %v7134, %v7135
        %v7137 = vrot.slane %v7136, 1
        %v7138 = vadd.f32 %v7136, %v7137
        %v7139 = vsel %vm1978, %v5901, 0.0
        %v7140 = vrot.slane %v7139, 4
        %v7141 = vadd.f32 %v7139, %v7140
        %v7142 = vrot.slane %v7141, 2
        %v7143 = vadd.f32 %v7141, %v7142
        %v7144 = vrot.slane %v7143, 1
        %v7145 = vadd.f32 %v7143, %v7144
        %v7146 = vsel %vm1978, %v5902, 0.0
        %v7147 = vrot.slane %v7146, 4
        %v7148 = vadd.f32 %v7146, %v7147
        %v7149 = vrot.slane %v7148, 2
        %v7150 = vadd.f32 %v7148, %v7149
        %v7151 = vrot.slane %v7150, 1
        %v7152 = vadd.f32 %v7150, %v7151
        %v7153 = vsel %vm1978, %v5903, 0.0
        %v7154 = vrot.slane %v7153, 4
        %v7155 = vadd.f32 %v7153, %v7154
        %v7156 = vrot.slane %v7155, 2
        %v7157 = vadd.f32 %v7155, %v7156
        %v7158 = vrot.slane %v7157, 1
        %v7159 = vadd.f32 %v7157, %v7158
        %v7160 = vsel %vm1978, %v5904, 0.0
        %v7161 = vrot.slane %v7160, 4
        %v7162 = vadd.f32 %v7160, %v7161
        %v7163 = vrot.slane %v7162, 2
        %v7164 = vadd.f32 %v7162, %v7163
        %v7165 = vrot.slane %v7164, 1
        %v7166 = vadd.f32 %v7164, %v7165
        %v7167 = vsel %vm1978, %v5905, 0.0
        %v7168 = vrot.slane %v7167, 4
        %v7169 = vadd.f32 %v7167, %v7168
        %v7170 = vrot.slane %v7169, 2
        %v7171 = vadd.f32 %v7169, %v7170
        %v7172 = vrot.slane %v7171, 1
        %v7173 = vadd.f32 %v7171, %v7172
        %v7174 = vsel %vm1978, %v5906, 0.0
        %v7175 = vrot.slane %v7174, 4
        %v7176 = vadd.f32 %v7174, %v7175
        %v7177 = vrot.slane %v7176, 2
        %v7178 = vadd.f32 %v7176, %v7177
        %v7179 = vrot.slane %v7178, 1
        %v7180 = vadd.f32 %v7178, %v7179
        %v7181 = vsel %vm1978, %v5907, 0.0
        %v7182 = vrot.slane %v7181, 4
        %v7183 = vadd.f32 %v7181, %v7182
        %v7184 = vrot.slane %v7183, 2
        %v7185 = vadd.f32 %v7183, %v7184
        %v7186 = vrot.slane %v7185, 1
        %v7187 = vadd.f32 %v7185, %v7186
        %v7188 = vsel %vm1978, %v5908, 0.0
        %v7189 = vrot.slane %v7188, 4
        %v7190 = vadd.f32 %v7188, %v7189
        %v7191 = vrot.slane %v7190, 2
        %v7192 = vadd.f32 %v7190, %v7191
        %v7193 = vrot.slane %v7192, 1
        %v7194 = vadd.f32 %v7192, %v7193
        %v7195 = vsel %vm1978, %v5909, 0.0
        %v7196 = vrot.slane %v7195, 4
        %v7197 = vadd.f32 %v7195, %v7196
        %v7198 = vrot.slane %v7197, 2
        %v7199 = vadd.f32 %v7197, %v7198
        %v7200 = vrot.slane %v7199, 1
        %v7201 = vadd.f32 %v7199, %v7200
        %v7202 = vsel %vm1978, %v5910, 0.0
        %v7203 = vrot.slane %v7202, 4
        %v7204 = vadd.f32 %v7202, %v7203
        %v7205 = vrot.slane %v7204, 2
        %v7206 = vadd.f32 %v7204, %v7205
        %v7207 = vrot.slane %v7206, 1
        %v7208 = vadd.f32 %v7206, %v7207
        %v7209 = vsel %vm1978, %v5911, 0.0
        %v7210 = vrot.slane %v7209, 4
        %v7211 = vadd.f32 %v7209, %v7210
        %v7212 = vrot.slane %v7211, 2
        %v7213 = vadd.f32 %v7211, %v7212
        %v7214 = vrot.slane %v7213, 1
        %v7215 = vadd.f32 %v7213, %v7214
        %v7216 = vsel %vm1978, %v5912, 0.0
        %v7217 = vrot.slane %v7216, 4
        %v7218 = vadd.f32 %v7216, %v7217
        %v7219 = vrot.slane %v7218, 2
        %v7220 = vadd.f32 %v7218, %v7219
        %v7221 = vrot.slane %v7220, 1
        %v7222 = vadd.f32 %v7220, %v7221
        %v7223 = vsel %vm1978, %v5913, 0.0
        %v7224 = vrot.slane %v7223, 4
        %v7225 = vadd.f32 %v7223, %v7224
        %v7226 = vrot.slane %v7225, 2
        %v7227 = vadd.f32 %v7225, %v7226
        %v7228 = vrot.slane %v7227, 1
        %v7229 = vadd.f32 %v7227, %v7228
        %v7230 = vsel %vm1978, %v5914, 0.0
        %v7231 = vrot.slane %v7230, 4
        %v7232 = vadd.f32 %v7230, %v7231
        %v7233 = vrot.slane %v7232, 2
        %v7234 = vadd.f32 %v7232, %v7233
        %v7235 = vrot.slane %v7234, 1
        %v7236 = vadd.f32 %v7234, %v7235
        %v7237 = vsel %vm1978, %v5915, 0.0
        %v7238 = vrot.slane %v7237, 4
        %v7239 = vadd.f32 %v7237, %v7238
        %v7240 = vrot.slane %v7239, 2
        %v7241 = vadd.f32 %v7239, %v7240
        %v7242 = vrot.slane %v7241, 1
        %v7243 = vadd.f32 %v7241, %v7242
        %v7244 = vsel %vm1978, %v5916, 0.0
        %v7245 = vrot.slane %v7244, 4
        %v7246 = vadd.f32 %v7244, %v7245
        %v7247 = vrot.slane %v7246, 2
        %v7248 = vadd.f32 %v7246, %v7247
        %v7249 = vrot.slane %v7248, 1
        %v7250 = vadd.f32 %v7248, %v7249
        %v7251 = vsel %vm1978, %v5917, 0.0
        %v7252 = vrot.slane %v7251, 4
        %v7253 = vadd.f32 %v7251, %v7252
        %v7254 = vrot.slane %v7253, 2
        %v7255 = vadd.f32 %v7253, %v7254
        %v7256 = vrot.slane %v7255, 1
        %v7257 = vadd.f32 %v7255, %v7256
        %v7258 = vsel %vm1978, %v5918, 0.0
        %v7259 = vrot.slane %v7258, 4
        %v7260 = vadd.f32 %v7258, %v7259
        %v7261 = vrot.slane %v7260, 2
        %v7262 = vadd.f32 %v7260, %v7261
        %v7263 = vrot.slane %v7262, 1
        %v7264 = vadd.f32 %v7262, %v7263
        %v7265 = vsel %vm1978, %v5919, 0.0
        %v7266 = vrot.slane %v7265, 4
        %v7267 = vadd.f32 %v7265, %v7266
        %v7268 = vrot.slane %v7267, 2
        %v7269 = vadd.f32 %v7267, %v7268
        %v7270 = vrot.slane %v7269, 1
        %v7271 = vadd.f32 %v7269, %v7270
        %v7272 = vsel %vm1978, %v5920, 0.0
        %v7273 = vrot.slane %v7272, 4
        %v7274 = vadd.f32 %v7272, %v7273
        %v7275 = vrot.slane %v7274, 2
        %v7276 = vadd.f32 %v7274, %v7275
        %v7277 = vrot.slane %v7276, 1
        %v7278 = vadd.f32 %v7276, %v7277
        %v7279 = vsel %vm1978, %v5921, 0.0
        %v7280 = vrot.slane %v7279, 4
        %v7281 = vadd.f32 %v7279, %v7280
        %v7282 = vrot.slane %v7281, 2
        %v7283 = vadd.f32 %v7281, %v7282
        %v7284 = vrot.slane %v7283, 1
        %v7285 = vadd.f32 %v7283, %v7284
        %v7286 = vsel %vm1978, %v5922, 0.0
        %v7287 = vrot.slane %v7286, 4
        %v7288 = vadd.f32 %v7286, %v7287
        %v7289 = vrot.slane %v7288, 2
        %v7290 = vadd.f32 %v7288, %v7289
        %v7291 = vrot.slane %v7290, 1
        %v7292 = vadd.f32 %v7290, %v7291
        %v7293 = vsel %vm1978, %v5923, 0.0
        %v7294 = vrot.slane %v7293, 4
        %v7295 = vadd.f32 %v7293, %v7294
        %v7296 = vrot.slane %v7295, 2
        %v7297 = vadd.f32 %v7295, %v7296
        %v7298 = vrot.slane %v7297, 1
        %v7299 = vadd.f32 %v7297, %v7298
        %v7300 = vsel %vm1978, %v5924, 0.0
        %v7301 = vrot.slane %v7300, 4
        %v7302 = vadd.f32 %v7300, %v7301
        %v7303 = vrot.slane %v7302, 2
        %v7304 = vadd.f32 %v7302, %v7303
        %v7305 = vrot.slane %v7304, 1
        %v7306 = vadd.f32 %v7304, %v7305
        %v7307 = vsel %vm1978, %v5925, 0.0
        %v7308 = vrot.slane %v7307, 4
        %v7309 = vadd.f32 %v7307, %v7308
        %v7310 = vrot.slane %v7309, 2
        %v7311 = vadd.f32 %v7309, %v7310
        %v7312 = vrot.slane %v7311, 1
        %v7313 = vadd.f32 %v7311, %v7312
        %v7314 = vsel %vm1978, %v5926, 0.0
        %v7315 = vrot.slane %v7314, 4
        %v7316 = vadd.f32 %v7314, %v7315
        %v7317 = vrot.slane %v7316, 2
        %v7318 = vadd.f32 %v7316, %v7317
        %v7319 = vrot.slane %v7318, 1
        %v7320 = vadd.f32 %v7318, %v7319
        %v7321 = vsel %vm1978, %v5927, 0.0
        %v7322 = vrot.slane %v7321, 4
        %v7323 = vadd.f32 %v7321, %v7322
        %v7324 = vrot.slane %v7323, 2
        %v7325 = vadd.f32 %v7323, %v7324
        %v7326 = vrot.slane %v7325, 1
        %v7327 = vadd.f32 %v7325, %v7326
        %v7328 = vsel %vm1978, %v5928, 0.0
        %v7329 = vrot.slane %v7328, 4
        %v7330 = vadd.f32 %v7328, %v7329
        %v7331 = vrot.slane %v7330, 2
        %v7332 = vadd.f32 %v7330, %v7331
        %v7333 = vrot.slane %v7332, 1
        %v7334 = vadd.f32 %v7332, %v7333
        %v7335 = vsel %vm1978, %v5929, 0.0
        %v7336 = vrot.slane %v7335, 4
        %v7337 = vadd.f32 %v7335, %v7336
        %v7338 = vrot.slane %v7337, 2
        %v7339 = vadd.f32 %v7337, %v7338
        %v7340 = vrot.slane %v7339, 1
        %v7341 = vadd.f32 %v7339, %v7340
        %v7342 = vsel %vm1978, %v5930, 0.0
        %v7343 = vrot.slane %v7342, 4
        %v7344 = vadd.f32 %v7342, %v7343
        %v7345 = vrot.slane %v7344, 2
        %v7346 = vadd.f32 %v7344, %v7345
        %v7347 = vrot.slane %v7346, 1
        %v7348 = vadd.f32 %v7346, %v7347
        %v7349 = vsel %vm1978, %v5931, 0.0
        %v7350 = vrot.slane %v7349, 4
        %v7351 = vadd.f32 %v7349, %v7350
        %v7352 = vrot.slane %v7351, 2
        %v7353 = vadd.f32 %v7351, %v7352
        %v7354 = vrot.slane %v7353, 1
        %v7355 = vadd.f32 %v7353, %v7354
        %v7356 = vsel %vm1978, %v5932, 0.0
        %v7357 = vrot.slane %v7356, 4
        %v7358 = vadd.f32 %v7356, %v7357
        %v7359 = vrot.slane %v7358, 2
        %v7360 = vadd.f32 %v7358, %v7359
        %v7361 = vrot.slane %v7360, 1
        %v7362 = vadd.f32 %v7360, %v7361
        %v7363 = vsel %vm1978, %v5933, 0.0
        %v7364 = vrot.slane %v7363, 4
        %v7365 = vadd.f32 %v7363, %v7364
        %v7366 = vrot.slane %v7365, 2
        %v7367 = vadd.f32 %v7365, %v7366
        %v7368 = vrot.slane %v7367, 1
        %v7369 = vadd.f32 %v7367, %v7368
        %v7370 = vsel %vm1978, %v5934, 0.0
        %v7371 = vrot.slane %v7370, 4
        %v7372 = vadd.f32 %v7370, %v7371
        %v7373 = vrot.slane %v7372, 2
        %v7374 = vadd.f32 %v7372, %v7373
        %v7375 = vrot.slane %v7374, 1
        %v7376 = vadd.f32 %v7374, %v7375
        %v7377 = vsel %vm1978, %v5935, 0.0
        %v7378 = vrot.slane %v7377, 4
        %v7379 = vadd.f32 %v7377, %v7378
        %v7380 = vrot.slane %v7379, 2
        %v7381 = vadd.f32 %v7379, %v7380
        %v7382 = vrot.slane %v7381, 1
        %v7383 = vadd.f32 %v7381, %v7382
        %v7384 = vsel %vm1978, %v5936, 0.0
        %v7385 = vrot.slane %v7384, 4
        %v7386 = vadd.f32 %v7384, %v7385
        %v7387 = vrot.slane %v7386, 2
        %v7388 = vadd.f32 %v7386, %v7387
        %v7389 = vrot.slane %v7388, 1
        %v7390 = vadd.f32 %v7388, %v7389
        %v7391 = vsel %vm1978, %v5937, 0.0
        %v7392 = vrot.slane %v7391, 4
        %v7393 = vadd.f32 %v7391, %v7392
        %v7394 = vrot.slane %v7393, 2
        %v7395 = vadd.f32 %v7393, %v7394
        %v7396 = vrot.slane %v7395, 1
        %v7397 = vadd.f32 %v7395, %v7396
        %v7398 = vsel %vm1978, %v5938, 0.0
        %v7399 = vrot.slane %v7398, 4
        %v7400 = vadd.f32 %v7398, %v7399
        %v7401 = vrot.slane %v7400, 2
        %v7402 = vadd.f32 %v7400, %v7401
        %v7403 = vrot.slane %v7402, 1
        %v7404 = vadd.f32 %v7402, %v7403
        %v7405 = vsel %vm1978, %v5939, 0.0
        %v7406 = vrot.slane %v7405, 4
        %v7407 = vadd.f32 %v7405, %v7406
        %v7408 = vrot.slane %v7407, 2
        %v7409 = vadd.f32 %v7407, %v7408
        %v7410 = vrot.slane %v7409, 1
        %v7411 = vadd.f32 %v7409, %v7410
        %v7412 = vsel %vm1978, %v5940, 0.0
        %v7413 = vrot.slane %v7412, 4
        %v7414 = vadd.f32 %v7412, %v7413
        %v7415 = vrot.slane %v7414, 2
        %v7416 = vadd.f32 %v7414, %v7415
        %v7417 = vrot.slane %v7416, 1
        %v7418 = vadd.f32 %v7416, %v7417
        %v7419 = vsel %vm1978, %v5941, 0.0
        %v7420 = vrot.slane %v7419, 4
        %v7421 = vadd.f32 %v7419, %v7420
        %v7422 = vrot.slane %v7421, 2
        %v7423 = vadd.f32 %v7421, %v7422
        %v7424 = vrot.slane %v7423, 1
        %v7425 = vadd.f32 %v7423, %v7424
        %v7426 = vsel %vm1978, %v5942, 0.0
        %v7427 = vrot.slane %v7426, 4
        %v7428 = vadd.f32 %v7426, %v7427
        %v7429 = vrot.slane %v7428, 2
        %v7430 = vadd.f32 %v7428, %v7429
        %v7431 = vrot.slane %v7430, 1
        %v7432 = vadd.f32 %v7430, %v7431
        %v7433 = vsel %vm1978, %v5943, 0.0
        %v7434 = vrot.slane %v7433, 4
        %v7435 = vadd.f32 %v7433, %v7434
        %v7436 = vrot.slane %v7435, 2
        %v7437 = vadd.f32 %v7435, %v7436
        %v7438 = vrot.slane %v7437, 1
        %v7439 = vadd.f32 %v7437, %v7438
        %v7440 = vsel %vm1978, %v5944, 0.0
        %v7441 = vrot.slane %v7440, 4
        %v7442 = vadd.f32 %v7440, %v7441
        %v7443 = vrot.slane %v7442, 2
        %v7444 = vadd.f32 %v7442, %v7443
        %v7445 = vrot.slane %v7444, 1
        %v7446 = vadd.f32 %v7444, %v7445
        %v7447 = vsel %vm1978, %v5945, 0.0
        %v7448 = vrot.slane %v7447, 4
        %v7449 = vadd.f32 %v7447, %v7448
        %v7450 = vrot.slane %v7449, 2
        %v7451 = vadd.f32 %v7449, %v7450
        %v7452 = vrot.slane %v7451, 1
        %v7453 = vadd.f32 %v7451, %v7452
        %v7454 = vsel %vm1978, %v5946, 0.0
        %v7455 = vrot.slane %v7454, 4
        %v7456 = vadd.f32 %v7454, %v7455
        %v7457 = vrot.slane %v7456, 2
        %v7458 = vadd.f32 %v7456, %v7457
        %v7459 = vrot.slane %v7458, 1
        %v7460 = vadd.f32 %v7458, %v7459
        %v7461 = vsel %vm1978, %v5947, 0.0
        %v7462 = vrot.slane %v7461, 4
        %v7463 = vadd.f32 %v7461, %v7462
        %v7464 = vrot.slane %v7463, 2
        %v7465 = vadd.f32 %v7463, %v7464
        %v7466 = vrot.slane %v7465, 1
        %v7467 = vadd.f32 %v7465, %v7466
        %v7468 = vsel %vm1978, %v5948, 0.0
        %v7469 = vrot.slane %v7468, 4
        %v7470 = vadd.f32 %v7468, %v7469
        %v7471 = vrot.slane %v7470, 2
        %v7472 = vadd.f32 %v7470, %v7471
        %v7473 = vrot.slane %v7472, 1
        %v7474 = vadd.f32 %v7472, %v7473
        %v7475 = vsel %vm1978, %v5949, 0.0
        %v7476 = vrot.slane %v7475, 4
        %v7477 = vadd.f32 %v7475, %v7476
        %v7478 = vrot.slane %v7477, 2
        %v7479 = vadd.f32 %v7477, %v7478
        %v7480 = vrot.slane %v7479, 1
        %v7481 = vadd.f32 %v7479, %v7480
        %v7482 = vsel %vm1978, %v5950, 0.0
        %v7483 = vrot.slane %v7482, 4
        %v7484 = vadd.f32 %v7482, %v7483
        %v7485 = vrot.slane %v7484, 2
        %v7486 = vadd.f32 %v7484, %v7485
        %v7487 = vrot.slane %v7486, 1
        %v7488 = vadd.f32 %v7486, %v7487
        %v7489 = vsel %vm1978, %v5951, 0.0
        %v7490 = vrot.slane %v7489, 4
        %v7491 = vadd.f32 %v7489, %v7490
        %v7492 = vrot.slane %v7491, 2
        %v7493 = vadd.f32 %v7491, %v7492
        %v7494 = vrot.slane %v7493, 1
        %v7495 = vadd.f32 %v7493, %v7494
        %v7496 = vsel %vm1978, %v5952, 0.0
        %v7497 = vrot.slane %v7496, 4
        %v7498 = vadd.f32 %v7496, %v7497
        %v7499 = vrot.slane %v7498, 2
        %v7500 = vadd.f32 %v7498, %v7499
        %v7501 = vrot.slane %v7500, 1
        %v7502 = vadd.f32 %v7500, %v7501
        %v7503 = vsel %vm1978, %v5953, 0.0
        %v7504 = vrot.slane %v7503, 4
        %v7505 = vadd.f32 %v7503, %v7504
        %v7506 = vrot.slane %v7505, 2
        %v7507 = vadd.f32 %v7505, %v7506
        %v7508 = vrot.slane %v7507, 1
        %v7509 = vadd.f32 %v7507, %v7508
        %v7510 = vsel %vm1978, %v5954, 0.0
        %v7511 = vrot.slane %v7510, 4
        %v7512 = vadd.f32 %v7510, %v7511
        %v7513 = vrot.slane %v7512, 2
        %v7514 = vadd.f32 %v7512, %v7513
        %v7515 = vrot.slane %v7514, 1
        %v7516 = vadd.f32 %v7514, %v7515
        %v7517 = vsel %vm1978, %v5955, 0.0
        %v7518 = vrot.slane %v7517, 4
        %v7519 = vadd.f32 %v7517, %v7518
        %v7520 = vrot.slane %v7519, 2
        %v7521 = vadd.f32 %v7519, %v7520
        %v7522 = vrot.slane %v7521, 1
        %v7523 = vadd.f32 %v7521, %v7522
        %v7524 = vsel %vm1978, %v5956, 0.0
        %v7525 = vrot.slane %v7524, 4
        %v7526 = vadd.f32 %v7524, %v7525
        %v7527 = vrot.slane %v7526, 2
        %v7528 = vadd.f32 %v7526, %v7527
        %v7529 = vrot.slane %v7528, 1
        %v7530 = vadd.f32 %v7528, %v7529
        %v7531 = vsel %vm1978, %v5957, 0.0
        %v7532 = vrot.slane %v7531, 4
        %v7533 = vadd.f32 %v7531, %v7532
        %v7534 = vrot.slane %v7533, 2
        %v7535 = vadd.f32 %v7533, %v7534
        %v7536 = vrot.slane %v7535, 1
        %v7537 = vadd.f32 %v7535, %v7536
        %v7538 = vsel %vm1978, %v5958, 0.0
        %v7539 = vrot.slane %v7538, 4
        %v7540 = vadd.f32 %v7538, %v7539
        %v7541 = vrot.slane %v7540, 2
        %v7542 = vadd.f32 %v7540, %v7541
        %v7543 = vrot.slane %v7542, 1
        %v7544 = vadd.f32 %v7542, %v7543
        %v7545 = vsel %vm1978, %v5959, 0.0
        %v7546 = vrot.slane %v7545, 4
        %v7547 = vadd.f32 %v7545, %v7546
        %v7548 = vrot.slane %v7547, 2
        %v7549 = vadd.f32 %v7547, %v7548
        %v7550 = vrot.slane %v7549, 1
        %v7551 = vadd.f32 %v7549, %v7550
        %v7552 = vsel %vm1978, %v5960, 0.0
        %v7553 = vrot.slane %v7552, 4
        %v7554 = vadd.f32 %v7552, %v7553
        %v7555 = vrot.slane %v7554, 2
        %v7556 = vadd.f32 %v7554, %v7555
        %v7557 = vrot.slane %v7556, 1
        %v7558 = vadd.f32 %v7556, %v7557
        %v7559 = vsel %vm1978, %v5961, 0.0
        %v7560 = vrot.slane %v7559, 4
        %v7561 = vadd.f32 %v7559, %v7560
        %v7562 = vrot.slane %v7561, 2
        %v7563 = vadd.f32 %v7561, %v7562
        %v7564 = vrot.slane %v7563, 1
        %v7565 = vadd.f32 %v7563, %v7564
        %v7566 = vsel %vm1978, %v5962, 0.0
        %v7567 = vrot.slane %v7566, 4
        %v7568 = vadd.f32 %v7566, %v7567
        %v7569 = vrot.slane %v7568, 2
        %v7570 = vadd.f32 %v7568, %v7569
        %v7571 = vrot.slane %v7570, 1
        %v7572 = vadd.f32 %v7570, %v7571
        %v7573 = vsel %vm1978, %v5963, 0.0
        %v7574 = vrot.slane %v7573, 4
        %v7575 = vadd.f32 %v7573, %v7574
        %v7576 = vrot.slane %v7575, 2
        %v7577 = vadd.f32 %v7575, %v7576
        %v7578 = vrot.slane %v7577, 1
        %v7579 = vadd.f32 %v7577, %v7578
        %v7580 = vsel %vm1978, %v5964, 0.0
        %v7581 = vrot.slane %v7580, 4
        %v7582 = vadd.f32 %v7580, %v7581
        %v7583 = vrot.slane %v7582, 2
        %v7584 = vadd.f32 %v7582, %v7583
        %v7585 = vrot.slane %v7584, 1
        %v7586 = vadd.f32 %v7584, %v7585
        %v7587 = vsel %vm1978, %v5965, 0.0
        %v7588 = vrot.slane %v7587, 4
        %v7589 = vadd.f32 %v7587, %v7588
        %v7590 = vrot.slane %v7589, 2
        %v7591 = vadd.f32 %v7589, %v7590
        %v7592 = vrot.slane %v7591, 1
        %v7593 = vadd.f32 %v7591, %v7592
        %v7594 = vsel %vm1978, %v5966, 0.0
        %v7595 = vrot.slane %v7594, 4
        %v7596 = vadd.f32 %v7594, %v7595
        %v7597 = vrot.slane %v7596, 2
        %v7598 = vadd.f32 %v7596, %v7597
        %v7599 = vrot.slane %v7598, 1
        %v7600 = vadd.f32 %v7598, %v7599
        %v7601 = vsel %vm1978, %v5967, 0.0
        %v7602 = vrot.slane %v7601, 4
        %v7603 = vadd.f32 %v7601, %v7602
        %v7604 = vrot.slane %v7603, 2
        %v7605 = vadd.f32 %v7603, %v7604
        %v7606 = vrot.slane %v7605, 1
        %v7607 = vadd.f32 %v7605, %v7606
        %v7608 = vsel %vm1978, %v5968, 0.0
        %v7609 = vrot.slane %v7608, 4
        %v7610 = vadd.f32 %v7608, %v7609
        %v7611 = vrot.slane %v7610, 2
        %v7612 = vadd.f32 %v7610, %v7611
        %v7613 = vrot.slane %v7612, 1
        %v7614 = vadd.f32 %v7612, %v7613
        %v7615 = vsel %vm1978, %v5969, 0.0
        %v7616 = vrot.slane %v7615, 4
        %v7617 = vadd.f32 %v7615, %v7616
        %v7618 = vrot.slane %v7617, 2
        %v7619 = vadd.f32 %v7617, %v7618
        %v7620 = vrot.slane %v7619, 1
        %v7621 = vadd.f32 %v7619, %v7620
        %v7622 = vsel %vm1978, %v5970, 0.0
        %v7623 = vrot.slane %v7622, 4
        %v7624 = vadd.f32 %v7622, %v7623
        %v7625 = vrot.slane %v7624, 2
        %v7626 = vadd.f32 %v7624, %v7625
        %v7627 = vrot.slane %v7626, 1
        %v7628 = vadd.f32 %v7626, %v7627
        %v7629 = vsel %vm1978, %v5971, 0.0
        %v7630 = vrot.slane %v7629, 4
        %v7631 = vadd.f32 %v7629, %v7630
        %v7632 = vrot.slane %v7631, 2
        %v7633 = vadd.f32 %v7631, %v7632
        %v7634 = vrot.slane %v7633, 1
        %v7635 = vadd.f32 %v7633, %v7634
        %v7636 = vsel %vm1978, %v5972, 0.0
        %v7637 = vrot.slane %v7636, 4
        %v7638 = vadd.f32 %v7636, %v7637
        %v7639 = vrot.slane %v7638, 2
        %v7640 = vadd.f32 %v7638, %v7639
        %v7641 = vrot.slane %v7640, 1
        %v7642 = vadd.f32 %v7640, %v7641
        %v7643 = vsel %vm1978, %v5973, 0.0
        %v7644 = vrot.slane %v7643, 4
        %v7645 = vadd.f32 %v7643, %v7644
        %v7646 = vrot.slane %v7645, 2
        %v7647 = vadd.f32 %v7645, %v7646
        %v7648 = vrot.slane %v7647, 1
        %v7649 = vadd.f32 %v7647, %v7648
        %v7650 = vsel %vm1978, %v5974, 0.0
        %v7651 = vrot.slane %v7650, 4
        %v7652 = vadd.f32 %v7650, %v7651
        %v7653 = vrot.slane %v7652, 2
        %v7654 = vadd.f32 %v7652, %v7653
        %v7655 = vrot.slane %v7654, 1
        %v7656 = vadd.f32 %v7654, %v7655
        %v7657 = vsel %vm1978, %v5975, 0.0
        %v7658 = vrot.slane %v7657, 4
        %v7659 = vadd.f32 %v7657, %v7658
        %v7660 = vrot.slane %v7659, 2
        %v7661 = vadd.f32 %v7659, %v7660
        %v7662 = vrot.slane %v7661, 1
        %v7663 = vadd.f32 %v7661, %v7662
        %v7664 = vsel %vm1978, %v5976, 0.0
        %v7665 = vrot.slane %v7664, 4
        %v7666 = vadd.f32 %v7664, %v7665
        %v7667 = vrot.slane %v7666, 2
        %v7668 = vadd.f32 %v7666, %v7667
        %v7669 = vrot.slane %v7668, 1
        %v7670 = vadd.f32 %v7668, %v7669
        %v7671 = vsel %vm1978, %v5977, 0.0
        %v7672 = vrot.slane %v7671, 4
        %v7673 = vadd.f32 %v7671, %v7672
        %v7674 = vrot.slane %v7673, 2
        %v7675 = vadd.f32 %v7673, %v7674
        %v7676 = vrot.slane %v7675, 1
        %v7677 = vadd.f32 %v7675, %v7676
        %v7678 = vsel %vm1978, %v5978, 0.0
        %v7679 = vrot.slane %v7678, 4
        %v7680 = vadd.f32 %v7678, %v7679
        %v7681 = vrot.slane %v7680, 2
        %v7682 = vadd.f32 %v7680, %v7681
        %v7683 = vrot.slane %v7682, 1
        %v7684 = vadd.f32 %v7682, %v7683
        %v7685 = vsel %vm1978, %v5979, 0.0
        %v7686 = vrot.slane %v7685, 4
        %v7687 = vadd.f32 %v7685, %v7686
        %v7688 = vrot.slane %v7687, 2
        %v7689 = vadd.f32 %v7687, %v7688
        %v7690 = vrot.slane %v7689, 1
        %v7691 = vadd.f32 %v7689, %v7690
        %v7692 = vsel %vm1978, %v5980, 0.0
        %v7693 = vrot.slane %v7692, 4
        %v7694 = vadd.f32 %v7692, %v7693
        %v7695 = vrot.slane %v7694, 2
        %v7696 = vadd.f32 %v7694, %v7695
        %v7697 = vrot.slane %v7696, 1
        %v7698 = vadd.f32 %v7696, %v7697
        %v7699 = vsel %vm1978, %v5981, 0.0
        %v7700 = vrot.slane %v7699, 4
        %v7701 = vadd.f32 %v7699, %v7700
        %v7702 = vrot.slane %v7701, 2
        %v7703 = vadd.f32 %v7701, %v7702
        %v7704 = vrot.slane %v7703, 1
        %v7705 = vadd.f32 %v7703, %v7704
        %v7706 = vsel %vm1978, %v5982, 0.0
        %v7707 = vrot.slane %v7706, 4
        %v7708 = vadd.f32 %v7706, %v7707
        %v7709 = vrot.slane %v7708, 2
        %v7710 = vadd.f32 %v7708, %v7709
        %v7711 = vrot.slane %v7710, 1
        %v7712 = vadd.f32 %v7710, %v7711
        %v7713 = vsel %vm1978, %v5983, 0.0
        %v7714 = vrot.slane %v7713, 4
        %v7715 = vadd.f32 %v7713, %v7714
        %v7716 = vrot.slane %v7715, 2
        %v7717 = vadd.f32 %v7715, %v7716
        %v7718 = vrot.slane %v7717, 1
        %v7719 = vadd.f32 %v7717, %v7718
        %v7720 = vsel %vm1978, %v5984, 0.0
        %v7721 = vrot.slane %v7720, 4
        %v7722 = vadd.f32 %v7720, %v7721
        %v7723 = vrot.slane %v7722, 2
        %v7724 = vadd.f32 %v7722, %v7723
        %v7725 = vrot.slane %v7724, 1
        %v7726 = vadd.f32 %v7724, %v7725
        %v7727 = vsel %vm1978, %v5985, 0.0
        %v7728 = vrot.slane %v7727, 4
        %v7729 = vadd.f32 %v7727, %v7728
        %v7730 = vrot.slane %v7729, 2
        %v7731 = vadd.f32 %v7729, %v7730
        %v7732 = vrot.slane %v7731, 1
        %v7733 = vadd.f32 %v7731, %v7732
        %v7734 = vsel %vm1978, %v5986, 0.0
        %v7735 = vrot.slane %v7734, 4
        %v7736 = vadd.f32 %v7734, %v7735
        %v7737 = vrot.slane %v7736, 2
        %v7738 = vadd.f32 %v7736, %v7737
        %v7739 = vrot.slane %v7738, 1
        %v7740 = vadd.f32 %v7738, %v7739
        %v7741 = vsel %vm1978, %v5987, 0.0
        %v7742 = vrot.slane %v7741, 4
        %v7743 = vadd.f32 %v7741, %v7742
        %v7744 = vrot.slane %v7743, 2
        %v7745 = vadd.f32 %v7743, %v7744
        %v7746 = vrot.slane %v7745, 1
        %v7747 = vadd.f32 %v7745, %v7746
        %v7748 = vsel %vm1978, %v5988, 0.0
        %v7749 = vrot.slane %v7748, 4
        %v7750 = vadd.f32 %v7748, %v7749
        %v7751 = vrot.slane %v7750, 2
        %v7752 = vadd.f32 %v7750, %v7751
        %v7753 = vrot.slane %v7752, 1
        %v7754 = vadd.f32 %v7752, %v7753
        %v7755 = vsel %vm1978, %v5989, 0.0
        %v7756 = vrot.slane %v7755, 4
        %v7757 = vadd.f32 %v7755, %v7756
        %v7758 = vrot.slane %v7757, 2
        %v7759 = vadd.f32 %v7757, %v7758
        %v7760 = vrot.slane %v7759, 1
        %v7761 = vadd.f32 %v7759, %v7760
        %v7762 = vsel %vm1978, %v5990, 0.0
        %v7763 = vrot.slane %v7762, 4
        %v7764 = vadd.f32 %v7762, %v7763
        %v7765 = vrot.slane %v7764, 2
        %v7766 = vadd.f32 %v7764, %v7765
        %v7767 = vrot.slane %v7766, 1
        %v7768 = vadd.f32 %v7766, %v7767
        %v7769 = vsel %vm1978, %v5991, 0.0
        %v7770 = vrot.slane %v7769, 4
        %v7771 = vadd.f32 %v7769, %v7770
        %v7772 = vrot.slane %v7771, 2
        %v7773 = vadd.f32 %v7771, %v7772
        %v7774 = vrot.slane %v7773, 1
        %v7775 = vadd.f32 %v7773, %v7774
        %v7776 = vsel %vm1978, %v5992, 0.0
        %v7777 = vrot.slane %v7776, 4
        %v7778 = vadd.f32 %v7776, %v7777
        %v7779 = vrot.slane %v7778, 2
        %v7780 = vadd.f32 %v7778, %v7779
        %v7781 = vrot.slane %v7780, 1
        %v7782 = vadd.f32 %v7780, %v7781
        %v7783 = vsel %vm1978, %v5993, 0.0
        %v7784 = vrot.slane %v7783, 4
        %v7785 = vadd.f32 %v7783, %v7784
        %v7786 = vrot.slane %v7785, 2
        %v7787 = vadd.f32 %v7785, %v7786
        %v7788 = vrot.slane %v7787, 1
        %v7789 = vadd.f32 %v7787, %v7788
        %v7790 = vsel %vm1978, %v5994, 0.0
        %v7791 = vrot.slane %v7790, 4
        %v7792 = vadd.f32 %v7790, %v7791
        %v7793 = vrot.slane %v7792, 2
        %v7794 = vadd.f32 %v7792, %v7793
        %v7795 = vrot.slane %v7794, 1
        %v7796 = vadd.f32 %v7794, %v7795
        %v7797 = vsel %vm1978, %v5995, 0.0
        %v7798 = vrot.slane %v7797, 4
        %v7799 = vadd.f32 %v7797, %v7798
        %v7800 = vrot.slane %v7799, 2
        %v7801 = vadd.f32 %v7799, %v7800
        %v7802 = vrot.slane %v7801, 1
        %v7803 = vadd.f32 %v7801, %v7802
        %v7804 = vsel %vm1978, %v5996, 0.0
        %v7805 = vrot.slane %v7804, 4
        %v7806 = vadd.f32 %v7804, %v7805
        %v7807 = vrot.slane %v7806, 2
        %v7808 = vadd.f32 %v7806, %v7807
        %v7809 = vrot.slane %v7808, 1
        %v7810 = vadd.f32 %v7808, %v7809
        %v7811 = vsel %vm1978, %v5997, 0.0
        %v7812 = vrot.slane %v7811, 4
        %v7813 = vadd.f32 %v7811, %v7812
        %v7814 = vrot.slane %v7813, 2
        %v7815 = vadd.f32 %v7813, %v7814
        %v7816 = vrot.slane %v7815, 1
        %v7817 = vadd.f32 %v7815, %v7816
        %v7818 = vsel %vm1978, %v5998, 0.0
        %v7819 = vrot.slane %v7818, 4
        %v7820 = vadd.f32 %v7818, %v7819
        %v7821 = vrot.slane %v7820, 2
        %v7822 = vadd.f32 %v7820, %v7821
        %v7823 = vrot.slane %v7822, 1
        %v7824 = vadd.f32 %v7822, %v7823
        %v7825 = vsel %vm1978, %v5999, 0.0
        %v7826 = vrot.slane %v7825, 4
        %v7827 = vadd.f32 %v7825, %v7826
        %v7828 = vrot.slane %v7827, 2
        %v7829 = vadd.f32 %v7827, %v7828
        %v7830 = vrot.slane %v7829, 1
        %v7831 = vadd.f32 %v7829, %v7830
        %v7832 = vsel %vm1978, %v6000, 0.0
        %v7833 = vrot.slane %v7832, 4
        %v7834 = vadd.f32 %v7832, %v7833
        %v7835 = vrot.slane %v7834, 2
        %v7836 = vadd.f32 %v7834, %v7835
        %v7837 = vrot.slane %v7836, 1
        %v7838 = vadd.f32 %v7836, %v7837
        %v7839 = vsel %vm1978, %v6001, 0.0
        %v7840 = vrot.slane %v7839, 4
        %v7841 = vadd.f32 %v7839, %v7840
        %v7842 = vrot.slane %v7841, 2
        %v7843 = vadd.f32 %v7841, %v7842
        %v7844 = vrot.slane %v7843, 1
        %v7845 = vadd.f32 %v7843, %v7844
        %v7846 = vsel %vm1978, %v6002, 0.0
        %v7847 = vrot.slane %v7846, 4
        %v7848 = vadd.f32 %v7846, %v7847
        %v7849 = vrot.slane %v7848, 2
        %v7850 = vadd.f32 %v7848, %v7849
        %v7851 = vrot.slane %v7850, 1
        %v7852 = vadd.f32 %v7850, %v7851
        %v7853 = vsel %vm1978, %v6003, 0.0
        %v7854 = vrot.slane %v7853, 4
        %v7855 = vadd.f32 %v7853, %v7854
        %v7856 = vrot.slane %v7855, 2
        %v7857 = vadd.f32 %v7855, %v7856
        %v7858 = vrot.slane %v7857, 1
        %v7859 = vadd.f32 %v7857, %v7858
        %v7860 = vsel %vm1978, %v6004, 0.0
        %v7861 = vrot.slane %v7860, 4
        %v7862 = vadd.f32 %v7860, %v7861
        %v7863 = vrot.slane %v7862, 2
        %v7864 = vadd.f32 %v7862, %v7863
        %v7865 = vrot.slane %v7864, 1
        %v7866 = vadd.f32 %v7864, %v7865
        %v7867 = vsel %vm1978, %v6005, 0.0
        %v7868 = vrot.slane %v7867, 4
        %v7869 = vadd.f32 %v7867, %v7868
        %v7870 = vrot.slane %v7869, 2
        %v7871 = vadd.f32 %v7869, %v7870
        %v7872 = vrot.slane %v7871, 1
        %v7873 = vadd.f32 %v7871, %v7872
        %v7874 = vsel %vm1978, %v6006, 0.0
        %v7875 = vrot.slane %v7874, 4
        %v7876 = vadd.f32 %v7874, %v7875
        %v7877 = vrot.slane %v7876, 2
        %v7878 = vadd.f32 %v7876, %v7877
        %v7879 = vrot.slane %v7878, 1
        %v7880 = vadd.f32 %v7878, %v7879
        %v7881 = vsel %vm1978, %v6007, 0.0
        %v7882 = vrot.slane %v7881, 4
        %v7883 = vadd.f32 %v7881, %v7882
        %v7884 = vrot.slane %v7883, 2
        %v7885 = vadd.f32 %v7883, %v7884
        %v7886 = vrot.slane %v7885, 1
        %v7887 = vadd.f32 %v7885, %v7886
        %v7888 = vsel %vm1978, %v6008, 0.0
        %v7889 = vrot.slane %v7888, 4
        %v7890 = vadd.f32 %v7888, %v7889
        %v7891 = vrot.slane %v7890, 2
        %v7892 = vadd.f32 %v7890, %v7891
        %v7893 = vrot.slane %v7892, 1
        %v7894 = vadd.f32 %v7892, %v7893
        %v7895 = vsel %vm1978, %v6009, 0.0
        %v7896 = vrot.slane %v7895, 4
        %v7897 = vadd.f32 %v7895, %v7896
        %v7898 = vrot.slane %v7897, 2
        %v7899 = vadd.f32 %v7897, %v7898
        %v7900 = vrot.slane %v7899, 1
        %v7901 = vadd.f32 %v7899, %v7900
        %v7902 = vsel %vm1978, %v6010, 0.0
        %v7903 = vrot.slane %v7902, 4
        %v7904 = vadd.f32 %v7902, %v7903
        %v7905 = vrot.slane %v7904, 2
        %v7906 = vadd.f32 %v7904, %v7905
        %v7907 = vrot.slane %v7906, 1
        %v7908 = vadd.f32 %v7906, %v7907
        %v7909 = vsel %vm1978, %v6011, 0.0
        %v7910 = vrot.slane %v7909, 4
        %v7911 = vadd.f32 %v7909, %v7910
        %v7912 = vrot.slane %v7911, 2
        %v7913 = vadd.f32 %v7911, %v7912
        %v7914 = vrot.slane %v7913, 1
        %v7915 = vadd.f32 %v7913, %v7914
        %v7916 = vsel %vm1978, %v6012, 0.0
        %v7917 = vrot.slane %v7916, 4
        %v7918 = vadd.f32 %v7916, %v7917
        %v7919 = vrot.slane %v7918, 2
        %v7920 = vadd.f32 %v7918, %v7919
        %v7921 = vrot.slane %v7920, 1
        %v7922 = vadd.f32 %v7920, %v7921
        %v7923 = vsel %vm1978, %v6013, 0.0
        %v7924 = vrot.slane %v7923, 4
        %v7925 = vadd.f32 %v7923, %v7924
        %v7926 = vrot.slane %v7925, 2
        %v7927 = vadd.f32 %v7925, %v7926
        %v7928 = vrot.slane %v7927, 1
        %v7929 = vadd.f32 %v7927, %v7928
        %v7930 = vsel %vm1978, %v6014, 0.0
        %v7931 = vrot.slane %v7930, 4
        %v7932 = vadd.f32 %v7930, %v7931
        %v7933 = vrot.slane %v7932, 2
        %v7934 = vadd.f32 %v7932, %v7933
        %v7935 = vrot.slane %v7934, 1
        %v7936 = vadd.f32 %v7934, %v7935
        %v7937 = vsel %vm1978, %v6015, 0.0
        %v7938 = vrot.slane %v7937, 4
        %v7939 = vadd.f32 %v7937, %v7938
        %v7940 = vrot.slane %v7939, 2
        %v7941 = vadd.f32 %v7939, %v7940
        %v7942 = vrot.slane %v7941, 1
        %v7943 = vadd.f32 %v7941, %v7942
        %v7944 = vsel %vm1978, %v6016, 0.0
        %v7945 = vrot.slane %v7944, 4
        %v7946 = vadd.f32 %v7944, %v7945
        %v7947 = vrot.slane %v7946, 2
        %v7948 = vadd.f32 %v7946, %v7947
        %v7949 = vrot.slane %v7948, 1
        %v7950 = vadd.f32 %v7948, %v7949
        %v7951 = vsel %vm1978, %v6017, 0.0
        %v7952 = vrot.slane %v7951, 4
        %v7953 = vadd.f32 %v7951, %v7952
        %v7954 = vrot.slane %v7953, 2
        %v7955 = vadd.f32 %v7953, %v7954
        %v7956 = vrot.slane %v7955, 1
        %v7957 = vadd.f32 %v7955, %v7956
        %v7958 = vsel %vm1978, %v6018, 0.0
        %v7959 = vrot.slane %v7958, 4
        %v7960 = vadd.f32 %v7958, %v7959
        %v7961 = vrot.slane %v7960, 2
        %v7962 = vadd.f32 %v7960, %v7961
        %v7963 = vrot.slane %v7962, 1
        %v7964 = vadd.f32 %v7962, %v7963
        %v7965 = vsel %vm1978, %v6019, 0.0
        %v7966 = vrot.slane %v7965, 4
        %v7967 = vadd.f32 %v7965, %v7966
        %v7968 = vrot.slane %v7967, 2
        %v7969 = vadd.f32 %v7967, %v7968
        %v7970 = vrot.slane %v7969, 1
        %v7971 = vadd.f32 %v7969, %v7970
        %v7972 = vsel %vm1978, %v6020, 0.0
        %v7973 = vrot.slane %v7972, 4
        %v7974 = vadd.f32 %v7972, %v7973
        %v7975 = vrot.slane %v7974, 2
        %v7976 = vadd.f32 %v7974, %v7975
        %v7977 = vrot.slane %v7976, 1
        %v7978 = vadd.f32 %v7976, %v7977
        %v7979 = vsel %vm1978, %v6021, 0.0
        %v7980 = vrot.slane %v7979, 4
        %v7981 = vadd.f32 %v7979, %v7980
        %v7982 = vrot.slane %v7981, 2
        %v7983 = vadd.f32 %v7981, %v7982
        %v7984 = vrot.slane %v7983, 1
        %v7985 = vadd.f32 %v7983, %v7984
        %v7986 = vsel %vm1978, %v6022, 0.0
        %v7987 = vrot.slane %v7986, 4
        %v7988 = vadd.f32 %v7986, %v7987
        %v7989 = vrot.slane %v7988, 2
        %v7990 = vadd.f32 %v7988, %v7989
        %v7991 = vrot.slane %v7990, 1
        %v7992 = vadd.f32 %v7990, %v7991
        %v7993 = vsel %vm1978, %v6023, 0.0
        %v7994 = vrot.slane %v7993, 4
        %v7995 = vadd.f32 %v7993, %v7994
        %v7996 = vrot.slane %v7995, 2
        %v7997 = vadd.f32 %v7995, %v7996
        %v7998 = vrot.slane %v7997, 1
        %v7999 = vadd.f32 %v7997, %v7998
        %v8000 = vsel %vm1978, %v6024, 0.0
        %v8001 = vrot.slane %v8000, 4
        %v8002 = vadd.f32 %v8000, %v8001
        %v8003 = vrot.slane %v8002, 2
        %v8004 = vadd.f32 %v8002, %v8003
        %v8005 = vrot.slane %v8004, 1
        %v8006 = vadd.f32 %v8004, %v8005
        %v8007 = vsel %vm1978, %v6025, 0.0
        %v8008 = vrot.slane %v8007, 4
        %v8009 = vadd.f32 %v8007, %v8008
        %v8010 = vrot.slane %v8009, 2
        %v8011 = vadd.f32 %v8009, %v8010
        %v8012 = vrot.slane %v8011, 1
        %v8013 = vadd.f32 %v8011, %v8012
        %v8014 = vsel %vm1978, %v6026, 0.0
        %v8015 = vrot.slane %v8014, 4
        %v8016 = vadd.f32 %v8014, %v8015
        %v8017 = vrot.slane %v8016, 2
        %v8018 = vadd.f32 %v8016, %v8017
        %v8019 = vrot.slane %v8018, 1
        %v8020 = vadd.f32 %v8018, %v8019
        %v8021 = vsel %vm1978, %v6027, 0.0
        %v8022 = vrot.slane %v8021, 4
        %v8023 = vadd.f32 %v8021, %v8022
        %v8024 = vrot.slane %v8023, 2
        %v8025 = vadd.f32 %v8023, %v8024
        %v8026 = vrot.slane %v8025, 1
        %v8027 = vadd.f32 %v8025, %v8026
        %v8028 = vsel %vm1978, %v6028, 0.0
        %v8029 = vrot.slane %v8028, 4
        %v8030 = vadd.f32 %v8028, %v8029
        %v8031 = vrot.slane %v8030, 2
        %v8032 = vadd.f32 %v8030, %v8031
        %v8033 = vrot.slane %v8032, 1
        %v8034 = vadd.f32 %v8032, %v8033
        %v8035 = vsel %vm1978, %v6029, 0.0
        %v8036 = vrot.slane %v8035, 4
        %v8037 = vadd.f32 %v8035, %v8036
        %v8038 = vrot.slane %v8037, 2
        %v8039 = vadd.f32 %v8037, %v8038
        %v8040 = vrot.slane %v8039, 1
        %v8041 = vadd.f32 %v8039, %v8040
        %v8042 = vsel %vm1978, %v6030, 0.0
        %v8043 = vrot.slane %v8042, 4
        %v8044 = vadd.f32 %v8042, %v8043
        %v8045 = vrot.slane %v8044, 2
        %v8046 = vadd.f32 %v8044, %v8045
        %v8047 = vrot.slane %v8046, 1
        %v8048 = vadd.f32 %v8046, %v8047
        %v8049 = vsel %vm1978, %v6031, 0.0
        %v8050 = vrot.slane %v8049, 4
        %v8051 = vadd.f32 %v8049, %v8050
        %v8052 = vrot.slane %v8051, 2
        %v8053 = vadd.f32 %v8051, %v8052
        %v8054 = vrot.slane %v8053, 1
        %v8055 = vadd.f32 %v8053, %v8054
        %v8056 = vsel %vm1978, %v6032, 0.0
        %v8057 = vrot.slane %v8056, 4
        %v8058 = vadd.f32 %v8056, %v8057
        %v8059 = vrot.slane %v8058, 2
        %v8060 = vadd.f32 %v8058, %v8059
        %v8061 = vrot.slane %v8060, 1
        %v8062 = vadd.f32 %v8060, %v8061
        %v8063 = vsel %vm1978, %v6033, 0.0
        %v8064 = vrot.slane %v8063, 4
        %v8065 = vadd.f32 %v8063, %v8064
        %v8066 = vrot.slane %v8065, 2
        %v8067 = vadd.f32 %v8065, %v8066
        %v8068 = vrot.slane %v8067, 1
        %v8069 = vadd.f32 %v8067, %v8068
        %v8070 = vsel %vm1978, %v6034, 0.0
        %v8071 = vrot.slane %v8070, 4
        %v8072 = vadd.f32 %v8070, %v8071
        %v8073 = vrot.slane %v8072, 2
        %v8074 = vadd.f32 %v8072, %v8073
        %v8075 = vrot.slane %v8074, 1
        %v8076 = vadd.f32 %v8074, %v8075
        %v8077 = vsel %vm1978, %v6035, 0.0
        %v8078 = vrot.slane %v8077, 4
        %v8079 = vadd.f32 %v8077, %v8078
        %v8080 = vrot.slane %v8079, 2
        %v8081 = vadd.f32 %v8079, %v8080
        %v8082 = vrot.slane %v8081, 1
        %v8083 = vadd.f32 %v8081, %v8082
        %v8084 = vsel %vm1978, %v6036, 0.0
        %v8085 = vrot.slane %v8084, 4
        %v8086 = vadd.f32 %v8084, %v8085
        %v8087 = vrot.slane %v8086, 2
        %v8088 = vadd.f32 %v8086, %v8087
        %v8089 = vrot.slane %v8088, 1
        %v8090 = vadd.f32 %v8088, %v8089
        %v8091 = vsel %vm1978, %v6037, 0.0
        %v8092 = vrot.slane %v8091, 4
        %v8093 = vadd.f32 %v8091, %v8092
        %v8094 = vrot.slane %v8093, 2
        %v8095 = vadd.f32 %v8093, %v8094
        %v8096 = vrot.slane %v8095, 1
        %v8097 = vadd.f32 %v8095, %v8096
        %v8098 = vsel %vm1978, %v6038, 0.0
        %v8099 = vrot.slane %v8098, 4
        %v8100 = vadd.f32 %v8098, %v8099
        %v8101 = vrot.slane %v8100, 2
        %v8102 = vadd.f32 %v8100, %v8101
        %v8103 = vrot.slane %v8102, 1
        %v8104 = vadd.f32 %v8102, %v8103
        %v8105 = vsel %vm1978, %v6039, 0.0
        %v8106 = vrot.slane %v8105, 4
        %v8107 = vadd.f32 %v8105, %v8106
        %v8108 = vrot.slane %v8107, 2
        %v8109 = vadd.f32 %v8107, %v8108
        %v8110 = vrot.slane %v8109, 1
        %v8111 = vadd.f32 %v8109, %v8110
        %v8112 = vsel %vm1978, %v6040, 0.0
        %v8113 = vrot.slane %v8112, 4
        %v8114 = vadd.f32 %v8112, %v8113
        %v8115 = vrot.slane %v8114, 2
        %v8116 = vadd.f32 %v8114, %v8115
        %v8117 = vrot.slane %v8116, 1
        %v8118 = vadd.f32 %v8116, %v8117
        %v8119 = vsel %vm1978, %v6041, 0.0
        %v8120 = vrot.slane %v8119, 4
        %v8121 = vadd.f32 %v8119, %v8120
        %v8122 = vrot.slane %v8121, 2
        %v8123 = vadd.f32 %v8121, %v8122
        %v8124 = vrot.slane %v8123, 1
        %v8125 = vadd.f32 %v8123, %v8124
        %v8126 = vsel %vm1978, %v6042, 0.0
        %v8127 = vrot.slane %v8126, 4
        %v8128 = vadd.f32 %v8126, %v8127
        %v8129 = vrot.slane %v8128, 2
        %v8130 = vadd.f32 %v8128, %v8129
        %v8131 = vrot.slane %v8130, 1
        %v8132 = vadd.f32 %v8130, %v8131
        %v8133 = vsel %vm1978, %v6043, 0.0
        %v8134 = vrot.slane %v8133, 4
        %v8135 = vadd.f32 %v8133, %v8134
        %v8136 = vrot.slane %v8135, 2
        %v8137 = vadd.f32 %v8135, %v8136
        %v8138 = vrot.slane %v8137, 1
        %v8139 = vadd.f32 %v8137, %v8138
        %v8140 = vsel %vm1978, %v6044, 0.0
        %v8141 = vrot.slane %v8140, 4
        %v8142 = vadd.f32 %v8140, %v8141
        %v8143 = vrot.slane %v8142, 2
        %v8144 = vadd.f32 %v8142, %v8143
        %v8145 = vrot.slane %v8144, 1
        %v8146 = vadd.f32 %v8144, %v8145
        %v8147 = vsel %vm1978, %v6045, 0.0
        %v8148 = vrot.slane %v8147, 4
        %v8149 = vadd.f32 %v8147, %v8148
        %v8150 = vrot.slane %v8149, 2
        %v8151 = vadd.f32 %v8149, %v8150
        %v8152 = vrot.slane %v8151, 1
        %v8153 = vadd.f32 %v8151, %v8152
        %v8154 = vsel %vm1978, %v6046, 0.0
        %v8155 = vrot.slane %v8154, 4
        %v8156 = vadd.f32 %v8154, %v8155
        %v8157 = vrot.slane %v8156, 2
        %v8158 = vadd.f32 %v8156, %v8157
        %v8159 = vrot.slane %v8158, 1
        %v8160 = vadd.f32 %v8158, %v8159
        %v8161 = vsel %vm1978, %v6047, 0.0
        %v8162 = vrot.slane %v8161, 4
        %v8163 = vadd.f32 %v8161, %v8162
        %v8164 = vrot.slane %v8163, 2
        %v8165 = vadd.f32 %v8163, %v8164
        %v8166 = vrot.slane %v8165, 1
        %v8167 = vadd.f32 %v8165, %v8166
        %v8168 = vsel %vm1978, %v6048, 0.0
        %v8169 = vrot.slane %v8168, 4
        %v8170 = vadd.f32 %v8168, %v8169
        %v8171 = vrot.slane %v8170, 2
        %v8172 = vadd.f32 %v8170, %v8171
        %v8173 = vrot.slane %v8172, 1
        %v8174 = vadd.f32 %v8172, %v8173
        %v8175 = vsel %vm1978, %v6049, 0.0
        %v8176 = vrot.slane %v8175, 4
        %v8177 = vadd.f32 %v8175, %v8176
        %v8178 = vrot.slane %v8177, 2
        %v8179 = vadd.f32 %v8177, %v8178
        %v8180 = vrot.slane %v8179, 1
        %v8181 = vadd.f32 %v8179, %v8180
        %v8182 = vsel %vm1978, %v6050, 0.0
        %v8183 = vrot.slane %v8182, 4
        %v8184 = vadd.f32 %v8182, %v8183
        %v8185 = vrot.slane %v8184, 2
        %v8186 = vadd.f32 %v8184, %v8185
        %v8187 = vrot.slane %v8186, 1
        %v8188 = vadd.f32 %v8186, %v8187
        %v8189 = vsel %vm1978, %v6051, 0.0
        %v8190 = vrot.slane %v8189, 4
        %v8191 = vadd.f32 %v8189, %v8190
        %v8192 = vrot.slane %v8191, 2
        %v8193 = vadd.f32 %v8191, %v8192
        %v8194 = vrot.slane %v8193, 1
        %v8195 = vadd.f32 %v8193, %v8194
        %v8196 = vsel %vm1978, %v6052, 0.0
        %v8197 = vrot.slane %v8196, 4
        %v8198 = vadd.f32 %v8196, %v8197
        %v8199 = vrot.slane %v8198, 2
        %v8200 = vadd.f32 %v8198, %v8199
        %v8201 = vrot.slane %v8200, 1
        %v8202 = vadd.f32 %v8200, %v8201
        %v8203 = vsel %vm1978, %v6053, 0.0
        %v8204 = vrot.slane %v8203, 4
        %v8205 = vadd.f32 %v8203, %v8204
        %v8206 = vrot.slane %v8205, 2
        %v8207 = vadd.f32 %v8205, %v8206
        %v8208 = vrot.slane %v8207, 1
        %v8209 = vadd.f32 %v8207, %v8208
        %v8210 = vsel %vm1978, %v6054, 0.0
        %v8211 = vrot.slane %v8210, 4
        %v8212 = vadd.f32 %v8210, %v8211
        %v8213 = vrot.slane %v8212, 2
        %v8214 = vadd.f32 %v8212, %v8213
        %v8215 = vrot.slane %v8214, 1
        %v8216 = vadd.f32 %v8214, %v8215
        %v8217 = vsel %vm1978, %v6055, 0.0
        %v8218 = vrot.slane %v8217, 4
        %v8219 = vadd.f32 %v8217, %v8218
        %v8220 = vrot.slane %v8219, 2
        %v8221 = vadd.f32 %v8219, %v8220
        %v8222 = vrot.slane %v8221, 1
        %v8223 = vadd.f32 %v8221, %v8222
        %v8224 = vsel %vm1978, %v6056, 0.0
        %v8225 = vrot.slane %v8224, 4
        %v8226 = vadd.f32 %v8224, %v8225
        %v8227 = vrot.slane %v8226, 2
        %v8228 = vadd.f32 %v8226, %v8227
        %v8229 = vrot.slane %v8228, 1
        %v8230 = vadd.f32 %v8228, %v8229
        %v8231 = vsel %vm1978, %v6057, 0.0
        %v8232 = vrot.slane %v8231, 4
        %v8233 = vadd.f32 %v8231, %v8232
        %v8234 = vrot.slane %v8233, 2
        %v8235 = vadd.f32 %v8233, %v8234
        %v8236 = vrot.slane %v8235, 1
        %v8237 = vadd.f32 %v8235, %v8236
        %v8238 = vsel %vm1978, %v6058, 0.0
        %v8239 = vrot.slane %v8238, 4
        %v8240 = vadd.f32 %v8238, %v8239
        %v8241 = vrot.slane %v8240, 2
        %v8242 = vadd.f32 %v8240, %v8241
        %v8243 = vrot.slane %v8242, 1
        %v8244 = vadd.f32 %v8242, %v8243
        %v8245 = vsel %vm1978, %v6059, 0.0
        %v8246 = vrot.slane %v8245, 4
        %v8247 = vadd.f32 %v8245, %v8246
        %v8248 = vrot.slane %v8247, 2
        %v8249 = vadd.f32 %v8247, %v8248
        %v8250 = vrot.slane %v8249, 1
        %v8251 = vadd.f32 %v8249, %v8250
        %v8252 = vsel %vm1978, %v6060, 0.0
        %v8253 = vrot.slane %v8252, 4
        %v8254 = vadd.f32 %v8252, %v8253
        %v8255 = vrot.slane %v8254, 2
        %v8256 = vadd.f32 %v8254, %v8255
        %v8257 = vrot.slane %v8256, 1
        %v8258 = vadd.f32 %v8256, %v8257
        %v8259 = vsel %vm1978, %v6061, 0.0
        %v8260 = vrot.slane %v8259, 4
        %v8261 = vadd.f32 %v8259, %v8260
        %v8262 = vrot.slane %v8261, 2
        %v8263 = vadd.f32 %v8261, %v8262
        %v8264 = vrot.slane %v8263, 1
        %v8265 = vadd.f32 %v8263, %v8264
        %v8266 = vsel %vm1978, %v6062, 0.0
        %v8267 = vrot.slane %v8266, 4
        %v8268 = vadd.f32 %v8266, %v8267
        %v8269 = vrot.slane %v8268, 2
        %v8270 = vadd.f32 %v8268, %v8269
        %v8271 = vrot.slane %v8270, 1
        %v8272 = vadd.f32 %v8270, %v8271
        %v8273 = vsel %vm1978, %v6063, 0.0
        %v8274 = vrot.slane %v8273, 4
        %v8275 = vadd.f32 %v8273, %v8274
        %v8276 = vrot.slane %v8275, 2
        %v8277 = vadd.f32 %v8275, %v8276
        %v8278 = vrot.slane %v8277, 1
        %v8279 = vadd.f32 %v8277, %v8278
        %v8280 = vsel %vm1978, %v6064, 0.0
        %v8281 = vrot.slane %v8280, 4
        %v8282 = vadd.f32 %v8280, %v8281
        %v8283 = vrot.slane %v8282, 2
        %v8284 = vadd.f32 %v8282, %v8283
        %v8285 = vrot.slane %v8284, 1
        %v8286 = vadd.f32 %v8284, %v8285
        %v8287 = vsel %vm1978, %v6065, 0.0
        %v8288 = vrot.slane %v8287, 4
        %v8289 = vadd.f32 %v8287, %v8288
        %v8290 = vrot.slane %v8289, 2
        %v8291 = vadd.f32 %v8289, %v8290
        %v8292 = vrot.slane %v8291, 1
        %v8293 = vadd.f32 %v8291, %v8292
        %v8294 = vsel %vm1978, %v6066, 0.0
        %v8295 = vrot.slane %v8294, 4
        %v8296 = vadd.f32 %v8294, %v8295
        %v8297 = vrot.slane %v8296, 2
        %v8298 = vadd.f32 %v8296, %v8297
        %v8299 = vrot.slane %v8298, 1
        %v8300 = vadd.f32 %v8298, %v8299
        %v8301 = vsel %vm1978, %v6067, 0.0
        %v8302 = vrot.slane %v8301, 4
        %v8303 = vadd.f32 %v8301, %v8302
        %v8304 = vrot.slane %v8303, 2
        %v8305 = vadd.f32 %v8303, %v8304
        %v8306 = vrot.slane %v8305, 1
        %v8307 = vadd.f32 %v8305, %v8306
        %v8308 = vsel %vm1978, %v6068, 0.0
        %v8309 = vrot.slane %v8308, 4
        %v8310 = vadd.f32 %v8308, %v8309
        %v8311 = vrot.slane %v8310, 2
        %v8312 = vadd.f32 %v8310, %v8311
        %v8313 = vrot.slane %v8312, 1
        %v8314 = vadd.f32 %v8312, %v8313
        %v8315 = vsel %vm1978, %v6069, 0.0
        %v8316 = vrot.slane %v8315, 4
        %v8317 = vadd.f32 %v8315, %v8316
        %v8318 = vrot.slane %v8317, 2
        %v8319 = vadd.f32 %v8317, %v8318
        %v8320 = vrot.slane %v8319, 1
        %v8321 = vadd.f32 %v8319, %v8320
        %v8322 = vsel %vm1978, %v6070, 0.0
        %v8323 = vrot.slane %v8322, 4
        %v8324 = vadd.f32 %v8322, %v8323
        %v8325 = vrot.slane %v8324, 2
        %v8326 = vadd.f32 %v8324, %v8325
        %v8327 = vrot.slane %v8326, 1
        %v8328 = vadd.f32 %v8326, %v8327
        %v8329 = vsel %vm1978, %v6071, 0.0
        %v8330 = vrot.slane %v8329, 4
        %v8331 = vadd.f32 %v8329, %v8330
        %v8332 = vrot.slane %v8331, 2
        %v8333 = vadd.f32 %v8331, %v8332
        %v8334 = vrot.slane %v8333, 1
        %v8335 = vadd.f32 %v8333, %v8334
        %v8336 = vsel %vm1978, %v6072, 0.0
        %v8337 = vrot.slane %v8336, 4
        %v8338 = vadd.f32 %v8336, %v8337
        %v8339 = vrot.slane %v8338, 2
        %v8340 = vadd.f32 %v8338, %v8339
        %v8341 = vrot.slane %v8340, 1
        %v8342 = vadd.f32 %v8340, %v8341
        %v8343 = vsel %vm1978, %v6073, 0.0
        %v8344 = vrot.slane %v8343, 4
        %v8345 = vadd.f32 %v8343, %v8344
        %v8346 = vrot.slane %v8345, 2
        %v8347 = vadd.f32 %v8345, %v8346
        %v8348 = vrot.slane %v8347, 1
        %v8349 = vadd.f32 %v8347, %v8348
        %v8350 = vsel %vm1978, %v6074, 0.0
        %v8351 = vrot.slane %v8350, 4
        %v8352 = vadd.f32 %v8350, %v8351
        %v8353 = vrot.slane %v8352, 2
        %v8354 = vadd.f32 %v8352, %v8353
        %v8355 = vrot.slane %v8354, 1
        %v8356 = vadd.f32 %v8354, %v8355
        %v8357 = vsel %vm1978, %v6075, 0.0
        %v8358 = vrot.slane %v8357, 4
        %v8359 = vadd.f32 %v8357, %v8358
        %v8360 = vrot.slane %v8359, 2
        %v8361 = vadd.f32 %v8359, %v8360
        %v8362 = vrot.slane %v8361, 1
        %v8363 = vadd.f32 %v8361, %v8362
        %v8364 = vsel %vm1978, %v6076, 0.0
        %v8365 = vrot.slane %v8364, 4
        %v8366 = vadd.f32 %v8364, %v8365
        %v8367 = vrot.slane %v8366, 2
        %v8368 = vadd.f32 %v8366, %v8367
        %v8369 = vrot.slane %v8368, 1
        %v8370 = vadd.f32 %v8368, %v8369
        %v8371 = vsel %vm1978, %v6077, 0.0
        %v8372 = vrot.slane %v8371, 4
        %v8373 = vadd.f32 %v8371, %v8372
        %v8374 = vrot.slane %v8373, 2
        %v8375 = vadd.f32 %v8373, %v8374
        %v8376 = vrot.slane %v8375, 1
        %v8377 = vadd.f32 %v8375, %v8376
        %v8378 = vsel %vm1978, %v6078, 0.0
        %v8379 = vrot.slane %v8378, 4
        %v8380 = vadd.f32 %v8378, %v8379
        %v8381 = vrot.slane %v8380, 2
        %v8382 = vadd.f32 %v8380, %v8381
        %v8383 = vrot.slane %v8382, 1
        %v8384 = vadd.f32 %v8382, %v8383
        %v8385 = vsel %vm1978, %v6079, 0.0
        %v8386 = vrot.slane %v8385, 4
        %v8387 = vadd.f32 %v8385, %v8386
        %v8388 = vrot.slane %v8387, 2
        %v8389 = vadd.f32 %v8387, %v8388
        %v8390 = vrot.slane %v8389, 1
        %v8391 = vadd.f32 %v8389, %v8390
        %v8392 = vsel %vm1978, %v6080, 0.0
        %v8393 = vrot.slane %v8392, 4
        %v8394 = vadd.f32 %v8392, %v8393
        %v8395 = vrot.slane %v8394, 2
        %v8396 = vadd.f32 %v8394, %v8395
        %v8397 = vrot.slane %v8396, 1
        %v8398 = vadd.f32 %v8396, %v8397
        %v8399 = vsel %vm1978, %v6081, 0.0
        %v8400 = vrot.slane %v8399, 4
        %v8401 = vadd.f32 %v8399, %v8400
        %v8402 = vrot.slane %v8401, 2
        %v8403 = vadd.f32 %v8401, %v8402
        %v8404 = vrot.slane %v8403, 1
        %v8405 = vadd.f32 %v8403, %v8404
        %v8406 = vsel %vm1978, %v6082, 0.0
        %v8407 = vrot.slane %v8406, 4
        %v8408 = vadd.f32 %v8406, %v8407
        %v8409 = vrot.slane %v8408, 2
        %v8410 = vadd.f32 %v8408, %v8409
        %v8411 = vrot.slane %v8410, 1
        %v8412 = vadd.f32 %v8410, %v8411
        %v8413 = vsel %vm1978, %v6083, 0.0
        %v8414 = vrot.slane %v8413, 4
        %v8415 = vadd.f32 %v8413, %v8414
        %v8416 = vrot.slane %v8415, 2
        %v8417 = vadd.f32 %v8415, %v8416
        %v8418 = vrot.slane %v8417, 1
        %v8419 = vadd.f32 %v8417, %v8418
        %v8420 = vsel %vm1978, %v6084, 0.0
        %v8421 = vrot.slane %v8420, 4
        %v8422 = vadd.f32 %v8420, %v8421
        %v8423 = vrot.slane %v8422, 2
        %v8424 = vadd.f32 %v8422, %v8423
        %v8425 = vrot.slane %v8424, 1
        %v8426 = vadd.f32 %v8424, %v8425
        %v8427 = vsel %vm1978, %v6085, 0.0
        %v8428 = vrot.slane %v8427, 4
        %v8429 = vadd.f32 %v8427, %v8428
        %v8430 = vrot.slane %v8429, 2
        %v8431 = vadd.f32 %v8429, %v8430
        %v8432 = vrot.slane %v8431, 1
        %v8433 = vadd.f32 %v8431, %v8432
        %v8434 = vsel %vm1978, %v6086, 0.0
        %v8435 = vrot.slane %v8434, 4
        %v8436 = vadd.f32 %v8434, %v8435
        %v8437 = vrot.slane %v8436, 2
        %v8438 = vadd.f32 %v8436, %v8437
        %v8439 = vrot.slane %v8438, 1
        %v8440 = vadd.f32 %v8438, %v8439
        %v8441 = vsel %vm1978, %v6087, 0.0
        %v8442 = vrot.slane %v8441, 4
        %v8443 = vadd.f32 %v8441, %v8442
        %v8444 = vrot.slane %v8443, 2
        %v8445 = vadd.f32 %v8443, %v8444
        %v8446 = vrot.slane %v8445, 1
        %v8447 = vadd.f32 %v8445, %v8446
        %v8448 = vsel %vm1978, %v6088, 0.0
        %v8449 = vrot.slane %v8448, 4
        %v8450 = vadd.f32 %v8448, %v8449
        %v8451 = vrot.slane %v8450, 2
        %v8452 = vadd.f32 %v8450, %v8451
        %v8453 = vrot.slane %v8452, 1
        %v8454 = vadd.f32 %v8452, %v8453
        %v8455 = vsel %vm1978, %v6089, 0.0
        %v8456 = vrot.slane %v8455, 4
        %v8457 = vadd.f32 %v8455, %v8456
        %v8458 = vrot.slane %v8457, 2
        %v8459 = vadd.f32 %v8457, %v8458
        %v8460 = vrot.slane %v8459, 1
        %v8461 = vadd.f32 %v8459, %v8460
        %v8462 = vsel %vm1978, %v6090, 0.0
        %v8463 = vrot.slane %v8462, 4
        %v8464 = vadd.f32 %v8462, %v8463
        %v8465 = vrot.slane %v8464, 2
        %v8466 = vadd.f32 %v8464, %v8465
        %v8467 = vrot.slane %v8466, 1
        %v8468 = vadd.f32 %v8466, %v8467
        %v8469 = vsel %vm1978, %v6091, 0.0
        %v8470 = vrot.slane %v8469, 4
        %v8471 = vadd.f32 %v8469, %v8470
        %v8472 = vrot.slane %v8471, 2
        %v8473 = vadd.f32 %v8471, %v8472
        %v8474 = vrot.slane %v8473, 1
        %v8475 = vadd.f32 %v8473, %v8474
        %v8476 = vsel %vm1978, %v6092, 0.0
        %v8477 = vrot.slane %v8476, 4
        %v8478 = vadd.f32 %v8476, %v8477
        %v8479 = vrot.slane %v8478, 2
        %v8480 = vadd.f32 %v8478, %v8479
        %v8481 = vrot.slane %v8480, 1
        %v8482 = vadd.f32 %v8480, %v8481
        %v8483 = vsel %vm1978, %v6093, 0.0
        %v8484 = vrot.slane %v8483, 4
        %v8485 = vadd.f32 %v8483, %v8484
        %v8486 = vrot.slane %v8485, 2
        %v8487 = vadd.f32 %v8485, %v8486
        %v8488 = vrot.slane %v8487, 1
        %v8489 = vadd.f32 %v8487, %v8488
        %v8490 = vsel %vm1978, %v6094, 0.0
        %v8491 = vrot.slane %v8490, 4
        %v8492 = vadd.f32 %v8490, %v8491
        %v8493 = vrot.slane %v8492, 2
        %v8494 = vadd.f32 %v8492, %v8493
        %v8495 = vrot.slane %v8494, 1
        %v8496 = vadd.f32 %v8494, %v8495
        %v8497 = vsel %vm1978, %v6095, 0.0
        %v8498 = vrot.slane %v8497, 4
        %v8499 = vadd.f32 %v8497, %v8498
        %v8500 = vrot.slane %v8499, 2
        %v8501 = vadd.f32 %v8499, %v8500
        %v8502 = vrot.slane %v8501, 1
        %v8503 = vadd.f32 %v8501, %v8502
        %v8504 = vsel %vm1978, %v6096, 0.0
        %v8505 = vrot.slane %v8504, 4
        %v8506 = vadd.f32 %v8504, %v8505
        %v8507 = vrot.slane %v8506, 2
        %v8508 = vadd.f32 %v8506, %v8507
        %v8509 = vrot.slane %v8508, 1
        %v8510 = vadd.f32 %v8508, %v8509
        %v8511 = vsel %vm1978, %v6097, 0.0
        %v8512 = vrot.slane %v8511, 4
        %v8513 = vadd.f32 %v8511, %v8512
        %v8514 = vrot.slane %v8513, 2
        %v8515 = vadd.f32 %v8513, %v8514
        %v8516 = vrot.slane %v8515, 1
        %v8517 = vadd.f32 %v8515, %v8516
        %v8518 = vsel %vm1978, %v6098, 0.0
        %v8519 = vrot.slane %v8518, 4
        %v8520 = vadd.f32 %v8518, %v8519
        %v8521 = vrot.slane %v8520, 2
        %v8522 = vadd.f32 %v8520, %v8521
        %v8523 = vrot.slane %v8522, 1
        %v8524 = vadd.f32 %v8522, %v8523
        %v8525 = vsel %vm1978, %v6099, 0.0
        %v8526 = vrot.slane %v8525, 4
        %v8527 = vadd.f32 %v8525, %v8526
        %v8528 = vrot.slane %v8527, 2
        %v8529 = vadd.f32 %v8527, %v8528
        %v8530 = vrot.slane %v8529, 1
        %v8531 = vadd.f32 %v8529, %v8530
        %v8532 = vsel %vm1978, %v6100, 0.0
        %v8533 = vrot.slane %v8532, 4
        %v8534 = vadd.f32 %v8532, %v8533
        %v8535 = vrot.slane %v8534, 2
        %v8536 = vadd.f32 %v8534, %v8535
        %v8537 = vrot.slane %v8536, 1
        %v8538 = vadd.f32 %v8536, %v8537
        %v8539 = vsel %vm1978, %v6101, 0.0
        %v8540 = vrot.slane %v8539, 4
        %v8541 = vadd.f32 %v8539, %v8540
        %v8542 = vrot.slane %v8541, 2
        %v8543 = vadd.f32 %v8541, %v8542
        %v8544 = vrot.slane %v8543, 1
        %v8545 = vadd.f32 %v8543, %v8544
        %v8546 = vsel %vm1978, %v6102, 0.0
        %v8547 = vrot.slane %v8546, 4
        %v8548 = vadd.f32 %v8546, %v8547
        %v8549 = vrot.slane %v8548, 2
        %v8550 = vadd.f32 %v8548, %v8549
        %v8551 = vrot.slane %v8550, 1
        %v8552 = vadd.f32 %v8550, %v8551
        %v8553 = vsel %vm1978, %v6103, 0.0
        %v8554 = vrot.slane %v8553, 4
        %v8555 = vadd.f32 %v8553, %v8554
        %v8556 = vrot.slane %v8555, 2
        %v8557 = vadd.f32 %v8555, %v8556
        %v8558 = vrot.slane %v8557, 1
        %v8559 = vadd.f32 %v8557, %v8558
        %v8560 = vsel %vm1978, %v6104, 0.0
        %v8561 = vrot.slane %v8560, 4
        %v8562 = vadd.f32 %v8560, %v8561
        %v8563 = vrot.slane %v8562, 2
        %v8564 = vadd.f32 %v8562, %v8563
        %v8565 = vrot.slane %v8564, 1
        %v8566 = vadd.f32 %v8564, %v8565
        %v8567 = vsel %vm1978, %v6105, 0.0
        %v8568 = vrot.slane %v8567, 4
        %v8569 = vadd.f32 %v8567, %v8568
        %v8570 = vrot.slane %v8569, 2
        %v8571 = vadd.f32 %v8569, %v8570
        %v8572 = vrot.slane %v8571, 1
        %v8573 = vadd.f32 %v8571, %v8572
        %v8574 = vsel %vm1978, %v6106, 0.0
        %v8575 = vrot.slane %v8574, 4
        %v8576 = vadd.f32 %v8574, %v8575
        %v8577 = vrot.slane %v8576, 2
        %v8578 = vadd.f32 %v8576, %v8577
        %v8579 = vrot.slane %v8578, 1
        %v8580 = vadd.f32 %v8578, %v8579
        %v8581 = vsel %vm1978, %v6107, 0.0
        %v8582 = vrot.slane %v8581, 4
        %v8583 = vadd.f32 %v8581, %v8582
        %v8584 = vrot.slane %v8583, 2
        %v8585 = vadd.f32 %v8583, %v8584
        %v8586 = vrot.slane %v8585, 1
        %v8587 = vadd.f32 %v8585, %v8586
        %v8588 = vsel %vm1978, %v6108, 0.0
        %v8589 = vrot.slane %v8588, 4
        %v8590 = vadd.f32 %v8588, %v8589
        %v8591 = vrot.slane %v8590, 2
        %v8592 = vadd.f32 %v8590, %v8591
        %v8593 = vrot.slane %v8592, 1
        %v8594 = vadd.f32 %v8592, %v8593
        %v8595 = vsel %vm1978, %v6109, 0.0
        %v8596 = vrot.slane %v8595, 4
        %v8597 = vadd.f32 %v8595, %v8596
        %v8598 = vrot.slane %v8597, 2
        %v8599 = vadd.f32 %v8597, %v8598
        %v8600 = vrot.slane %v8599, 1
        %v8601 = vadd.f32 %v8599, %v8600
        %v8602 = vsel %vm1978, %v6110, 0.0
        %v8603 = vrot.slane %v8602, 4
        %v8604 = vadd.f32 %v8602, %v8603
        %v8605 = vrot.slane %v8604, 2
        %v8606 = vadd.f32 %v8604, %v8605
        %v8607 = vrot.slane %v8606, 1
        %v8608 = vadd.f32 %v8606, %v8607
        %v8609 = vsel %vm1978, %v6111, 0.0
        %v8610 = vrot.slane %v8609, 4
        %v8611 = vadd.f32 %v8609, %v8610
        %v8612 = vrot.slane %v8611, 2
        %v8613 = vadd.f32 %v8611, %v8612
        %v8614 = vrot.slane %v8613, 1
        %v8615 = vadd.f32 %v8613, %v8614
        %v8616 = vsel %vm1978, %v6112, 0.0
        %v8617 = vrot.slane %v8616, 4
        %v8618 = vadd.f32 %v8616, %v8617
        %v8619 = vrot.slane %v8618, 2
        %v8620 = vadd.f32 %v8618, %v8619
        %v8621 = vrot.slane %v8620, 1
        %v8622 = vadd.f32 %v8620, %v8621
        %v8623 = vsel %vm1978, %v6113, 0.0
        %v8624 = vrot.slane %v8623, 4
        %v8625 = vadd.f32 %v8623, %v8624
        %v8626 = vrot.slane %v8625, 2
        %v8627 = vadd.f32 %v8625, %v8626
        %v8628 = vrot.slane %v8627, 1
        %v8629 = vadd.f32 %v8627, %v8628
        %v8630 = vsel %vm1978, %v6114, 0.0
        %v8631 = vrot.slane %v8630, 4
        %v8632 = vadd.f32 %v8630, %v8631
        %v8633 = vrot.slane %v8632, 2
        %v8634 = vadd.f32 %v8632, %v8633
        %v8635 = vrot.slane %v8634, 1
        %v8636 = vadd.f32 %v8634, %v8635
        %v8637 = vsel %vm1978, %v6115, 0.0
        %v8638 = vrot.slane %v8637, 4
        %v8639 = vadd.f32 %v8637, %v8638
        %v8640 = vrot.slane %v8639, 2
        %v8641 = vadd.f32 %v8639, %v8640
        %v8642 = vrot.slane %v8641, 1
        %v8643 = vadd.f32 %v8641, %v8642
        %v8644 = vsel %vm1978, %v6116, 0.0
        %v8645 = vrot.slane %v8644, 4
        %v8646 = vadd.f32 %v8644, %v8645
        %v8647 = vrot.slane %v8646, 2
        %v8648 = vadd.f32 %v8646, %v8647
        %v8649 = vrot.slane %v8648, 1
        %v8650 = vadd.f32 %v8648, %v8649
        %v8651 = vsel %vm1978, %v6117, 0.0
        %v8652 = vrot.slane %v8651, 4
        %v8653 = vadd.f32 %v8651, %v8652
        %v8654 = vrot.slane %v8653, 2
        %v8655 = vadd.f32 %v8653, %v8654
        %v8656 = vrot.slane %v8655, 1
        %v8657 = vadd.f32 %v8655, %v8656
        %v8658 = vsel %vm1978, %v6118, 0.0
        %v8659 = vrot.slane %v8658, 4
        %v8660 = vadd.f32 %v8658, %v8659
        %v8661 = vrot.slane %v8660, 2
        %v8662 = vadd.f32 %v8660, %v8661
        %v8663 = vrot.slane %v8662, 1
        %v8664 = vadd.f32 %v8662, %v8663
        %v8665 = vsel %vm1978, %v6119, 0.0
        %v8666 = vrot.slane %v8665, 4
        %v8667 = vadd.f32 %v8665, %v8666
        %v8668 = vrot.slane %v8667, 2
        %v8669 = vadd.f32 %v8667, %v8668
        %v8670 = vrot.slane %v8669, 1
        %v8671 = vadd.f32 %v8669, %v8670
        %v8672 = vsel %vm1978, %v6120, 0.0
        %v8673 = vrot.slane %v8672, 4
        %v8674 = vadd.f32 %v8672, %v8673
        %v8675 = vrot.slane %v8674, 2
        %v8676 = vadd.f32 %v8674, %v8675
        %v8677 = vrot.slane %v8676, 1
        %v8678 = vadd.f32 %v8676, %v8677
        %v8679 = vsel %vm1978, %v6121, 0.0
        %v8680 = vrot.slane %v8679, 4
        %v8681 = vadd.f32 %v8679, %v8680
        %v8682 = vrot.slane %v8681, 2
        %v8683 = vadd.f32 %v8681, %v8682
        %v8684 = vrot.slane %v8683, 1
        %v8685 = vadd.f32 %v8683, %v8684
        %v8686 = vsel %vm1978, %v6122, 0.0
        %v8687 = vrot.slane %v8686, 4
        %v8688 = vadd.f32 %v8686, %v8687
        %v8689 = vrot.slane %v8688, 2
        %v8690 = vadd.f32 %v8688, %v8689
        %v8691 = vrot.slane %v8690, 1
        %v8692 = vadd.f32 %v8690, %v8691
        %v8693 = vsel %vm1978, %v6123, 0.0
        %v8694 = vrot.slane %v8693, 4
        %v8695 = vadd.f32 %v8693, %v8694
        %v8696 = vrot.slane %v8695, 2
        %v8697 = vadd.f32 %v8695, %v8696
        %v8698 = vrot.slane %v8697, 1
        %v8699 = vadd.f32 %v8697, %v8698
        %v8700 = vsel %vm1978, %v6124, 0.0
        %v8701 = vrot.slane %v8700, 4
        %v8702 = vadd.f32 %v8700, %v8701
        %v8703 = vrot.slane %v8702, 2
        %v8704 = vadd.f32 %v8702, %v8703
        %v8705 = vrot.slane %v8704, 1
        %v8706 = vadd.f32 %v8704, %v8705
        %v8707 = vsel %vm1978, %v6125, 0.0
        %v8708 = vrot.slane %v8707, 4
        %v8709 = vadd.f32 %v8707, %v8708
        %v8710 = vrot.slane %v8709, 2
        %v8711 = vadd.f32 %v8709, %v8710
        %v8712 = vrot.slane %v8711, 1
        %v8713 = vadd.f32 %v8711, %v8712
        %v8714 = vsel %vm1978, %v6126, 0.0
        %v8715 = vrot.slane %v8714, 4
        %v8716 = vadd.f32 %v8714, %v8715
        %v8717 = vrot.slane %v8716, 2
        %v8718 = vadd.f32 %v8716, %v8717
        %v8719 = vrot.slane %v8718, 1
        %v8720 = vadd.f32 %v8718, %v8719
        %v8721 = vsel %vm1978, %v6127, 0.0
        %v8722 = vrot.slane %v8721, 4
        %v8723 = vadd.f32 %v8721, %v8722
        %v8724 = vrot.slane %v8723, 2
        %v8725 = vadd.f32 %v8723, %v8724
        %v8726 = vrot.slane %v8725, 1
        %v8727 = vadd.f32 %v8725, %v8726
        %v8728 = vsel %vm1978, %v6128, 0.0
        %v8729 = vrot.slane %v8728, 4
        %v8730 = vadd.f32 %v8728, %v8729
        %v8731 = vrot.slane %v8730, 2
        %v8732 = vadd.f32 %v8730, %v8731
        %v8733 = vrot.slane %v8732, 1
        %v8734 = vadd.f32 %v8732, %v8733
        %v8735 = vsel %vm1978, %v6129, 0.0
        %v8736 = vrot.slane %v8735, 4
        %v8737 = vadd.f32 %v8735, %v8736
        %v8738 = vrot.slane %v8737, 2
        %v8739 = vadd.f32 %v8737, %v8738
        %v8740 = vrot.slane %v8739, 1
        %v8741 = vadd.f32 %v8739, %v8740
        %v8742 = vsel %vm1978, %v6130, 0.0
        %v8743 = vrot.slane %v8742, 4
        %v8744 = vadd.f32 %v8742, %v8743
        %v8745 = vrot.slane %v8744, 2
        %v8746 = vadd.f32 %v8744, %v8745
        %v8747 = vrot.slane %v8746, 1
        %v8748 = vadd.f32 %v8746, %v8747
        %v8749 = vsel %vm1978, %v6131, 0.0
        %v8750 = vrot.slane %v8749, 4
        %v8751 = vadd.f32 %v8749, %v8750
        %v8752 = vrot.slane %v8751, 2
        %v8753 = vadd.f32 %v8751, %v8752
        %v8754 = vrot.slane %v8753, 1
        %v8755 = vadd.f32 %v8753, %v8754
        %v8756 = vsel %vm1978, %v6132, 0.0
        %v8757 = vrot.slane %v8756, 4
        %v8758 = vadd.f32 %v8756, %v8757
        %v8759 = vrot.slane %v8758, 2
        %v8760 = vadd.f32 %v8758, %v8759
        %v8761 = vrot.slane %v8760, 1
        %v8762 = vadd.f32 %v8760, %v8761
        %v8763 = vsel %vm1978, %v6133, 0.0
        %v8764 = vrot.slane %v8763, 4
        %v8765 = vadd.f32 %v8763, %v8764
        %v8766 = vrot.slane %v8765, 2
        %v8767 = vadd.f32 %v8765, %v8766
        %v8768 = vrot.slane %v8767, 1
        %v8769 = vadd.f32 %v8767, %v8768
        %v8770 = vsel %vm1978, %v6134, 0.0
        %v8771 = vrot.slane %v8770, 4
        %v8772 = vadd.f32 %v8770, %v8771
        %v8773 = vrot.slane %v8772, 2
        %v8774 = vadd.f32 %v8772, %v8773
        %v8775 = vrot.slane %v8774, 1
        %v8776 = vadd.f32 %v8774, %v8775
        %v8777 = vsel %vm1978, %v6135, 0.0
        %v8778 = vrot.slane %v8777, 4
        %v8779 = vadd.f32 %v8777, %v8778
        %v8780 = vrot.slane %v8779, 2
        %v8781 = vadd.f32 %v8779, %v8780
        %v8782 = vrot.slane %v8781, 1
        %v8783 = vadd.f32 %v8781, %v8782
        %v8784 = vsel %vm1978, %v6136, 0.0
        %v8785 = vrot.slane %v8784, 4
        %v8786 = vadd.f32 %v8784, %v8785
        %v8787 = vrot.slane %v8786, 2
        %v8788 = vadd.f32 %v8786, %v8787
        %v8789 = vrot.slane %v8788, 1
        %v8790 = vadd.f32 %v8788, %v8789
        %v8791 = vsel %vm1978, %v6137, 0.0
        %v8792 = vrot.slane %v8791, 4
        %v8793 = vadd.f32 %v8791, %v8792
        %v8794 = vrot.slane %v8793, 2
        %v8795 = vadd.f32 %v8793, %v8794
        %v8796 = vrot.slane %v8795, 1
        %v8797 = vadd.f32 %v8795, %v8796
        %v8798 = vsel %vm1978, %v6138, 0.0
        %v8799 = vrot.slane %v8798, 4
        %v8800 = vadd.f32 %v8798, %v8799
        %v8801 = vrot.slane %v8800, 2
        %v8802 = vadd.f32 %v8800, %v8801
        %v8803 = vrot.slane %v8802, 1
        %v8804 = vadd.f32 %v8802, %v8803
        %v8805 = vsel %vm1978, %v6139, 0.0
        %v8806 = vrot.slane %v8805, 4
        %v8807 = vadd.f32 %v8805, %v8806
        %v8808 = vrot.slane %v8807, 2
        %v8809 = vadd.f32 %v8807, %v8808
        %v8810 = vrot.slane %v8809, 1
        %v8811 = vadd.f32 %v8809, %v8810
        %v8812 = vsel %vm1978, %v6140, 0.0
        %v8813 = vrot.slane %v8812, 4
        %v8814 = vadd.f32 %v8812, %v8813
        %v8815 = vrot.slane %v8814, 2
        %v8816 = vadd.f32 %v8814, %v8815
        %v8817 = vrot.slane %v8816, 1
        %v8818 = vadd.f32 %v8816, %v8817
        %v8819 = vsel %vm1978, %v6141, 0.0
        %v8820 = vrot.slane %v8819, 4
        %v8821 = vadd.f32 %v8819, %v8820
        %v8822 = vrot.slane %v8821, 2
        %v8823 = vadd.f32 %v8821, %v8822
        %v8824 = vrot.slane %v8823, 1
        %v8825 = vadd.f32 %v8823, %v8824
        %v8826 = vsel %vm1978, %v6142, 0.0
        %v8827 = vrot.slane %v8826, 4
        %v8828 = vadd.f32 %v8826, %v8827
        %v8829 = vrot.slane %v8828, 2
        %v8830 = vadd.f32 %v8828, %v8829
        %v8831 = vrot.slane %v8830, 1
        %v8832 = vadd.f32 %v8830, %v8831
        %v8833 = vsel %vm1978, %v6143, 0.0
        %v8834 = vrot.slane %v8833, 4
        %v8835 = vadd.f32 %v8833, %v8834
        %v8836 = vrot.slane %v8835, 2
        %v8837 = vadd.f32 %v8835, %v8836
        %v8838 = vrot.slane %v8837, 1
        %v8839 = vadd.f32 %v8837, %v8838
        %v8840 = vsel %vm1978, %v6144, 0.0
        %v8841 = vrot.slane %v8840, 4
        %v8842 = vadd.f32 %v8840, %v8841
        %v8843 = vrot.slane %v8842, 2
        %v8844 = vadd.f32 %v8842, %v8843
        %v8845 = vrot.slane %v8844, 1
        %v8846 = vadd.f32 %v8844, %v8845
        %v8847 = vsel %vm1978, %v6145, 0.0
        %v8848 = vrot.slane %v8847, 4
        %v8849 = vadd.f32 %v8847, %v8848
        %v8850 = vrot.slane %v8849, 2
        %v8851 = vadd.f32 %v8849, %v8850
        %v8852 = vrot.slane %v8851, 1
        %v8853 = vadd.f32 %v8851, %v8852
        %v8854 = vsel %vm1978, %v6146, 0.0
        %v8855 = vrot.slane %v8854, 4
        %v8856 = vadd.f32 %v8854, %v8855
        %v8857 = vrot.slane %v8856, 2
        %v8858 = vadd.f32 %v8856, %v8857
        %v8859 = vrot.slane %v8858, 1
        %v8860 = vadd.f32 %v8858, %v8859
        %v8861 = vsel %vm1978, %v6147, 0.0
        %v8862 = vrot.slane %v8861, 4
        %v8863 = vadd.f32 %v8861, %v8862
        %v8864 = vrot.slane %v8863, 2
        %v8865 = vadd.f32 %v8863, %v8864
        %v8866 = vrot.slane %v8865, 1
        %v8867 = vadd.f32 %v8865, %v8866
        %v8868 = vsel %vm1978, %v6148, 0.0
        %v8869 = vrot.slane %v8868, 4
        %v8870 = vadd.f32 %v8868, %v8869
        %v8871 = vrot.slane %v8870, 2
        %v8872 = vadd.f32 %v8870, %v8871
        %v8873 = vrot.slane %v8872, 1
        %v8874 = vadd.f32 %v8872, %v8873
        %v8875 = vsel %vm1978, %v6149, 0.0
        %v8876 = vrot.slane %v8875, 4
        %v8877 = vadd.f32 %v8875, %v8876
        %v8878 = vrot.slane %v8877, 2
        %v8879 = vadd.f32 %v8877, %v8878
        %v8880 = vrot.slane %v8879, 1
        %v8881 = vadd.f32 %v8879, %v8880
        %v8882 = vsel %vm1978, %v6150, 0.0
        %v8883 = vrot.slane %v8882, 4
        %v8884 = vadd.f32 %v8882, %v8883
        %v8885 = vrot.slane %v8884, 2
        %v8886 = vadd.f32 %v8884, %v8885
        %v8887 = vrot.slane %v8886, 1
        %v8888 = vadd.f32 %v8886, %v8887
        %v8889 = vsel %vm1978, %v6151, 0.0
        %v8890 = vrot.slane %v8889, 4
        %v8891 = vadd.f32 %v8889, %v8890
        %v8892 = vrot.slane %v8891, 2
        %v8893 = vadd.f32 %v8891, %v8892
        %v8894 = vrot.slane %v8893, 1
        %v8895 = vadd.f32 %v8893, %v8894
        %v8896 = vsel %vm1978, %v6152, 0.0
        %v8897 = vrot.slane %v8896, 4
        %v8898 = vadd.f32 %v8896, %v8897
        %v8899 = vrot.slane %v8898, 2
        %v8900 = vadd.f32 %v8898, %v8899
        %v8901 = vrot.slane %v8900, 1
        %v8902 = vadd.f32 %v8900, %v8901
        %v8903 = vsel %vm1978, %v6153, 0.0
        %v8904 = vrot.slane %v8903, 4
        %v8905 = vadd.f32 %v8903, %v8904
        %v8906 = vrot.slane %v8905, 2
        %v8907 = vadd.f32 %v8905, %v8906
        %v8908 = vrot.slane %v8907, 1
        %v8909 = vadd.f32 %v8907, %v8908
        %v8910 = vsel %vm1978, %v6154, 0.0
        %v8911 = vrot.slane %v8910, 4
        %v8912 = vadd.f32 %v8910, %v8911
        %v8913 = vrot.slane %v8912, 2
        %v8914 = vadd.f32 %v8912, %v8913
        %v8915 = vrot.slane %v8914, 1
        %v8916 = vadd.f32 %v8914, %v8915
        %v8917 = vsel %vm1978, %v6155, 0.0
        %v8918 = vrot.slane %v8917, 4
        %v8919 = vadd.f32 %v8917, %v8918
        %v8920 = vrot.slane %v8919, 2
        %v8921 = vadd.f32 %v8919, %v8920
        %v8922 = vrot.slane %v8921, 1
        %v8923 = vadd.f32 %v8921, %v8922
        %v8924 = vsel %vm1978, %v6156, 0.0
        %v8925 = vrot.slane %v8924, 4
        %v8926 = vadd.f32 %v8924, %v8925
        %v8927 = vrot.slane %v8926, 2
        %v8928 = vadd.f32 %v8926, %v8927
        %v8929 = vrot.slane %v8928, 1
        %v8930 = vadd.f32 %v8928, %v8929
        %v8931 = vsel %vm1978, %v6157, 0.0
        %v8932 = vrot.slane %v8931, 4
        %v8933 = vadd.f32 %v8931, %v8932
        %v8934 = vrot.slane %v8933, 2
        %v8935 = vadd.f32 %v8933, %v8934
        %v8936 = vrot.slane %v8935, 1
        %v8937 = vadd.f32 %v8935, %v8936
        %v8938 = vsel %vm1978, %v6158, 0.0
        %v8939 = vrot.slane %v8938, 4
        %v8940 = vadd.f32 %v8938, %v8939
        %v8941 = vrot.slane %v8940, 2
        %v8942 = vadd.f32 %v8940, %v8941
        %v8943 = vrot.slane %v8942, 1
        %v8944 = vadd.f32 %v8942, %v8943
        %v8945 = vsel %vm1978, %v6159, 0.0
        %v8946 = vrot.slane %v8945, 4
        %v8947 = vadd.f32 %v8945, %v8946
        %v8948 = vrot.slane %v8947, 2
        %v8949 = vadd.f32 %v8947, %v8948
        %v8950 = vrot.slane %v8949, 1
        %v8951 = vadd.f32 %v8949, %v8950
        %v8952 = vsel %vm1978, %v6160, 0.0
        %v8953 = vrot.slane %v8952, 4
        %v8954 = vadd.f32 %v8952, %v8953
        %v8955 = vrot.slane %v8954, 2
        %v8956 = vadd.f32 %v8954, %v8955
        %v8957 = vrot.slane %v8956, 1
        %v8958 = vadd.f32 %v8956, %v8957
        %v8959 = vsel %vm1978, %v6161, 0.0
        %v8960 = vrot.slane %v8959, 4
        %v8961 = vadd.f32 %v8959, %v8960
        %v8962 = vrot.slane %v8961, 2
        %v8963 = vadd.f32 %v8961, %v8962
        %v8964 = vrot.slane %v8963, 1
        %v8965 = vadd.f32 %v8963, %v8964
        %v8966 = vsel %vm1978, %v6162, 0.0
        %v8967 = vrot.slane %v8966, 4
        %v8968 = vadd.f32 %v8966, %v8967
        %v8969 = vrot.slane %v8968, 2
        %v8970 = vadd.f32 %v8968, %v8969
        %v8971 = vrot.slane %v8970, 1
        %v8972 = vadd.f32 %v8970, %v8971
        %v8973 = vsel %vm1978, %v6163, 0.0
        %v8974 = vrot.slane %v8973, 4
        %v8975 = vadd.f32 %v8973, %v8974
        %v8976 = vrot.slane %v8975, 2
        %v8977 = vadd.f32 %v8975, %v8976
        %v8978 = vrot.slane %v8977, 1
        %v8979 = vadd.f32 %v8977, %v8978
        %v8980 = vsel %vm1978, %v6164, 0.0
        %v8981 = vrot.slane %v8980, 4
        %v8982 = vadd.f32 %v8980, %v8981
        %v8983 = vrot.slane %v8982, 2
        %v8984 = vadd.f32 %v8982, %v8983
        %v8985 = vrot.slane %v8984, 1
        %v8986 = vadd.f32 %v8984, %v8985
        %v8987 = vsel %vm1978, %v6165, 0.0
        %v8988 = vrot.slane %v8987, 4
        %v8989 = vadd.f32 %v8987, %v8988
        %v8990 = vrot.slane %v8989, 2
        %v8991 = vadd.f32 %v8989, %v8990
        %v8992 = vrot.slane %v8991, 1
        %v8993 = vadd.f32 %v8991, %v8992
        %v8994 = vsel %vm1978, %v6166, 0.0
        %v8995 = vrot.slane %v8994, 4
        %v8996 = vadd.f32 %v8994, %v8995
        %v8997 = vrot.slane %v8996, 2
        %v8998 = vadd.f32 %v8996, %v8997
        %v8999 = vrot.slane %v8998, 1
        %v9000 = vadd.f32 %v8998, %v8999
        %v9001 = vsel %vm1978, %v6167, 0.0
        %v9002 = vrot.slane %v9001, 4
        %v9003 = vadd.f32 %v9001, %v9002
        %v9004 = vrot.slane %v9003, 2
        %v9005 = vadd.f32 %v9003, %v9004
        %v9006 = vrot.slane %v9005, 1
        %v9007 = vadd.f32 %v9005, %v9006
        %v9008 = vsel %vm1978, %v6168, 0.0
        %v9009 = vrot.slane %v9008, 4
        %v9010 = vadd.f32 %v9008, %v9009
        %v9011 = vrot.slane %v9010, 2
        %v9012 = vadd.f32 %v9010, %v9011
        %v9013 = vrot.slane %v9012, 1
        %v9014 = vadd.f32 %v9012, %v9013
        %v9015 = vsel %vm1978, %v6169, 0.0
        %v9016 = vrot.slane %v9015, 4
        %v9017 = vadd.f32 %v9015, %v9016
        %v9018 = vrot.slane %v9017, 2
        %v9019 = vadd.f32 %v9017, %v9018
        %v9020 = vrot.slane %v9019, 1
        %v9021 = vadd.f32 %v9019, %v9020
        %v9022 = vsel %vm1978, %v6170, 0.0
        %v9023 = vrot.slane %v9022, 4
        %v9024 = vadd.f32 %v9022, %v9023
        %v9025 = vrot.slane %v9024, 2
        %v9026 = vadd.f32 %v9024, %v9025
        %v9027 = vrot.slane %v9026, 1
        %v9028 = vadd.f32 %v9026, %v9027
        %v9029 = vsel %vm1978, %v6171, 0.0
        %v9030 = vrot.slane %v9029, 4
        %v9031 = vadd.f32 %v9029, %v9030
        %v9032 = vrot.slane %v9031, 2
        %v9033 = vadd.f32 %v9031, %v9032
        %v9034 = vrot.slane %v9033, 1
        %v9035 = vadd.f32 %v9033, %v9034
        %v9036 = vsel %vm1978, %v6172, 0.0
        %v9037 = vrot.slane %v9036, 4
        %v9038 = vadd.f32 %v9036, %v9037
        %v9039 = vrot.slane %v9038, 2
        %v9040 = vadd.f32 %v9038, %v9039
        %v9041 = vrot.slane %v9040, 1
        %v9042 = vadd.f32 %v9040, %v9041
        %v9043 = vsel %vm1978, %v6173, 0.0
        %v9044 = vrot.slane %v9043, 4
        %v9045 = vadd.f32 %v9043, %v9044
        %v9046 = vrot.slane %v9045, 2
        %v9047 = vadd.f32 %v9045, %v9046
        %v9048 = vrot.slane %v9047, 1
        %v9049 = vadd.f32 %v9047, %v9048
        %v9050 = vsel %vm1978, %v6174, 0.0
        %v9051 = vrot.slane %v9050, 4
        %v9052 = vadd.f32 %v9050, %v9051
        %v9053 = vrot.slane %v9052, 2
        %v9054 = vadd.f32 %v9052, %v9053
        %v9055 = vrot.slane %v9054, 1
        %v9056 = vadd.f32 %v9054, %v9055
        %v9057 = vsel %vm1978, %v6175, 0.0
        %v9058 = vrot.slane %v9057, 4
        %v9059 = vadd.f32 %v9057, %v9058
        %v9060 = vrot.slane %v9059, 2
        %v9061 = vadd.f32 %v9059, %v9060
        %v9062 = vrot.slane %v9061, 1
        %v9063 = vadd.f32 %v9061, %v9062
        %v9064 = vsel %vm1978, %v6176, 0.0
        %v9065 = vrot.slane %v9064, 4
        %v9066 = vadd.f32 %v9064, %v9065
        %v9067 = vrot.slane %v9066, 2
        %v9068 = vadd.f32 %v9066, %v9067
        %v9069 = vrot.slane %v9068, 1
        %v9070 = vadd.f32 %v9068, %v9069
        %v9071 = vsel %vm1978, %v6177, 0.0
        %v9072 = vrot.slane %v9071, 4
        %v9073 = vadd.f32 %v9071, %v9072
        %v9074 = vrot.slane %v9073, 2
        %v9075 = vadd.f32 %v9073, %v9074
        %v9076 = vrot.slane %v9075, 1
        %v9077 = vadd.f32 %v9075, %v9076
        %v9078 = vsel %vm1978, %v6178, 0.0
        %v9079 = vrot.slane %v9078, 4
        %v9080 = vadd.f32 %v9078, %v9079
        %v9081 = vrot.slane %v9080, 2
        %v9082 = vadd.f32 %v9080, %v9081
        %v9083 = vrot.slane %v9082, 1
        %v9084 = vadd.f32 %v9082, %v9083
        %v9085 = vsel %vm1978, %v6179, 0.0
        %v9086 = vrot.slane %v9085, 4
        %v9087 = vadd.f32 %v9085, %v9086
        %v9088 = vrot.slane %v9087, 2
        %v9089 = vadd.f32 %v9087, %v9088
        %v9090 = vrot.slane %v9089, 1
        %v9091 = vadd.f32 %v9089, %v9090
        %v9092 = vsel %vm1978, %v6180, 0.0
        %v9093 = vrot.slane %v9092, 4
        %v9094 = vadd.f32 %v9092, %v9093
        %v9095 = vrot.slane %v9094, 2
        %v9096 = vadd.f32 %v9094, %v9095
        %v9097 = vrot.slane %v9096, 1
        %v9098 = vadd.f32 %v9096, %v9097
        %v9099 = vsel %vm1978, %v6181, 0.0
        %v9100 = vrot.slane %v9099, 4
        %v9101 = vadd.f32 %v9099, %v9100
        %v9102 = vrot.slane %v9101, 2
        %v9103 = vadd.f32 %v9101, %v9102
        %v9104 = vrot.slane %v9103, 1
        %v9105 = vadd.f32 %v9103, %v9104
        %v9106 = vsel %vm1978, %v6182, 0.0
        %v9107 = vrot.slane %v9106, 4
        %v9108 = vadd.f32 %v9106, %v9107
        %v9109 = vrot.slane %v9108, 2
        %v9110 = vadd.f32 %v9108, %v9109
        %v9111 = vrot.slane %v9110, 1
        %v9112 = vadd.f32 %v9110, %v9111
        %v9113 = vsel %vm1978, %v6183, 0.0
        %v9114 = vrot.slane %v9113, 4
        %v9115 = vadd.f32 %v9113, %v9114
        %v9116 = vrot.slane %v9115, 2
        %v9117 = vadd.f32 %v9115, %v9116
        %v9118 = vrot.slane %v9117, 1
        %v9119 = vadd.f32 %v9117, %v9118
        %v9120 = vsel %vm1978, %v6184, 0.0
        %v9121 = vrot.slane %v9120, 4
        %v9122 = vadd.f32 %v9120, %v9121
        %v9123 = vrot.slane %v9122, 2
        %v9124 = vadd.f32 %v9122, %v9123
        %v9125 = vrot.slane %v9124, 1
        %v9126 = vadd.f32 %v9124, %v9125
        %v9127 = vsel %vm1978, %v6185, 0.0
        %v9128 = vrot.slane %v9127, 4
        %v9129 = vadd.f32 %v9127, %v9128
        %v9130 = vrot.slane %v9129, 2
        %v9131 = vadd.f32 %v9129, %v9130
        %v9132 = vrot.slane %v9131, 1
        %v9133 = vadd.f32 %v9131, %v9132
        %v9134 = vsel %vm1978, %v6186, 0.0
        %v9135 = vrot.slane %v9134, 4
        %v9136 = vadd.f32 %v9134, %v9135
        %v9137 = vrot.slane %v9136, 2
        %v9138 = vadd.f32 %v9136, %v9137
        %v9139 = vrot.slane %v9138, 1
        %v9140 = vadd.f32 %v9138, %v9139
        %v9141 = vsel %vm1978, %v6187, 0.0
        %v9142 = vrot.slane %v9141, 4
        %v9143 = vadd.f32 %v9141, %v9142
        %v9144 = vrot.slane %v9143, 2
        %v9145 = vadd.f32 %v9143, %v9144
        %v9146 = vrot.slane %v9145, 1
        %v9147 = vadd.f32 %v9145, %v9146
        %v9148 = vsel %vm1978, %v6188, 0.0
        %v9149 = vrot.slane %v9148, 4
        %v9150 = vadd.f32 %v9148, %v9149
        %v9151 = vrot.slane %v9150, 2
        %v9152 = vadd.f32 %v9150, %v9151
        %v9153 = vrot.slane %v9152, 1
        %v9154 = vadd.f32 %v9152, %v9153
        %v9155 = vsel %vm1978, %v6189, 0.0
        %v9156 = vrot.slane %v9155, 4
        %v9157 = vadd.f32 %v9155, %v9156
        %v9158 = vrot.slane %v9157, 2
        %v9159 = vadd.f32 %v9157, %v9158
        %v9160 = vrot.slane %v9159, 1
        %v9161 = vadd.f32 %v9159, %v9160
        %v9162 = vsel %vm1978, %v6190, 0.0
        %v9163 = vrot.slane %v9162, 4
        %v9164 = vadd.f32 %v9162, %v9163
        %v9165 = vrot.slane %v9164, 2
        %v9166 = vadd.f32 %v9164, %v9165
        %v9167 = vrot.slane %v9166, 1
        %v9168 = vadd.f32 %v9166, %v9167
        %v9169 = vsel %vm1978, %v6191, 0.0
        %v9170 = vrot.slane %v9169, 4
        %v9171 = vadd.f32 %v9169, %v9170
        %v9172 = vrot.slane %v9171, 2
        %v9173 = vadd.f32 %v9171, %v9172
        %v9174 = vrot.slane %v9173, 1
        %v9175 = vadd.f32 %v9173, %v9174
        %v9176 = vsel %vm1978, %v6192, 0.0
        %v9177 = vrot.slane %v9176, 4
        %v9178 = vadd.f32 %v9176, %v9177
        %v9179 = vrot.slane %v9178, 2
        %v9180 = vadd.f32 %v9178, %v9179
        %v9181 = vrot.slane %v9180, 1
        %v9182 = vadd.f32 %v9180, %v9181
        %v9183 = vsel %vm1978, %v6193, 0.0
        %v9184 = vrot.slane %v9183, 4
        %v9185 = vadd.f32 %v9183, %v9184
        %v9186 = vrot.slane %v9185, 2
        %v9187 = vadd.f32 %v9185, %v9186
        %v9188 = vrot.slane %v9187, 1
        %v9189 = vadd.f32 %v9187, %v9188
        %v9190 = vsel %vm1978, %v6194, 0.0
        %v9191 = vrot.slane %v9190, 4
        %v9192 = vadd.f32 %v9190, %v9191
        %v9193 = vrot.slane %v9192, 2
        %v9194 = vadd.f32 %v9192, %v9193
        %v9195 = vrot.slane %v9194, 1
        %v9196 = vadd.f32 %v9194, %v9195
        %v9197 = vsel %vm1978, %v6195, 0.0
        %v9198 = vrot.slane %v9197, 4
        %v9199 = vadd.f32 %v9197, %v9198
        %v9200 = vrot.slane %v9199, 2
        %v9201 = vadd.f32 %v9199, %v9200
        %v9202 = vrot.slane %v9201, 1
        %v9203 = vadd.f32 %v9201, %v9202
        %v9204 = vsel %vm1978, %v6196, 0.0
        %v9205 = vrot.slane %v9204, 4
        %v9206 = vadd.f32 %v9204, %v9205
        %v9207 = vrot.slane %v9206, 2
        %v9208 = vadd.f32 %v9206, %v9207
        %v9209 = vrot.slane %v9208, 1
        %v9210 = vadd.f32 %v9208, %v9209
        %v9211 = vsel %vm1978, %v6197, 0.0
        %v9212 = vrot.slane %v9211, 4
        %v9213 = vadd.f32 %v9211, %v9212
        %v9214 = vrot.slane %v9213, 2
        %v9215 = vadd.f32 %v9213, %v9214
        %v9216 = vrot.slane %v9215, 1
        %v9217 = vadd.f32 %v9215, %v9216
        %v9218 = vsel %vm1978, %v6198, 0.0
        %v9219 = vrot.slane %v9218, 4
        %v9220 = vadd.f32 %v9218, %v9219
        %v9221 = vrot.slane %v9220, 2
        %v9222 = vadd.f32 %v9220, %v9221
        %v9223 = vrot.slane %v9222, 1
        %v9224 = vadd.f32 %v9222, %v9223
        %v9225 = vsel %vm1978, %v6199, 0.0
        %v9226 = vrot.slane %v9225, 4
        %v9227 = vadd.f32 %v9225, %v9226
        %v9228 = vrot.slane %v9227, 2
        %v9229 = vadd.f32 %v9227, %v9228
        %v9230 = vrot.slane %v9229, 1
        %v9231 = vadd.f32 %v9229, %v9230
        %v9232 = vsel %vm1978, %v6200, 0.0
        %v9233 = vrot.slane %v9232, 4
        %v9234 = vadd.f32 %v9232, %v9233
        %v9235 = vrot.slane %v9234, 2
        %v9236 = vadd.f32 %v9234, %v9235
        %v9237 = vrot.slane %v9236, 1
        %v9238 = vadd.f32 %v9236, %v9237
        %v9239 = vsel %vm1978, %v6201, 0.0
        %v9240 = vrot.slane %v9239, 4
        %v9241 = vadd.f32 %v9239, %v9240
        %v9242 = vrot.slane %v9241, 2
        %v9243 = vadd.f32 %v9241, %v9242
        %v9244 = vrot.slane %v9243, 1
        %v9245 = vadd.f32 %v9243, %v9244
        %v9246 = vsel %vm1978, %v6202, 0.0
        %v9247 = vrot.slane %v9246, 4
        %v9248 = vadd.f32 %v9246, %v9247
        %v9249 = vrot.slane %v9248, 2
        %v9250 = vadd.f32 %v9248, %v9249
        %v9251 = vrot.slane %v9250, 1
        %v9252 = vadd.f32 %v9250, %v9251
        %v9253 = vsel %vm1978, %v6203, 0.0
        %v9254 = vrot.slane %v9253, 4
        %v9255 = vadd.f32 %v9253, %v9254
        %v9256 = vrot.slane %v9255, 2
        %v9257 = vadd.f32 %v9255, %v9256
        %v9258 = vrot.slane %v9257, 1
        %v9259 = vadd.f32 %v9257, %v9258
        %v9260 = vsel %vm1978, %v6204, 0.0
        %v9261 = vrot.slane %v9260, 4
        %v9262 = vadd.f32 %v9260, %v9261
        %v9263 = vrot.slane %v9262, 2
        %v9264 = vadd.f32 %v9262, %v9263
        %v9265 = vrot.slane %v9264, 1
        %v9266 = vadd.f32 %v9264, %v9265
        %v9267 = vsel %vm1978, %v6205, 0.0
        %v9268 = vrot.slane %v9267, 4
        %v9269 = vadd.f32 %v9267, %v9268
        %v9270 = vrot.slane %v9269, 2
        %v9271 = vadd.f32 %v9269, %v9270
        %v9272 = vrot.slane %v9271, 1
        %v9273 = vadd.f32 %v9271, %v9272
        %v9274 = vsel %vm1978, %v6206, 0.0
        %v9275 = vrot.slane %v9274, 4
        %v9276 = vadd.f32 %v9274, %v9275
        %v9277 = vrot.slane %v9276, 2
        %v9278 = vadd.f32 %v9276, %v9277
        %v9279 = vrot.slane %v9278, 1
        %v9280 = vadd.f32 %v9278, %v9279
        %v9281 = vsel %vm1978, %v6207, 0.0
        %v9282 = vrot.slane %v9281, 4
        %v9283 = vadd.f32 %v9281, %v9282
        %v9284 = vrot.slane %v9283, 2
        %v9285 = vadd.f32 %v9283, %v9284
        %v9286 = vrot.slane %v9285, 1
        %v9287 = vadd.f32 %v9285, %v9286
        %v9288 = vsel %vm1978, %v6208, 0.0
        %v9289 = vrot.slane %v9288, 4
        %v9290 = vadd.f32 %v9288, %v9289
        %v9291 = vrot.slane %v9290, 2
        %v9292 = vadd.f32 %v9290, %v9291
        %v9293 = vrot.slane %v9292, 1
        %v9294 = vadd.f32 %v9292, %v9293
        %v9295 = vsel %vm1978, %v6209, 0.0
        %v9296 = vrot.slane %v9295, 4
        %v9297 = vadd.f32 %v9295, %v9296
        %v9298 = vrot.slane %v9297, 2
        %v9299 = vadd.f32 %v9297, %v9298
        %v9300 = vrot.slane %v9299, 1
        %v9301 = vadd.f32 %v9299, %v9300
        %v9302 = vsel %vm1978, %v6210, 0.0
        %v9303 = vrot.slane %v9302, 4
        %v9304 = vadd.f32 %v9302, %v9303
        %v9305 = vrot.slane %v9304, 2
        %v9306 = vadd.f32 %v9304, %v9305
        %v9307 = vrot.slane %v9306, 1
        %v9308 = vadd.f32 %v9306, %v9307
        %v9309 = vsel %vm1978, %v6211, 0.0
        %v9310 = vrot.slane %v9309, 4
        %v9311 = vadd.f32 %v9309, %v9310
        %v9312 = vrot.slane %v9311, 2
        %v9313 = vadd.f32 %v9311, %v9312
        %v9314 = vrot.slane %v9313, 1
        %v9315 = vadd.f32 %v9313, %v9314
        %v9316 = vsel %vm1978, %v6212, 0.0
        %v9317 = vrot.slane %v9316, 4
        %v9318 = vadd.f32 %v9316, %v9317
        %v9319 = vrot.slane %v9318, 2
        %v9320 = vadd.f32 %v9318, %v9319
        %v9321 = vrot.slane %v9320, 1
        %v9322 = vadd.f32 %v9320, %v9321
        %v9323 = vsel %vm1978, %v6213, 0.0
        %v9324 = vrot.slane %v9323, 4
        %v9325 = vadd.f32 %v9323, %v9324
        %v9326 = vrot.slane %v9325, 2
        %v9327 = vadd.f32 %v9325, %v9326
        %v9328 = vrot.slane %v9327, 1
        %v9329 = vadd.f32 %v9327, %v9328
        %v9330 = vsel %vm1978, %v6214, 0.0
        %v9331 = vrot.slane %v9330, 4
        %v9332 = vadd.f32 %v9330, %v9331
        %v9333 = vrot.slane %v9332, 2
        %v9334 = vadd.f32 %v9332, %v9333
        %v9335 = vrot.slane %v9334, 1
        %v9336 = vadd.f32 %v9334, %v9335
        %v9337 = vsel %vm1978, %v6215, 0.0
        %v9338 = vrot.slane %v9337, 4
        %v9339 = vadd.f32 %v9337, %v9338
        %v9340 = vrot.slane %v9339, 2
        %v9341 = vadd.f32 %v9339, %v9340
        %v9342 = vrot.slane %v9341, 1
        %v9343 = vadd.f32 %v9341, %v9342
        %v9344 = vsel %vm1978, %v6216, 0.0
        %v9345 = vrot.slane %v9344, 4
        %v9346 = vadd.f32 %v9344, %v9345
        %v9347 = vrot.slane %v9346, 2
        %v9348 = vadd.f32 %v9346, %v9347
        %v9349 = vrot.slane %v9348, 1
        %v9350 = vadd.f32 %v9348, %v9349
        %v9351 = vsel %vm1978, %v6217, 0.0
        %v9352 = vrot.slane %v9351, 4
        %v9353 = vadd.f32 %v9351, %v9352
        %v9354 = vrot.slane %v9353, 2
        %v9355 = vadd.f32 %v9353, %v9354
        %v9356 = vrot.slane %v9355, 1
        %v9357 = vadd.f32 %v9355, %v9356
        %v9358 = vsel %vm1978, %v6218, 0.0
        %v9359 = vrot.slane %v9358, 4
        %v9360 = vadd.f32 %v9358, %v9359
        %v9361 = vrot.slane %v9360, 2
        %v9362 = vadd.f32 %v9360, %v9361
        %v9363 = vrot.slane %v9362, 1
        %v9364 = vadd.f32 %v9362, %v9363
        %v9365 = vsel %vm1978, %v6219, 0.0
        %v9366 = vrot.slane %v9365, 4
        %v9367 = vadd.f32 %v9365, %v9366
        %v9368 = vrot.slane %v9367, 2
        %v9369 = vadd.f32 %v9367, %v9368
        %v9370 = vrot.slane %v9369, 1
        %v9371 = vadd.f32 %v9369, %v9370
        %v9372 = vsel %vm1978, %v6220, 0.0
        %v9373 = vrot.slane %v9372, 4
        %v9374 = vadd.f32 %v9372, %v9373
        %v9375 = vrot.slane %v9374, 2
        %v9376 = vadd.f32 %v9374, %v9375
        %v9377 = vrot.slane %v9376, 1
        %v9378 = vadd.f32 %v9376, %v9377
        %v9379 = vsel %vm1978, %v6221, 0.0
        %v9380 = vrot.slane %v9379, 4
        %v9381 = vadd.f32 %v9379, %v9380
        %v9382 = vrot.slane %v9381, 2
        %v9383 = vadd.f32 %v9381, %v9382
        %v9384 = vrot.slane %v9383, 1
        %v9385 = vadd.f32 %v9383, %v9384
        %v9386 = vsel %vm1978, %v6222, 0.0
        %v9387 = vrot.slane %v9386, 4
        %v9388 = vadd.f32 %v9386, %v9387
        %v9389 = vrot.slane %v9388, 2
        %v9390 = vadd.f32 %v9388, %v9389
        %v9391 = vrot.slane %v9390, 1
        %v9392 = vadd.f32 %v9390, %v9391
        %v9393 = vsel %vm1978, %v6223, 0.0
        %v9394 = vrot.slane %v9393, 4
        %v9395 = vadd.f32 %v9393, %v9394
        %v9396 = vrot.slane %v9395, 2
        %v9397 = vadd.f32 %v9395, %v9396
        %v9398 = vrot.slane %v9397, 1
        %v9399 = vadd.f32 %v9397, %v9398
        %v9400 = vsel %vm1978, %v6224, 0.0
        %v9401 = vrot.slane %v9400, 4
        %v9402 = vadd.f32 %v9400, %v9401
        %v9403 = vrot.slane %v9402, 2
        %v9404 = vadd.f32 %v9402, %v9403
        %v9405 = vrot.slane %v9404, 1
        %v9406 = vadd.f32 %v9404, %v9405
        %v9407 = vsel %vm1978, %v6225, 0.0
        %v9408 = vrot.slane %v9407, 4
        %v9409 = vadd.f32 %v9407, %v9408
        %v9410 = vrot.slane %v9409, 2
        %v9411 = vadd.f32 %v9409, %v9410
        %v9412 = vrot.slane %v9411, 1
        %v9413 = vadd.f32 %v9411, %v9412
        %v9414 = vsel %vm1978, %v6226, 0.0
        %v9415 = vrot.slane %v9414, 4
        %v9416 = vadd.f32 %v9414, %v9415
        %v9417 = vrot.slane %v9416, 2
        %v9418 = vadd.f32 %v9416, %v9417
        %v9419 = vrot.slane %v9418, 1
        %v9420 = vadd.f32 %v9418, %v9419
        %v9421 = vsel %vm1978, %v6227, 0.0
        %v9422 = vrot.slane %v9421, 4
        %v9423 = vadd.f32 %v9421, %v9422
        %v9424 = vrot.slane %v9423, 2
        %v9425 = vadd.f32 %v9423, %v9424
        %v9426 = vrot.slane %v9425, 1
        %v9427 = vadd.f32 %v9425, %v9426
        %v9428 = vsel %vm1978, %v6228, 0.0
        %v9429 = vrot.slane %v9428, 4
        %v9430 = vadd.f32 %v9428, %v9429
        %v9431 = vrot.slane %v9430, 2
        %v9432 = vadd.f32 %v9430, %v9431
        %v9433 = vrot.slane %v9432, 1
        %v9434 = vadd.f32 %v9432, %v9433
        %v9435 = vsel %vm1978, %v6229, 0.0
        %v9436 = vrot.slane %v9435, 4
        %v9437 = vadd.f32 %v9435, %v9436
        %v9438 = vrot.slane %v9437, 2
        %v9439 = vadd.f32 %v9437, %v9438
        %v9440 = vrot.slane %v9439, 1
        %v9441 = vadd.f32 %v9439, %v9440
        %v9442 = vsel %vm1978, %v6230, 0.0
        %v9443 = vrot.slane %v9442, 4
        %v9444 = vadd.f32 %v9442, %v9443
        %v9445 = vrot.slane %v9444, 2
        %v9446 = vadd.f32 %v9444, %v9445
        %v9447 = vrot.slane %v9446, 1
        %v9448 = vadd.f32 %v9446, %v9447
        %v9449 = vsel %vm1978, %v6231, 0.0
        %v9450 = vrot.slane %v9449, 4
        %v9451 = vadd.f32 %v9449, %v9450
        %v9452 = vrot.slane %v9451, 2
        %v9453 = vadd.f32 %v9451, %v9452
        %v9454 = vrot.slane %v9453, 1
        %v9455 = vadd.f32 %v9453, %v9454
        %v9456 = vsel %vm1978, %v6232, 0.0
        %v9457 = vrot.slane %v9456, 4
        %v9458 = vadd.f32 %v9456, %v9457
        %v9459 = vrot.slane %v9458, 2
        %v9460 = vadd.f32 %v9458, %v9459
        %v9461 = vrot.slane %v9460, 1
        %v9462 = vadd.f32 %v9460, %v9461
        %v9463 = vsel %vm1978, %v6233, 0.0
        %v9464 = vrot.slane %v9463, 4
        %v9465 = vadd.f32 %v9463, %v9464
        %v9466 = vrot.slane %v9465, 2
        %v9467 = vadd.f32 %v9465, %v9466
        %v9468 = vrot.slane %v9467, 1
        %v9469 = vadd.f32 %v9467, %v9468
        %v9470 = vsel %vm1978, %v6234, 0.0
        %v9471 = vrot.slane %v9470, 4
        %v9472 = vadd.f32 %v9470, %v9471
        %v9473 = vrot.slane %v9472, 2
        %v9474 = vadd.f32 %v9472, %v9473
        %v9475 = vrot.slane %v9474, 1
        %v9476 = vadd.f32 %v9474, %v9475
        %v9477 = vsel %vm1978, %v6235, 0.0
        %v9478 = vrot.slane %v9477, 4
        %v9479 = vadd.f32 %v9477, %v9478
        %v9480 = vrot.slane %v9479, 2
        %v9481 = vadd.f32 %v9479, %v9480
        %v9482 = vrot.slane %v9481, 1
        %v9483 = vadd.f32 %v9481, %v9482
        %v9484 = vsel %vm1978, %v6236, 0.0
        %v9485 = vrot.slane %v9484, 4
        %v9486 = vadd.f32 %v9484, %v9485
        %v9487 = vrot.slane %v9486, 2
        %v9488 = vadd.f32 %v9486, %v9487
        %v9489 = vrot.slane %v9488, 1
        %v9490 = vadd.f32 %v9488, %v9489
        %v9491 = vsel %vm1978, %v6237, 0.0
        %v9492 = vrot.slane %v9491, 4
        %v9493 = vadd.f32 %v9491, %v9492
        %v9494 = vrot.slane %v9493, 2
        %v9495 = vadd.f32 %v9493, %v9494
        %v9496 = vrot.slane %v9495, 1
        %v9497 = vadd.f32 %v9495, %v9496
        %v9498 = vsel %vm1978, %v6238, 0.0
        %v9499 = vrot.slane %v9498, 4
        %v9500 = vadd.f32 %v9498, %v9499
        %v9501 = vrot.slane %v9500, 2
        %v9502 = vadd.f32 %v9500, %v9501
        %v9503 = vrot.slane %v9502, 1
        %v9504 = vadd.f32 %v9502, %v9503
        %v9505 = vsel %vm1978, %v6239, 0.0
        %v9506 = vrot.slane %v9505, 4
        %v9507 = vadd.f32 %v9505, %v9506
        %v9508 = vrot.slane %v9507, 2
        %v9509 = vadd.f32 %v9507, %v9508
        %v9510 = vrot.slane %v9509, 1
        %v9511 = vadd.f32 %v9509, %v9510
        %v9512 = vsel %vm1978, %v6240, 0.0
        %v9513 = vrot.slane %v9512, 4
        %v9514 = vadd.f32 %v9512, %v9513
        %v9515 = vrot.slane %v9514, 2
        %v9516 = vadd.f32 %v9514, %v9515
        %v9517 = vrot.slane %v9516, 1
        %v9518 = vadd.f32 %v9516, %v9517
        %v9519 = vsel %vm1978, %v6241, 0.0
        %v9520 = vrot.slane %v9519, 4
        %v9521 = vadd.f32 %v9519, %v9520
        %v9522 = vrot.slane %v9521, 2
        %v9523 = vadd.f32 %v9521, %v9522
        %v9524 = vrot.slane %v9523, 1
        %v9525 = vadd.f32 %v9523, %v9524
        %v9526 = vsel %vm1978, %v6242, 0.0
        %v9527 = vrot.slane %v9526, 4
        %v9528 = vadd.f32 %v9526, %v9527
        %v9529 = vrot.slane %v9528, 2
        %v9530 = vadd.f32 %v9528, %v9529
        %v9531 = vrot.slane %v9530, 1
        %v9532 = vadd.f32 %v9530, %v9531
        %v9533 = vsel %vm1978, %v6243, 0.0
        %v9534 = vrot.slane %v9533, 4
        %v9535 = vadd.f32 %v9533, %v9534
        %v9536 = vrot.slane %v9535, 2
        %v9537 = vadd.f32 %v9535, %v9536
        %v9538 = vrot.slane %v9537, 1
        %v9539 = vadd.f32 %v9537, %v9538
        %v9540 = vsel %vm1978, %v6244, 0.0
        %v9541 = vrot.slane %v9540, 4
        %v9542 = vadd.f32 %v9540, %v9541
        %v9543 = vrot.slane %v9542, 2
        %v9544 = vadd.f32 %v9542, %v9543
        %v9545 = vrot.slane %v9544, 1
        %v9546 = vadd.f32 %v9544, %v9545
        %v9547 = vsel %vm1978, %v6245, 0.0
        %v9548 = vrot.slane %v9547, 4
        %v9549 = vadd.f32 %v9547, %v9548
        %v9550 = vrot.slane %v9549, 2
        %v9551 = vadd.f32 %v9549, %v9550
        %v9552 = vrot.slane %v9551, 1
        %v9553 = vadd.f32 %v9551, %v9552
        %v9554 = vsel %vm1978, %v6246, 0.0
        %v9555 = vrot.slane %v9554, 4
        %v9556 = vadd.f32 %v9554, %v9555
        %v9557 = vrot.slane %v9556, 2
        %v9558 = vadd.f32 %v9556, %v9557
        %v9559 = vrot.slane %v9558, 1
        %v9560 = vadd.f32 %v9558, %v9559
        %v9561 = vsel %vm1978, %v6247, 0.0
        %v9562 = vrot.slane %v9561, 4
        %v9563 = vadd.f32 %v9561, %v9562
        %v9564 = vrot.slane %v9563, 2
        %v9565 = vadd.f32 %v9563, %v9564
        %v9566 = vrot.slane %v9565, 1
        %v9567 = vadd.f32 %v9565, %v9566
        %v9568 = vsel %vm1978, %v6248, 0.0
        %v9569 = vrot.slane %v9568, 4
        %v9570 = vadd.f32 %v9568, %v9569
        %v9571 = vrot.slane %v9570, 2
        %v9572 = vadd.f32 %v9570, %v9571
        %v9573 = vrot.slane %v9572, 1
        %v9574 = vadd.f32 %v9572, %v9573
        %v9575 = vsel %vm1978, %v6249, 0.0
        %v9576 = vrot.slane %v9575, 4
        %v9577 = vadd.f32 %v9575, %v9576
        %v9578 = vrot.slane %v9577, 2
        %v9579 = vadd.f32 %v9577, %v9578
        %v9580 = vrot.slane %v9579, 1
        %v9581 = vadd.f32 %v9579, %v9580
        %v9582 = vsel %vm1978, %v6250, 0.0
        %v9583 = vrot.slane %v9582, 4
        %v9584 = vadd.f32 %v9582, %v9583
        %v9585 = vrot.slane %v9584, 2
        %v9586 = vadd.f32 %v9584, %v9585
        %v9587 = vrot.slane %v9586, 1
        %v9588 = vadd.f32 %v9586, %v9587
        %v9589 = vsel %vm1978, %v6251, 0.0
        %v9590 = vrot.slane %v9589, 4
        %v9591 = vadd.f32 %v9589, %v9590
        %v9592 = vrot.slane %v9591, 2
        %v9593 = vadd.f32 %v9591, %v9592
        %v9594 = vrot.slane %v9593, 1
        %v9595 = vadd.f32 %v9593, %v9594
        %v9596 = vsel %vm1978, %v6252, 0.0
        %v9597 = vrot.slane %v9596, 4
        %v9598 = vadd.f32 %v9596, %v9597
        %v9599 = vrot.slane %v9598, 2
        %v9600 = vadd.f32 %v9598, %v9599
        %v9601 = vrot.slane %v9600, 1
        %v9602 = vadd.f32 %v9600, %v9601
        %v9603 = vsel %vm1978, %v6253, 0.0
        %v9604 = vrot.slane %v9603, 4
        %v9605 = vadd.f32 %v9603, %v9604
        %v9606 = vrot.slane %v9605, 2
        %v9607 = vadd.f32 %v9605, %v9606
        %v9608 = vrot.slane %v9607, 1
        %v9609 = vadd.f32 %v9607, %v9608
        %v9610 = vsel %vm1978, %v6254, 0.0
        %v9611 = vrot.slane %v9610, 4
        %v9612 = vadd.f32 %v9610, %v9611
        %v9613 = vrot.slane %v9612, 2
        %v9614 = vadd.f32 %v9612, %v9613
        %v9615 = vrot.slane %v9614, 1
        %v9616 = vadd.f32 %v9614, %v9615
        %v9617 = vsel %vm1978, %v6255, 0.0
        %v9618 = vrot.slane %v9617, 4
        %v9619 = vadd.f32 %v9617, %v9618
        %v9620 = vrot.slane %v9619, 2
        %v9621 = vadd.f32 %v9619, %v9620
        %v9622 = vrot.slane %v9621, 1
        %v9623 = vadd.f32 %v9621, %v9622
        %v9624 = vsel %vm1978, %v6256, 0.0
        %v9625 = vrot.slane %v9624, 4
        %v9626 = vadd.f32 %v9624, %v9625
        %v9627 = vrot.slane %v9626, 2
        %v9628 = vadd.f32 %v9626, %v9627
        %v9629 = vrot.slane %v9628, 1
        %v9630 = vadd.f32 %v9628, %v9629
        %v9631 = vsel %vm1978, %v6257, 0.0
        %v9632 = vrot.slane %v9631, 4
        %v9633 = vadd.f32 %v9631, %v9632
        %v9634 = vrot.slane %v9633, 2
        %v9635 = vadd.f32 %v9633, %v9634
        %v9636 = vrot.slane %v9635, 1
        %v9637 = vadd.f32 %v9635, %v9636
        %v9638 = vsel %vm1978, %v6258, 0.0
        %v9639 = vrot.slane %v9638, 4
        %v9640 = vadd.f32 %v9638, %v9639
        %v9641 = vrot.slane %v9640, 2
        %v9642 = vadd.f32 %v9640, %v9641
        %v9643 = vrot.slane %v9642, 1
        %v9644 = vadd.f32 %v9642, %v9643
        %v9645 = vsel %vm1978, %v6259, 0.0
        %v9646 = vrot.slane %v9645, 4
        %v9647 = vadd.f32 %v9645, %v9646
        %v9648 = vrot.slane %v9647, 2
        %v9649 = vadd.f32 %v9647, %v9648
        %v9650 = vrot.slane %v9649, 1
        %v9651 = vadd.f32 %v9649, %v9650
        %v9652 = vsel %vm1978, %v6260, 0.0
        %v9653 = vrot.slane %v9652, 4
        %v9654 = vadd.f32 %v9652, %v9653
        %v9655 = vrot.slane %v9654, 2
        %v9656 = vadd.f32 %v9654, %v9655
        %v9657 = vrot.slane %v9656, 1
        %v9658 = vadd.f32 %v9656, %v9657
        %v9659 = vsel %vm1978, %v6261, 0.0
        %v9660 = vrot.slane %v9659, 4
        %v9661 = vadd.f32 %v9659, %v9660
        %v9662 = vrot.slane %v9661, 2
        %v9663 = vadd.f32 %v9661, %v9662
        %v9664 = vrot.slane %v9663, 1
        %v9665 = vadd.f32 %v9663, %v9664
        %v9666 = vsel %vm1978, %v6262, 0.0
        %v9667 = vrot.slane %v9666, 4
        %v9668 = vadd.f32 %v9666, %v9667
        %v9669 = vrot.slane %v9668, 2
        %v9670 = vadd.f32 %v9668, %v9669
        %v9671 = vrot.slane %v9670, 1
        %v9672 = vadd.f32 %v9670, %v9671
        %v9673 = vsel %vm1978, %v6263, 0.0
        %v9674 = vrot.slane %v9673, 4
        %v9675 = vadd.f32 %v9673, %v9674
        %v9676 = vrot.slane %v9675, 2
        %v9677 = vadd.f32 %v9675, %v9676
        %v9678 = vrot.slane %v9677, 1
        %v9679 = vadd.f32 %v9677, %v9678
        %v9680 = vsel %vm1978, %v6264, 0.0
        %v9681 = vrot.slane %v9680, 4
        %v9682 = vadd.f32 %v9680, %v9681
        %v9683 = vrot.slane %v9682, 2
        %v9684 = vadd.f32 %v9682, %v9683
        %v9685 = vrot.slane %v9684, 1
        %v9686 = vadd.f32 %v9684, %v9685
        %v9687 = vsel %vm1978, %v6265, 0.0
        %v9688 = vrot.slane %v9687, 4
        %v9689 = vadd.f32 %v9687, %v9688
        %v9690 = vrot.slane %v9689, 2
        %v9691 = vadd.f32 %v9689, %v9690
        %v9692 = vrot.slane %v9691, 1
        %v9693 = vadd.f32 %v9691, %v9692
        %v9694 = vsel %vm1978, %v6266, 0.0
        %v9695 = vrot.slane %v9694, 4
        %v9696 = vadd.f32 %v9694, %v9695
        %v9697 = vrot.slane %v9696, 2
        %v9698 = vadd.f32 %v9696, %v9697
        %v9699 = vrot.slane %v9698, 1
        %v9700 = vadd.f32 %v9698, %v9699
        %v9701 = vsel %vm1978, %v6267, 0.0
        %v9702 = vrot.slane %v9701, 4
        %v9703 = vadd.f32 %v9701, %v9702
        %v9704 = vrot.slane %v9703, 2
        %v9705 = vadd.f32 %v9703, %v9704
        %v9706 = vrot.slane %v9705, 1
        %v9707 = vadd.f32 %v9705, %v9706
        %v9708 = vsel %vm1978, %v6268, 0.0
        %v9709 = vrot.slane %v9708, 4
        %v9710 = vadd.f32 %v9708, %v9709
        %v9711 = vrot.slane %v9710, 2
        %v9712 = vadd.f32 %v9710, %v9711
        %v9713 = vrot.slane %v9712, 1
        %v9714 = vadd.f32 %v9712, %v9713
        %v9715 = vsel %vm1978, %v6269, 0.0
        %v9716 = vrot.slane %v9715, 4
        %v9717 = vadd.f32 %v9715, %v9716
        %v9718 = vrot.slane %v9717, 2
        %v9719 = vadd.f32 %v9717, %v9718
        %v9720 = vrot.slane %v9719, 1
        %v9721 = vadd.f32 %v9719, %v9720
        %v9722 = vsel %vm1978, %v6270, 0.0
        %v9723 = vrot.slane %v9722, 4
        %v9724 = vadd.f32 %v9722, %v9723
        %v9725 = vrot.slane %v9724, 2
        %v9726 = vadd.f32 %v9724, %v9725
        %v9727 = vrot.slane %v9726, 1
        %v9728 = vadd.f32 %v9726, %v9727
        %v9729 = vsel %vm1978, %v6271, 0.0
        %v9730 = vrot.slane %v9729, 4
        %v9731 = vadd.f32 %v9729, %v9730
        %v9732 = vrot.slane %v9731, 2
        %v9733 = vadd.f32 %v9731, %v9732
        %v9734 = vrot.slane %v9733, 1
        %v9735 = vadd.f32 %v9733, %v9734
        %v9736 = vsel %vm1978, %v6272, 0.0
        %v9737 = vrot.slane %v9736, 4
        %v9738 = vadd.f32 %v9736, %v9737
        %v9739 = vrot.slane %v9738, 2
        %v9740 = vadd.f32 %v9738, %v9739
        %v9741 = vrot.slane %v9740, 1
        %v9742 = vadd.f32 %v9740, %v9741
        %v9743 = vsel %vm1978, %v6273, 0.0
        %v9744 = vrot.slane %v9743, 4
        %v9745 = vadd.f32 %v9743, %v9744
        %v9746 = vrot.slane %v9745, 2
        %v9747 = vadd.f32 %v9745, %v9746
        %v9748 = vrot.slane %v9747, 1
        %v9749 = vadd.f32 %v9747, %v9748
        %v9750 = vsel %vm1978, %v6274, 0.0
        %v9751 = vrot.slane %v9750, 4
        %v9752 = vadd.f32 %v9750, %v9751
        %v9753 = vrot.slane %v9752, 2
        %v9754 = vadd.f32 %v9752, %v9753
        %v9755 = vrot.slane %v9754, 1
        %v9756 = vadd.f32 %v9754, %v9755
        %v9757 = vsel %vm1978, %v6275, 0.0
        %v9758 = vrot.slane %v9757, 4
        %v9759 = vadd.f32 %v9757, %v9758
        %v9760 = vrot.slane %v9759, 2
        %v9761 = vadd.f32 %v9759, %v9760
        %v9762 = vrot.slane %v9761, 1
        %v9763 = vadd.f32 %v9761, %v9762
        %v9764 = vsel %vm1978, %v6276, 0.0
        %v9765 = vrot.slane %v9764, 4
        %v9766 = vadd.f32 %v9764, %v9765
        %v9767 = vrot.slane %v9766, 2
        %v9768 = vadd.f32 %v9766, %v9767
        %v9769 = vrot.slane %v9768, 1
        %v9770 = vadd.f32 %v9768, %v9769
        %v9771 = vsel %vm1978, %v6277, 0.0
        %v9772 = vrot.slane %v9771, 4
        %v9773 = vadd.f32 %v9771, %v9772
        %v9774 = vrot.slane %v9773, 2
        %v9775 = vadd.f32 %v9773, %v9774
        %v9776 = vrot.slane %v9775, 1
        %v9777 = vadd.f32 %v9775, %v9776
        %v9778 = vsel %vm1978, %v6278, 0.0
        %v9779 = vrot.slane %v9778, 4
        %v9780 = vadd.f32 %v9778, %v9779
        %v9781 = vrot.slane %v9780, 2
        %v9782 = vadd.f32 %v9780, %v9781
        %v9783 = vrot.slane %v9782, 1
        %v9784 = vadd.f32 %v9782, %v9783
        %v9785 = vsel %vm1978, %v6279, 0.0
        %v9786 = vrot.slane %v9785, 4
        %v9787 = vadd.f32 %v9785, %v9786
        %v9788 = vrot.slane %v9787, 2
        %v9789 = vadd.f32 %v9787, %v9788
        %v9790 = vrot.slane %v9789, 1
        %v9791 = vadd.f32 %v9789, %v9790
        %v9792 = vsel %vm1978, %v6280, 0.0
        %v9793 = vrot.slane %v9792, 4
        %v9794 = vadd.f32 %v9792, %v9793
        %v9795 = vrot.slane %v9794, 2
        %v9796 = vadd.f32 %v9794, %v9795
        %v9797 = vrot.slane %v9796, 1
        %v9798 = vadd.f32 %v9796, %v9797
        %v9799 = vsel %vm1978, %v6281, 0.0
        %v9800 = vrot.slane %v9799, 4
        %v9801 = vadd.f32 %v9799, %v9800
        %v9802 = vrot.slane %v9801, 2
        %v9803 = vadd.f32 %v9801, %v9802
        %v9804 = vrot.slane %v9803, 1
        %v9805 = vadd.f32 %v9803, %v9804
        %v9806 = vsel %vm1978, %v6282, 0.0
        %v9807 = vrot.slane %v9806, 4
        %v9808 = vadd.f32 %v9806, %v9807
        %v9809 = vrot.slane %v9808, 2
        %v9810 = vadd.f32 %v9808, %v9809
        %v9811 = vrot.slane %v9810, 1
        %v9812 = vadd.f32 %v9810, %v9811
        %v9813 = vsel %vm1978, %v6283, 0.0
        %v9814 = vrot.slane %v9813, 4
        %v9815 = vadd.f32 %v9813, %v9814
        %v9816 = vrot.slane %v9815, 2
        %v9817 = vadd.f32 %v9815, %v9816
        %v9818 = vrot.slane %v9817, 1
        %v9819 = vadd.f32 %v9817, %v9818
        %v9820 = vsel %vm1978, %v6284, 0.0
        %v9821 = vrot.slane %v9820, 4
        %v9822 = vadd.f32 %v9820, %v9821
        %v9823 = vrot.slane %v9822, 2
        %v9824 = vadd.f32 %v9822, %v9823
        %v9825 = vrot.slane %v9824, 1
        %v9826 = vadd.f32 %v9824, %v9825
        %v9827 = vsel %vm1978, %v6285, 0.0
        %v9828 = vrot.slane %v9827, 4
        %v9829 = vadd.f32 %v9827, %v9828
        %v9830 = vrot.slane %v9829, 2
        %v9831 = vadd.f32 %v9829, %v9830
        %v9832 = vrot.slane %v9831, 1
        %v9833 = vadd.f32 %v9831, %v9832
        %v9834 = vsel %vm1978, %v6286, 0.0
        %v9835 = vrot.slane %v9834, 4
        %v9836 = vadd.f32 %v9834, %v9835
        %v9837 = vrot.slane %v9836, 2
        %v9838 = vadd.f32 %v9836, %v9837
        %v9839 = vrot.slane %v9838, 1
        %v9840 = vadd.f32 %v9838, %v9839
        %v9841 = vsel %vm1978, %v6287, 0.0
        %v9842 = vrot.slane %v9841, 4
        %v9843 = vadd.f32 %v9841, %v9842
        %v9844 = vrot.slane %v9843, 2
        %v9845 = vadd.f32 %v9843, %v9844
        %v9846 = vrot.slane %v9845, 1
        %v9847 = vadd.f32 %v9845, %v9846
        %v9848 = vsel %vm1978, %v6288, 0.0
        %v9849 = vrot.slane %v9848, 4
        %v9850 = vadd.f32 %v9848, %v9849
        %v9851 = vrot.slane %v9850, 2
        %v9852 = vadd.f32 %v9850, %v9851
        %v9853 = vrot.slane %v9852, 1
        %v9854 = vadd.f32 %v9852, %v9853
        %v9855 = vsel %vm1978, %v6289, 0.0
        %v9856 = vrot.slane %v9855, 4
        %v9857 = vadd.f32 %v9855, %v9856
        %v9858 = vrot.slane %v9857, 2
        %v9859 = vadd.f32 %v9857, %v9858
        %v9860 = vrot.slane %v9859, 1
        %v9861 = vadd.f32 %v9859, %v9860
        %v9862 = vsel %vm1978, %v6290, 0.0
        %v9863 = vrot.slane %v9862, 4
        %v9864 = vadd.f32 %v9862, %v9863
        %v9865 = vrot.slane %v9864, 2
        %v9866 = vadd.f32 %v9864, %v9865
        %v9867 = vrot.slane %v9866, 1
        %v9868 = vadd.f32 %v9866, %v9867
        %v9869 = vsel %vm1978, %v6291, 0.0
        %v9870 = vrot.slane %v9869, 4
        %v9871 = vadd.f32 %v9869, %v9870
        %v9872 = vrot.slane %v9871, 2
        %v9873 = vadd.f32 %v9871, %v9872
        %v9874 = vrot.slane %v9873, 1
        %v9875 = vadd.f32 %v9873, %v9874
        %vm10388 = vcmask 1041409
        %v10389 = vsel %vm10388, %v6305, %v6298
        %vm10390 = vcmask 1042434
        %v10391 = vsel %vm10390, %v6312, %v10389
        %vm10392 = vcmask 1043459
        %v10393 = vsel %vm10392, %v6319, %v10391
        %vm10394 = vcmask 1044484
        %v10395 = vsel %vm10394, %v6326, %v10393
        %vm10396 = vcmask 1045509
        %v10397 = vsel %vm10396, %v6333, %v10395
        %vm10398 = vcmask 1046534
        %v10399 = vsel %vm10398, %v6340, %v10397
        %vm10400 = vcmask 1047559
        %v10401 = vsel %vm10400, %v6347, %v10399
        %v10402 = vsel %vm10388, %v6361, %v6354
        %v10403 = vsel %vm10390, %v6368, %v10402
        %v10404 = vsel %vm10392, %v6375, %v10403
        %v10405 = vsel %vm10394, %v6382, %v10404
        %v10406 = vsel %vm10396, %v6389, %v10405
        %v10407 = vsel %vm10398, %v6396, %v10406
        %v10408 = vsel %vm10400, %v6403, %v10407
        %v10409 = vsel %vm10388, %v6417, %v6410
        %v10410 = vsel %vm10390, %v6424, %v10409
        %v10411 = vsel %vm10392, %v6431, %v10410
        %v10412 = vsel %vm10394, %v6438, %v10411
        %v10413 = vsel %vm10396, %v6445, %v10412
        %v10414 = vsel %vm10398, %v6452, %v10413
        %v10415 = vsel %vm10400, %v6459, %v10414
        %v10416 = vsel %vm10388, %v6473, %v6466
        %v10417 = vsel %vm10390, %v6480, %v10416
        %v10418 = vsel %vm10392, %v6487, %v10417
        %v10419 = vsel %vm10394, %v6494, %v10418
        %v10420 = vsel %vm10396, %v6501, %v10419
        %v10421 = vsel %vm10398, %v6508, %v10420
        %v10422 = vsel %vm10400, %v6515, %v10421
        %v10423 = vsel %vm10388, %v6529, %v6522
        %v10424 = vsel %vm10390, %v6536, %v10423
        %v10425 = vsel %vm10392, %v6543, %v10424
        %v10426 = vsel %vm10394, %v6550, %v10425
        %v10427 = vsel %vm10396, %v6557, %v10426
        %v10428 = vsel %vm10398, %v6564, %v10427
        %v10429 = vsel %vm10400, %v6571, %v10428
        %v10430 = vsel %vm10388, %v6585, %v6578
        %v10431 = vsel %vm10390, %v6592, %v10430
        %v10432 = vsel %vm10392, %v6599, %v10431
        %v10433 = vsel %vm10394, %v6606, %v10432
        %v10434 = vsel %vm10396, %v6613, %v10433
        %v10435 = vsel %vm10398, %v6620, %v10434
        %v10436 = vsel %vm10400, %v6627, %v10435
        %v10437 = vsel %vm10388, %v6641, %v6634
        %v10438 = vsel %vm10390, %v6648, %v10437
        %v10439 = vsel %vm10392, %v6655, %v10438
        %v10440 = vsel %vm10394, %v6662, %v10439
        %v10441 = vsel %vm10396, %v6669, %v10440
        %v10442 = vsel %vm10398, %v6676, %v10441
        %v10443 = vsel %vm10400, %v6683, %v10442
        %v10444 = vsel %vm10388, %v6697, %v6690
        %v10445 = vsel %vm10390, %v6704, %v10444
        %v10446 = vsel %vm10392, %v6711, %v10445
        %v10447 = vsel %vm10394, %v6718, %v10446
        %v10448 = vsel %vm10396, %v6725, %v10447
        %v10449 = vsel %vm10398, %v6732, %v10448
        %v10450 = vsel %vm10400, %v6739, %v10449
        %v10451 = vsel %vm10388, %v6753, %v6746
        %v10452 = vsel %vm10390, %v6760, %v10451
        %v10453 = vsel %vm10392, %v6767, %v10452
        %v10454 = vsel %vm10394, %v6774, %v10453
        %v10455 = vsel %vm10396, %v6781, %v10454
        %v10456 = vsel %vm10398, %v6788, %v10455
        %v10457 = vsel %vm10400, %v6795, %v10456
        %v10458 = vsel %vm10388, %v6809, %v6802
        %v10459 = vsel %vm10390, %v6816, %v10458
        %v10460 = vsel %vm10392, %v6823, %v10459
        %v10461 = vsel %vm10394, %v6830, %v10460
        %v10462 = vsel %vm10396, %v6837, %v10461
        %v10463 = vsel %vm10398, %v6844, %v10462
        %v10464 = vsel %vm10400, %v6851, %v10463
        %v10465 = vsel %vm10388, %v6865, %v6858
        %v10466 = vsel %vm10390, %v6872, %v10465
        %v10467 = vsel %vm10392, %v6879, %v10466
        %v10468 = vsel %vm10394, %v6886, %v10467
        %v10469 = vsel %vm10396, %v6893, %v10468
        %v10470 = vsel %vm10398, %v6900, %v10469
        %v10471 = vsel %vm10400, %v6907, %v10470
        %v10472 = vsel %vm10388, %v6921, %v6914
        %v10473 = vsel %vm10390, %v6928, %v10472
        %v10474 = vsel %vm10392, %v6935, %v10473
        %v10475 = vsel %vm10394, %v6942, %v10474
        %v10476 = vsel %vm10396, %v6949, %v10475
        %v10477 = vsel %vm10398, %v6956, %v10476
        %v10478 = vsel %vm10400, %v6963, %v10477
        %v10479 = vsel %vm10388, %v6977, %v6970
        %v10480 = vsel %vm10390, %v6984, %v10479
        %v10481 = vsel %vm10392, %v6991, %v10480
        %v10482 = vsel %vm10394, %v6998, %v10481
        %v10483 = vsel %vm10396, %v7005, %v10482
        %v10484 = vsel %vm10398, %v7012, %v10483
        %v10485 = vsel %vm10400, %v7019, %v10484
        %v10486 = vsel %vm10388, %v7033, %v7026
        %v10487 = vsel %vm10390, %v7040, %v10486
        %v10488 = vsel %vm10392, %v7047, %v10487
        %v10489 = vsel %vm10394, %v7054, %v10488
        %v10490 = vsel %vm10396, %v7061, %v10489
        %v10491 = vsel %vm10398, %v7068, %v10490
        %v10492 = vsel %vm10400, %v7075, %v10491
        %v10493 = vsel %vm10388, %v7089, %v7082
        %v10494 = vsel %vm10390, %v7096, %v10493
        %v10495 = vsel %vm10392, %v7103, %v10494
        %v10496 = vsel %vm10394, %v7110, %v10495
        %v10497 = vsel %vm10396, %v7117, %v10496
        %v10498 = vsel %vm10398, %v7124, %v10497
        %v10499 = vsel %vm10400, %v7131, %v10498
        %v10500 = vsel %vm10388, %v7145, %v7138
        %v10501 = vsel %vm10390, %v7152, %v10500
        %v10502 = vsel %vm10392, %v7159, %v10501
        %v10503 = vsel %vm10394, %v7166, %v10502
        %v10504 = vsel %vm10396, %v7173, %v10503
        %v10505 = vsel %vm10398, %v7180, %v10504
        %v10506 = vsel %vm10400, %v7187, %v10505
        %v10507 = vsel %vm10388, %v7201, %v7194
        %v10508 = vsel %vm10390, %v7208, %v10507
        %v10509 = vsel %vm10392, %v7215, %v10508
        %v10510 = vsel %vm10394, %v7222, %v10509
        %v10511 = vsel %vm10396, %v7229, %v10510
        %v10512 = vsel %vm10398, %v7236, %v10511
        %v10513 = vsel %vm10400, %v7243, %v10512
        %v10514 = vsel %vm10388, %v7257, %v7250
        %v10515 = vsel %vm10390, %v7264, %v10514
        %v10516 = vsel %vm10392, %v7271, %v10515
        %v10517 = vsel %vm10394, %v7278, %v10516
        %v10518 = vsel %vm10396, %v7285, %v10517
        %v10519 = vsel %vm10398, %v7292, %v10518
        %v10520 = vsel %vm10400, %v7299, %v10519
        %v10521 = vsel %vm10388, %v7313, %v7306
        %v10522 = vsel %vm10390, %v7320, %v10521
        %v10523 = vsel %vm10392, %v7327, %v10522
        %v10524 = vsel %vm10394, %v7334, %v10523
        %v10525 = vsel %vm10396, %v7341, %v10524
        %v10526 = vsel %vm10398, %v7348, %v10525
        %v10527 = vsel %vm10400, %v7355, %v10526
        %v10528 = vsel %vm10388, %v7369, %v7362
        %v10529 = vsel %vm10390, %v7376, %v10528
        %v10530 = vsel %vm10392, %v7383, %v10529
        %v10531 = vsel %vm10394, %v7390, %v10530
        %v10532 = vsel %vm10396, %v7397, %v10531
        %v10533 = vsel %vm10398, %v7404, %v10532
        %v10534 = vsel %vm10400, %v7411, %v10533
        %v10535 = vsel %vm10388, %v7425, %v7418
        %v10536 = vsel %vm10390, %v7432, %v10535
        %v10537 = vsel %vm10392, %v7439, %v10536
        %v10538 = vsel %vm10394, %v7446, %v10537
        %v10539 = vsel %vm10396, %v7453, %v10538
        %v10540 = vsel %vm10398, %v7460, %v10539
        %v10541 = vsel %vm10400, %v7467, %v10540
        %v10542 = vsel %vm10388, %v7481, %v7474
        %v10543 = vsel %vm10390, %v7488, %v10542
        %v10544 = vsel %vm10392, %v7495, %v10543
        %v10545 = vsel %vm10394, %v7502, %v10544
        %v10546 = vsel %vm10396, %v7509, %v10545
        %v10547 = vsel %vm10398, %v7516, %v10546
        %v10548 = vsel %vm10400, %v7523, %v10547
        %v10549 = vsel %vm10388, %v7537, %v7530
        %v10550 = vsel %vm10390, %v7544, %v10549
        %v10551 = vsel %vm10392, %v7551, %v10550
        %v10552 = vsel %vm10394, %v7558, %v10551
        %v10553 = vsel %vm10396, %v7565, %v10552
        %v10554 = vsel %vm10398, %v7572, %v10553
        %v10555 = vsel %vm10400, %v7579, %v10554
        %v10556 = vsel %vm10388, %v7593, %v7586
        %v10557 = vsel %vm10390, %v7600, %v10556
        %v10558 = vsel %vm10392, %v7607, %v10557
        %v10559 = vsel %vm10394, %v7614, %v10558
        %v10560 = vsel %vm10396, %v7621, %v10559
        %v10561 = vsel %vm10398, %v7628, %v10560
        %v10562 = vsel %vm10400, %v7635, %v10561
        %v10563 = vsel %vm10388, %v7649, %v7642
        %v10564 = vsel %vm10390, %v7656, %v10563
        %v10565 = vsel %vm10392, %v7663, %v10564
        %v10566 = vsel %vm10394, %v7670, %v10565
        %v10567 = vsel %vm10396, %v7677, %v10566
        %v10568 = vsel %vm10398, %v7684, %v10567
        %v10569 = vsel %vm10400, %v7691, %v10568
        %v10570 = vsel %vm10388, %v7705, %v7698
        %v10571 = vsel %vm10390, %v7712, %v10570
        %v10572 = vsel %vm10392, %v7719, %v10571
        %v10573 = vsel %vm10394, %v7726, %v10572
        %v10574 = vsel %vm10396, %v7733, %v10573
        %v10575 = vsel %vm10398, %v7740, %v10574
        %v10576 = vsel %vm10400, %v7747, %v10575
        %v10577 = vsel %vm10388, %v7761, %v7754
        %v10578 = vsel %vm10390, %v7768, %v10577
        %v10579 = vsel %vm10392, %v7775, %v10578
        %v10580 = vsel %vm10394, %v7782, %v10579
        %v10581 = vsel %vm10396, %v7789, %v10580
        %v10582 = vsel %vm10398, %v7796, %v10581
        %v10583 = vsel %vm10400, %v7803, %v10582
        %v10584 = vsel %vm10388, %v7817, %v7810
        %v10585 = vsel %vm10390, %v7824, %v10584
        %v10586 = vsel %vm10392, %v7831, %v10585
        %v10587 = vsel %vm10394, %v7838, %v10586
        %v10588 = vsel %vm10396, %v7845, %v10587
        %v10589 = vsel %vm10398, %v7852, %v10588
        %v10590 = vsel %vm10400, %v7859, %v10589
        %v10591 = vsel %vm10388, %v7873, %v7866
        %v10592 = vsel %vm10390, %v7880, %v10591
        %v10593 = vsel %vm10392, %v7887, %v10592
        %v10594 = vsel %vm10394, %v7894, %v10593
        %v10595 = vsel %vm10396, %v7901, %v10594
        %v10596 = vsel %vm10398, %v7908, %v10595
        %v10597 = vsel %vm10400, %v7915, %v10596
        %v10598 = vsel %vm10388, %v7929, %v7922
        %v10599 = vsel %vm10390, %v7936, %v10598
        %v10600 = vsel %vm10392, %v7943, %v10599
        %v10601 = vsel %vm10394, %v7950, %v10600
        %v10602 = vsel %vm10396, %v7957, %v10601
        %v10603 = vsel %vm10398, %v7964, %v10602
        %v10604 = vsel %vm10400, %v7971, %v10603
        %v10605 = vsel %vm10388, %v7985, %v7978
        %v10606 = vsel %vm10390, %v7992, %v10605
        %v10607 = vsel %vm10392, %v7999, %v10606
        %v10608 = vsel %vm10394, %v8006, %v10607
        %v10609 = vsel %vm10396, %v8013, %v10608
        %v10610 = vsel %vm10398, %v8020, %v10609
        %v10611 = vsel %vm10400, %v8027, %v10610
        %v10612 = vsel %vm10388, %v8041, %v8034
        %v10613 = vsel %vm10390, %v8048, %v10612
        %v10614 = vsel %vm10392, %v8055, %v10613
        %v10615 = vsel %vm10394, %v8062, %v10614
        %v10616 = vsel %vm10396, %v8069, %v10615
        %v10617 = vsel %vm10398, %v8076, %v10616
        %v10618 = vsel %vm10400, %v8083, %v10617
        %v10619 = vsel %vm10388, %v8097, %v8090
        %v10620 = vsel %vm10390, %v8104, %v10619
        %v10621 = vsel %vm10392, %v8111, %v10620
        %v10622 = vsel %vm10394, %v8118, %v10621
        %v10623 = vsel %vm10396, %v8125, %v10622
        %v10624 = vsel %vm10398, %v8132, %v10623
        %v10625 = vsel %vm10400, %v8139, %v10624
        %v10626 = vsel %vm10388, %v8153, %v8146
        %v10627 = vsel %vm10390, %v8160, %v10626
        %v10628 = vsel %vm10392, %v8167, %v10627
        %v10629 = vsel %vm10394, %v8174, %v10628
        %v10630 = vsel %vm10396, %v8181, %v10629
        %v10631 = vsel %vm10398, %v8188, %v10630
        %v10632 = vsel %vm10400, %v8195, %v10631
        %v10633 = vsel %vm10388, %v8209, %v8202
        %v10634 = vsel %vm10390, %v8216, %v10633
        %v10635 = vsel %vm10392, %v8223, %v10634
        %v10636 = vsel %vm10394, %v8230, %v10635
        %v10637 = vsel %vm10396, %v8237, %v10636
        %v10638 = vsel %vm10398, %v8244, %v10637
        %v10639 = vsel %vm10400, %v8251, %v10638
        %v10640 = vsel %vm10388, %v8265, %v8258
        %v10641 = vsel %vm10390, %v8272, %v10640
        %v10642 = vsel %vm10392, %v8279, %v10641
        %v10643 = vsel %vm10394, %v8286, %v10642
        %v10644 = vsel %vm10396, %v8293, %v10643
        %v10645 = vsel %vm10398, %v8300, %v10644
        %v10646 = vsel %vm10400, %v8307, %v10645
        %v10647 = vsel %vm10388, %v8321, %v8314
        %v10648 = vsel %vm10390, %v8328, %v10647
        %v10649 = vsel %vm10392, %v8335, %v10648
        %v10650 = vsel %vm10394, %v8342, %v10649
        %v10651 = vsel %vm10396, %v8349, %v10650
        %v10652 = vsel %vm10398, %v8356, %v10651
        %v10653 = vsel %vm10400, %v8363, %v10652
        %v10654 = vsel %vm10388, %v8377, %v8370
        %v10655 = vsel %vm10390, %v8384, %v10654
        %v10656 = vsel %vm10392, %v8391, %v10655
        %v10657 = vsel %vm10394, %v8398, %v10656
        %v10658 = vsel %vm10396, %v8405, %v10657
        %v10659 = vsel %vm10398, %v8412, %v10658
        %v10660 = vsel %vm10400, %v8419, %v10659
        %v10661 = vsel %vm10388, %v8433, %v8426
        %v10662 = vsel %vm10390, %v8440, %v10661
        %v10663 = vsel %vm10392, %v8447, %v10662
        %v10664 = vsel %vm10394, %v8454, %v10663
        %v10665 = vsel %vm10396, %v8461, %v10664
        %v10666 = vsel %vm10398, %v8468, %v10665
        %v10667 = vsel %vm10400, %v8475, %v10666
        %v10668 = vsel %vm10388, %v8489, %v8482
        %v10669 = vsel %vm10390, %v8496, %v10668
        %v10670 = vsel %vm10392, %v8503, %v10669
        %v10671 = vsel %vm10394, %v8510, %v10670
        %v10672 = vsel %vm10396, %v8517, %v10671
        %v10673 = vsel %vm10398, %v8524, %v10672
        %v10674 = vsel %vm10400, %v8531, %v10673
        %v10675 = vsel %vm10388, %v8545, %v8538
        %v10676 = vsel %vm10390, %v8552, %v10675
        %v10677 = vsel %vm10392, %v8559, %v10676
        %v10678 = vsel %vm10394, %v8566, %v10677
        %v10679 = vsel %vm10396, %v8573, %v10678
        %v10680 = vsel %vm10398, %v8580, %v10679
        %v10681 = vsel %vm10400, %v8587, %v10680
        %v10682 = vsel %vm10388, %v8601, %v8594
        %v10683 = vsel %vm10390, %v8608, %v10682
        %v10684 = vsel %vm10392, %v8615, %v10683
        %v10685 = vsel %vm10394, %v8622, %v10684
        %v10686 = vsel %vm10396, %v8629, %v10685
        %v10687 = vsel %vm10398, %v8636, %v10686
        %v10688 = vsel %vm10400, %v8643, %v10687
        %v10689 = vsel %vm10388, %v8657, %v8650
        %v10690 = vsel %vm10390, %v8664, %v10689
        %v10691 = vsel %vm10392, %v8671, %v10690
        %v10692 = vsel %vm10394, %v8678, %v10691
        %v10693 = vsel %vm10396, %v8685, %v10692
        %v10694 = vsel %vm10398, %v8692, %v10693
        %v10695 = vsel %vm10400, %v8699, %v10694
        %v10696 = vsel %vm10388, %v8713, %v8706
        %v10697 = vsel %vm10390, %v8720, %v10696
        %v10698 = vsel %vm10392, %v8727, %v10697
        %v10699 = vsel %vm10394, %v8734, %v10698
        %v10700 = vsel %vm10396, %v8741, %v10699
        %v10701 = vsel %vm10398, %v8748, %v10700
        %v10702 = vsel %vm10400, %v8755, %v10701
        %v10703 = vsel %vm10388, %v8769, %v8762
        %v10704 = vsel %vm10390, %v8776, %v10703
        %v10705 = vsel %vm10392, %v8783, %v10704
        %v10706 = vsel %vm10394, %v8790, %v10705
        %v10707 = vsel %vm10396, %v8797, %v10706
        %v10708 = vsel %vm10398, %v8804, %v10707
        %v10709 = vsel %vm10400, %v8811, %v10708
        %v10710 = vsel %vm10388, %v8825, %v8818
        %v10711 = vsel %vm10390, %v8832, %v10710
        %v10712 = vsel %vm10392, %v8839, %v10711
        %v10713 = vsel %vm10394, %v8846, %v10712
        %v10714 = vsel %vm10396, %v8853, %v10713
        %v10715 = vsel %vm10398, %v8860, %v10714
        %v10716 = vsel %vm10400, %v8867, %v10715
        %v10717 = vsel %vm10388, %v8881, %v8874
        %v10718 = vsel %vm10390, %v8888, %v10717
        %v10719 = vsel %vm10392, %v8895, %v10718
        %v10720 = vsel %vm10394, %v8902, %v10719
        %v10721 = vsel %vm10396, %v8909, %v10720
        %v10722 = vsel %vm10398, %v8916, %v10721
        %v10723 = vsel %vm10400, %v8923, %v10722
        %v10724 = vsel %vm10388, %v8937, %v8930
        %v10725 = vsel %vm10390, %v8944, %v10724
        %v10726 = vsel %vm10392, %v8951, %v10725
        %v10727 = vsel %vm10394, %v8958, %v10726
        %v10728 = vsel %vm10396, %v8965, %v10727
        %v10729 = vsel %vm10398, %v8972, %v10728
        %v10730 = vsel %vm10400, %v8979, %v10729
        %v10731 = vsel %vm10388, %v8993, %v8986
        %v10732 = vsel %vm10390, %v9000, %v10731
        %v10733 = vsel %vm10392, %v9007, %v10732
        %v10734 = vsel %vm10394, %v9014, %v10733
        %v10735 = vsel %vm10396, %v9021, %v10734
        %v10736 = vsel %vm10398, %v9028, %v10735
        %v10737 = vsel %vm10400, %v9035, %v10736
        %v10738 = vsel %vm10388, %v9049, %v9042
        %v10739 = vsel %vm10390, %v9056, %v10738
        %v10740 = vsel %vm10392, %v9063, %v10739
        %v10741 = vsel %vm10394, %v9070, %v10740
        %v10742 = vsel %vm10396, %v9077, %v10741
        %v10743 = vsel %vm10398, %v9084, %v10742
        %v10744 = vsel %vm10400, %v9091, %v10743
        %v10745 = vsel %vm10388, %v9105, %v9098
        %v10746 = vsel %vm10390, %v9112, %v10745
        %v10747 = vsel %vm10392, %v9119, %v10746
        %v10748 = vsel %vm10394, %v9126, %v10747
        %v10749 = vsel %vm10396, %v9133, %v10748
        %v10750 = vsel %vm10398, %v9140, %v10749
        %v10751 = vsel %vm10400, %v9147, %v10750
        %v10752 = vsel %vm10388, %v9161, %v9154
        %v10753 = vsel %vm10390, %v9168, %v10752
        %v10754 = vsel %vm10392, %v9175, %v10753
        %v10755 = vsel %vm10394, %v9182, %v10754
        %v10756 = vsel %vm10396, %v9189, %v10755
        %v10757 = vsel %vm10398, %v9196, %v10756
        %v10758 = vsel %vm10400, %v9203, %v10757
        %v10759 = vsel %vm10388, %v9217, %v9210
        %v10760 = vsel %vm10390, %v9224, %v10759
        %v10761 = vsel %vm10392, %v9231, %v10760
        %v10762 = vsel %vm10394, %v9238, %v10761
        %v10763 = vsel %vm10396, %v9245, %v10762
        %v10764 = vsel %vm10398, %v9252, %v10763
        %v10765 = vsel %vm10400, %v9259, %v10764
        %v10766 = vsel %vm10388, %v9273, %v9266
        %v10767 = vsel %vm10390, %v9280, %v10766
        %v10768 = vsel %vm10392, %v9287, %v10767
        %v10769 = vsel %vm10394, %v9294, %v10768
        %v10770 = vsel %vm10396, %v9301, %v10769
        %v10771 = vsel %vm10398, %v9308, %v10770
        %v10772 = vsel %vm10400, %v9315, %v10771
        %v10773 = vsel %vm10388, %v9329, %v9322
        %v10774 = vsel %vm10390, %v9336, %v10773
        %v10775 = vsel %vm10392, %v9343, %v10774
        %v10776 = vsel %vm10394, %v9350, %v10775
        %v10777 = vsel %vm10396, %v9357, %v10776
        %v10778 = vsel %vm10398, %v9364, %v10777
        %v10779 = vsel %vm10400, %v9371, %v10778
        %v10780 = vsel %vm10388, %v9385, %v9378
        %v10781 = vsel %vm10390, %v9392, %v10780
        %v10782 = vsel %vm10392, %v9399, %v10781
        %v10783 = vsel %vm10394, %v9406, %v10782
        %v10784 = vsel %vm10396, %v9413, %v10783
        %v10785 = vsel %vm10398, %v9420, %v10784
        %v10786 = vsel %vm10400, %v9427, %v10785
        %v10787 = vsel %vm10388, %v9441, %v9434
        %v10788 = vsel %vm10390, %v9448, %v10787
        %v10789 = vsel %vm10392, %v9455, %v10788
        %v10790 = vsel %vm10394, %v9462, %v10789
        %v10791 = vsel %vm10396, %v9469, %v10790
        %v10792 = vsel %vm10398, %v9476, %v10791
        %v10793 = vsel %vm10400, %v9483, %v10792
        %v10794 = vsel %vm10388, %v9497, %v9490
        %v10795 = vsel %vm10390, %v9504, %v10794
        %v10796 = vsel %vm10392, %v9511, %v10795
        %v10797 = vsel %vm10394, %v9518, %v10796
        %v10798 = vsel %vm10396, %v9525, %v10797
        %v10799 = vsel %vm10398, %v9532, %v10798
        %v10800 = vsel %vm10400, %v9539, %v10799
        %v10801 = vsel %vm10388, %v9553, %v9546
        %v10802 = vsel %vm10390, %v9560, %v10801
        %v10803 = vsel %vm10392, %v9567, %v10802
        %v10804 = vsel %vm10394, %v9574, %v10803
        %v10805 = vsel %vm10396, %v9581, %v10804
        %v10806 = vsel %vm10398, %v9588, %v10805
        %v10807 = vsel %vm10400, %v9595, %v10806
        %v10808 = vsel %vm10388, %v9609, %v9602
        %v10809 = vsel %vm10390, %v9616, %v10808
        %v10810 = vsel %vm10392, %v9623, %v10809
        %v10811 = vsel %vm10394, %v9630, %v10810
        %v10812 = vsel %vm10396, %v9637, %v10811
        %v10813 = vsel %vm10398, %v9644, %v10812
        %v10814 = vsel %vm10400, %v9651, %v10813
        %v10815 = vsel %vm10388, %v9665, %v9658
        %v10816 = vsel %vm10390, %v9672, %v10815
        %v10817 = vsel %vm10392, %v9679, %v10816
        %v10818 = vsel %vm10394, %v9686, %v10817
        %v10819 = vsel %vm10396, %v9693, %v10818
        %v10820 = vsel %vm10398, %v9700, %v10819
        %v10821 = vsel %vm10400, %v9707, %v10820
        %v10822 = vsel %vm10388, %v9721, %v9714
        %v10823 = vsel %vm10390, %v9728, %v10822
        %v10824 = vsel %vm10392, %v9735, %v10823
        %v10825 = vsel %vm10394, %v9742, %v10824
        %v10826 = vsel %vm10396, %v9749, %v10825
        %v10827 = vsel %vm10398, %v9756, %v10826
        %v10828 = vsel %vm10400, %v9763, %v10827
        %v10829 = vsel %vm10388, %v9777, %v9770
        %v10830 = vsel %vm10390, %v9784, %v10829
        %v10831 = vsel %vm10392, %v9791, %v10830
        %v10832 = vsel %vm10394, %v9798, %v10831
        %v10833 = vsel %vm10396, %v9805, %v10832
        %v10834 = vsel %vm10398, %v9812, %v10833
        %v10835 = vsel %vm10400, %v9819, %v10834
        %v10836 = vsel %vm10388, %v9833, %v9826
        %v10837 = vsel %vm10390, %v9840, %v10836
        %v10838 = vsel %vm10392, %v9847, %v10837
        %v10839 = vsel %vm10394, %v9854, %v10838
        %v10840 = vsel %vm10396, %v9861, %v10839
        %v10841 = vsel %vm10398, %v9868, %v10840
        %v10842 = vsel %vm10400, %v9875, %v10841
        %10907 = vxpose.xlu0.b32.start [1/16] %v10401, 128
        %10908 = vxpose.xlu0.b32.cont [2/16] %v10408, 128
        %10909 = vxpose.xlu0.b32.cont [3/16] %v10415, 128
        %10910 = vxpose.xlu0.b32.cont [4/16] %v10422, 128
        %10911 = vxpose.xlu0.b32.cont [5/16] %v10429, 128
        %10912 = vxpose.xlu0.b32.cont [6/16] %v10436, 128
        %10913 = vxpose.xlu0.b32.cont [7/16] %v10443, 128
        %10914 = vxpose.xlu0.b32.cont [8/16] %v10450, 128
        %10915 = vxpose.xlu0.b32.cont [9/16] %v10457, 128
        %10916 = vxpose.xlu0.b32.cont [10/16] %v10464, 128
        %10917 = vxpose.xlu0.b32.cont [11/16] %v10471, 128
        %10918 = vxpose.xlu0.b32.cont [12/16] %v10478, 128
        %10919 = vxpose.xlu0.b32.cont [13/16] %v10485, 128
        %10920 = vxpose.xlu0.b32.cont [14/16] %v10492, 128
        %10921 = vxpose.xlu0.b32.cont [15/16] %v10499, 128
        %10922 = vxpose.xlu0.b32.end [16/16] %v10506, 128
        %v10923 = vpop.trf.xlu0
        %v10924 = vpop.trf.xlu0
        %v10925 = vpop.trf.xlu0
        %v10926 = vpop.trf.xlu0
        %v10927 = vpop.trf.xlu0
        %v10928 = vpop.trf.xlu0
        %v10929 = vpop.trf.xlu0
        %v10930 = vpop.trf.xlu0
        %v10931 = vpop.trf.xlu0
        %v10932 = vpop.trf.xlu0
        %v10933 = vpop.trf.xlu0
        %v10934 = vpop.trf.xlu0
        %v10935 = vpop.trf.xlu0
        %v10936 = vpop.trf.xlu0
        %v10937 = vpop.trf.xlu0
        %v10938 = vpop.trf.xlu0
        %10939 = vxpose.xlu0.b32.start [1/16] %v10513, 128
        %10940 = vxpose.xlu0.b32.cont [2/16] %v10520, 128
        %10941 = vxpose.xlu0.b32.cont [3/16] %v10527, 128
        %10942 = vxpose.xlu0.b32.cont [4/16] %v10534, 128
        %10943 = vxpose.xlu0.b32.cont [5/16] %v10541, 128
        %10944 = vxpose.xlu0.b32.cont [6/16] %v10548, 128
        %10945 = vxpose.xlu0.b32.cont [7/16] %v10555, 128
        %10946 = vxpose.xlu0.b32.cont [8/16] %v10562, 128
        %10947 = vxpose.xlu0.b32.cont [9/16] %v10569, 128
        %10948 = vxpose.xlu0.b32.cont [10/16] %v10576, 128
        %10949 = vxpose.xlu0.b32.cont [11/16] %v10583, 128
        %10950 = vxpose.xlu0.b32.cont [12/16] %v10590, 128
        %10951 = vxpose.xlu0.b32.cont [13/16] %v10597, 128
        %10952 = vxpose.xlu0.b32.cont [14/16] %v10604, 128
        %10953 = vxpose.xlu0.b32.cont [15/16] %v10611, 128
        %10954 = vxpose.xlu0.b32.end [16/16] %v10618, 128
        %v10955 = vpop.trf.xlu0
        %v10956 = vpop.trf.xlu0
        %v10957 = vpop.trf.xlu0
        %v10958 = vpop.trf.xlu0
        %v10959 = vpop.trf.xlu0
        %v10960 = vpop.trf.xlu0
        %v10961 = vpop.trf.xlu0
        %v10962 = vpop.trf.xlu0
        %v10963 = vpop.trf.xlu0
        %v10964 = vpop.trf.xlu0
        %v10965 = vpop.trf.xlu0
        %v10966 = vpop.trf.xlu0
        %v10967 = vpop.trf.xlu0
        %v10968 = vpop.trf.xlu0
        %v10969 = vpop.trf.xlu0
        %v10970 = vpop.trf.xlu0
        %10971 = vxpose.xlu0.b32.start [1/16] %v10625, 128
        %10972 = vxpose.xlu0.b32.cont [2/16] %v10632, 128
        %10973 = vxpose.xlu0.b32.cont [3/16] %v10639, 128
        %10974 = vxpose.xlu0.b32.cont [4/16] %v10646, 128
        %10975 = vxpose.xlu0.b32.cont [5/16] %v10653, 128
        %10976 = vxpose.xlu0.b32.cont [6/16] %v10660, 128
        %10977 = vxpose.xlu0.b32.cont [7/16] %v10667, 128
        %10978 = vxpose.xlu0.b32.cont [8/16] %v10674, 128
        %10979 = vxpose.xlu0.b32.cont [9/16] %v10681, 128
        %10980 = vxpose.xlu0.b32.cont [10/16] %v10688, 128
        %10981 = vxpose.xlu0.b32.cont [11/16] %v10695, 128
        %10982 = vxpose.xlu0.b32.cont [12/16] %v10702, 128
        %10983 = vxpose.xlu0.b32.cont [13/16] %v10709, 128
        %10984 = vxpose.xlu0.b32.cont [14/16] %v10716, 128
        %10985 = vxpose.xlu0.b32.cont [15/16] %v10723, 128
        %10986 = vxpose.xlu0.b32.end [16/16] %v10730, 128
        %v10987 = vpop.trf.xlu0
        %v10988 = vpop.trf.xlu0
        %v10989 = vpop.trf.xlu0
        %v10990 = vpop.trf.xlu0
        %v10991 = vpop.trf.xlu0
        %v10992 = vpop.trf.xlu0
        %v10993 = vpop.trf.xlu0
        %v10994 = vpop.trf.xlu0
        %v10995 = vpop.trf.xlu0
        %v10996 = vpop.trf.xlu0
        %v10997 = vpop.trf.xlu0
        %v10998 = vpop.trf.xlu0
        %v10999 = vpop.trf.xlu0
        %v11000 = vpop.trf.xlu0
        %v11001 = vpop.trf.xlu0
        %v11002 = vpop.trf.xlu0
        %11003 = vxpose.xlu0.b32.start [1/16] %v10737, 128
        %11004 = vxpose.xlu0.b32.cont [2/16] %v10744, 128
        %11005 = vxpose.xlu0.b32.cont [3/16] %v10751, 128
        %11006 = vxpose.xlu0.b32.cont [4/16] %v10758, 128
        %11007 = vxpose.xlu0.b32.cont [5/16] %v10765, 128
        %11008 = vxpose.xlu0.b32.cont [6/16] %v10772, 128
        %11009 = vxpose.xlu0.b32.cont [7/16] %v10779, 128
        %11010 = vxpose.xlu0.b32.cont [8/16] %v10786, 128
        %11011 = vxpose.xlu0.b32.cont [9/16] %v10793, 128
        %11012 = vxpose.xlu0.b32.cont [10/16] %v10800, 128
        %11013 = vxpose.xlu0.b32.cont [11/16] %v10807, 128
        %11014 = vxpose.xlu0.b32.cont [12/16] %v10814, 128
        %11015 = vxpose.xlu0.b32.cont [13/16] %v10821, 128
        %11016 = vxpose.xlu0.b32.cont [14/16] %v10828, 128
        %11017 = vxpose.xlu0.b32.cont [15/16] %v10835, 128
        %11018 = vxpose.xlu0.b32.end [16/16] %v10842, 128
        %v11019 = vpop.trf.xlu0
        %v11020 = vpop.trf.xlu0
        %v11021 = vpop.trf.xlu0
        %v11022 = vpop.trf.xlu0
        %v11023 = vpop.trf.xlu0
        %v11024 = vpop.trf.xlu0
        %v11025 = vpop.trf.xlu0
        %v11026 = vpop.trf.xlu0
        %v11027 = vpop.trf.xlu0
        %v11028 = vpop.trf.xlu0
        %v11029 = vpop.trf.xlu0
        %v11030 = vpop.trf.xlu0
        %v11031 = vpop.trf.xlu0
        %v11032 = vpop.trf.xlu0
        %v11033 = vpop.trf.xlu0
        %v11034 = vpop.trf.xlu0
        %11035 = vst [vmem:[%s296] sm:$0xff] %v10923
        %11036 = vst [vmem:[%s296 + $0x8] sm:$0xff] %v10955
        %11037 = vst [vmem:[%s296 + $0x10] sm:$0xff] %v10987
        %11038 = vst [vmem:[%s296 + $0x18] sm:$0xff] %v11019
        %11039 = vst [vmem:[%s296 + $0x20] sm:$0xff] %v10924
        %11040 = vst [vmem:[%s296 + $0x28] sm:$0xff] %v10956
        %11041 = vst [vmem:[%s296 + $0x30] sm:$0xff] %v10988
        %11042 = vst [vmem:[%s296 + $0x38] sm:$0xff] %v11020
        %11043 = vst [vmem:[%s296 + $0x40] sm:$0xff] %v10925
        %11044 = vst [vmem:[%s296 + $0x48] sm:$0xff] %v10957
        %11045 = vst [vmem:[%s296 + $0x50] sm:$0xff] %v10989
        %11046 = vst [vmem:[%s296 + $0x58] sm:$0xff] %v11021
        %11047 = vst [vmem:[%s296 + $0x60] sm:$0xff] %v10926
        %11048 = vst [vmem:[%s296 + $0x68] sm:$0xff] %v10958
        %11049 = vst [vmem:[%s296 + $0x70] sm:$0xff] %v10990
        %11050 = vst [vmem:[%s296 + $0x78] sm:$0xff] %v11022
        %11051 = vst [vmem:[%s296 + $0x80] sm:$0xff] %v10927
        %11052 = vst [vmem:[%s296 + $0x88] sm:$0xff] %v10959
        %11053 = vst [vmem:[%s296 + $0x90] sm:$0xff] %v10991
        %11054 = vst [vmem:[%s296 + $0x98] sm:$0xff] %v11023
        %11055 = vst [vmem:[%s296 + $0xa0] sm:$0xff] %v10928
        %11056 = vst [vmem:[%s296 + $0xa8] sm:$0xff] %v10960
        %11057 = vst [vmem:[%s296 + $0xb0] sm:$0xff] %v10992
        %11058 = vst [vmem:[%s296 + $0xb8] sm:$0xff] %v11024
        %11059 = vst [vmem:[%s296 + $0xc0] sm:$0xff] %v10929
        %11060 = vst [vmem:[%s296 + $0xc8] sm:$0xff] %v10961
        %11061 = vst [vmem:[%s296 + $0xd0] sm:$0xff] %v10993
        %11062 = vst [vmem:[%s296 + $0xd8] sm:$0xff] %v11025
        %11063 = vst [vmem:[%s296 + $0xe0] sm:$0xff] %v10930
        %11064 = vst [vmem:[%s296 + $0xe8] sm:$0xff] %v10962
        %11065 = vst [vmem:[%s296 + $0xf0] sm:$0xff] %v10994
        %11066 = vst [vmem:[%s296 + $0xf8] sm:$0xff] %v11026
        %s11067 = sand.u32 %s197, 1
        %s11068 = scalar_lea.sflag [#allocation3], %s11067
        %s11069 = sand.u32 %s197, 1
        %s11070 = smul.addr %s11069, 256
        %s11071 = scalar_lea.vmem [#allocation2], %s11070
        // Predicated region
        $region49: #{feature_aggregation.1} parent=47 // pred_check
          %p11072 = pneg %p207
        $region50: #{feature_aggregation.1} parent=47 // pred_check_branch
          %11074 = sbr.rel (%p11072) target = $region52
        $region51: #{feature_aggregation.1} parent=47 // pred_region
          %s11075 = smul.u32 4, %s26
          %11077 = vsyncadd %s11068, 0
          %s11078 = smul.addr %s25, 32
          %s11079 = sadd.s32 %s11075, %s11078
          %s11080 = smul.addr %s11079, 8
          %s11081 = scalar_lea.hbm %s7, %s11080
          %s11082 = sshll.u32 %s11071, 4
          %s11083 = int_to_ptr.vmem [resolvable:$true] %s11082
          %s11084 = sshll.u32 %s11081, 4
          %s11085 = int_to_ptr.hbm [resolvable:$true] %s11084
          %11090 = dma.vmem_to_hbm [thread:$0]  %s11083, 4096, %s11085, %s11068, 512, 512, 32
        $region52: #{feature_aggregation.1} parent=47 // pred_fallthru
          _
      $region48: #{feature_aggregation.1} parent=5 // pred_fallthru
        _
      %p11091 = scmp.le.s32.totalorder 2, %s16
      // Predicated region
      $region53: #{feature_aggregation.1} parent=5 // pred_check
        %p11092 = pneg %p11091
      $region54: #{feature_aggregation.1} parent=5 // pred_check_branch
        %11094 = sbr.rel (%p11092) target = $region56
      $region55: #{feature_aggregation.1} parent=5 // pred_region
        %s11095 = ssub.s32 %s16, 2
        // Predicated region
        $region57: #{feature_aggregation.1} parent=55 // pred_check
          %p11096 = pneg %p213
        $region58: #{feature_aggregation.1} parent=55 // pred_check_branch
          %11098 = sbr.rel (%p11096) target = $region60
        $region59: #{feature_aggregation.1} parent=55 // pred_region
          %s11099 = sand.u32 %s198, 1
          %s11100 = scalar_lea.sflag [#allocation3], %s11099
          %s11101 = sand.u32 %s198, 1
          %s11102 = smul.addr %s11101, 256
          %s11103 = scalar_lea.vmem [#allocation2], %s11102
          %11105 = dma.done %s11100, 4096
        $region60: #{feature_aggregation.1} parent=55 // pred_fallthru
          _
      $region56: #{feature_aggregation.1} parent=5 // pred_fallthru
        _
    $region6: #{feature_aggregation.1} parent=1 // loop_footer
      %s20 = sadd.s32 1, %s16
    $region7: #{feature_aggregation.1} parent=1 // loop_footer_branch
      %15 = sbr.rel target = $region3
    $region8: #{feature_aggregation.1} parent=1 // loop_exit
      _
    %11106 = vsyncpa [#allocation3], 1
    %s11107 = scalar_lea.sflag [#allocation3], 1
    %11108 = vsyncpa %s11107, 1

</llo_original>
